<compile_context>
chip_gen: v6e
topology: v6e:2x2x1
jax: 0.10.0
libtpu: 0.0.40
codegen_flags: <defaults>
</compile_context>

<pallas_src>
import functools

import jax
import jax.numpy as jnp
from jax.experimental import pallas as pl
from jax.experimental.pallas import tpu as pltpu

NEG_SLOPE = 0.3     # nn.LeakyReLU(negative_slope=0.3)
BN_EPS = 1e-5       # nn.BatchNorm3d default eps


def _leaky_relu(x):
    return jnp.where(x > 0, x, NEG_SLOPE * x)


def _round_up(x, m):
    return ((x + m - 1) // m) * m


# ----------------------------------------------------------------------------
# Fused kernel: one batch sample (full spatial volume) per grid step.
# ----------------------------------------------------------------------------
def _fused_bottleneck_kernel(x_ref, w1_ref, w2_ref, w3_ref,
                             b1_ref, b2_ref, b3_ref, mask_ref,
                             o_ref, ypad_ref, stack_ref,
                             *, D, P, W, margin):
    """Refs (VMEM blocks):
      x_ref    : (1, C, Sp)  input activations, f32 (residual stays f32)
      w1_ref   : (C, C)      1x1x1 weights, BN1 scale folded, compute dtype
      w2/w3    : (C, 27*C)   3x3x3 weights, tap-major columns, BN scale folded
      b1/2/3   : (C, 1)      folded BN biases (f32)
      mask_ref : (27, Sp)    combined per-tap boundary masks (compute dtype)
      o_ref    : (1, C, Sp)  output (compute dtype)
      ypad_ref : (C, Sp + 2*margin)  persistent padded activation scratch
      stack_ref: (27*C, Sp)  masked shifted tap stack (matmul RHS)
    where Sp = D * P and P = roundup(H*W, 128) is the lane-aligned plane stride.
    """
    C = x_ref.shape[1]
    Sp = D * P
    cdt = ypad_ref.dtype

    x_f32 = x_ref[0].astype(jnp.float32)      # [C, Sp] residual path (f32)
    masks = mask_ref[...]                      # [27, Sp] compute dtype (0/1)

    # Zero the depth-halo strips (scratch memory is undefined; cheap, done each
    # grid step so it is safe under megacore sharding of the batch axis).
    ypad_ref[:, :margin] = jnp.zeros((C, margin), cdt)
    ypad_ref[:, margin + Sp:] = jnp.zeros((C, margin), cdt)

    kh_kw = [(kh - 1, kw - 1) for kh in range(3) for kw in range(3)]

    def conv3x3x3(w_ref):
        # Build the masked shifted tap stack [27*C, Sp] in VMEM, then ONE
        # K = 27*C matmul: all 27 taps accumulate on the MXU, no per-tap VPU
        # adds, and the masks (already on the input) keep the dot chain bare.
        yfull = ypad_ref[...]                                # [C, Sp+2*margin]
        for j, (oh, ow) in enumerate(kh_kw):
            # One lane-unaligned slice per (kh, kw); the three kd variants are
            # lane-aligned offsets of it (P is a multiple of 128).
            base = margin - P + oh * W + ow
            rot = yfull[:, base:base + Sp + 2 * P]
            for kd_i in range(3):
                t = kd_i * 9 + j
                sl = rot[:, kd_i * P:kd_i * P + Sp]          # lane-aligned
                stack_ref[t * C:(t + 1) * C, :] = sl * masks[t:t + 1, :]
        return jnp.dot(w_ref[...], stack_ref[...],
                       preferred_element_type=jnp.float32)

    # stage 1: conv1x1x1 + bn1 + leaky_relu
    y1 = _leaky_relu(
        jnp.dot(w1_ref[...], x_f32.astype(cdt),
                preferred_element_type=jnp.float32) + b1_ref[...])
    ypad_ref[:, margin:margin + Sp] = y1.astype(cdt)

    # stage 2: conv3x3x3 + bn2 + leaky_relu
    y2 = _leaky_relu(conv3x3x3(w2_ref) + b2_ref[...])
    ypad_ref[:, margin:margin + Sp] = y2.astype(cdt)

    # stage 3: conv3x3x3 + bn3 + residual (f32) + leaky_relu
    y3 = _leaky_relu(conv3x3x3(w3_ref) + b3_ref[...] + x_f32)
    o_ref[0] = y3.astype(o_ref.dtype)


# ----------------------------------------------------------------------------
# Wrapper: BN folding, weight/mask layout, padded flattening, pallas_call.
# ----------------------------------------------------------------------------
def _fold_bn(gamma, beta, mean, var):
    scale = gamma / jnp.sqrt(var + BN_EPS)
    bias = beta - mean * scale
    return scale, bias


def resnet_bottleneck_forward(x_ncdhw, params, *, compute_dtype=jnp.bfloat16):
    """Fused ResNetBottleneck forward (NCDHW in / NCDHW out, like PyTorch)."""
    N, C, D, H, W = x_ncdhw.shape
    P = _round_up(H * W, 128)             # lane-aligned plane stride
    Sp = D * P
    margin = _round_up(P + W + 1, 128)    # depth halo >= max |tap shift|

    # Fold BN scale into conv weights; the kernel only adds a per-channel bias.
    s1, b1 = _fold_bn(*params["bn1"])
    s2, b2 = _fold_bn(*params["bn2"])
    s3, b3 = _fold_bn(*params["bn3"])

    w1 = (params["w1"][:, :, 0, 0, 0] * s1[:, None]).astype(compute_dtype)

    def fold3(w, s):
        # [Cout, Cin, kd, kh, kw] -> [Cout, kd, kh, kw, Cin] -> [Cout, 27*Cin]
        wf = jnp.transpose(w, (0, 2, 3, 4, 1)).reshape(C, 27 * C)
        return (wf * s[:, None]).astype(compute_dtype)

    w2 = fold3(params["w2"], s2)
    w3 = fold3(params["w3"], s3)
    b1 = b1.reshape(C, 1).astype(jnp.float32)
    b2 = b2.reshape(C, 1).astype(jnp.float32)
    b3 = b3.reshape(C, 1).astype(jnp.float32)

    # Combined per-tap boundary masks [27, Sp], 0/1 (exact in bf16), ordered
    # tap-major (kd, kh, kw) to match the weight columns and the kernel stack.
    d = jnp.arange(D)[:, None, None]
    h = jnp.arange(H)[None, :, None]
    w = jnp.arange(W)[None, None, :]
    mask_rows = []
    for od in (-1, 0, 1):
        for oh in (-1, 0, 1):
            for ow in (-1, 0, 1):
                valid = ((d + od >= 0) & (d + od < D) &
                         (h + oh >= 0) & (h + oh < H) &
                         (w + ow >= 0) & (w + ow < W))
                m = jnp.broadcast_to(valid, (D, H, W)).astype(compute_dtype)
                m = jnp.pad(m.reshape(D, H * W), ((0, 0), (0, P - H * W)))
                mask_rows.append(m.reshape(Sp))
    mask = jnp.stack(mask_rows)                             # [27, Sp]

    # NCDHW -> [N, C, D*P]: each H*W plane padded (with zeros) to stride P.
    x_flat = jnp.pad(x_ncdhw.reshape(N, C, D, H * W),
                     ((0, 0), (0, 0), (0, 0), (0, P - H * W))
                     ).reshape(N, C, Sp).astype(jnp.float32)

    kernel = functools.partial(_fused_bottleneck_kernel,
                               D=D, P=P, W=W, margin=margin)

    wbytes = jnp.dtype(compute_dtype).itemsize
    cost = pl.CostEstimate(
        flops=2 * N * C * C * Sp * (1 + 27 + 27),
        transcendentals=0,
        bytes_accessed=(N * C * Sp * 4                      # x (f32)
                        + N * C * Sp * wbytes               # out
                        + (C * C + 2 * 27 * C * C) * wbytes # weights
                        + 27 * Sp * wbytes                  # masks
                        + 3 * C * 4))                       # biases

    out = pl.pallas_call(
        kernel,
        out_shape=jax.ShapeDtypeStruct((N, C, Sp), compute_dtype),
        grid_spec=pltpu.PrefetchScalarGridSpec(
            num_scalar_prefetch=0,
            grid=(N,),
            in_specs=[
                pl.BlockSpec((1, C, Sp), lambda n: (n, 0, 0)),     # x (f32)
                pl.BlockSpec((C, C), lambda n: (0, 0)),            # w1
                pl.BlockSpec((C, 27 * C), lambda n: (0, 0)),       # w2
                pl.BlockSpec((C, 27 * C), lambda n: (0, 0)),       # w3
                pl.BlockSpec((C, 1), lambda n: (0, 0)),            # b1
                pl.BlockSpec((C, 1), lambda n: (0, 0)),            # b2
                pl.BlockSpec((C, 1), lambda n: (0, 0)),            # b3
                pl.BlockSpec((27, Sp), lambda n: (0, 0)),          # masks
            ],
            out_specs=pl.BlockSpec((1, C, Sp), lambda n: (n, 0, 0)),
            scratch_shapes=[
                pltpu.VMEM((C, Sp + 2 * margin), compute_dtype),   # padded act
                pltpu.VMEM((27 * C, Sp), compute_dtype),           # tap stack
            ],
        ),
        compiler_params=pltpu.CompilerParams(
            dimension_semantics=("parallel",),
            vmem_limit_bytes=64 * 1024 * 1024,
        ),
        cost_estimate=cost,
    )(x_flat, w1, w2, w3, b1, b2, b3, mask)

    out = out.reshape(N, C, D, P)[..., :H * W].reshape(N, C, D, H, W)
    return out.astype(x_ncdhw.dtype)


# ----------------------------------------------------------------------------
# Pure-JAX reference (lax conv, f32 HIGHEST) for correctness check.
# ----------------------------------------------------------------------------
def _conv3d_ref(x, w, padding):
    return jax.lax.conv_general_dilated(
        x, w, window_strides=(1, 1, 1),
        padding=[(padding, padding)] * 3,
        dimension_numbers=("NCDHW", "OIDHW", "NCDHW"),
        precision=jax.lax.Precision.HIGHEST)


def _bn_ref(x, gamma, beta, mean, var):
    sh = (1, -1, 1, 1, 1)
    return (x - mean.reshape(sh)) / jnp.sqrt(var.reshape(sh) + BN_EPS) \
        * gamma.reshape(sh) + beta.reshape(sh)


def reference_forward(x, p):
    out = _leaky_relu(_bn_ref(_conv3d_ref(x, p["w1"], 0), *p["bn1"]))
    out = _leaky_relu(_bn_ref(_conv3d_ref(out, p["w2"], 1), *p["bn2"]))
    out = _bn_ref(_conv3d_ref(out, p["w3"], 1), *p["bn3"])
    return _leaky_relu(out + x)


# ----------------------------------------------------------------------------
if __name__ == "__main__":
    key = jax.random.PRNGKey(0)
    ks = jax.random.split(key, 8)

    # Small shapes: batch=2, channels=8, volume 8x8x8.
    N, C, D, H, W = 2, 8, 8, 8, 8
    x = jax.random.normal(ks[0], (N, C, D, H, W), jnp.float32)

    def bn_params(k):
        k1, k2, k3, k4 = jax.random.split(k, 4)
        gamma = 1.0 + 0.1 * jax.random.normal(k1, (C,), jnp.float32)
        beta = 0.1 * jax.random.normal(k2, (C,), jnp.float32)
        mean = 0.1 * jax.random.normal(k3, (C,), jnp.float32)
        var = 1.0 + 0.1 * jax.random.uniform(k4, (C,), jnp.float32)
        return (gamma, beta, mean, var)

    params = {
        "w1": 0.2 * jax.random.normal(ks[1], (C, C, 1, 1, 1), jnp.float32),
        "w2": 0.1 * jax.random.normal(ks[2], (C, C, 3, 3, 3), jnp.float32),
        "w3": 0.1 * jax.random.normal(ks[3], (C, C, 3, 3, 3), jnp.float32),
        "bn1": bn_params(ks[4]),
        "bn2": bn_params(ks[5]),
        "bn3": bn_params(ks[6]),
    }

    ref = jax.block_until_ready(reference_forward(x, params))

    # f32 compute path: tight check of the fused-kernel semantics.
    out_f32 = jax.block_until_ready(
        resnet_bottleneck_forward(x, params, compute_dtype=jnp.float32))
    assert out_f32.shape == (N, C, D, H, W)
    assert jnp.allclose(out_f32, ref, rtol=2e-3, atol=2e-3), \
        f"f32 max err {jnp.max(jnp.abs(out_f32 - ref))}"

    # bf16 matmul-input + bf16-output path (default).
    out_bf16 = jax.block_until_ready(resnet_bottleneck_forward(x, params))
    assert out_bf16.shape == (N, C, D, H, W)
    assert jnp.allclose(out_bf16, ref, rtol=1e-1, atol=1e-1), \
        f"bf16 max err {jnp.max(jnp.abs(out_bf16 - ref))}"

    print("KERNEL_OK")
</pallas_src>

<mosaic_0001>
module attributes {stable_mosaic.version = 11 : i64} {
  func.func @_fused_bottleneck_kernel(%arg0: i32, %arg1: memref<1x8x1024xf32, #tpu.memory_space<vmem>>, %arg2: memref<8x8xf32, #tpu.memory_space<vmem>>, %arg3: memref<8x216xf32, #tpu.memory_space<vmem>>, %arg4: memref<8x216xf32, #tpu.memory_space<vmem>>, %arg5: memref<8x1xf32, #tpu.memory_space<vmem>>, %arg6: memref<8x1xf32, #tpu.memory_space<vmem>>, %arg7: memref<8x1xf32, #tpu.memory_space<vmem>>, %arg8: memref<27x1024xf32, #tpu.memory_space<vmem>>, %arg9: memref<1x8x1024xf32, #tpu.memory_space<vmem>>, %arg10: memref<8x1536xf32, #tpu.memory_space<vmem>>, %arg11: memref<216x1024xf32, #tpu.memory_space<vmem>>) attributes {dimension_semantics = [#tpu.dimension_semantics<parallel>], iteration_bounds = array<i64: 2>, scalar_prefetch = 0 : i64, scratch_operands = 2 : i64, tpu.core_type = #tpu.core_type<tc>, window_params = [{transform_indices = @transform_0, window_bounds = array<i64: 1, 8, 1024>}, {pipeline_mode = #tpu.pipeline_mode<synchronous>, transform_indices = @transform_1, window_bounds = array<i64: 8, 8>}, {pipeline_mode = #tpu.pipeline_mode<synchronous>, transform_indices = @transform_2, window_bounds = array<i64: 8, 216>}, {pipeline_mode = #tpu.pipeline_mode<synchronous>, transform_indices = @transform_3, window_bounds = array<i64: 8, 216>}, {pipeline_mode = #tpu.pipeline_mode<synchronous>, transform_indices = @transform_4, window_bounds = array<i64: 8, 1>}, {pipeline_mode = #tpu.pipeline_mode<synchronous>, transform_indices = @transform_5, window_bounds = array<i64: 8, 1>}, {pipeline_mode = #tpu.pipeline_mode<synchronous>, transform_indices = @transform_6, window_bounds = array<i64: 8, 1>}, {pipeline_mode = #tpu.pipeline_mode<synchronous>, transform_indices = @transform_7, window_bounds = array<i64: 27, 1024>}, {transform_indices = @transform_8, window_bounds = array<i64: 1, 8, 1024>}]} {
    %c0 = arith.constant 0 : index
    %c0_0 = arith.constant 0 : index
    %c0_1 = arith.constant 0 : index
    %0 = vector.load %arg1[%c0, %c0_0, %c0_1] : memref<1x8x1024xf32, #tpu.memory_space<vmem>>, vector<1x8x1024xf32>
    %1 = vector.shape_cast %0 : vector<1x8x1024xf32> to vector<8x1024xf32>
    %c0_2 = arith.constant 0 : index
    %c0_3 = arith.constant 0 : index
    %2 = vector.load %arg8[%c0_2, %c0_3] : memref<27x1024xf32, #tpu.memory_space<vmem>>, vector<27x1024xf32>
    %cst = arith.constant 0.000000e+00 : f32
    %3 = vector.broadcast %cst : f32 to vector<8x256xf32>
    %c0_4 = arith.constant 0 : index
    %c0_5 = arith.constant 0 : index
    %4 = vector.load %arg10[%c0_4, %c0_5] : memref<8x1536xf32, #tpu.memory_space<vmem>>, vector<8x256xf32>
    tpu.vector_store %arg10[%c0_4, %c0_5], %3 {strides = array<i32>} : memref<8x1536xf32, #tpu.memory_space<vmem>>, vector<8x256xf32>,
    %cst_6 = arith.constant 0.000000e+00 : f32
    %5 = vector.broadcast %cst_6 : f32 to vector<8x256xf32>
    %c0_7 = arith.constant 0 : index
    %c1280 = arith.constant 1280 : index
    %6 = vector.load %arg10[%c0_7, %c1280] : memref<8x1536xf32, #tpu.memory_space<vmem>>, vector<8x256xf32>
    tpu.vector_store %arg10[%c0_7, %c1280], %5 {strides = array<i32>} : memref<8x1536xf32, #tpu.memory_space<vmem>>, vector<8x256xf32>,
    %c0_8 = arith.constant 0 : index
    %c0_9 = arith.constant 0 : index
    %7 = vector.load %arg2[%c0_8, %c0_9] : memref<8x8xf32, #tpu.memory_space<vmem>>, vector<8x8xf32>
    %cst_10 = arith.constant dense<0.000000e+00> : vector<8x1024xf32>
    %8 = tpu.matmul %7, %1, %cst_10 {dimension_numbers = #tpu.dot_dimension_numbers<[1], [0], [0], [1], [0, 0, 1, 1], [], []>} : vector<8x8xf32>, vector<8x1024xf32>, vector<8x1024xf32> -> vector<8x1024xf32>
    %c0_11 = arith.constant 0 : index
    %c0_12 = arith.constant 0 : index
    %9 = vector.load %arg5[%c0_11, %c0_12] : memref<8x1xf32, #tpu.memory_space<vmem>>, vector<8x1xf32>
    %10 = vector.broadcast %9 : vector<8x1xf32> to vector<8x1024xf32>
    %11 = arith.addf %8, %10 : vector<8x1024xf32>
    %cst_13 = arith.constant 0.000000e+00 : f32
    %12 = vector.broadcast %cst_13 : f32 to vector<8x1024xf32>
    %13 = arith.cmpf ogt, %11, %12 : vector<8x1024xf32>
    %cst_14 = arith.constant 3.000000e-01 : f32
    %14 = vector.broadcast %cst_14 : f32 to vector<8x1024xf32>
    %15 = arith.mulf %14, %11 : vector<8x1024xf32>
    %16 = arith.select %13, %11, %15 : vector<8x1024xi1>, vector<8x1024xf32>
    %c0_15 = arith.constant 0 : index
    %c256 = arith.constant 256 : index
    %17 = vector.load %arg10[%c0_15, %c256] : memref<8x1536xf32, #tpu.memory_space<vmem>>, vector<8x1024xf32>
    tpu.vector_store %arg10[%c0_15, %c256], %16 {strides = array<i32>} : memref<8x1536xf32, #tpu.memory_space<vmem>>, vector<8x1024xf32>,
    %c0_16 = arith.constant 0 : index
    %c0_17 = arith.constant 0 : index
    %18 = vector.load %arg10[%c0_16, %c0_17] : memref<8x1536xf32, #tpu.memory_space<vmem>>, vector<8x1536xf32>
    %19 = vector.extract_strided_slice %18 {offsets = [0, 119], sizes = [8, 1280], strides = [1, 1]} : vector<8x1536xf32> to vector<8x1280xf32>
    %20 = vector.extract_strided_slice %19 {offsets = [0, 0], sizes = [8, 1024], strides = [1, 1]} : vector<8x1280xf32> to vector<8x1024xf32>
    %21 = vector.extract_strided_slice %2 {offsets = [0, 0], sizes = [1, 1024], strides = [1, 1]} : vector<27x1024xf32> to vector<1x1024xf32>
    %22 = vector.broadcast %21 : vector<1x1024xf32> to vector<8x1024xf32>
    %23 = arith.mulf %20, %22 : vector<8x1024xf32>
    %c0_18 = arith.constant 0 : index
    %c0_19 = arith.constant 0 : index
    %24 = vector.load %arg11[%c0_18, %c0_19] : memref<216x1024xf32, #tpu.memory_space<vmem>>, vector<8x1024xf32>
    tpu.vector_store %arg11[%c0_18, %c0_19], %23 {strides = array<i32>} : memref<216x1024xf32, #tpu.memory_space<vmem>>, vector<8x1024xf32>,
    %25 = vector.extract_strided_slice %19 {offsets = [0, 128], sizes = [8, 1024], strides = [1, 1]} : vector<8x1280xf32> to vector<8x1024xf32>
    %26 = vector.extract_strided_slice %2 {offsets = [9, 0], sizes = [1, 1024], strides = [1, 1]} : vector<27x1024xf32> to vector<1x1024xf32>
    %27 = vector.broadcast %26 : vector<1x1024xf32> to vector<8x1024xf32>
    %28 = arith.mulf %25, %27 : vector<8x1024xf32>
    %c72 = arith.constant 72 : index
    %c0_20 = arith.constant 0 : index
    %29 = vector.load %arg11[%c72, %c0_20] : memref<216x1024xf32, #tpu.memory_space<vmem>>, vector<8x1024xf32>
    tpu.vector_store %arg11[%c72, %c0_20], %28 {strides = array<i32>} : memref<216x1024xf32, #tpu.memory_space<vmem>>, vector<8x1024xf32>,
    %30 = vector.extract_strided_slice %19 {offsets = [0, 256], sizes = [8, 1024], strides = [1, 1]} : vector<8x1280xf32> to vector<8x1024xf32>
    %31 = vector.extract_strided_slice %2 {offsets = [18, 0], sizes = [1, 1024], strides = [1, 1]} : vector<27x1024xf32> to vector<1x1024xf32>
    %32 = vector.broadcast %31 : vector<1x1024xf32> to vector<8x1024xf32>
    %33 = arith.mulf %30, %32 : vector<8x1024xf32>
    %c144 = arith.constant 144 : index
    %c0_21 = arith.constant 0 : index
    %34 = vector.load %arg11[%c144, %c0_21] : memref<216x1024xf32, #tpu.memory_space<vmem>>, vector<8x1024xf32>
    tpu.vector_store %arg11[%c144, %c0_21], %33 {strides = array<i32>} : memref<216x1024xf32, #tpu.memory_space<vmem>>, vector<8x1024xf32>,
    %35 = vector.extract_strided_slice %18 {offsets = [0, 120], sizes = [8, 1280], strides = [1, 1]} : vector<8x1536xf32> to vector<8x1280xf32>
    %36 = vector.extract_strided_slice %35 {offsets = [0, 0], sizes = [8, 1024], strides = [1, 1]} : vector<8x1280xf32> to vector<8x1024xf32>
    %37 = vector.extract_strided_slice %2 {offsets = [1, 0], sizes = [1, 1024], strides = [1, 1]} : vector<27x1024xf32> to vector<1x1024xf32>
    %38 = vector.broadcast %37 : vector<1x1024xf32> to vector<8x1024xf32>
    %39 = arith.mulf %36, %38 : vector<8x1024xf32>
    %c8 = arith.constant 8 : index
    %c0_22 = arith.constant 0 : index
    %40 = vector.load %arg11[%c8, %c0_22] : memref<216x1024xf32, #tpu.memory_space<vmem>>, vector<8x1024xf32>
    tpu.vector_store %arg11[%c8, %c0_22], %39 {strides = array<i32>} : memref<216x1024xf32, #tpu.memory_space<vmem>>, vector<8x1024xf32>,
    %41 = vector.extract_strided_slice %35 {offsets = [0, 128], sizes = [8, 1024], strides = [1, 1]} : vector<8x1280xf32> to vector<8x1024xf32>
    %42 = vector.extract_strided_slice %2 {offsets = [10, 0], sizes = [1, 1024], strides = [1, 1]} : vector<27x1024xf32> to vector<1x1024xf32>
    %43 = vector.broadcast %42 : vector<1x1024xf32> to vector<8x1024xf32>
    %44 = arith.mulf %41, %43 : vector<8x1024xf32>
    %c80 = arith.constant 80 : index
    %c0_23 = arith.constant 0 : index
    %45 = vector.load %arg11[%c80, %c0_23] : memref<216x1024xf32, #tpu.memory_space<vmem>>, vector<8x1024xf32>
    tpu.vector_store %arg11[%c80, %c0_23], %44 {strides = array<i32>} : memref<216x1024xf32, #tpu.memory_space<vmem>>, vector<8x1024xf32>,
    %46 = vector.extract_strided_slice %35 {offsets = [0, 256], sizes = [8, 1024], strides = [1, 1]} : vector<8x1280xf32> to vector<8x1024xf32>
    %47 = vector.extract_strided_slice %2 {offsets = [19, 0], sizes = [1, 1024], strides = [1, 1]} : vector<27x1024xf32> to vector<1x1024xf32>
    %48 = vector.broadcast %47 : vector<1x1024xf32> to vector<8x1024xf32>
    %49 = arith.mulf %46, %48 : vector<8x1024xf32>
    %c152 = arith.constant 152 : index
    %c0_24 = arith.constant 0 : index
    %50 = vector.load %arg11[%c152, %c0_24] : memref<216x1024xf32, #tpu.memory_space<vmem>>, vector<8x1024xf32>
    tpu.vector_store %arg11[%c152, %c0_24], %49 {strides = array<i32>} : memref<216x1024xf32, #tpu.memory_space<vmem>>, vector<8x1024xf32>,
    %51 = vector.extract_strided_slice %18 {offsets = [0, 121], sizes = [8, 1280], strides = [1, 1]} : vector<8x1536xf32> to vector<8x1280xf32>
    %52 = vector.extract_strided_slice %51 {offsets = [0, 0], sizes = [8, 1024], strides = [1, 1]} : vector<8x1280xf32> to vector<8x1024xf32>
    %53 = vector.extract_strided_slice %2 {offsets = [2, 0], sizes = [1, 1024], strides = [1, 1]} : vector<27x1024xf32> to vector<1x1024xf32>
    %54 = vector.broadcast %53 : vector<1x1024xf32> to vector<8x1024xf32>
    %55 = arith.mulf %52, %54 : vector<8x1024xf32>
    %c16 = arith.constant 16 : index
    %c0_25 = arith.constant 0 : index
    %56 = vector.load %arg11[%c16, %c0_25] : memref<216x1024xf32, #tpu.memory_space<vmem>>, vector<8x1024xf32>
    tpu.vector_store %arg11[%c16, %c0_25], %55 {strides = array<i32>} : memref<216x1024xf32, #tpu.memory_space<vmem>>, vector<8x1024xf32>,
    %57 = vector.extract_strided_slice %51 {offsets = [0, 128], sizes = [8, 1024], strides = [1, 1]} : vector<8x1280xf32> to vector<8x1024xf32>
    %58 = vector.extract_strided_slice %2 {offsets = [11, 0], sizes = [1, 1024], strides = [1, 1]} : vector<27x1024xf32> to vector<1x1024xf32>
    %59 = vector.broadcast %58 : vector<1x1024xf32> to vector<8x1024xf32>
    %60 = arith.mulf %57, %59 : vector<8x1024xf32>
    %c88 = arith.constant 88 : index
    %c0_26 = arith.constant 0 : index
    %61 = vector.load %arg11[%c88, %c0_26] : memref<216x1024xf32, #tpu.memory_space<vmem>>, vector<8x1024xf32>
    tpu.vector_store %arg11[%c88, %c0_26], %60 {strides = array<i32>} : memref<216x1024xf32, #tpu.memory_space<vmem>>, vector<8x1024xf32>,
    %62 = vector.extract_strided_slice %51 {offsets = [0, 256], sizes = [8, 1024], strides = [1, 1]} : vector<8x1280xf32> to vector<8x1024xf32>
    %63 = vector.extract_strided_slice %2 {offsets = [20, 0], sizes = [1, 1024], strides = [1, 1]} : vector<27x1024xf32> to vector<1x1024xf32>
    %64 = vector.broadcast %63 : vector<1x1024xf32> to vector<8x1024xf32>
    %65 = arith.mulf %62, %64 : vector<8x1024xf32>
    %c160 = arith.constant 160 : index
    %c0_27 = arith.constant 0 : index
    %66 = vector.load %arg11[%c160, %c0_27] : memref<216x1024xf32, #tpu.memory_space<vmem>>, vector<8x1024xf32>
    tpu.vector_store %arg11[%c160, %c0_27], %65 {strides = array<i32>} : memref<216x1024xf32, #tpu.memory_space<vmem>>, vector<8x1024xf32>,
    %67 = vector.extract_strided_slice %18 {offsets = [0, 127], sizes = [8, 1280], strides = [1, 1]} : vector<8x1536xf32> to vector<8x1280xf32>
    %68 = vector.extract_strided_slice %67 {offsets = [0, 0], sizes = [8, 1024], strides = [1, 1]} : vector<8x1280xf32> to vector<8x1024xf32>
    %69 = vector.extract_strided_slice %2 {offsets = [3, 0], sizes = [1, 1024], strides = [1, 1]} : vector<27x1024xf32> to vector<1x1024xf32>
    %70 = vector.broadcast %69 : vector<1x1024xf32> to vector<8x1024xf32>
    %71 = arith.mulf %68, %70 : vector<8x1024xf32>
    %c24 = arith.constant 24 : index
    %c0_28 = arith.constant 0 : index
    %72 = vector.load %arg11[%c24, %c0_28] : memref<216x1024xf32, #tpu.memory_space<vmem>>, vector<8x1024xf32>
    tpu.vector_store %arg11[%c24, %c0_28], %71 {strides = array<i32>} : memref<216x1024xf32, #tpu.memory_space<vmem>>, vector<8x1024xf32>,
    %73 = vector.extract_strided_slice %67 {offsets = [0, 128], sizes = [8, 1024], strides = [1, 1]} : vector<8x1280xf32> to vector<8x1024xf32>
    %74 = vector.extract_strided_slice %2 {offsets = [12, 0], sizes = [1, 1024], strides = [1, 1]} : vector<27x1024xf32> to vector<1x1024xf32>
    %75 = vector.broadcast %74 : vector<1x1024xf32> to vector<8x1024xf32>
    %76 = arith.mulf %73, %75 : vector<8x1024xf32>
    %c96 = arith.constant 96 : index
    %c0_29 = arith.constant 0 : index
    %77 = vector.load %arg11[%c96, %c0_29] : memref<216x1024xf32, #tpu.memory_space<vmem>>, vector<8x1024xf32>
    tpu.vector_store %arg11[%c96, %c0_29], %76 {strides = array<i32>} : memref<216x1024xf32, #tpu.memory_space<vmem>>, vector<8x1024xf32>,
    %78 = vector.extract_strided_slice %67 {offsets = [0, 256], sizes = [8, 1024], strides = [1, 1]} : vector<8x1280xf32> to vector<8x1024xf32>
    %79 = vector.extract_strided_slice %2 {offsets = [21, 0], sizes = [1, 1024], strides = [1, 1]} : vector<27x1024xf32> to vector<1x1024xf32>
    %80 = vector.broadcast %79 : vector<1x1024xf32> to vector<8x1024xf32>
    %81 = arith.mulf %78, %80 : vector<8x1024xf32>
    %c168 = arith.constant 168 : index
    %c0_30 = arith.constant 0 : index
    %82 = vector.load %arg11[%c168, %c0_30] : memref<216x1024xf32, #tpu.memory_space<vmem>>, vector<8x1024xf32>
    tpu.vector_store %arg11[%c168, %c0_30], %81 {strides = array<i32>} : memref<216x1024xf32, #tpu.memory_space<vmem>>, vector<8x1024xf32>,
    %83 = vector.extract_strided_slice %18 {offsets = [0, 128], sizes = [8, 1280], strides = [1, 1]} : vector<8x1536xf32> to vector<8x1280xf32>
    %84 = vector.extract_strided_slice %83 {offsets = [0, 0], sizes = [8, 1024], strides = [1, 1]} : vector<8x1280xf32> to vector<8x1024xf32>
    %85 = vector.extract_strided_slice %2 {offsets = [4, 0], sizes = [1, 1024], strides = [1, 1]} : vector<27x1024xf32> to vector<1x1024xf32>
    %86 = vector.broadcast %85 : vector<1x1024xf32> to vector<8x1024xf32>
    %87 = arith.mulf %84, %86 : vector<8x1024xf32>
    %c32 = arith.constant 32 : index
    %c0_31 = arith.constant 0 : index
    %88 = vector.load %arg11[%c32, %c0_31] : memref<216x1024xf32, #tpu.memory_space<vmem>>, vector<8x1024xf32>
    tpu.vector_store %arg11[%c32, %c0_31], %87 {strides = array<i32>} : memref<216x1024xf32, #tpu.memory_space<vmem>>, vector<8x1024xf32>,
    %89 = vector.extract_strided_slice %83 {offsets = [0, 128], sizes = [8, 1024], strides = [1, 1]} : vector<8x1280xf32> to vector<8x1024xf32>
    %90 = vector.extract_strided_slice %2 {offsets = [13, 0], sizes = [1, 1024], strides = [1, 1]} : vector<27x1024xf32> to vector<1x1024xf32>
    %91 = vector.broadcast %90 : vector<1x1024xf32> to vector<8x1024xf32>
    %92 = arith.mulf %89, %91 : vector<8x1024xf32>
    %c104 = arith.constant 104 : index
    %c0_32 = arith.constant 0 : index
    %93 = vector.load %arg11[%c104, %c0_32] : memref<216x1024xf32, #tpu.memory_space<vmem>>, vector<8x1024xf32>
    tpu.vector_store %arg11[%c104, %c0_32], %92 {strides = array<i32>} : memref<216x1024xf32, #tpu.memory_space<vmem>>, vector<8x1024xf32>,
    %94 = vector.extract_strided_slice %83 {offsets = [0, 256], sizes = [8, 1024], strides = [1, 1]} : vector<8x1280xf32> to vector<8x1024xf32>
    %95 = vector.extract_strided_slice %2 {offsets = [22, 0], sizes = [1, 1024], strides = [1, 1]} : vector<27x1024xf32> to vector<1x1024xf32>
    %96 = vector.broadcast %95 : vector<1x1024xf32> to vector<8x1024xf32>
    %97 = arith.mulf %94, %96 : vector<8x1024xf32>
    %c176 = arith.constant 176 : index
    %c0_33 = arith.constant 0 : index
    %98 = vector.load %arg11[%c176, %c0_33] : memref<216x1024xf32, #tpu.memory_space<vmem>>, vector<8x1024xf32>
    tpu.vector_store %arg11[%c176, %c0_33], %97 {strides = array<i32>} : memref<216x1024xf32, #tpu.memory_space<vmem>>, vector<8x1024xf32>,
    %99 = vector.extract_strided_slice %18 {offsets = [0, 129], sizes = [8, 1280], strides = [1, 1]} : vector<8x1536xf32> to vector<8x1280xf32>
    %100 = vector.extract_strided_slice %99 {offsets = [0, 0], sizes = [8, 1024], strides = [1, 1]} : vector<8x1280xf32> to vector<8x1024xf32>
    %101 = vector.extract_strided_slice %2 {offsets = [5, 0], sizes = [1, 1024], strides = [1, 1]} : vector<27x1024xf32> to vector<1x1024xf32>
    %102 = vector.broadcast %101 : vector<1x1024xf32> to vector<8x1024xf32>
    %103 = arith.mulf %100, %102 : vector<8x1024xf32>
    %c40 = arith.constant 40 : index
    %c0_34 = arith.constant 0 : index
    %104 = vector.load %arg11[%c40, %c0_34] : memref<216x1024xf32, #tpu.memory_space<vmem>>, vector<8x1024xf32>
    tpu.vector_store %arg11[%c40, %c0_34], %103 {strides = array<i32>} : memref<216x1024xf32, #tpu.memory_space<vmem>>, vector<8x1024xf32>,
    %105 = vector.extract_strided_slice %99 {offsets = [0, 128], sizes = [8, 1024], strides = [1, 1]} : vector<8x1280xf32> to vector<8x1024xf32>
    %106 = vector.extract_strided_slice %2 {offsets = [14, 0], sizes = [1, 1024], strides = [1, 1]} : vector<27x1024xf32> to vector<1x1024xf32>
    %107 = vector.broadcast %106 : vector<1x1024xf32> to vector<8x1024xf32>
    %108 = arith.mulf %105, %107 : vector<8x1024xf32>
    %c112 = arith.constant 112 : index
    %c0_35 = arith.constant 0 : index
    %109 = vector.load %arg11[%c112, %c0_35] : memref<216x1024xf32, #tpu.memory_space<vmem>>, vector<8x1024xf32>
    tpu.vector_store %arg11[%c112, %c0_35], %108 {strides = array<i32>} : memref<216x1024xf32, #tpu.memory_space<vmem>>, vector<8x1024xf32>,
    %110 = vector.extract_strided_slice %99 {offsets = [0, 256], sizes = [8, 1024], strides = [1, 1]} : vector<8x1280xf32> to vector<8x1024xf32>
    %111 = vector.extract_strided_slice %2 {offsets = [23, 0], sizes = [1, 1024], strides = [1, 1]} : vector<27x1024xf32> to vector<1x1024xf32>
    %112 = vector.broadcast %111 : vector<1x1024xf32> to vector<8x1024xf32>
    %113 = arith.mulf %110, %112 : vector<8x1024xf32>
    %c184 = arith.constant 184 : index
    %c0_36 = arith.constant 0 : index
    %114 = vector.load %arg11[%c184, %c0_36] : memref<216x1024xf32, #tpu.memory_space<vmem>>, vector<8x1024xf32>
    tpu.vector_store %arg11[%c184, %c0_36], %113 {strides = array<i32>} : memref<216x1024xf32, #tpu.memory_space<vmem>>, vector<8x1024xf32>,
    %115 = vector.extract_strided_slice %18 {offsets = [0, 135], sizes = [8, 1280], strides = [1, 1]} : vector<8x1536xf32> to vector<8x1280xf32>
    %116 = vector.extract_strided_slice %115 {offsets = [0, 0], sizes = [8, 1024], strides = [1, 1]} : vector<8x1280xf32> to vector<8x1024xf32>
    %117 = vector.extract_strided_slice %2 {offsets = [6, 0], sizes = [1, 1024], strides = [1, 1]} : vector<27x1024xf32> to vector<1x1024xf32>
    %118 = vector.broadcast %117 : vector<1x1024xf32> to vector<8x1024xf32>
    %119 = arith.mulf %116, %118 : vector<8x1024xf32>
    %c48 = arith.constant 48 : index
    %c0_37 = arith.constant 0 : index
    %120 = vector.load %arg11[%c48, %c0_37] : memref<216x1024xf32, #tpu.memory_space<vmem>>, vector<8x1024xf32>
    tpu.vector_store %arg11[%c48, %c0_37], %119 {strides = array<i32>} : memref<216x1024xf32, #tpu.memory_space<vmem>>, vector<8x1024xf32>,
    %121 = vector.extract_strided_slice %115 {offsets = [0, 128], sizes = [8, 1024], strides = [1, 1]} : vector<8x1280xf32> to vector<8x1024xf32>
    %122 = vector.extract_strided_slice %2 {offsets = [15, 0], sizes = [1, 1024], strides = [1, 1]} : vector<27x1024xf32> to vector<1x1024xf32>
    %123 = vector.broadcast %122 : vector<1x1024xf32> to vector<8x1024xf32>
    %124 = arith.mulf %121, %123 : vector<8x1024xf32>
    %c120 = arith.constant 120 : index
    %c0_38 = arith.constant 0 : index
    %125 = vector.load %arg11[%c120, %c0_38] : memref<216x1024xf32, #tpu.memory_space<vmem>>, vector<8x1024xf32>
    tpu.vector_store %arg11[%c120, %c0_38], %124 {strides = array<i32>} : memref<216x1024xf32, #tpu.memory_space<vmem>>, vector<8x1024xf32>,
    %126 = vector.extract_strided_slice %115 {offsets = [0, 256], sizes = [8, 1024], strides = [1, 1]} : vector<8x1280xf32> to vector<8x1024xf32>
    %127 = vector.extract_strided_slice %2 {offsets = [24, 0], sizes = [1, 1024], strides = [1, 1]} : vector<27x1024xf32> to vector<1x1024xf32>
    %128 = vector.broadcast %127 : vector<1x1024xf32> to vector<8x1024xf32>
    %129 = arith.mulf %126, %128 : vector<8x1024xf32>
    %c192 = arith.constant 192 : index
    %c0_39 = arith.constant 0 : index
    %130 = vector.load %arg11[%c192, %c0_39] : memref<216x1024xf32, #tpu.memory_space<vmem>>, vector<8x1024xf32>
    tpu.vector_store %arg11[%c192, %c0_39], %129 {strides = array<i32>} : memref<216x1024xf32, #tpu.memory_space<vmem>>, vector<8x1024xf32>,
    %131 = vector.extract_strided_slice %18 {offsets = [0, 136], sizes = [8, 1280], strides = [1, 1]} : vector<8x1536xf32> to vector<8x1280xf32>
    %132 = vector.extract_strided_slice %131 {offsets = [0, 0], sizes = [8, 1024], strides = [1, 1]} : vector<8x1280xf32> to vector<8x1024xf32>
    %133 = vector.extract_strided_slice %2 {offsets = [7, 0], sizes = [1, 1024], strides = [1, 1]} : vector<27x1024xf32> to vector<1x1024xf32>
    %134 = vector.broadcast %133 : vector<1x1024xf32> to vector<8x1024xf32>
    %135 = arith.mulf %132, %134 : vector<8x1024xf32>
    %c56 = arith.constant 56 : index
    %c0_40 = arith.constant 0 : index
    %136 = vector.load %arg11[%c56, %c0_40] : memref<216x1024xf32, #tpu.memory_space<vmem>>, vector<8x1024xf32>
    tpu.vector_store %arg11[%c56, %c0_40], %135 {strides = array<i32>} : memref<216x1024xf32, #tpu.memory_space<vmem>>, vector<8x1024xf32>,
    %137 = vector.extract_strided_slice %131 {offsets = [0, 128], sizes = [8, 1024], strides = [1, 1]} : vector<8x1280xf32> to vector<8x1024xf32>
    %138 = vector.extract_strided_slice %2 {offsets = [16, 0], sizes = [1, 1024], strides = [1, 1]} : vector<27x1024xf32> to vector<1x1024xf32>
    %139 = vector.broadcast %138 : vector<1x1024xf32> to vector<8x1024xf32>
    %140 = arith.mulf %137, %139 : vector<8x1024xf32>
    %c128 = arith.constant 128 : index
    %c0_41 = arith.constant 0 : index
    %141 = vector.load %arg11[%c128, %c0_41] : memref<216x1024xf32, #tpu.memory_space<vmem>>, vector<8x1024xf32>
    tpu.vector_store %arg11[%c128, %c0_41], %140 {strides = array<i32>} : memref<216x1024xf32, #tpu.memory_space<vmem>>, vector<8x1024xf32>,
    %142 = vector.extract_strided_slice %131 {offsets = [0, 256], sizes = [8, 1024], strides = [1, 1]} : vector<8x1280xf32> to vector<8x1024xf32>
    %143 = vector.extract_strided_slice %2 {offsets = [25, 0], sizes = [1, 1024], strides = [1, 1]} : vector<27x1024xf32> to vector<1x1024xf32>
    %144 = vector.broadcast %143 : vector<1x1024xf32> to vector<8x1024xf32>
    %145 = arith.mulf %142, %144 : vector<8x1024xf32>
    %c200 = arith.constant 200 : index
    %c0_42 = arith.constant 0 : index
    %146 = vector.load %arg11[%c200, %c0_42] : memref<216x1024xf32, #tpu.memory_space<vmem>>, vector<8x1024xf32>
    tpu.vector_store %arg11[%c200, %c0_42], %145 {strides = array<i32>} : memref<216x1024xf32, #tpu.memory_space<vmem>>, vector<8x1024xf32>,
    %147 = vector.extract_strided_slice %18 {offsets = [0, 137], sizes = [8, 1280], strides = [1, 1]} : vector<8x1536xf32> to vector<8x1280xf32>
    %148 = vector.extract_strided_slice %147 {offsets = [0, 0], sizes = [8, 1024], strides = [1, 1]} : vector<8x1280xf32> to vector<8x1024xf32>
    %149 = vector.extract_strided_slice %2 {offsets = [8, 0], sizes = [1, 1024], strides = [1, 1]} : vector<27x1024xf32> to vector<1x1024xf32>
    %150 = vector.broadcast %149 : vector<1x1024xf32> to vector<8x1024xf32>
    %151 = arith.mulf %148, %150 : vector<8x1024xf32>
    %c64 = arith.constant 64 : index
    %c0_43 = arith.constant 0 : index
    %152 = vector.load %arg11[%c64, %c0_43] : memref<216x1024xf32, #tpu.memory_space<vmem>>, vector<8x1024xf32>
    tpu.vector_store %arg11[%c64, %c0_43], %151 {strides = array<i32>} : memref<216x1024xf32, #tpu.memory_space<vmem>>, vector<8x1024xf32>,
    %153 = vector.extract_strided_slice %147 {offsets = [0, 128], sizes = [8, 1024], strides = [1, 1]} : vector<8x1280xf32> to vector<8x1024xf32>
    %154 = vector.extract_strided_slice %2 {offsets = [17, 0], sizes = [1, 1024], strides = [1, 1]} : vector<27x1024xf32> to vector<1x1024xf32>
    %155 = vector.broadcast %154 : vector<1x1024xf32> to vector<8x1024xf32>
    %156 = arith.mulf %153, %155 : vector<8x1024xf32>
    %c136 = arith.constant 136 : index
    %c0_44 = arith.constant 0 : index
    %157 = vector.load %arg11[%c136, %c0_44] : memref<216x1024xf32, #tpu.memory_space<vmem>>, vector<8x1024xf32>
    tpu.vector_store %arg11[%c136, %c0_44], %156 {strides = array<i32>} : memref<216x1024xf32, #tpu.memory_space<vmem>>, vector<8x1024xf32>,
    %158 = vector.extract_strided_slice %147 {offsets = [0, 256], sizes = [8, 1024], strides = [1, 1]} : vector<8x1280xf32> to vector<8x1024xf32>
    %159 = vector.extract_strided_slice %2 {offsets = [26, 0], sizes = [1, 1024], strides = [1, 1]} : vector<27x1024xf32> to vector<1x1024xf32>
    %160 = vector.broadcast %159 : vector<1x1024xf32> to vector<8x1024xf32>
    %161 = arith.mulf %158, %160 : vector<8x1024xf32>
    %c208 = arith.constant 208 : index
    %c0_45 = arith.constant 0 : index
    %162 = vector.load %arg11[%c208, %c0_45] : memref<216x1024xf32, #tpu.memory_space<vmem>>, vector<8x1024xf32>
    tpu.vector_store %arg11[%c208, %c0_45], %161 {strides = array<i32>} : memref<216x1024xf32, #tpu.memory_space<vmem>>, vector<8x1024xf32>,
    %c0_46 = arith.constant 0 : index
    %c0_47 = arith.constant 0 : index
    %163 = vector.load %arg3[%c0_46, %c0_47] : memref<8x216xf32, #tpu.memory_space<vmem>>, vector<8x216xf32>
    %c0_48 = arith.constant 0 : index
    %c0_49 = arith.constant 0 : index
    %164 = vector.load %arg11[%c0_48, %c0_49] : memref<216x1024xf32, #tpu.memory_space<vmem>>, vector<216x1024xf32>
    %cst_50 = arith.constant dense<0.000000e+00> : vector<8x1024xf32>
    %165 = tpu.matmul %163, %164, %cst_50 {dimension_numbers = #tpu.dot_dimension_numbers<[1], [0], [0], [1], [0, 0, 1, 1], [], []>} : vector<8x216xf32>, vector<216x1024xf32>, vector<8x1024xf32> -> vector<8x1024xf32>
    %c0_51 = arith.constant 0 : index
    %c0_52 = arith.constant 0 : index
    %166 = vector.load %arg6[%c0_51, %c0_52] : memref<8x1xf32, #tpu.memory_space<vmem>>, vector<8x1xf32>
    %167 = vector.broadcast %166 : vector<8x1xf32> to vector<8x1024xf32>
    %168 = arith.addf %165, %167 : vector<8x1024xf32>
    %cst_53 = arith.constant 0.000000e+00 : f32
    %169 = vector.broadcast %cst_53 : f32 to vector<8x1024xf32>
    %170 = arith.cmpf ogt, %168, %169 : vector<8x1024xf32>
    %cst_54 = arith.constant 3.000000e-01 : f32
    %171 = vector.broadcast %cst_54 : f32 to vector<8x1024xf32>
    %172 = arith.mulf %171, %168 : vector<8x1024xf32>
    %173 = arith.select %170, %168, %172 : vector<8x1024xi1>, vector<8x1024xf32>
    %c0_55 = arith.constant 0 : index
    %c256_56 = arith.constant 256 : index
    %174 = vector.load %arg10[%c0_55, %c256_56] : memref<8x1536xf32, #tpu.memory_space<vmem>>, vector<8x1024xf32>
    tpu.vector_store %arg10[%c0_55, %c256_56], %173 {strides = array<i32>} : memref<8x1536xf32, #tpu.memory_space<vmem>>, vector<8x1024xf32>,
    %c0_57 = arith.constant 0 : index
    %c0_58 = arith.constant 0 : index
    %175 = vector.load %arg10[%c0_57, %c0_58] : memref<8x1536xf32, #tpu.memory_space<vmem>>, vector<8x1536xf32>
    %176 = vector.extract_strided_slice %175 {offsets = [0, 119], sizes = [8, 1280], strides = [1, 1]} : vector<8x1536xf32> to vector<8x1280xf32>
    %177 = vector.extract_strided_slice %176 {offsets = [0, 0], sizes = [8, 1024], strides = [1, 1]} : vector<8x1280xf32> to vector<8x1024xf32>
    %178 = vector.extract_strided_slice %2 {offsets = [0, 0], sizes = [1, 1024], strides = [1, 1]} : vector<27x1024xf32> to vector<1x1024xf32>
    %179 = vector.broadcast %178 : vector<1x1024xf32> to vector<8x1024xf32>
    %180 = arith.mulf %177, %179 : vector<8x1024xf32>
    %c0_59 = arith.constant 0 : index
    %c0_60 = arith.constant 0 : index
    %181 = vector.load %arg11[%c0_59, %c0_60] : memref<216x1024xf32, #tpu.memory_space<vmem>>, vector<8x1024xf32>
    tpu.vector_store %arg11[%c0_59, %c0_60], %180 {strides = array<i32>} : memref<216x1024xf32, #tpu.memory_space<vmem>>, vector<8x1024xf32>,
    %182 = vector.extract_strided_slice %176 {offsets = [0, 128], sizes = [8, 1024], strides = [1, 1]} : vector<8x1280xf32> to vector<8x1024xf32>
    %183 = vector.extract_strided_slice %2 {offsets = [9, 0], sizes = [1, 1024], strides = [1, 1]} : vector<27x1024xf32> to vector<1x1024xf32>
    %184 = vector.broadcast %183 : vector<1x1024xf32> to vector<8x1024xf32>
    %185 = arith.mulf %182, %184 : vector<8x1024xf32>
    %c72_61 = arith.constant 72 : index
    %c0_62 = arith.constant 0 : index
    %186 = vector.load %arg11[%c72_61, %c0_62] : memref<216x1024xf32, #tpu.memory_space<vmem>>, vector<8x1024xf32>
    tpu.vector_store %arg11[%c72_61, %c0_62], %185 {strides = array<i32>} : memref<216x1024xf32, #tpu.memory_space<vmem>>, vector<8x1024xf32>,
    %187 = vector.extract_strided_slice %176 {offsets = [0, 256], sizes = [8, 1024], strides = [1, 1]} : vector<8x1280xf32> to vector<8x1024xf32>
    %188 = vector.extract_strided_slice %2 {offsets = [18, 0], sizes = [1, 1024], strides = [1, 1]} : vector<27x1024xf32> to vector<1x1024xf32>
    %189 = vector.broadcast %188 : vector<1x1024xf32> to vector<8x1024xf32>
    %190 = arith.mulf %187, %189 : vector<8x1024xf32>
    %c144_63 = arith.constant 144 : index
    %c0_64 = arith.constant 0 : index
    %191 = vector.load %arg11[%c144_63, %c0_64] : memref<216x1024xf32, #tpu.memory_space<vmem>>, vector<8x1024xf32>
    tpu.vector_store %arg11[%c144_63, %c0_64], %190 {strides = array<i32>} : memref<216x1024xf32, #tpu.memory_space<vmem>>, vector<8x1024xf32>,
    %192 = vector.extract_strided_slice %175 {offsets = [0, 120], sizes = [8, 1280], strides = [1, 1]} : vector<8x1536xf32> to vector<8x1280xf32>
    %193 = vector.extract_strided_slice %192 {offsets = [0, 0], sizes = [8, 1024], strides = [1, 1]} : vector<8x1280xf32> to vector<8x1024xf32>
    %194 = vector.extract_strided_slice %2 {offsets = [1, 0], sizes = [1, 1024], strides = [1, 1]} : vector<27x1024xf32> to vector<1x1024xf32>
    %195 = vector.broadcast %194 : vector<1x1024xf32> to vector<8x1024xf32>
    %196 = arith.mulf %193, %195 : vector<8x1024xf32>
    %c8_65 = arith.constant 8 : index
    %c0_66 = arith.constant 0 : index
    %197 = vector.load %arg11[%c8_65, %c0_66] : memref<216x1024xf32, #tpu.memory_space<vmem>>, vector<8x1024xf32>
    tpu.vector_store %arg11[%c8_65, %c0_66], %196 {strides = array<i32>} : memref<216x1024xf32, #tpu.memory_space<vmem>>, vector<8x1024xf32>,
    %198 = vector.extract_strided_slice %192 {offsets = [0, 128], sizes = [8, 1024], strides = [1, 1]} : vector<8x1280xf32> to vector<8x1024xf32>
    %199 = vector.extract_strided_slice %2 {offsets = [10, 0], sizes = [1, 1024], strides = [1, 1]} : vector<27x1024xf32> to vector<1x1024xf32>
    %200 = vector.broadcast %199 : vector<1x1024xf32> to vector<8x1024xf32>
    %201 = arith.mulf %198, %200 : vector<8x1024xf32>
    %c80_67 = arith.constant 80 : index
    %c0_68 = arith.constant 0 : index
    %202 = vector.load %arg11[%c80_67, %c0_68] : memref<216x1024xf32, #tpu.memory_space<vmem>>, vector<8x1024xf32>
    tpu.vector_store %arg11[%c80_67, %c0_68], %201 {strides = array<i32>} : memref<216x1024xf32, #tpu.memory_space<vmem>>, vector<8x1024xf32>,
    %203 = vector.extract_strided_slice %192 {offsets = [0, 256], sizes = [8, 1024], strides = [1, 1]} : vector<8x1280xf32> to vector<8x1024xf32>
    %204 = vector.extract_strided_slice %2 {offsets = [19, 0], sizes = [1, 1024], strides = [1, 1]} : vector<27x1024xf32> to vector<1x1024xf32>
    %205 = vector.broadcast %204 : vector<1x1024xf32> to vector<8x1024xf32>
    %206 = arith.mulf %203, %205 : vector<8x1024xf32>
    %c152_69 = arith.constant 152 : index
    %c0_70 = arith.constant 0 : index
    %207 = vector.load %arg11[%c152_69, %c0_70] : memref<216x1024xf32, #tpu.memory_space<vmem>>, vector<8x1024xf32>
    tpu.vector_store %arg11[%c152_69, %c0_70], %206 {strides = array<i32>} : memref<216x1024xf32, #tpu.memory_space<vmem>>, vector<8x1024xf32>,
    %208 = vector.extract_strided_slice %175 {offsets = [0, 121], sizes = [8, 1280], strides = [1, 1]} : vector<8x1536xf32> to vector<8x1280xf32>
    %209 = vector.extract_strided_slice %208 {offsets = [0, 0], sizes = [8, 1024], strides = [1, 1]} : vector<8x1280xf32> to vector<8x1024xf32>
    %210 = vector.extract_strided_slice %2 {offsets = [2, 0], sizes = [1, 1024], strides = [1, 1]} : vector<27x1024xf32> to vector<1x1024xf32>
    %211 = vector.broadcast %210 : vector<1x1024xf32> to vector<8x1024xf32>
    %212 = arith.mulf %209, %211 : vector<8x1024xf32>
    %c16_71 = arith.constant 16 : index
    %c0_72 = arith.constant 0 : index
    %213 = vector.load %arg11[%c16_71, %c0_72] : memref<216x1024xf32, #tpu.memory_space<vmem>>, vector<8x1024xf32>
    tpu.vector_store %arg11[%c16_71, %c0_72], %212 {strides = array<i32>} : memref<216x1024xf32, #tpu.memory_space<vmem>>, vector<8x1024xf32>,
    %214 = vector.extract_strided_slice %208 {offsets = [0, 128], sizes = [8, 1024], strides = [1, 1]} : vector<8x1280xf32> to vector<8x1024xf32>
    %215 = vector.extract_strided_slice %2 {offsets = [11, 0], sizes = [1, 1024], strides = [1, 1]} : vector<27x1024xf32> to vector<1x1024xf32>
    %216 = vector.broadcast %215 : vector<1x1024xf32> to vector<8x1024xf32>
    %217 = arith.mulf %214, %216 : vector<8x1024xf32>
    %c88_73 = arith.constant 88 : index
    %c0_74 = arith.constant 0 : index
    %218 = vector.load %arg11[%c88_73, %c0_74] : memref<216x1024xf32, #tpu.memory_space<vmem>>, vector<8x1024xf32>
    tpu.vector_store %arg11[%c88_73, %c0_74], %217 {strides = array<i32>} : memref<216x1024xf32, #tpu.memory_space<vmem>>, vector<8x1024xf32>,
    %219 = vector.extract_strided_slice %208 {offsets = [0, 256], sizes = [8, 1024], strides = [1, 1]} : vector<8x1280xf32> to vector<8x1024xf32>
    %220 = vector.extract_strided_slice %2 {offsets = [20, 0], sizes = [1, 1024], strides = [1, 1]} : vector<27x1024xf32> to vector<1x1024xf32>
    %221 = vector.broadcast %220 : vector<1x1024xf32> to vector<8x1024xf32>
    %222 = arith.mulf %219, %221 : vector<8x1024xf32>
    %c160_75 = arith.constant 160 : index
    %c0_76 = arith.constant 0 : index
    %223 = vector.load %arg11[%c160_75, %c0_76] : memref<216x1024xf32, #tpu.memory_space<vmem>>, vector<8x1024xf32>
    tpu.vector_store %arg11[%c160_75, %c0_76], %222 {strides = array<i32>} : memref<216x1024xf32, #tpu.memory_space<vmem>>, vector<8x1024xf32>,
    %224 = vector.extract_strided_slice %175 {offsets = [0, 127], sizes = [8, 1280], strides = [1, 1]} : vector<8x1536xf32> to vector<8x1280xf32>
    %225 = vector.extract_strided_slice %224 {offsets = [0, 0], sizes = [8, 1024], strides = [1, 1]} : vector<8x1280xf32> to vector<8x1024xf32>
    %226 = vector.extract_strided_slice %2 {offsets = [3, 0], sizes = [1, 1024], strides = [1, 1]} : vector<27x1024xf32> to vector<1x1024xf32>
    %227 = vector.broadcast %226 : vector<1x1024xf32> to vector<8x1024xf32>
    %228 = arith.mulf %225, %227 : vector<8x1024xf32>
    %c24_77 = arith.constant 24 : index
    %c0_78 = arith.constant 0 : index
    %229 = vector.load %arg11[%c24_77, %c0_78] : memref<216x1024xf32, #tpu.memory_space<vmem>>, vector<8x1024xf32>
    tpu.vector_store %arg11[%c24_77, %c0_78], %228 {strides = array<i32>} : memref<216x1024xf32, #tpu.memory_space<vmem>>, vector<8x1024xf32>,
    %230 = vector.extract_strided_slice %224 {offsets = [0, 128], sizes = [8, 1024], strides = [1, 1]} : vector<8x1280xf32> to vector<8x1024xf32>
    %231 = vector.extract_strided_slice %2 {offsets = [12, 0], sizes = [1, 1024], strides = [1, 1]} : vector<27x1024xf32> to vector<1x1024xf32>
    %232 = vector.broadcast %231 : vector<1x1024xf32> to vector<8x1024xf32>
    %233 = arith.mulf %230, %232 : vector<8x1024xf32>
    %c96_79 = arith.constant 96 : index
    %c0_80 = arith.constant 0 : index
    %234 = vector.load %arg11[%c96_79, %c0_80] : memref<216x1024xf32, #tpu.memory_space<vmem>>, vector<8x1024xf32>
    tpu.vector_store %arg11[%c96_79, %c0_80], %233 {strides = array<i32>} : memref<216x1024xf32, #tpu.memory_space<vmem>>, vector<8x1024xf32>,
    %235 = vector.extract_strided_slice %224 {offsets = [0, 256], sizes = [8, 1024], strides = [1, 1]} : vector<8x1280xf32> to vector<8x1024xf32>
    %236 = vector.extract_strided_slice %2 {offsets = [21, 0], sizes = [1, 1024], strides = [1, 1]} : vector<27x1024xf32> to vector<1x1024xf32>
    %237 = vector.broadcast %236 : vector<1x1024xf32> to vector<8x1024xf32>
    %238 = arith.mulf %235, %237 : vector<8x1024xf32>
    %c168_81 = arith.constant 168 : index
    %c0_82 = arith.constant 0 : index
    %239 = vector.load %arg11[%c168_81, %c0_82] : memref<216x1024xf32, #tpu.memory_space<vmem>>, vector<8x1024xf32>
    tpu.vector_store %arg11[%c168_81, %c0_82], %238 {strides = array<i32>} : memref<216x1024xf32, #tpu.memory_space<vmem>>, vector<8x1024xf32>,
    %240 = vector.extract_strided_slice %175 {offsets = [0, 128], sizes = [8, 1280], strides = [1, 1]} : vector<8x1536xf32> to vector<8x1280xf32>
    %241 = vector.extract_strided_slice %240 {offsets = [0, 0], sizes = [8, 1024], strides = [1, 1]} : vector<8x1280xf32> to vector<8x1024xf32>
    %242 = vector.extract_strided_slice %2 {offsets = [4, 0], sizes = [1, 1024], strides = [1, 1]} : vector<27x1024xf32> to vector<1x1024xf32>
    %243 = vector.broadcast %242 : vector<1x1024xf32> to vector<8x1024xf32>
    %244 = arith.mulf %241, %243 : vector<8x1024xf32>
    %c32_83 = arith.constant 32 : index
    %c0_84 = arith.constant 0 : index
    %245 = vector.load %arg11[%c32_83, %c0_84] : memref<216x1024xf32, #tpu.memory_space<vmem>>, vector<8x1024xf32>
    tpu.vector_store %arg11[%c32_83, %c0_84], %244 {strides = array<i32>} : memref<216x1024xf32, #tpu.memory_space<vmem>>, vector<8x1024xf32>,
    %246 = vector.extract_strided_slice %240 {offsets = [0, 128], sizes = [8, 1024], strides = [1, 1]} : vector<8x1280xf32> to vector<8x1024xf32>
    %247 = vector.extract_strided_slice %2 {offsets = [13, 0], sizes = [1, 1024], strides = [1, 1]} : vector<27x1024xf32> to vector<1x1024xf32>
    %248 = vector.broadcast %247 : vector<1x1024xf32> to vector<8x1024xf32>
    %249 = arith.mulf %246, %248 : vector<8x1024xf32>
    %c104_85 = arith.constant 104 : index
    %c0_86 = arith.constant 0 : index
    %250 = vector.load %arg11[%c104_85, %c0_86] : memref<216x1024xf32, #tpu.memory_space<vmem>>, vector<8x1024xf32>
    tpu.vector_store %arg11[%c104_85, %c0_86], %249 {strides = array<i32>} : memref<216x1024xf32, #tpu.memory_space<vmem>>, vector<8x1024xf32>,
    %251 = vector.extract_strided_slice %240 {offsets = [0, 256], sizes = [8, 1024], strides = [1, 1]} : vector<8x1280xf32> to vector<8x1024xf32>
    %252 = vector.extract_strided_slice %2 {offsets = [22, 0], sizes = [1, 1024], strides = [1, 1]} : vector<27x1024xf32> to vector<1x1024xf32>
    %253 = vector.broadcast %252 : vector<1x1024xf32> to vector<8x1024xf32>
    %254 = arith.mulf %251, %253 : vector<8x1024xf32>
    %c176_87 = arith.constant 176 : index
    %c0_88 = arith.constant 0 : index
    %255 = vector.load %arg11[%c176_87, %c0_88] : memref<216x1024xf32, #tpu.memory_space<vmem>>, vector<8x1024xf32>
    tpu.vector_store %arg11[%c176_87, %c0_88], %254 {strides = array<i32>} : memref<216x1024xf32, #tpu.memory_space<vmem>>, vector<8x1024xf32>,
    %256 = vector.extract_strided_slice %175 {offsets = [0, 129], sizes = [8, 1280], strides = [1, 1]} : vector<8x1536xf32> to vector<8x1280xf32>
    %257 = vector.extract_strided_slice %256 {offsets = [0, 0], sizes = [8, 1024], strides = [1, 1]} : vector<8x1280xf32> to vector<8x1024xf32>
    %258 = vector.extract_strided_slice %2 {offsets = [5, 0], sizes = [1, 1024], strides = [1, 1]} : vector<27x1024xf32> to vector<1x1024xf32>
    %259 = vector.broadcast %258 : vector<1x1024xf32> to vector<8x1024xf32>
    %260 = arith.mulf %257, %259 : vector<8x1024xf32>
    %c40_89 = arith.constant 40 : index
    %c0_90 = arith.constant 0 : index
    %261 = vector.load %arg11[%c40_89, %c0_90] : memref<216x1024xf32, #tpu.memory_space<vmem>>, vector<8x1024xf32>
    tpu.vector_store %arg11[%c40_89, %c0_90], %260 {strides = array<i32>} : memref<216x1024xf32, #tpu.memory_space<vmem>>, vector<8x1024xf32>,
    %262 = vector.extract_strided_slice %256 {offsets = [0, 128], sizes = [8, 1024], strides = [1, 1]} : vector<8x1280xf32> to vector<8x1024xf32>
    %263 = vector.extract_strided_slice %2 {offsets = [14, 0], sizes = [1, 1024], strides = [1, 1]} : vector<27x1024xf32> to vector<1x1024xf32>
    %264 = vector.broadcast %263 : vector<1x1024xf32> to vector<8x1024xf32>
    %265 = arith.mulf %262, %264 : vector<8x1024xf32>
    %c112_91 = arith.constant 112 : index
    %c0_92 = arith.constant 0 : index
    %266 = vector.load %arg11[%c112_91, %c0_92] : memref<216x1024xf32, #tpu.memory_space<vmem>>, vector<8x1024xf32>
    tpu.vector_store %arg11[%c112_91, %c0_92], %265 {strides = array<i32>} : memref<216x1024xf32, #tpu.memory_space<vmem>>, vector<8x1024xf32>,
    %267 = vector.extract_strided_slice %256 {offsets = [0, 256], sizes = [8, 1024], strides = [1, 1]} : vector<8x1280xf32> to vector<8x1024xf32>
    %268 = vector.extract_strided_slice %2 {offsets = [23, 0], sizes = [1, 1024], strides = [1, 1]} : vector<27x1024xf32> to vector<1x1024xf32>
    %269 = vector.broadcast %268 : vector<1x1024xf32> to vector<8x1024xf32>
    %270 = arith.mulf %267, %269 : vector<8x1024xf32>
    %c184_93 = arith.constant 184 : index
    %c0_94 = arith.constant 0 : index
    %271 = vector.load %arg11[%c184_93, %c0_94] : memref<216x1024xf32, #tpu.memory_space<vmem>>, vector<8x1024xf32>
    tpu.vector_store %arg11[%c184_93, %c0_94], %270 {strides = array<i32>} : memref<216x1024xf32, #tpu.memory_space<vmem>>, vector<8x1024xf32>,
    %272 = vector.extract_strided_slice %175 {offsets = [0, 135], sizes = [8, 1280], strides = [1, 1]} : vector<8x1536xf32> to vector<8x1280xf32>
    %273 = vector.extract_strided_slice %272 {offsets = [0, 0], sizes = [8, 1024], strides = [1, 1]} : vector<8x1280xf32> to vector<8x1024xf32>
    %274 = vector.extract_strided_slice %2 {offsets = [6, 0], sizes = [1, 1024], strides = [1, 1]} : vector<27x1024xf32> to vector<1x1024xf32>
    %275 = vector.broadcast %274 : vector<1x1024xf32> to vector<8x1024xf32>
    %276 = arith.mulf %273, %275 : vector<8x1024xf32>
    %c48_95 = arith.constant 48 : index
    %c0_96 = arith.constant 0 : index
    %277 = vector.load %arg11[%c48_95, %c0_96] : memref<216x1024xf32, #tpu.memory_space<vmem>>, vector<8x1024xf32>
    tpu.vector_store %arg11[%c48_95, %c0_96], %276 {strides = array<i32>} : memref<216x1024xf32, #tpu.memory_space<vmem>>, vector<8x1024xf32>,
    %278 = vector.extract_strided_slice %272 {offsets = [0, 128], sizes = [8, 1024], strides = [1, 1]} : vector<8x1280xf32> to vector<8x1024xf32>
    %279 = vector.extract_strided_slice %2 {offsets = [15, 0], sizes = [1, 1024], strides = [1, 1]} : vector<27x1024xf32> to vector<1x1024xf32>
    %280 = vector.broadcast %279 : vector<1x1024xf32> to vector<8x1024xf32>
    %281 = arith.mulf %278, %280 : vector<8x1024xf32>
    %c120_97 = arith.constant 120 : index
    %c0_98 = arith.constant 0 : index
    %282 = vector.load %arg11[%c120_97, %c0_98] : memref<216x1024xf32, #tpu.memory_space<vmem>>, vector<8x1024xf32>
    tpu.vector_store %arg11[%c120_97, %c0_98], %281 {strides = array<i32>} : memref<216x1024xf32, #tpu.memory_space<vmem>>, vector<8x1024xf32>,
    %283 = vector.extract_strided_slice %272 {offsets = [0, 256], sizes = [8, 1024], strides = [1, 1]} : vector<8x1280xf32> to vector<8x1024xf32>
    %284 = vector.extract_strided_slice %2 {offsets = [24, 0], sizes = [1, 1024], strides = [1, 1]} : vector<27x1024xf32> to vector<1x1024xf32>
    %285 = vector.broadcast %284 : vector<1x1024xf32> to vector<8x1024xf32>
    %286 = arith.mulf %283, %285 : vector<8x1024xf32>
    %c192_99 = arith.constant 192 : index
    %c0_100 = arith.constant 0 : index
    %287 = vector.load %arg11[%c192_99, %c0_100] : memref<216x1024xf32, #tpu.memory_space<vmem>>, vector<8x1024xf32>
    tpu.vector_store %arg11[%c192_99, %c0_100], %286 {strides = array<i32>} : memref<216x1024xf32, #tpu.memory_space<vmem>>, vector<8x1024xf32>,
    %288 = vector.extract_strided_slice %175 {offsets = [0, 136], sizes = [8, 1280], strides = [1, 1]} : vector<8x1536xf32> to vector<8x1280xf32>
    %289 = vector.extract_strided_slice %288 {offsets = [0, 0], sizes = [8, 1024], strides = [1, 1]} : vector<8x1280xf32> to vector<8x1024xf32>
    %290 = vector.extract_strided_slice %2 {offsets = [7, 0], sizes = [1, 1024], strides = [1, 1]} : vector<27x1024xf32> to vector<1x1024xf32>
    %291 = vector.broadcast %290 : vector<1x1024xf32> to vector<8x1024xf32>
    %292 = arith.mulf %289, %291 : vector<8x1024xf32>
    %c56_101 = arith.constant 56 : index
    %c0_102 = arith.constant 0 : index
    %293 = vector.load %arg11[%c56_101, %c0_102] : memref<216x1024xf32, #tpu.memory_space<vmem>>, vector<8x1024xf32>
    tpu.vector_store %arg11[%c56_101, %c0_102], %292 {strides = array<i32>} : memref<216x1024xf32, #tpu.memory_space<vmem>>, vector<8x1024xf32>,
    %294 = vector.extract_strided_slice %288 {offsets = [0, 128], sizes = [8, 1024], strides = [1, 1]} : vector<8x1280xf32> to vector<8x1024xf32>
    %295 = vector.extract_strided_slice %2 {offsets = [16, 0], sizes = [1, 1024], strides = [1, 1]} : vector<27x1024xf32> to vector<1x1024xf32>
    %296 = vector.broadcast %295 : vector<1x1024xf32> to vector<8x1024xf32>
    %297 = arith.mulf %294, %296 : vector<8x1024xf32>
    %c128_103 = arith.constant 128 : index
    %c0_104 = arith.constant 0 : index
    %298 = vector.load %arg11[%c128_103, %c0_104] : memref<216x1024xf32, #tpu.memory_space<vmem>>, vector<8x1024xf32>
    tpu.vector_store %arg11[%c128_103, %c0_104], %297 {strides = array<i32>} : memref<216x1024xf32, #tpu.memory_space<vmem>>, vector<8x1024xf32>,
    %299 = vector.extract_strided_slice %288 {offsets = [0, 256], sizes = [8, 1024], strides = [1, 1]} : vector<8x1280xf32> to vector<8x1024xf32>
    %300 = vector.extract_strided_slice %2 {offsets = [25, 0], sizes = [1, 1024], strides = [1, 1]} : vector<27x1024xf32> to vector<1x1024xf32>
    %301 = vector.broadcast %300 : vector<1x1024xf32> to vector<8x1024xf32>
    %302 = arith.mulf %299, %301 : vector<8x1024xf32>
    %c200_105 = arith.constant 200 : index
    %c0_106 = arith.constant 0 : index
    %303 = vector.load %arg11[%c200_105, %c0_106] : memref<216x1024xf32, #tpu.memory_space<vmem>>, vector<8x1024xf32>
    tpu.vector_store %arg11[%c200_105, %c0_106], %302 {strides = array<i32>} : memref<216x1024xf32, #tpu.memory_space<vmem>>, vector<8x1024xf32>,
    %304 = vector.extract_strided_slice %175 {offsets = [0, 137], sizes = [8, 1280], strides = [1, 1]} : vector<8x1536xf32> to vector<8x1280xf32>
    %305 = vector.extract_strided_slice %304 {offsets = [0, 0], sizes = [8, 1024], strides = [1, 1]} : vector<8x1280xf32> to vector<8x1024xf32>
    %306 = vector.extract_strided_slice %2 {offsets = [8, 0], sizes = [1, 1024], strides = [1, 1]} : vector<27x1024xf32> to vector<1x1024xf32>
    %307 = vector.broadcast %306 : vector<1x1024xf32> to vector<8x1024xf32>
    %308 = arith.mulf %305, %307 : vector<8x1024xf32>
    %c64_107 = arith.constant 64 : index
    %c0_108 = arith.constant 0 : index
    %309 = vector.load %arg11[%c64_107, %c0_108] : memref<216x1024xf32, #tpu.memory_space<vmem>>, vector<8x1024xf32>
    tpu.vector_store %arg11[%c64_107, %c0_108], %308 {strides = array<i32>} : memref<216x1024xf32, #tpu.memory_space<vmem>>, vector<8x1024xf32>,
    %310 = vector.extract_strided_slice %304 {offsets = [0, 128], sizes = [8, 1024], strides = [1, 1]} : vector<8x1280xf32> to vector<8x1024xf32>
    %311 = vector.extract_strided_slice %2 {offsets = [17, 0], sizes = [1, 1024], strides = [1, 1]} : vector<27x1024xf32> to vector<1x1024xf32>
    %312 = vector.broadcast %311 : vector<1x1024xf32> to vector<8x1024xf32>
    %313 = arith.mulf %310, %312 : vector<8x1024xf32>
    %c136_109 = arith.constant 136 : index
    %c0_110 = arith.constant 0 : index
    %314 = vector.load %arg11[%c136_109, %c0_110] : memref<216x1024xf32, #tpu.memory_space<vmem>>, vector<8x1024xf32>
    tpu.vector_store %arg11[%c136_109, %c0_110], %313 {strides = array<i32>} : memref<216x1024xf32, #tpu.memory_space<vmem>>, vector<8x1024xf32>,
    %315 = vector.extract_strided_slice %304 {offsets = [0, 256], sizes = [8, 1024], strides = [1, 1]} : vector<8x1280xf32> to vector<8x1024xf32>
    %316 = vector.extract_strided_slice %2 {offsets = [26, 0], sizes = [1, 1024], strides = [1, 1]} : vector<27x1024xf32> to vector<1x1024xf32>
    %317 = vector.broadcast %316 : vector<1x1024xf32> to vector<8x1024xf32>
    %318 = arith.mulf %315, %317 : vector<8x1024xf32>
    %c208_111 = arith.constant 208 : index
    %c0_112 = arith.constant 0 : index
    %319 = vector.load %arg11[%c208_111, %c0_112] : memref<216x1024xf32, #tpu.memory_space<vmem>>, vector<8x1024xf32>
    tpu.vector_store %arg11[%c208_111, %c0_112], %318 {strides = array<i32>} : memref<216x1024xf32, #tpu.memory_space<vmem>>, vector<8x1024xf32>,
    %c0_113 = arith.constant 0 : index
    %c0_114 = arith.constant 0 : index
    %320 = vector.load %arg4[%c0_113, %c0_114] : memref<8x216xf32, #tpu.memory_space<vmem>>, vector<8x216xf32>
    %c0_115 = arith.constant 0 : index
    %c0_116 = arith.constant 0 : index
    %321 = vector.load %arg11[%c0_115, %c0_116] : memref<216x1024xf32, #tpu.memory_space<vmem>>, vector<216x1024xf32>
    %cst_117 = arith.constant dense<0.000000e+00> : vector<8x1024xf32>
    %322 = tpu.matmul %320, %321, %cst_117 {dimension_numbers = #tpu.dot_dimension_numbers<[1], [0], [0], [1], [0, 0, 1, 1], [], []>} : vector<8x216xf32>, vector<216x1024xf32>, vector<8x1024xf32> -> vector<8x1024xf32>
    %c0_118 = arith.constant 0 : index
    %c0_119 = arith.constant 0 : index
    %323 = vector.load %arg7[%c0_118, %c0_119] : memref<8x1xf32, #tpu.memory_space<vmem>>, vector<8x1xf32>
    %324 = vector.broadcast %323 : vector<8x1xf32> to vector<8x1024xf32>
    %325 = arith.addf %322, %324 : vector<8x1024xf32>
    %326 = arith.addf %325, %1 : vector<8x1024xf32>
    %cst_120 = arith.constant 0.000000e+00 : f32
    %327 = vector.broadcast %cst_120 : f32 to vector<8x1024xf32>
    %328 = arith.cmpf ogt, %326, %327 : vector<8x1024xf32>
    %cst_121 = arith.constant 3.000000e-01 : f32
    %329 = vector.broadcast %cst_121 : f32 to vector<8x1024xf32>
    %330 = arith.mulf %329, %326 : vector<8x1024xf32>
    %331 = arith.select %328, %326, %330 : vector<8x1024xi1>, vector<8x1024xf32>
    %c0_122 = arith.constant 0 : index
    %c0_123 = arith.constant 0 : index
    %c0_124 = arith.constant 0 : index
    %332 = vector.load %arg9[%c0_122, %c0_123, %c0_124] : memref<1x8x1024xf32, #tpu.memory_space<vmem>>, vector<1x8x1024xf32>
    %333 = vector.shape_cast %332 : vector<1x8x1024xf32> to vector<8x1024xf32>
    %334 = vector.shape_cast %331 : vector<8x1024xf32> to vector<1x8x1024xf32>
    tpu.vector_store %arg9[%c0_122, %c0_123, %c0_124], %334 {strides = array<i32>} : memref<1x8x1024xf32, #tpu.memory_space<vmem>>, vector<1x8x1024xf32>,
    return
  }
  func.func @transform_0(%arg0: i32) -> (i32, i32, i32) {
    %c0_i32 = arith.constant 0 : i32
    %c0_i32_0 = arith.constant 0 : i32
    %c0_i32_1 = arith.constant 0 : i32
    return %arg0, %c0_i32, %c0_i32_0 : i32, i32, i32
  }
  func.func @transform_1(%arg0: i32) -> (i32, i32) {
    %c0_i32 = arith.constant 0 : i32
    %c0_i32_0 = arith.constant 0 : i32
    %c0_i32_1 = arith.constant 0 : i32
    return %c0_i32, %c0_i32_0 : i32, i32
  }
  func.func @transform_2(%arg0: i32) -> (i32, i32) {
    %c0_i32 = arith.constant 0 : i32
    %c0_i32_0 = arith.constant 0 : i32
    %c0_i32_1 = arith.constant 0 : i32
    return %c0_i32, %c0_i32_0 : i32, i32
  }
  func.func @transform_3(%arg0: i32) -> (i32, i32) {
    %c0_i32 = arith.constant 0 : i32
    %c0_i32_0 = arith.constant 0 : i32
    %c0_i32_1 = arith.constant 0 : i32
    return %c0_i32, %c0_i32_0 : i32, i32
  }
  func.func @transform_4(%arg0: i32) -> (i32, i32) {
    %c0_i32 = arith.constant 0 : i32
    %c0_i32_0 = arith.constant 0 : i32
    %c0_i32_1 = arith.constant 0 : i32
    return %c0_i32, %c0_i32_0 : i32, i32
  }
  func.func @transform_5(%arg0: i32) -> (i32, i32) {
    %c0_i32 = arith.constant 0 : i32
    %c0_i32_0 = arith.constant 0 : i32
    %c0_i32_1 = arith.constant 0 : i32
    return %c0_i32, %c0_i32_0 : i32, i32
  }
  func.func @transform_6(%arg0: i32) -> (i32, i32) {
    %c0_i32 = arith.constant 0 : i32
    %c0_i32_0 = arith.constant 0 : i32
    %c0_i32_1 = arith.constant 0 : i32
    return %c0_i32, %c0_i32_0 : i32, i32
  }
  func.func @transform_7(%arg0: i32) -> (i32, i32) {
    %c0_i32 = arith.constant 0 : i32
    %c0_i32_0 = arith.constant 0 : i32
    %c0_i32_1 = arith.constant 0 : i32
    return %c0_i32, %c0_i32_0 : i32, i32
  }
  func.func @transform_8(%arg0: i32) -> (i32, i32, i32) {
    %c0_i32 = arith.constant 0 : i32
    %c0_i32_0 = arith.constant 0 : i32
    %c0_i32_1 = arith.constant 0 : i32
    return %arg0, %c0_i32, %c0_i32_0 : i32, i32, i32
  }
}

</mosaic_0001>

<llo_original>
// kernel: tpu_custom_call.1
$region0: #{tpu_custom_call.1}
  #allocation0 [shape = 'u32[]', space=smem, size = 0x4, offset = 0x4, fixed_abs, tag = 'smem constant byte address 0x4 - core index']
  #allocation1 [shape = 'u32[144,128]{1,0:T(1,128)}', space=vmem, size = 0x12000, scoped, tag = 'internal scratch']
  #allocation2 [shape = 'f32[8,1536]{1,0:T(8,128)}', space=vmem, size = 0xc000, scoped, tag = 'scratch operand']
  #allocation3 [shape = 'f32[216,1024]{1,0:T(8,128)}', space=vmem, size = 0xd8000, scoped, tag = 'scratch operand']
  %s0 = inlined_call_operand.hbm [shape: f32[2,8,1024], index: 0, kind: input, shape index: {}]
  %s1 = inlined_call_operand.hbm [shape: f32[8,8], index: 1, kind: input, shape index: {}]
  %s2 = inlined_call_operand.vmem [shape: f32[8,216], index: 2, kind: input, shape index: {}]
  %s3 = inlined_call_operand.vmem [shape: f32[8,216], index: 3, kind: input, shape index: {}]
  %s4 = inlined_call_operand.vmem [shape: f32[8,1], index: 4, kind: input, shape index: {}]
  %s5 = inlined_call_operand.vmem [shape: f32[8,1], index: 5, kind: input, shape index: {}]
  %s6 = inlined_call_operand.vmem [shape: f32[8,1], index: 6, kind: input, shape index: {}]
  %s7 = inlined_call_operand.hbm [shape: f32[27,1024], index: 7, kind: input, shape index: {}]
  %s8 = inlined_call_operand.hbm [shape: f32[2,8,1024], index: 8, kind: output, shape index: {}]
  %s9 = sld [smem:[#allocation0]]
  $region77: #{tpu_custom_call.1} parent=0
    _
  %s11 = ssub.s32 1, %s9
  %s12 = scalar_select 0, %s11, %s9
  $region1: #{tpu_custom_call.1} parent=0
    #allocation4 [shape = 'u8[65536]{0}', space=vmem, size = 0x10000, scoped, tag = 'input window, operand 0']
    #allocation5 [shape = 's32[2]{0}', space=sflag, size = 0x8, scoped, tag = 'scoped memory for tpu_custom_call.1']
    #allocation6 [shape = 's32[2]{0}', space=sflag, size = 0x8, scoped, tag = 'scoped memory for tpu_custom_call.1']
    #allocation7 [shape = 'u8[4096]{0}', space=vmem, size = 0x1000, scoped, tag = 'input window, operand 1, single buffered']
    #allocation8 [shape = 's32[1]{0}', space=sflag, size = 0x4, scoped, tag = 'scoped memory for tpu_custom_call.1']
    #allocation9 [shape = 'u8[131072]{0}', space=vmem, size = 0x20000, scoped, tag = 'input window, operand 7, single buffered']
    #allocation10 [shape = 'u8[65536]{0}', space=vmem, size = 0x10000, scoped, tag = 'output window, operand 0']
    %13 = vsyncpa [#allocation5], 0
    %s14 = scalar_lea.sflag [#allocation5], 1
    %15 = vsyncpa %s14, 0
    %16 = vsyncpa [#allocation8], 0
    %17 = vsyncpa [#allocation6], 0
    %s18 = scalar_lea.sflag [#allocation6], 1
    %19 = vsyncpa %s18, 0
    loop: start=0, step=1, limit=4
    $region2: #{tpu_custom_call.1} parent=1 // loop_pre_header
      _
    $region3: #{tpu_custom_call.1} parent=1 // loop_header
      %s21 = sphi 0, %s25
      %p22 = scmp.ge.s32.totalorder %s21, 4
      %s31 = sphi 0, %s33
      %s34 = sphi 0, %s31
      %s35 = sphi 0, %s34
      %s51 = sphi 0, %s35
      %s55 = sphi 0, %s55
      %s57 = sphi 0, %s55
      %s58 = sphi 0, %s57
      %s72 = sphi 0, %s58
      %s76 = sphi 0, %s76
      %s78 = sphi 0, %s76
      %s79 = sphi 0, %s78
      %s93 = sphi 0, %s79
      %s97 = sphi 0, %s97
      %s99 = sphi 0, %s97
      %s100 = sphi 0, %s99
      %s114 = sphi 0, %s100
      %s118 = sphi 0, %s118
      %s120 = sphi 0, %s118
      %s121 = sphi 0, %s120
      %s135 = sphi 0, %s121
      %s139 = sphi 0, %s139
      %s141 = sphi 0, %s139
      %s142 = sphi 0, %s141
      %s156 = sphi 0, %s142
      %s160 = sphi 0, %s160
      %s162 = sphi 0, %s160
      %s163 = sphi 0, %s162
      %s177 = sphi 0, %s163
      %s181 = sphi 0, %s181
      %s183 = sphi 0, %s181
      %s184 = sphi 0, %s183
      %s198 = sphi 0, %s184
      %s204 = sphi 0, %s206
      %s207 = sphi 0, %s204
      %s208 = sphi 0, %s207
      %s224 = sphi 0, %s208
    $region4: #{tpu_custom_call.1} parent=1 // loop_header_branch
      %24 = sbr.rel (%p22) target = $region8
    $region5: #{tpu_custom_call.1} parent=1 // loop_body
      %s26 = ssub.s32 %s21, 1
      %s27 = ssub.s32 %s21, 2
      %s28 = sadd.s32 %s21, 1
      %s29 = ssub.s32 %s21, %s28
      %p30 = scmp.eq.s32.totalorder %s29, 0
      %s32 = sadd.s32 %s31, 1
      %s33 = scalar_select %p30, %s31, %s32
      %p36 = pneg %p30
      %p37 = scmp.eq.s32.totalorder %s21, 1
      %p38 = por %p36, %p37
      %p39 = scmp.ne.s32.totalorder %s31, %s34
      %p40 = scmp.eq.s32.totalorder %s21, 0
      %p41 = por %p39, %p40
      %p42 = scmp.ne.s32.totalorder %s31, %s34
      %p43 = scmp.eq.s32.totalorder %s26, 1
      %p44 = por %p42, %p43
      %p45 = scmp.ne.s32.totalorder %s34, %s35
      %p46 = scmp.eq.s32.totalorder %s26, 0
      %p47 = por %p45, %p46
      %p48 = scmp.ne.s32.totalorder %s34, %s35
      %p49 = scmp.eq.s32.totalorder %s27, 1
      %p50 = por %p48, %p49
      %p52 = scmp.ne.s32.totalorder %s35, %s51
      %p53 = scmp.eq.s32.totalorder %s27, 0
      %p54 = por %p52, %p53
      %s56 = sadd.s32 %s55, 1
      %p59 = scmp.eq.s32.totalorder %s21, 1
      %p60 = scmp.ne.s32.totalorder %s55, %s57
      %p61 = scmp.eq.s32.totalorder %s21, 0
      %p62 = por %p60, %p61
      %p63 = scmp.ne.s32.totalorder %s55, %s57
      %p64 = scmp.eq.s32.totalorder %s26, 1
      %p65 = por %p63, %p64
      %p66 = scmp.ne.s32.totalorder %s57, %s58
      %p67 = scmp.eq.s32.totalorder %s26, 0
      %p68 = por %p66, %p67
      %p69 = scmp.ne.s32.totalorder %s57, %s58
      %p70 = scmp.eq.s32.totalorder %s27, 1
      %p71 = por %p69, %p70
      %p73 = scmp.ne.s32.totalorder %s58, %s72
      %p74 = scmp.eq.s32.totalorder %s27, 0
      %p75 = por %p73, %p74
      %s77 = sadd.s32 %s76, 1
      %p80 = scmp.eq.s32.totalorder %s21, 1
      %p81 = scmp.ne.s32.totalorder %s76, %s78
      %p82 = scmp.eq.s32.totalorder %s21, 0
      %p83 = por %p81, %p82
      %p84 = scmp.ne.s32.totalorder %s76, %s78
      %p85 = scmp.eq.s32.totalorder %s26, 1
      %p86 = por %p84, %p85
      %p87 = scmp.ne.s32.totalorder %s78, %s79
      %p88 = scmp.eq.s32.totalorder %s26, 0
      %p89 = por %p87, %p88
      %p90 = scmp.ne.s32.totalorder %s78, %s79
      %p91 = scmp.eq.s32.totalorder %s27, 1
      %p92 = por %p90, %p91
      %p94 = scmp.ne.s32.totalorder %s79, %s93
      %p95 = scmp.eq.s32.totalorder %s27, 0
      %p96 = por %p94, %p95
      %s98 = sadd.s32 %s97, 1
      %p101 = scmp.eq.s32.totalorder %s21, 1
      %p102 = scmp.ne.s32.totalorder %s97, %s99
      %p103 = scmp.eq.s32.totalorder %s21, 0
      %p104 = por %p102, %p103
      %p105 = scmp.ne.s32.totalorder %s97, %s99
      %p106 = scmp.eq.s32.totalorder %s26, 1
      %p107 = por %p105, %p106
      %p108 = scmp.ne.s32.totalorder %s99, %s100
      %p109 = scmp.eq.s32.totalorder %s26, 0
      %p110 = por %p108, %p109
      %p111 = scmp.ne.s32.totalorder %s99, %s100
      %p112 = scmp.eq.s32.totalorder %s27, 1
      %p113 = por %p111, %p112
      %p115 = scmp.ne.s32.totalorder %s100, %s114
      %p116 = scmp.eq.s32.totalorder %s27, 0
      %p117 = por %p115, %p116
      %s119 = sadd.s32 %s118, 1
      %p122 = scmp.eq.s32.totalorder %s21, 1
      %p123 = scmp.ne.s32.totalorder %s118, %s120
      %p124 = scmp.eq.s32.totalorder %s21, 0
      %p125 = por %p123, %p124
      %p126 = scmp.ne.s32.totalorder %s118, %s120
      %p127 = scmp.eq.s32.totalorder %s26, 1
      %p128 = por %p126, %p127
      %p129 = scmp.ne.s32.totalorder %s120, %s121
      %p130 = scmp.eq.s32.totalorder %s26, 0
      %p131 = por %p129, %p130
      %p132 = scmp.ne.s32.totalorder %s120, %s121
      %p133 = scmp.eq.s32.totalorder %s27, 1
      %p134 = por %p132, %p133
      %p136 = scmp.ne.s32.totalorder %s121, %s135
      %p137 = scmp.eq.s32.totalorder %s27, 0
      %p138 = por %p136, %p137
      %s140 = sadd.s32 %s139, 1
      %p143 = scmp.eq.s32.totalorder %s21, 1
      %p144 = scmp.ne.s32.totalorder %s139, %s141
      %p145 = scmp.eq.s32.totalorder %s21, 0
      %p146 = por %p144, %p145
      %p147 = scmp.ne.s32.totalorder %s139, %s141
      %p148 = scmp.eq.s32.totalorder %s26, 1
      %p149 = por %p147, %p148
      %p150 = scmp.ne.s32.totalorder %s141, %s142
      %p151 = scmp.eq.s32.totalorder %s26, 0
      %p152 = por %p150, %p151
      %p153 = scmp.ne.s32.totalorder %s141, %s142
      %p154 = scmp.eq.s32.totalorder %s27, 1
      %p155 = por %p153, %p154
      %p157 = scmp.ne.s32.totalorder %s142, %s156
      %p158 = scmp.eq.s32.totalorder %s27, 0
      %p159 = por %p157, %p158
      %s161 = sadd.s32 %s160, 1
      %p164 = scmp.eq.s32.totalorder %s21, 1
      %p165 = scmp.ne.s32.totalorder %s160, %s162
      %p166 = scmp.eq.s32.totalorder %s21, 0
      %p167 = por %p165, %p166
      %p168 = scmp.ne.s32.totalorder %s160, %s162
      %p169 = scmp.eq.s32.totalorder %s26, 1
      %p170 = por %p168, %p169
      %p171 = scmp.ne.s32.totalorder %s162, %s163
      %p172 = scmp.eq.s32.totalorder %s26, 0
      %p173 = por %p171, %p172
      %p174 = scmp.ne.s32.totalorder %s162, %s163
      %p175 = scmp.eq.s32.totalorder %s27, 1
      %p176 = por %p174, %p175
      %p178 = scmp.ne.s32.totalorder %s163, %s177
      %p179 = scmp.eq.s32.totalorder %s27, 0
      %p180 = por %p178, %p179
      %s182 = sadd.s32 %s181, 1
      %p185 = scmp.eq.s32.totalorder %s21, 1
      %p186 = scmp.ne.s32.totalorder %s181, %s183
      %p187 = scmp.eq.s32.totalorder %s21, 0
      %p188 = por %p186, %p187
      %p189 = scmp.ne.s32.totalorder %s181, %s183
      %p190 = scmp.eq.s32.totalorder %s26, 1
      %p191 = por %p189, %p190
      %p192 = scmp.ne.s32.totalorder %s183, %s184
      %p193 = scmp.eq.s32.totalorder %s26, 0
      %p194 = por %p192, %p193
      %p195 = scmp.ne.s32.totalorder %s183, %s184
      %p196 = scmp.eq.s32.totalorder %s27, 1
      %p197 = por %p195, %p196
      %p199 = scmp.ne.s32.totalorder %s184, %s198
      %p200 = scmp.eq.s32.totalorder %s27, 0
      %p201 = por %p199, %p200
      %s202 = ssub.s32 %s21, %s28
      %p203 = scmp.eq.s32.totalorder %s202, 0
      %s205 = sadd.s32 %s204, 1
      %s206 = scalar_select %p203, %s204, %s205
      %p209 = pneg %p203
      %p210 = scmp.eq.s32.totalorder %s21, 1
      %p211 = por %p209, %p210
      %p212 = scmp.ne.s32.totalorder %s204, %s207
      %p213 = scmp.eq.s32.totalorder %s21, 0
      %p214 = por %p212, %p213
      %p215 = scmp.ne.s32.totalorder %s204, %s207
      %p216 = scmp.eq.s32.totalorder %s26, 1
      %p217 = por %p215, %p216
      %p218 = scmp.ne.s32.totalorder %s207, %s208
      %p219 = scmp.eq.s32.totalorder %s26, 0
      %p220 = por %p218, %p219
      %p221 = scmp.ne.s32.totalorder %s207, %s208
      %p222 = scmp.eq.s32.totalorder %s27, 1
      %p223 = por %p221, %p222
      %p225 = scmp.ne.s32.totalorder %s208, %s224
      %p226 = scmp.eq.s32.totalorder %s27, 0
      %p227 = por %p225, %p226
      %p228 = scmp.le.s32.totalorder 1, %s21
      %p229 = scmp.lt.s32.totalorder %s21, 3
      %p230 = pnand %p228, %p229
      %p231 = pneg %p230
      // Predicated region
      $region9: #{tpu_custom_call.1} parent=5 // pred_check
        _
      $region10: #{tpu_custom_call.1} parent=5 // pred_check_branch
        %233 = sbr.rel (%p230) target = $region12
      $region11: #{tpu_custom_call.1} parent=5 // pred_region
        %s234 = ssub.s32 %s21, 1
        // Predicated region
        $region13: #{tpu_custom_call.1} parent=11 // pred_check
          %p235 = pneg %p68
        $region14: #{tpu_custom_call.1} parent=11 // pred_check_branch
          %237 = sbr.rel (%p235) target = $region16
        $region15: #{tpu_custom_call.1} parent=11 // pred_region
          %s239 = ssub.s32 128, 128
          %240 = vsyncadd [#allocation8], %s239
          %s242 = sshll.u32 [#allocation7], 4
          %s243 = int_to_ptr.vmem [resolvable:$true] %s242
          %245 = dma.hbm_to_vmem [thread:$0]  %s1, 128, %s243, [#allocation8]
        $region16: #{tpu_custom_call.1} parent=11 // pred_fallthru
          _
        // Predicated region
        $region17: #{tpu_custom_call.1} parent=11 // pred_check
          %p246 = pneg %p89
        $region18: #{tpu_custom_call.1} parent=11 // pred_check_branch
          %248 = sbr.rel (%p246) target = $region20
        $region19: #{tpu_custom_call.1} parent=11 // pred_region
          _
        $region20: #{tpu_custom_call.1} parent=11 // pred_fallthru
          _
        // Predicated region
        $region21: #{tpu_custom_call.1} parent=11 // pred_check
          %p249 = pneg %p110
        $region22: #{tpu_custom_call.1} parent=11 // pred_check_branch
          %251 = sbr.rel (%p249) target = $region24
        $region23: #{tpu_custom_call.1} parent=11 // pred_region
          _
        $region24: #{tpu_custom_call.1} parent=11 // pred_fallthru
          _
        // Predicated region
        $region25: #{tpu_custom_call.1} parent=11 // pred_check
          %p252 = pneg %p131
        $region26: #{tpu_custom_call.1} parent=11 // pred_check_branch
          %254 = sbr.rel (%p252) target = $region28
        $region27: #{tpu_custom_call.1} parent=11 // pred_region
          _
        $region28: #{tpu_custom_call.1} parent=11 // pred_fallthru
          _
        // Predicated region
        $region29: #{tpu_custom_call.1} parent=11 // pred_check
          %p255 = pneg %p152
        $region30: #{tpu_custom_call.1} parent=11 // pred_check_branch
          %257 = sbr.rel (%p255) target = $region32
        $region31: #{tpu_custom_call.1} parent=11 // pred_region
          _
        $region32: #{tpu_custom_call.1} parent=11 // pred_fallthru
          _
        // Predicated region
        $region33: #{tpu_custom_call.1} parent=11 // pred_check
          %p258 = pneg %p173
        $region34: #{tpu_custom_call.1} parent=11 // pred_check_branch
          %260 = sbr.rel (%p258) target = $region36
        $region35: #{tpu_custom_call.1} parent=11 // pred_region
          _
        $region36: #{tpu_custom_call.1} parent=11 // pred_fallthru
          _
        // Predicated region
        $region37: #{tpu_custom_call.1} parent=11 // pred_check
          %p261 = pneg %p194
        $region38: #{tpu_custom_call.1} parent=11 // pred_check_branch
          %263 = sbr.rel (%p261) target = $region40
        $region39: #{tpu_custom_call.1} parent=11 // pred_region
          %s265 = ssub.s32 4096, 4096
          %266 = vsyncadd [#allocation8], %s265
          %s267 = sshll.u32 [#allocation9], 4
          %s268 = int_to_ptr.vmem [resolvable:$true] %s267
          %273 = dma.hbm_to_vmem [thread:$0]  %s7, 4096, %s268, [#allocation8], 1024, 1024, 64
        $region40: #{tpu_custom_call.1} parent=11 // pred_fallthru
          _
      $region12: #{tpu_custom_call.1} parent=5 // pred_fallthru
        _
      %p274 = scmp.lt.s32.totalorder %s21, 2
      // Predicated region
      $region41: #{tpu_custom_call.1} parent=5 // pred_check
        %p275 = pneg %p274
      $region42: #{tpu_custom_call.1} parent=5 // pred_check_branch
        %277 = sbr.rel (%p275) target = $region44
      $region43: #{tpu_custom_call.1} parent=5 // pred_region
        // Predicated region
        $region45: #{tpu_custom_call.1} parent=43 // pred_check
          %p278 = pneg %p41
        $region46: #{tpu_custom_call.1} parent=43 // pred_check_branch
          %280 = sbr.rel (%p278) target = $region48
        $region47: #{tpu_custom_call.1} parent=43 // pred_region
          %s281 = sand.u32 %s31, 1
          %s282 = scalar_lea.sflag [#allocation5], %s281
          %s283 = sand.u32 %s31, 1
          %s284 = smul.addr %s283, 64
          %s285 = scalar_lea.vmem [#allocation4], %s284
          %s287 = ssub.s32 1024, 1024
          %288 = vsyncadd %s282, %s287
          %s289 = smul.addr %s21, 8
          %s290 = smul.addr %s289, 128
          %s291 = scalar_lea.hbm %s0, %s290
          %s293 = sshll.u32 %s285, 4
          %s294 = int_to_ptr.vmem [resolvable:$true] %s293
          %296 = dma.hbm_to_vmem [thread:$0]  %s291, 1024, %s294, %s282
        $region48: #{tpu_custom_call.1} parent=43 // pred_fallthru
          _
      $region44: #{tpu_custom_call.1} parent=5 // pred_fallthru
        _
      %p297 = scmp.le.s32.totalorder 1, %s21
      %p298 = scmp.lt.s32.totalorder %s21, 3
      %p299 = pnand %p297, %p298
      %p300 = pneg %p299
      // Predicated region
      $region49: #{tpu_custom_call.1} parent=5 // pred_check
        _
      $region50: #{tpu_custom_call.1} parent=5 // pred_check_branch
        %302 = sbr.rel (%p299) target = $region52
      $region51: #{tpu_custom_call.1} parent=5 // pred_region
        %s303 = ssub.s32 %s21, 1
        %s304 = sand.u32 %s34, 1
        %s305 = scalar_lea.sflag [#allocation5], %s304
        %s306 = sand.u32 %s34, 1
        %s307 = smul.addr %s306, 64
        %s308 = scalar_lea.vmem [#allocation4], %s307
        // Predicated region
        $region53: #{tpu_custom_call.1} parent=51 // pred_check
          %p309 = pneg %p47
        $region54: #{tpu_custom_call.1} parent=51 // pred_check_branch
          %311 = sbr.rel (%p309) target = $region56
        $region55: #{tpu_custom_call.1} parent=51 // pred_region
          %312 = dma.done %s305, 1024
        $region56: #{tpu_custom_call.1} parent=51 // pred_fallthru
          _
        // Predicated region
        $region57: #{tpu_custom_call.1} parent=51 // pred_check
          %p313 = pneg %p68
        $region58: #{tpu_custom_call.1} parent=51 // pred_check_branch
          %315 = sbr.rel (%p313) target = $region60
        $region59: #{tpu_custom_call.1} parent=51 // pred_region
          %316 = dma.done [#allocation8], 128
        $region60: #{tpu_custom_call.1} parent=51 // pred_fallthru
          _
        // Predicated region
        $region61: #{tpu_custom_call.1} parent=51 // pred_check
          %p317 = pneg %p194
        $region62: #{tpu_custom_call.1} parent=51 // pred_check_branch
          %319 = sbr.rel (%p317) target = $region64
        $region63: #{tpu_custom_call.1} parent=51 // pred_region
          %320 = dma.done [#allocation8], 4096
        $region64: #{tpu_custom_call.1} parent=51 // pred_fallthru
          _
        %s321 = sand.u32 %s34, 1
        %s322 = scalar_lea.sflag [#allocation5], %s321
        %s323 = sand.u32 %s34, 1
        %s324 = smul.addr %s323, 64
        %s325 = scalar_lea.vmem [#allocation4], %s324
        %p326 = pneg %p47
        %p327 = pneg %p44
        %p328 = pneg %p68
        %p329 = pneg %p65
        %p330 = pneg %p89
        %p331 = pneg %p86
        %p332 = pneg %p110
        %p333 = pneg %p107
        %p334 = pneg %p131
        %p335 = pneg %p128
        %p336 = pneg %p152
        %p337 = pneg %p149
        %p338 = pneg %p173
        %p339 = pneg %p170
        %p340 = pneg %p194
        %p341 = pneg %p191
        %p342 = pneg %p220
        %p343 = pneg %p217
        %s344 = sand.u32 %s207, 1
        %s345 = scalar_lea.sflag [#allocation6], %s344
        %s346 = sand.u32 %s207, 1
        %s347 = smul.addr %s346, 64
        %s348 = scalar_lea.vmem [#allocation10], %s347
        %v349 = vld [vmem:[%s308] sm:$0xff]
        %v350 = vld [vmem:[%s308 + $0x8] sm:$0xff]
        %v351 = vld [vmem:[%s308 + $0x10] sm:$0xff]
        %v352 = vld [vmem:[%s308 + $0x18] sm:$0xff]
        %v353 = vld [vmem:[%s308 + $0x20] sm:$0xff]
        %v354 = vld [vmem:[%s308 + $0x28] sm:$0xff]
        %v355 = vld [vmem:[%s308 + $0x30] sm:$0xff]
        %v356 = vld [vmem:[%s308 + $0x38] sm:$0xff]
        %v357 = vld [vmem:[#allocation9] sm:$0xff]
        %v358 = vld [vmem:[#allocation9 + $0x8] sm:$0xff]
        %v359 = vld [vmem:[#allocation9 + $0x10] sm:$0xff]
        %v360 = vld [vmem:[#allocation9 + $0x18] sm:$0xff]
        %v361 = vld [vmem:[#allocation9 + $0x20] sm:$0xff]
        %v362 = vld [vmem:[#allocation9 + $0x28] sm:$0xff]
        %v363 = vld [vmem:[#allocation9 + $0x30] sm:$0xff]
        %v364 = vld [vmem:[#allocation9 + $0x38] sm:$0xff]
        %v365 = vld [vmem:[#allocation9 + $0x40] sm:$0xff]
        %v366 = vld [vmem:[#allocation9 + $0x48] sm:$0xff]
        %v367 = vld [vmem:[#allocation9 + $0x50] sm:$0xff]
        %v368 = vld [vmem:[#allocation9 + $0x58] sm:$0xff]
        %v369 = vld [vmem:[#allocation9 + $0x60] sm:$0xff]
        %v370 = vld [vmem:[#allocation9 + $0x68] sm:$0xff]
        %v371 = vld [vmem:[#allocation9 + $0x70] sm:$0xff]
        %v372 = vld [vmem:[#allocation9 + $0x78] sm:$0xff]
        %v373 = vld [vmem:[#allocation9 + $0x80] sm:$0xff]
        %v374 = vld [vmem:[#allocation9 + $0x88] sm:$0xff]
        %v375 = vld [vmem:[#allocation9 + $0x90] sm:$0xff]
        %v376 = vld [vmem:[#allocation9 + $0x98] sm:$0xff]
        %v377 = vld [vmem:[#allocation9 + $0xa0] sm:$0xff]
        %v378 = vld [vmem:[#allocation9 + $0xa8] sm:$0xff]
        %v379 = vld [vmem:[#allocation9 + $0xb0] sm:$0xff]
        %v380 = vld [vmem:[#allocation9 + $0xb8] sm:$0xff]
        %v381 = vld [vmem:[#allocation9 + $0xc0] sm:$0x7]
        %v382 = vld [vmem:[#allocation9 + $0xc8] sm:$0x7]
        %v383 = vld [vmem:[#allocation9 + $0xd0] sm:$0x7]
        %v384 = vld [vmem:[#allocation9 + $0xd8] sm:$0x7]
        %v385 = vld [vmem:[#allocation9 + $0xe0] sm:$0x7]
        %v386 = vld [vmem:[#allocation9 + $0xe8] sm:$0x7]
        %v387 = vld [vmem:[#allocation9 + $0xf0] sm:$0x7]
        %v388 = vld [vmem:[#allocation9 + $0xf8] sm:$0x7]
        %389 = vst [vmem:[#allocation2] sm:$0xff] 0.0
        %390 = vst [vmem:[#allocation2 + $0x8] sm:$0xff] 0.0
        %391 = vst [vmem:[#allocation2 + $0x50] sm:$0xff] 0.0
        %392 = vst [vmem:[#allocation2 + $0x58] sm:$0xff] 0.0
        %v393 = vld [vmem:[#allocation7] sm:$0xff]
        %v394 = vld [vmem:[%s4] sm:$0xff]
        %396 = vset.pattern.permute.xlu0 0
        %397 = vperm.xlu0 %396, %v394
        %v398 = vpop.permute.xlu0 %397
        %vm400 = vcmask 64512
        %v402 = vsel %vm400, %v393, 0
        %404 = vmatprep.subr.mxu0 0.0
        %405 = vmatpush1.msra.mxu0 0.0
        %406 = vmatprep.subr.mxu0 0.0
        %407 = vmatpush1.msra.mxu0 0.0
        %408 = vmatprep.subr.mxu0 0.0
        %409 = vmatpush1.msra.mxu0 0.0
        %410 = vmatprep.subr.mxu0 0.0
        %411 = vmatpush1.msra.mxu0 0.0
        %412 = vmatprep.subr.mxu0 0.0
        %413 = vmatpush1.msra.mxu0 0.0
        %414 = vmatprep.subr.mxu0 0.0
        %415 = vmatpush1.msra.mxu0 0.0
        %416 = vmatprep.subr.mxu0 0.0
        %417 = vmatpush1.msra.mxu0 0.0
        %418 = vmatprep.subr.mxu0 0.0
        %419 = vmatpush1.msra.mxu0 0.0
        %420 = vmatprep.subr.mxu0 0.0
        %421 = vmatpush1.msra.mxu0 0.0
        %422 = vmatprep.subr.mxu0 0.0
        %423 = vmatpush1.msra.mxu0 0.0
        %424 = vmatprep.subr.mxu0 0.0
        %425 = vmatpush1.msra.mxu0 0.0
        %426 = vmatprep.subr.mxu0 0.0
        %427 = vmatpush1.msra.mxu0 0.0
        %428 = vmatprep.subr.mxu0 0.0
        %429 = vmatpush1.msra.mxu0 0.0
        %430 = vmatprep.subr.mxu0 0.0
        %431 = vmatpush1.msra.mxu0 0.0
        %432 = vmatprep.subr.mxu0 0.0
        %433 = vmatpush1.msra.mxu0 0.0
        %434 = vmatprep.subr.mxu0 %v350
        %435 = vmatpush1.msra.mxu0 %v349
        %436 = vmatprep.subr.mxu0 0.0
        %437 = vmatpush2.msra.mxu0 0.0
        %438 = vmatprep.subr.mxu0 0.0
        %439 = vmatpush2.msra.mxu0 0.0
        %440 = vmatprep.subr.mxu0 0.0
        %441 = vmatpush2.msra.mxu0 0.0
        %442 = vmatprep.subr.mxu0 0.0
        %443 = vmatpush2.msra.mxu0 0.0
        %444 = vmatprep.subr.mxu0 0.0
        %445 = vmatpush2.msra.mxu0 0.0
        %446 = vmatprep.subr.mxu0 0.0
        %447 = vmatpush2.msra.mxu0 0.0
        %448 = vmatprep.subr.mxu0 0.0
        %449 = vmatpush2.msra.mxu0 0.0
        %450 = vmatprep.subr.mxu0 0.0
        %451 = vmatpush2.msra.mxu0 0.0
        %452 = vmatprep.subr.mxu0 0.0
        %453 = vmatpush2.msra.mxu0 0.0
        %454 = vmatprep.subr.mxu0 0.0
        %455 = vmatpush2.msra.mxu0 0.0
        %456 = vmatprep.subr.mxu0 0.0
        %457 = vmatpush2.msra.mxu0 0.0
        %458 = vmatprep.subr.mxu0 0.0
        %459 = vmatpush2.msra.mxu0 0.0
        %460 = vmatprep.subr.mxu0 0.0
        %461 = vmatpush2.msra.mxu0 0.0
        %462 = vmatprep.subr.mxu0 0.0
        %463 = vmatpush2.msra.mxu0 0.0
        %464 = vmatprep.subr.mxu0 0.0
        %465 = vmatpush2.msra.mxu0 0.0
        %466 = vmatprep.subr.mxu0 0.0
        %467 = vmatpush2.msra.mxu0 0.0
        %468 = vmatprep.mubr.f32.mxu0 0.0
        %469 = vmatmul.mubr.f32.gmra.mxu0 %v402
        %v470 = vpop.f32.mrf.mxu0
        %v471 = vadd.f32 %v398, %v470
        %v472 = vpop.f32.mrf.mxu0
        %v473 = vadd.f32 %v398, %v472
        %474 = vdwg.mxu0
        %475 = vmatprep.subr.mxu0 0.0
        %476 = vmatpush1.msra.mxu0 0.0
        %477 = vmatprep.subr.mxu0 0.0
        %478 = vmatpush1.msra.mxu0 0.0
        %479 = vmatprep.subr.mxu0 0.0
        %480 = vmatpush1.msra.mxu0 0.0
        %481 = vmatprep.subr.mxu0 0.0
        %482 = vmatpush1.msra.mxu0 0.0
        %483 = vmatprep.subr.mxu0 0.0
        %484 = vmatpush1.msra.mxu0 0.0
        %485 = vmatprep.subr.mxu0 0.0
        %486 = vmatpush1.msra.mxu0 0.0
        %487 = vmatprep.subr.mxu0 0.0
        %488 = vmatpush1.msra.mxu0 0.0
        %489 = vmatprep.subr.mxu0 0.0
        %490 = vmatpush1.msra.mxu0 0.0
        %491 = vmatprep.subr.mxu0 0.0
        %492 = vmatpush1.msra.mxu0 0.0
        %493 = vmatprep.subr.mxu0 0.0
        %494 = vmatpush1.msra.mxu0 0.0
        %495 = vmatprep.subr.mxu0 0.0
        %496 = vmatpush1.msra.mxu0 0.0
        %497 = vmatprep.subr.mxu0 0.0
        %498 = vmatpush1.msra.mxu0 0.0
        %499 = vmatprep.subr.mxu0 0.0
        %500 = vmatpush1.msra.mxu0 0.0
        %501 = vmatprep.subr.mxu0 0.0
        %502 = vmatpush1.msra.mxu0 0.0
        %503 = vmatprep.subr.mxu0 0.0
        %504 = vmatpush1.msra.mxu0 0.0
        %505 = vmatprep.subr.mxu0 %v352
        %506 = vmatpush1.msra.mxu0 %v351
        %507 = vmatprep.subr.mxu0 0.0
        %508 = vmatpush2.msra.mxu0 0.0
        %509 = vmatprep.subr.mxu0 0.0
        %510 = vmatpush2.msra.mxu0 0.0
        %511 = vmatprep.subr.mxu0 0.0
        %512 = vmatpush2.msra.mxu0 0.0
        %513 = vmatprep.subr.mxu0 0.0
        %514 = vmatpush2.msra.mxu0 0.0
        %515 = vmatprep.subr.mxu0 0.0
        %516 = vmatpush2.msra.mxu0 0.0
        %517 = vmatprep.subr.mxu0 0.0
        %518 = vmatpush2.msra.mxu0 0.0
        %519 = vmatprep.subr.mxu0 0.0
        %520 = vmatpush2.msra.mxu0 0.0
        %521 = vmatprep.subr.mxu0 0.0
        %522 = vmatpush2.msra.mxu0 0.0
        %523 = vmatprep.subr.mxu0 0.0
        %524 = vmatpush2.msra.mxu0 0.0
        %525 = vmatprep.subr.mxu0 0.0
        %526 = vmatpush2.msra.mxu0 0.0
        %527 = vmatprep.subr.mxu0 0.0
        %528 = vmatpush2.msra.mxu0 0.0
        %529 = vmatprep.subr.mxu0 0.0
        %530 = vmatpush2.msra.mxu0 0.0
        %531 = vmatprep.subr.mxu0 0.0
        %532 = vmatpush2.msra.mxu0 0.0
        %533 = vmatprep.subr.mxu0 0.0
        %534 = vmatpush2.msra.mxu0 0.0
        %535 = vmatprep.subr.mxu0 0.0
        %536 = vmatpush2.msra.mxu0 0.0
        %537 = vmatprep.subr.mxu0 0.0
        %538 = vmatpush2.msra.mxu0 0.0
        %539 = vmatprep.mubr.f32.mxu0 0.0
        %540 = vmatmul.mubr.f32.gmra.mxu0 %v402
        %v541 = vpop.f32.mrf.mxu0
        %v542 = vadd.f32 %v398, %v541
        %v543 = vpop.f32.mrf.mxu0
        %v544 = vadd.f32 %v398, %v543
        %545 = vdwg.mxu0
        %546 = vmatprep.subr.mxu0 0.0
        %547 = vmatpush1.msra.mxu0 0.0
        %548 = vmatprep.subr.mxu0 0.0
        %549 = vmatpush1.msra.mxu0 0.0
        %550 = vmatprep.subr.mxu0 0.0
        %551 = vmatpush1.msra.mxu0 0.0
        %552 = vmatprep.subr.mxu0 0.0
        %553 = vmatpush1.msra.mxu0 0.0
        %554 = vmatprep.subr.mxu0 0.0
        %555 = vmatpush1.msra.mxu0 0.0
        %556 = vmatprep.subr.mxu0 0.0
        %557 = vmatpush1.msra.mxu0 0.0
        %558 = vmatprep.subr.mxu0 0.0
        %559 = vmatpush1.msra.mxu0 0.0
        %560 = vmatprep.subr.mxu0 0.0
        %561 = vmatpush1.msra.mxu0 0.0
        %562 = vmatprep.subr.mxu0 0.0
        %563 = vmatpush1.msra.mxu0 0.0
        %564 = vmatprep.subr.mxu0 0.0
        %565 = vmatpush1.msra.mxu0 0.0
        %566 = vmatprep.subr.mxu0 0.0
        %567 = vmatpush1.msra.mxu0 0.0
        %568 = vmatprep.subr.mxu0 0.0
        %569 = vmatpush1.msra.mxu0 0.0
        %570 = vmatprep.subr.mxu0 0.0
        %571 = vmatpush1.msra.mxu0 0.0
        %572 = vmatprep.subr.mxu0 0.0
        %573 = vmatpush1.msra.mxu0 0.0
        %574 = vmatprep.subr.mxu0 0.0
        %575 = vmatpush1.msra.mxu0 0.0
        %576 = vmatprep.subr.mxu0 %v354
        %577 = vmatpush1.msra.mxu0 %v353
        %578 = vmatprep.subr.mxu0 0.0
        %579 = vmatpush2.msra.mxu0 0.0
        %580 = vmatprep.subr.mxu0 0.0
        %581 = vmatpush2.msra.mxu0 0.0
        %582 = vmatprep.subr.mxu0 0.0
        %583 = vmatpush2.msra.mxu0 0.0
        %584 = vmatprep.subr.mxu0 0.0
        %585 = vmatpush2.msra.mxu0 0.0
        %586 = vmatprep.subr.mxu0 0.0
        %587 = vmatpush2.msra.mxu0 0.0
        %588 = vmatprep.subr.mxu0 0.0
        %589 = vmatpush2.msra.mxu0 0.0
        %590 = vmatprep.subr.mxu0 0.0
        %591 = vmatpush2.msra.mxu0 0.0
        %592 = vmatprep.subr.mxu0 0.0
        %593 = vmatpush2.msra.mxu0 0.0
        %594 = vmatprep.subr.mxu0 0.0
        %595 = vmatpush2.msra.mxu0 0.0
        %596 = vmatprep.subr.mxu0 0.0
        %597 = vmatpush2.msra.mxu0 0.0
        %598 = vmatprep.subr.mxu0 0.0
        %599 = vmatpush2.msra.mxu0 0.0
        %600 = vmatprep.subr.mxu0 0.0
        %601 = vmatpush2.msra.mxu0 0.0
        %602 = vmatprep.subr.mxu0 0.0
        %603 = vmatpush2.msra.mxu0 0.0
        %604 = vmatprep.subr.mxu0 0.0
        %605 = vmatpush2.msra.mxu0 0.0
        %606 = vmatprep.subr.mxu0 0.0
        %607 = vmatpush2.msra.mxu0 0.0
        %608 = vmatprep.subr.mxu0 0.0
        %609 = vmatpush2.msra.mxu0 0.0
        %610 = vmatprep.mubr.f32.mxu0 0.0
        %611 = vmatmul.mubr.f32.gmra.mxu0 %v402
        %v612 = vpop.f32.mrf.mxu0
        %v613 = vadd.f32 %v398, %v612
        %v614 = vpop.f32.mrf.mxu0
        %v615 = vadd.f32 %v398, %v614
        %616 = vdwg.mxu0
        %617 = vmatprep.subr.mxu0 0.0
        %618 = vmatpush1.msra.mxu0 0.0
        %619 = vmatprep.subr.mxu0 0.0
        %620 = vmatpush1.msra.mxu0 0.0
        %621 = vmatprep.subr.mxu0 0.0
        %622 = vmatpush1.msra.mxu0 0.0
        %623 = vmatprep.subr.mxu0 0.0
        %624 = vmatpush1.msra.mxu0 0.0
        %625 = vmatprep.subr.mxu0 0.0
        %626 = vmatpush1.msra.mxu0 0.0
        %627 = vmatprep.subr.mxu0 0.0
        %628 = vmatpush1.msra.mxu0 0.0
        %629 = vmatprep.subr.mxu0 0.0
        %630 = vmatpush1.msra.mxu0 0.0
        %631 = vmatprep.subr.mxu0 0.0
        %632 = vmatpush1.msra.mxu0 0.0
        %633 = vmatprep.subr.mxu0 0.0
        %634 = vmatpush1.msra.mxu0 0.0
        %635 = vmatprep.subr.mxu0 0.0
        %636 = vmatpush1.msra.mxu0 0.0
        %637 = vmatprep.subr.mxu0 0.0
        %638 = vmatpush1.msra.mxu0 0.0
        %639 = vmatprep.subr.mxu0 0.0
        %640 = vmatpush1.msra.mxu0 0.0
        %641 = vmatprep.subr.mxu0 0.0
        %642 = vmatpush1.msra.mxu0 0.0
        %643 = vmatprep.subr.mxu0 0.0
        %644 = vmatpush1.msra.mxu0 0.0
        %645 = vmatprep.subr.mxu0 0.0
        %646 = vmatpush1.msra.mxu0 0.0
        %647 = vmatprep.subr.mxu0 %v356
        %648 = vmatpush1.msra.mxu0 %v355
        %649 = vmatprep.subr.mxu0 0.0
        %650 = vmatpush2.msra.mxu0 0.0
        %651 = vmatprep.subr.mxu0 0.0
        %652 = vmatpush2.msra.mxu0 0.0
        %653 = vmatprep.subr.mxu0 0.0
        %654 = vmatpush2.msra.mxu0 0.0
        %655 = vmatprep.subr.mxu0 0.0
        %656 = vmatpush2.msra.mxu0 0.0
        %657 = vmatprep.subr.mxu0 0.0
        %658 = vmatpush2.msra.mxu0 0.0
        %659 = vmatprep.subr.mxu0 0.0
        %660 = vmatpush2.msra.mxu0 0.0
        %661 = vmatprep.subr.mxu0 0.0
        %662 = vmatpush2.msra.mxu0 0.0
        %663 = vmatprep.subr.mxu0 0.0
        %664 = vmatpush2.msra.mxu0 0.0
        %665 = vmatprep.subr.mxu0 0.0
        %666 = vmatpush2.msra.mxu0 0.0
        %667 = vmatprep.subr.mxu0 0.0
        %668 = vmatpush2.msra.mxu0 0.0
        %669 = vmatprep.subr.mxu0 0.0
        %670 = vmatpush2.msra.mxu0 0.0
        %671 = vmatprep.subr.mxu0 0.0
        %672 = vmatpush2.msra.mxu0 0.0
        %673 = vmatprep.subr.mxu0 0.0
        %674 = vmatpush2.msra.mxu0 0.0
        %675 = vmatprep.subr.mxu0 0.0
        %676 = vmatpush2.msra.mxu0 0.0
        %677 = vmatprep.subr.mxu0 0.0
        %678 = vmatpush2.msra.mxu0 0.0
        %679 = vmatprep.subr.mxu0 0.0
        %680 = vmatpush2.msra.mxu0 0.0
        %681 = vmatprep.mubr.f32.mxu0 0.0
        %682 = vmatmul.mubr.f32.gmra.mxu0 %v402
        %v683 = vpop.f32.mrf.mxu0
        %v684 = vadd.f32 %v398, %v683
        %v685 = vpop.f32.mrf.mxu0
        %v686 = vadd.f32 %v398, %v685
        %687 = vdwg.mxu0
        %vm688 = vcmp.gt.f32.partialorder %v471, 0.0
        %vm689 = vcmp.gt.f32.partialorder %v473, 0.0
        %vm690 = vcmp.gt.f32.partialorder %v542, 0.0
        %vm691 = vcmp.gt.f32.partialorder %v544, 0.0
        %vm692 = vcmp.gt.f32.partialorder %v613, 0.0
        %vm693 = vcmp.gt.f32.partialorder %v615, 0.0
        %vm694 = vcmp.gt.f32.partialorder %v684, 0.0
        %vm695 = vcmp.gt.f32.partialorder %v686, 0.0
        %v696 = vmul.f32 %v471, 0.3
        %v697 = vmul.f32 %v473, 0.3
        %v698 = vmul.f32 %v542, 0.3
        %v699 = vmul.f32 %v544, 0.3
        %v700 = vmul.f32 %v613, 0.3
        %v701 = vmul.f32 %v615, 0.3
        %v702 = vmul.f32 %v684, 0.3
        %v703 = vmul.f32 %v686, 0.3
        %v704 = vsel %vm688, %v471, %v696
        %v705 = vsel %vm689, %v473, %v697
        %v706 = vsel %vm690, %v542, %v698
        %v707 = vsel %vm691, %v544, %v699
        %v708 = vsel %vm692, %v613, %v700
        %v709 = vsel %vm693, %v615, %v701
        %v710 = vsel %vm694, %v684, %v702
        %v711 = vsel %vm695, %v686, %v703
        %712 = vst [vmem:[#allocation2 + $0x10] sm:$0xff] %v704
        %713 = vst [vmem:[#allocation2 + $0x18] sm:$0xff] %v705
        %714 = vst [vmem:[#allocation2 + $0x20] sm:$0xff] %v706
        %715 = vst [vmem:[#allocation2 + $0x28] sm:$0xff] %v707
        %716 = vst [vmem:[#allocation2 + $0x30] sm:$0xff] %v708
        %717 = vst [vmem:[#allocation2 + $0x38] sm:$0xff] %v709
        %718 = vst [vmem:[#allocation2 + $0x40] sm:$0xff] %v710
        %719 = vst [vmem:[#allocation2 + $0x48] sm:$0xff] %v711
        %v720 = vld [vmem:[#allocation2] sm:$0xff]
        %v721 = vld [vmem:[#allocation2 + $0x8] sm:$0xff]
        %v722 = vld [vmem:[#allocation2 + $0x10] sm:$0xff]
        %v723 = vld [vmem:[#allocation2 + $0x18] sm:$0xff]
        %v724 = vld [vmem:[#allocation2 + $0x20] sm:$0xff]
        %v725 = vld [vmem:[#allocation2 + $0x28] sm:$0xff]
        %v726 = vld [vmem:[#allocation2 + $0x30] sm:$0xff]
        %v727 = vld [vmem:[#allocation2 + $0x38] sm:$0xff]
        %v728 = vld [vmem:[#allocation2 + $0x40] sm:$0xff]
        %v729 = vld [vmem:[#allocation2 + $0x48] sm:$0xff]
        %v730 = vld [vmem:[#allocation2 + $0x50] sm:$0xff]
        %v731 = vld [vmem:[#allocation2 + $0x58] sm:$0xff]
        %v732 = vlaneseq
        %v733 = vshrl.u32 %v732, 7
        %v734 = vsub.s32 0, %v733
        %v735 = vrot.slane %v357, %v734
        %v736 = vlaneseq
        %v737 = vshrl.u32 %v736, 7
        %v738 = vsub.s32 0, %v737
        %v739 = vrot.slane %v358, %v738
        %v740 = vlaneseq
        %v741 = vshrl.u32 %v740, 7
        %v742 = vsub.s32 0, %v741
        %v743 = vrot.slane %v359, %v742
        %v744 = vlaneseq
        %v745 = vshrl.u32 %v744, 7
        %v746 = vsub.s32 0, %v745
        %v747 = vrot.slane %v360, %v746
        %v748 = vlaneseq
        %v749 = vshrl.u32 %v748, 7
        %v750 = vsub.s32 0, %v749
        %v751 = vrot.slane %v361, %v750
        %v752 = vlaneseq
        %v753 = vshrl.u32 %v752, 7
        %v754 = vsub.s32 0, %v753
        %v755 = vrot.slane %v362, %v754
        %v756 = vlaneseq
        %v757 = vshrl.u32 %v756, 7
        %v758 = vsub.s32 0, %v757
        %v759 = vrot.slane %v363, %v758
        %v760 = vlaneseq
        %v761 = vshrl.u32 %v760, 7
        %v762 = vsub.s32 0, %v761
        %v763 = vrot.slane %v364, %v762
        %772 = vrot.lane.b32.xlu0 %v735, 119
        %v773 = vpop.permute.xlu0 %772
        %774 = vrot.lane.b32.xlu0 %v739, 119
        %v775 = vpop.permute.xlu0 %774
        %776 = vrot.lane.b32.xlu0 %v743, 119
        %v777 = vpop.permute.xlu0 %776
        %778 = vrot.lane.b32.xlu0 %v747, 119
        %v779 = vpop.permute.xlu0 %778
        %780 = vrot.lane.b32.xlu0 %v751, 119
        %v781 = vpop.permute.xlu0 %780
        %782 = vrot.lane.b32.xlu0 %v755, 119
        %v783 = vpop.permute.xlu0 %782
        %784 = vrot.lane.b32.xlu0 %v759, 119
        %v785 = vpop.permute.xlu0 %784
        %786 = vrot.lane.b32.xlu0 %v763, 119
        %v787 = vpop.permute.xlu0 %786
        %vm788 = vcmask 973824
        %v789 = vsel %vm788, %v773, %v775
        %v790 = vsel %vm788, %v775, %v777
        %v791 = vsel %vm788, %v777, %v779
        %v792 = vsel %vm788, %v779, %v781
        %v793 = vsel %vm788, %v781, %v783
        %v794 = vsel %vm788, %v783, %v785
        %v795 = vsel %vm788, %v785, %v787
        %v805 = vmul.f32 %v720, %v773
        %v806 = vmul.f32 %v721, %v789
        %v807 = vmul.f32 %v722, %v790
        %v808 = vmul.f32 %v723, %v791
        %v809 = vmul.f32 %v724, %v792
        %v810 = vmul.f32 %v725, %v793
        %v811 = vmul.f32 %v726, %v794
        %v812 = vmul.f32 %v727, %v795
        %v813 = vmul.f32 %v728, %v787
        %823 = vrot.lane.b32.xlu0 %v805, 9
        %v824 = vpop.permute.xlu0 %823
        %825 = vrot.lane.b32.xlu0 %v806, 9
        %v826 = vpop.permute.xlu0 %825
        %827 = vrot.lane.b32.xlu0 %v807, 9
        %v828 = vpop.permute.xlu0 %827
        %829 = vrot.lane.b32.xlu0 %v808, 9
        %v830 = vpop.permute.xlu0 %829
        %831 = vrot.lane.b32.xlu0 %v809, 9
        %v832 = vpop.permute.xlu0 %831
        %833 = vrot.lane.b32.xlu0 %v810, 9
        %v834 = vpop.permute.xlu0 %833
        %835 = vrot.lane.b32.xlu0 %v811, 9
        %v836 = vpop.permute.xlu0 %835
        %837 = vrot.lane.b32.xlu0 %v812, 9
        %v838 = vpop.permute.xlu0 %837
        %839 = vrot.lane.b32.xlu0 %v813, 9
        %v840 = vpop.permute.xlu0 %839
        %vm841 = vcmask 72704
        %v842 = vsel %vm841, %v824, %v826
        %v843 = vsel %vm841, %v826, %v828
        %v844 = vsel %vm841, %v828, %v830
        %v845 = vsel %vm841, %v830, %v832
        %v846 = vsel %vm841, %v832, %v834
        %v847 = vsel %vm841, %v834, %v836
        %v848 = vsel %vm841, %v836, %v838
        %v849 = vsel %vm841, %v838, %v840
        %858 = vst [vmem:[#allocation3] sm:$0xff] %v842
        %859 = vst [vmem:[#allocation3 + $0x8] sm:$0xff] %v843
        %860 = vst [vmem:[#allocation3 + $0x10] sm:$0xff] %v844
        %861 = vst [vmem:[#allocation3 + $0x18] sm:$0xff] %v845
        %862 = vst [vmem:[#allocation3 + $0x20] sm:$0xff] %v846
        %863 = vst [vmem:[#allocation3 + $0x28] sm:$0xff] %v847
        %864 = vst [vmem:[#allocation3 + $0x30] sm:$0xff] %v848
        %865 = vst [vmem:[#allocation3 + $0x38] sm:$0xff] %v849
        %v866 = vlaneseq
        %v867 = vshrl.u32 %v866, 7
        %v868 = vsub.s32 1, %v867
        %v869 = vrot.slane %v365, %v868
        %v870 = vlaneseq
        %v871 = vshrl.u32 %v870, 7
        %v872 = vsub.s32 1, %v871
        %v873 = vrot.slane %v366, %v872
        %v874 = vlaneseq
        %v875 = vshrl.u32 %v874, 7
        %v876 = vsub.s32 1, %v875
        %v877 = vrot.slane %v367, %v876
        %v878 = vlaneseq
        %v879 = vshrl.u32 %v878, 7
        %v880 = vsub.s32 1, %v879
        %v881 = vrot.slane %v368, %v880
        %v882 = vlaneseq
        %v883 = vshrl.u32 %v882, 7
        %v884 = vsub.s32 1, %v883
        %v885 = vrot.slane %v369, %v884
        %v886 = vlaneseq
        %v887 = vshrl.u32 %v886, 7
        %v888 = vsub.s32 1, %v887
        %v889 = vrot.slane %v370, %v888
        %v890 = vlaneseq
        %v891 = vshrl.u32 %v890, 7
        %v892 = vsub.s32 1, %v891
        %v893 = vrot.slane %v371, %v892
        %v894 = vlaneseq
        %v895 = vshrl.u32 %v894, 7
        %v896 = vsub.s32 1, %v895
        %v897 = vrot.slane %v372, %v896
        %906 = vrot.lane.b32.xlu0 %v869, 119
        %v907 = vpop.permute.xlu0 %906
        %908 = vrot.lane.b32.xlu0 %v873, 119
        %v909 = vpop.permute.xlu0 %908
        %910 = vrot.lane.b32.xlu0 %v877, 119
        %v911 = vpop.permute.xlu0 %910
        %912 = vrot.lane.b32.xlu0 %v881, 119
        %v913 = vpop.permute.xlu0 %912
        %914 = vrot.lane.b32.xlu0 %v885, 119
        %v915 = vpop.permute.xlu0 %914
        %916 = vrot.lane.b32.xlu0 %v889, 119
        %v917 = vpop.permute.xlu0 %916
        %918 = vrot.lane.b32.xlu0 %v893, 119
        %v919 = vpop.permute.xlu0 %918
        %920 = vrot.lane.b32.xlu0 %v897, 119
        %v921 = vpop.permute.xlu0 %920
        %v922 = vsel %vm788, %v907, %v909
        %v923 = vsel %vm788, %v909, %v911
        %v924 = vsel %vm788, %v911, %v913
        %v925 = vsel %vm788, %v913, %v915
        %v926 = vsel %vm788, %v915, %v917
        %v927 = vsel %vm788, %v917, %v919
        %v928 = vsel %vm788, %v919, %v921
        %v938 = vmul.f32 %v721, %v907
        %v939 = vmul.f32 %v722, %v922
        %v940 = vmul.f32 %v723, %v923
        %v941 = vmul.f32 %v724, %v924
        %v942 = vmul.f32 %v725, %v925
        %v943 = vmul.f32 %v726, %v926
        %v944 = vmul.f32 %v727, %v927
        %v945 = vmul.f32 %v728, %v928
        %v946 = vmul.f32 %v729, %v921
        %956 = vrot.lane.b32.xlu0 %v938, 9
        %v957 = vpop.permute.xlu0 %956
        %958 = vrot.lane.b32.xlu0 %v939, 9
        %v959 = vpop.permute.xlu0 %958
        %960 = vrot.lane.b32.xlu0 %v940, 9
        %v961 = vpop.permute.xlu0 %960
        %962 = vrot.lane.b32.xlu0 %v941, 9
        %v963 = vpop.permute.xlu0 %962
        %964 = vrot.lane.b32.xlu0 %v942, 9
        %v965 = vpop.permute.xlu0 %964
        %966 = vrot.lane.b32.xlu0 %v943, 9
        %v967 = vpop.permute.xlu0 %966
        %968 = vrot.lane.b32.xlu0 %v944, 9
        %v969 = vpop.permute.xlu0 %968
        %970 = vrot.lane.b32.xlu0 %v945, 9
        %v971 = vpop.permute.xlu0 %970
        %972 = vrot.lane.b32.xlu0 %v946, 9
        %v973 = vpop.permute.xlu0 %972
        %v974 = vsel %vm841, %v957, %v959
        %v975 = vsel %vm841, %v959, %v961
        %v976 = vsel %vm841, %v961, %v963
        %v977 = vsel %vm841, %v963, %v965
        %v978 = vsel %vm841, %v965, %v967
        %v979 = vsel %vm841, %v967, %v969
        %v980 = vsel %vm841, %v969, %v971
        %v981 = vsel %vm841, %v971, %v973
        %990 = vst [vmem:[#allocation3 + $0x240] sm:$0xff] %v974
        %991 = vst [vmem:[#allocation3 + $0x248] sm:$0xff] %v975
        %992 = vst [vmem:[#allocation3 + $0x250] sm:$0xff] %v976
        %993 = vst [vmem:[#allocation3 + $0x258] sm:$0xff] %v977
        %994 = vst [vmem:[#allocation3 + $0x260] sm:$0xff] %v978
        %995 = vst [vmem:[#allocation3 + $0x268] sm:$0xff] %v979
        %996 = vst [vmem:[#allocation3 + $0x270] sm:$0xff] %v980
        %997 = vst [vmem:[#allocation3 + $0x278] sm:$0xff] %v981
        %v998 = vlaneseq
        %v999 = vshrl.u32 %v998, 7
        %v1000 = vsub.s32 2, %v999
        %v1001 = vrot.slane %v373, %v1000
        %v1002 = vlaneseq
        %v1003 = vshrl.u32 %v1002, 7
        %v1004 = vsub.s32 2, %v1003
        %v1005 = vrot.slane %v374, %v1004
        %v1006 = vlaneseq
        %v1007 = vshrl.u32 %v1006, 7
        %v1008 = vsub.s32 2, %v1007
        %v1009 = vrot.slane %v375, %v1008
        %v1010 = vlaneseq
        %v1011 = vshrl.u32 %v1010, 7
        %v1012 = vsub.s32 2, %v1011
        %v1013 = vrot.slane %v376, %v1012
        %v1014 = vlaneseq
        %v1015 = vshrl.u32 %v1014, 7
        %v1016 = vsub.s32 2, %v1015
        %v1017 = vrot.slane %v377, %v1016
        %v1018 = vlaneseq
        %v1019 = vshrl.u32 %v1018, 7
        %v1020 = vsub.s32 2, %v1019
        %v1021 = vrot.slane %v378, %v1020
        %v1022 = vlaneseq
        %v1023 = vshrl.u32 %v1022, 7
        %v1024 = vsub.s32 2, %v1023
        %v1025 = vrot.slane %v379, %v1024
        %v1026 = vlaneseq
        %v1027 = vshrl.u32 %v1026, 7
        %v1028 = vsub.s32 2, %v1027
        %v1029 = vrot.slane %v380, %v1028
        %1038 = vrot.lane.b32.xlu0 %v1001, 119
        %v1039 = vpop.permute.xlu0 %1038
        %1040 = vrot.lane.b32.xlu0 %v1005, 119
        %v1041 = vpop.permute.xlu0 %1040
        %1042 = vrot.lane.b32.xlu0 %v1009, 119
        %v1043 = vpop.permute.xlu0 %1042
        %1044 = vrot.lane.b32.xlu0 %v1013, 119
        %v1045 = vpop.permute.xlu0 %1044
        %1046 = vrot.lane.b32.xlu0 %v1017, 119
        %v1047 = vpop.permute.xlu0 %1046
        %1048 = vrot.lane.b32.xlu0 %v1021, 119
        %v1049 = vpop.permute.xlu0 %1048
        %1050 = vrot.lane.b32.xlu0 %v1025, 119
        %v1051 = vpop.permute.xlu0 %1050
        %1052 = vrot.lane.b32.xlu0 %v1029, 119
        %v1053 = vpop.permute.xlu0 %1052
        %v1054 = vsel %vm788, %v1039, %v1041
        %v1055 = vsel %vm788, %v1041, %v1043
        %v1056 = vsel %vm788, %v1043, %v1045
        %v1057 = vsel %vm788, %v1045, %v1047
        %v1058 = vsel %vm788, %v1047, %v1049
        %v1059 = vsel %vm788, %v1049, %v1051
        %v1060 = vsel %vm788, %v1051, %v1053
        %v1070 = vmul.f32 %v722, %v1039
        %v1071 = vmul.f32 %v723, %v1054
        %v1072 = vmul.f32 %v724, %v1055
        %v1073 = vmul.f32 %v725, %v1056
        %v1074 = vmul.f32 %v726, %v1057
        %v1075 = vmul.f32 %v727, %v1058
        %v1076 = vmul.f32 %v728, %v1059
        %v1077 = vmul.f32 %v729, %v1060
        %v1078 = vmul.f32 %v730, %v1053
        %1088 = vrot.lane.b32.xlu0 %v1070, 9
        %v1089 = vpop.permute.xlu0 %1088
        %1090 = vrot.lane.b32.xlu0 %v1071, 9
        %v1091 = vpop.permute.xlu0 %1090
        %1092 = vrot.lane.b32.xlu0 %v1072, 9
        %v1093 = vpop.permute.xlu0 %1092
        %1094 = vrot.lane.b32.xlu0 %v1073, 9
        %v1095 = vpop.permute.xlu0 %1094
        %1096 = vrot.lane.b32.xlu0 %v1074, 9
        %v1097 = vpop.permute.xlu0 %1096
        %1098 = vrot.lane.b32.xlu0 %v1075, 9
        %v1099 = vpop.permute.xlu0 %1098
        %1100 = vrot.lane.b32.xlu0 %v1076, 9
        %v1101 = vpop.permute.xlu0 %1100
        %1102 = vrot.lane.b32.xlu0 %v1077, 9
        %v1103 = vpop.permute.xlu0 %1102
        %1104 = vrot.lane.b32.xlu0 %v1078, 9
        %v1105 = vpop.permute.xlu0 %1104
        %v1106 = vsel %vm841, %v1089, %v1091
        %v1107 = vsel %vm841, %v1091, %v1093
        %v1108 = vsel %vm841, %v1093, %v1095
        %v1109 = vsel %vm841, %v1095, %v1097
        %v1110 = vsel %vm841, %v1097, %v1099
        %v1111 = vsel %vm841, %v1099, %v1101
        %v1112 = vsel %vm841, %v1101, %v1103
        %v1113 = vsel %vm841, %v1103, %v1105
        %1122 = vst [vmem:[#allocation3 + $0x480] sm:$0xff] %v1106
        %1123 = vst [vmem:[#allocation3 + $0x488] sm:$0xff] %v1107
        %1124 = vst [vmem:[#allocation3 + $0x490] sm:$0xff] %v1108
        %1125 = vst [vmem:[#allocation3 + $0x498] sm:$0xff] %v1109
        %1126 = vst [vmem:[#allocation3 + $0x4a0] sm:$0xff] %v1110
        %1127 = vst [vmem:[#allocation3 + $0x4a8] sm:$0xff] %v1111
        %1128 = vst [vmem:[#allocation3 + $0x4b0] sm:$0xff] %v1112
        %1129 = vst [vmem:[#allocation3 + $0x4b8] sm:$0xff] %v1113
        %v1130 = vlaneseq
        %v1131 = vshrl.u32 %v1130, 7
        %v1132 = vsub.s32 1, %v1131
        %v1133 = vrot.slane %v357, %v1132
        %v1134 = vlaneseq
        %v1135 = vshrl.u32 %v1134, 7
        %v1136 = vsub.s32 1, %v1135
        %v1137 = vrot.slane %v358, %v1136
        %v1138 = vlaneseq
        %v1139 = vshrl.u32 %v1138, 7
        %v1140 = vsub.s32 1, %v1139
        %v1141 = vrot.slane %v359, %v1140
        %v1142 = vlaneseq
        %v1143 = vshrl.u32 %v1142, 7
        %v1144 = vsub.s32 1, %v1143
        %v1145 = vrot.slane %v360, %v1144
        %v1146 = vlaneseq
        %v1147 = vshrl.u32 %v1146, 7
        %v1148 = vsub.s32 1, %v1147
        %v1149 = vrot.slane %v361, %v1148
        %v1150 = vlaneseq
        %v1151 = vshrl.u32 %v1150, 7
        %v1152 = vsub.s32 1, %v1151
        %v1153 = vrot.slane %v362, %v1152
        %v1154 = vlaneseq
        %v1155 = vshrl.u32 %v1154, 7
        %v1156 = vsub.s32 1, %v1155
        %v1157 = vrot.slane %v363, %v1156
        %v1158 = vlaneseq
        %v1159 = vshrl.u32 %v1158, 7
        %v1160 = vsub.s32 1, %v1159
        %v1161 = vrot.slane %v364, %v1160
        %1170 = vrot.lane.b32.xlu0 %v1133, 120
        %v1171 = vpop.permute.xlu0 %1170
        %1172 = vrot.lane.b32.xlu0 %v1137, 120
        %v1173 = vpop.permute.xlu0 %1172
        %1174 = vrot.lane.b32.xlu0 %v1141, 120
        %v1175 = vpop.permute.xlu0 %1174
        %1176 = vrot.lane.b32.xlu0 %v1145, 120
        %v1177 = vpop.permute.xlu0 %1176
        %1178 = vrot.lane.b32.xlu0 %v1149, 120
        %v1179 = vpop.permute.xlu0 %1178
        %1180 = vrot.lane.b32.xlu0 %v1153, 120
        %v1181 = vpop.permute.xlu0 %1180
        %1182 = vrot.lane.b32.xlu0 %v1157, 120
        %v1183 = vpop.permute.xlu0 %1182
        %1184 = vrot.lane.b32.xlu0 %v1161, 120
        %v1185 = vpop.permute.xlu0 %1184
        %vm1186 = vcmask 982016
        %v1187 = vsel %vm1186, %v1171, %v1173
        %v1188 = vsel %vm1186, %v1173, %v1175
        %v1189 = vsel %vm1186, %v1175, %v1177
        %v1190 = vsel %vm1186, %v1177, %v1179
        %v1191 = vsel %vm1186, %v1179, %v1181
        %v1192 = vsel %vm1186, %v1181, %v1183
        %v1193 = vsel %vm1186, %v1183, %v1185
        %v1203 = vmul.f32 %v720, %v1171
        %v1204 = vmul.f32 %v721, %v1187
        %v1205 = vmul.f32 %v722, %v1188
        %v1206 = vmul.f32 %v723, %v1189
        %v1207 = vmul.f32 %v724, %v1190
        %v1208 = vmul.f32 %v725, %v1191
        %v1209 = vmul.f32 %v726, %v1192
        %v1210 = vmul.f32 %v727, %v1193
        %v1211 = vmul.f32 %v728, %v1185
        %1221 = vrot.lane.b32.xlu0 %v1203, 8
        %v1222 = vpop.permute.xlu0 %1221
        %1223 = vrot.lane.b32.xlu0 %v1204, 8
        %v1224 = vpop.permute.xlu0 %1223
        %1225 = vrot.lane.b32.xlu0 %v1205, 8
        %v1226 = vpop.permute.xlu0 %1225
        %1227 = vrot.lane.b32.xlu0 %v1206, 8
        %v1228 = vpop.permute.xlu0 %1227
        %1229 = vrot.lane.b32.xlu0 %v1207, 8
        %v1230 = vpop.permute.xlu0 %1229
        %1231 = vrot.lane.b32.xlu0 %v1208, 8
        %v1232 = vpop.permute.xlu0 %1231
        %1233 = vrot.lane.b32.xlu0 %v1209, 8
        %v1234 = vpop.permute.xlu0 %1233
        %1235 = vrot.lane.b32.xlu0 %v1210, 8
        %v1236 = vpop.permute.xlu0 %1235
        %1237 = vrot.lane.b32.xlu0 %v1211, 8
        %v1238 = vpop.permute.xlu0 %1237
        %v1239 = vsel %vm400, %v1222, %v1224
        %v1240 = vsel %vm400, %v1224, %v1226
        %v1241 = vsel %vm400, %v1226, %v1228
        %v1242 = vsel %vm400, %v1228, %v1230
        %v1243 = vsel %vm400, %v1230, %v1232
        %v1244 = vsel %vm400, %v1232, %v1234
        %v1245 = vsel %vm400, %v1234, %v1236
        %v1246 = vsel %vm400, %v1236, %v1238
        %1255 = vst [vmem:[#allocation3 + $0x40] sm:$0xff] %v1239
        %1256 = vst [vmem:[#allocation3 + $0x48] sm:$0xff] %v1240
        %1257 = vst [vmem:[#allocation3 + $0x50] sm:$0xff] %v1241
        %1258 = vst [vmem:[#allocation3 + $0x58] sm:$0xff] %v1242
        %1259 = vst [vmem:[#allocation3 + $0x60] sm:$0xff] %v1243
        %1260 = vst [vmem:[#allocation3 + $0x68] sm:$0xff] %v1244
        %1261 = vst [vmem:[#allocation3 + $0x70] sm:$0xff] %v1245
        %1262 = vst [vmem:[#allocation3 + $0x78] sm:$0xff] %v1246
        %v1263 = vlaneseq
        %v1264 = vshrl.u32 %v1263, 7
        %v1265 = vsub.s32 2, %v1264
        %v1266 = vrot.slane %v365, %v1265
        %v1267 = vlaneseq
        %v1268 = vshrl.u32 %v1267, 7
        %v1269 = vsub.s32 2, %v1268
        %v1270 = vrot.slane %v366, %v1269
        %v1271 = vlaneseq
        %v1272 = vshrl.u32 %v1271, 7
        %v1273 = vsub.s32 2, %v1272
        %v1274 = vrot.slane %v367, %v1273
        %v1275 = vlaneseq
        %v1276 = vshrl.u32 %v1275, 7
        %v1277 = vsub.s32 2, %v1276
        %v1278 = vrot.slane %v368, %v1277
        %v1279 = vlaneseq
        %v1280 = vshrl.u32 %v1279, 7
        %v1281 = vsub.s32 2, %v1280
        %v1282 = vrot.slane %v369, %v1281
        %v1283 = vlaneseq
        %v1284 = vshrl.u32 %v1283, 7
        %v1285 = vsub.s32 2, %v1284
        %v1286 = vrot.slane %v370, %v1285
        %v1287 = vlaneseq
        %v1288 = vshrl.u32 %v1287, 7
        %v1289 = vsub.s32 2, %v1288
        %v1290 = vrot.slane %v371, %v1289
        %v1291 = vlaneseq
        %v1292 = vshrl.u32 %v1291, 7
        %v1293 = vsub.s32 2, %v1292
        %v1294 = vrot.slane %v372, %v1293
        %1303 = vrot.lane.b32.xlu0 %v1266, 120
        %v1304 = vpop.permute.xlu0 %1303
        %1305 = vrot.lane.b32.xlu0 %v1270, 120
        %v1306 = vpop.permute.xlu0 %1305
        %1307 = vrot.lane.b32.xlu0 %v1274, 120
        %v1308 = vpop.permute.xlu0 %1307
        %1309 = vrot.lane.b32.xlu0 %v1278, 120
        %v1310 = vpop.permute.xlu0 %1309
        %1311 = vrot.lane.b32.xlu0 %v1282, 120
        %v1312 = vpop.permute.xlu0 %1311
        %1313 = vrot.lane.b32.xlu0 %v1286, 120
        %v1314 = vpop.permute.xlu0 %1313
        %1315 = vrot.lane.b32.xlu0 %v1290, 120
        %v1316 = vpop.permute.xlu0 %1315
        %1317 = vrot.lane.b32.xlu0 %v1294, 120
        %v1318 = vpop.permute.xlu0 %1317
        %v1319 = vsel %vm1186, %v1304, %v1306
        %v1320 = vsel %vm1186, %v1306, %v1308
        %v1321 = vsel %vm1186, %v1308, %v1310
        %v1322 = vsel %vm1186, %v1310, %v1312
        %v1323 = vsel %vm1186, %v1312, %v1314
        %v1324 = vsel %vm1186, %v1314, %v1316
        %v1325 = vsel %vm1186, %v1316, %v1318
        %v1335 = vmul.f32 %v721, %v1304
        %v1336 = vmul.f32 %v722, %v1319
        %v1337 = vmul.f32 %v723, %v1320
        %v1338 = vmul.f32 %v724, %v1321
        %v1339 = vmul.f32 %v725, %v1322
        %v1340 = vmul.f32 %v726, %v1323
        %v1341 = vmul.f32 %v727, %v1324
        %v1342 = vmul.f32 %v728, %v1325
        %v1343 = vmul.f32 %v729, %v1318
        %1353 = vrot.lane.b32.xlu0 %v1335, 8
        %v1354 = vpop.permute.xlu0 %1353
        %1355 = vrot.lane.b32.xlu0 %v1336, 8
        %v1356 = vpop.permute.xlu0 %1355
        %1357 = vrot.lane.b32.xlu0 %v1337, 8
        %v1358 = vpop.permute.xlu0 %1357
        %1359 = vrot.lane.b32.xlu0 %v1338, 8
        %v1360 = vpop.permute.xlu0 %1359
        %1361 = vrot.lane.b32.xlu0 %v1339, 8
        %v1362 = vpop.permute.xlu0 %1361
        %1363 = vrot.lane.b32.xlu0 %v1340, 8
        %v1364 = vpop.permute.xlu0 %1363
        %1365 = vrot.lane.b32.xlu0 %v1341, 8
        %v1366 = vpop.permute.xlu0 %1365
        %1367 = vrot.lane.b32.xlu0 %v1342, 8
        %v1368 = vpop.permute.xlu0 %1367
        %1369 = vrot.lane.b32.xlu0 %v1343, 8
        %v1370 = vpop.permute.xlu0 %1369
        %v1371 = vsel %vm400, %v1354, %v1356
        %v1372 = vsel %vm400, %v1356, %v1358
        %v1373 = vsel %vm400, %v1358, %v1360
        %v1374 = vsel %vm400, %v1360, %v1362
        %v1375 = vsel %vm400, %v1362, %v1364
        %v1376 = vsel %vm400, %v1364, %v1366
        %v1377 = vsel %vm400, %v1366, %v1368
        %v1378 = vsel %vm400, %v1368, %v1370
        %1387 = vst [vmem:[#allocation3 + $0x280] sm:$0xff] %v1371
        %1388 = vst [vmem:[#allocation3 + $0x288] sm:$0xff] %v1372
        %1389 = vst [vmem:[#allocation3 + $0x290] sm:$0xff] %v1373
        %1390 = vst [vmem:[#allocation3 + $0x298] sm:$0xff] %v1374
        %1391 = vst [vmem:[#allocation3 + $0x2a0] sm:$0xff] %v1375
        %1392 = vst [vmem:[#allocation3 + $0x2a8] sm:$0xff] %v1376
        %1393 = vst [vmem:[#allocation3 + $0x2b0] sm:$0xff] %v1377
        %1394 = vst [vmem:[#allocation3 + $0x2b8] sm:$0xff] %v1378
        %v1395 = vlaneseq
        %v1396 = vshrl.u32 %v1395, 7
        %v1397 = vsub.s32 3, %v1396
        %v1398 = vrot.slane %v373, %v1397
        %v1399 = vlaneseq
        %v1400 = vshrl.u32 %v1399, 7
        %v1401 = vsub.s32 3, %v1400
        %v1402 = vrot.slane %v374, %v1401
        %v1403 = vlaneseq
        %v1404 = vshrl.u32 %v1403, 7
        %v1405 = vsub.s32 3, %v1404
        %v1406 = vrot.slane %v375, %v1405
        %v1407 = vlaneseq
        %v1408 = vshrl.u32 %v1407, 7
        %v1409 = vsub.s32 3, %v1408
        %v1410 = vrot.slane %v376, %v1409
        %v1411 = vlaneseq
        %v1412 = vshrl.u32 %v1411, 7
        %v1413 = vsub.s32 3, %v1412
        %v1414 = vrot.slane %v377, %v1413
        %v1415 = vlaneseq
        %v1416 = vshrl.u32 %v1415, 7
        %v1417 = vsub.s32 3, %v1416
        %v1418 = vrot.slane %v378, %v1417
        %v1419 = vlaneseq
        %v1420 = vshrl.u32 %v1419, 7
        %v1421 = vsub.s32 3, %v1420
        %v1422 = vrot.slane %v379, %v1421
        %v1423 = vlaneseq
        %v1424 = vshrl.u32 %v1423, 7
        %v1425 = vsub.s32 3, %v1424
        %v1426 = vrot.slane %v380, %v1425
        %1435 = vrot.lane.b32.xlu0 %v1398, 120
        %v1436 = vpop.permute.xlu0 %1435
        %1437 = vrot.lane.b32.xlu0 %v1402, 120
        %v1438 = vpop.permute.xlu0 %1437
        %1439 = vrot.lane.b32.xlu0 %v1406, 120
        %v1440 = vpop.permute.xlu0 %1439
        %1441 = vrot.lane.b32.xlu0 %v1410, 120
        %v1442 = vpop.permute.xlu0 %1441
        %1443 = vrot.lane.b32.xlu0 %v1414, 120
        %v1444 = vpop.permute.xlu0 %1443
        %1445 = vrot.lane.b32.xlu0 %v1418, 120
        %v1446 = vpop.permute.xlu0 %1445
        %1447 = vrot.lane.b32.xlu0 %v1422, 120
        %v1448 = vpop.permute.xlu0 %1447
        %1449 = vrot.lane.b32.xlu0 %v1426, 120
        %v1450 = vpop.permute.xlu0 %1449
        %v1451 = vsel %vm1186, %v1436, %v1438
        %v1452 = vsel %vm1186, %v1438, %v1440
        %v1453 = vsel %vm1186, %v1440, %v1442
        %v1454 = vsel %vm1186, %v1442, %v1444
        %v1455 = vsel %vm1186, %v1444, %v1446
        %v1456 = vsel %vm1186, %v1446, %v1448
        %v1457 = vsel %vm1186, %v1448, %v1450
        %v1467 = vmul.f32 %v722, %v1436
        %v1468 = vmul.f32 %v723, %v1451
        %v1469 = vmul.f32 %v724, %v1452
        %v1470 = vmul.f32 %v725, %v1453
        %v1471 = vmul.f32 %v726, %v1454
        %v1472 = vmul.f32 %v727, %v1455
        %v1473 = vmul.f32 %v728, %v1456
        %v1474 = vmul.f32 %v729, %v1457
        %v1475 = vmul.f32 %v730, %v1450
        %1485 = vrot.lane.b32.xlu0 %v1467, 8
        %v1486 = vpop.permute.xlu0 %1485
        %1487 = vrot.lane.b32.xlu0 %v1468, 8
        %v1488 = vpop.permute.xlu0 %1487
        %1489 = vrot.lane.b32.xlu0 %v1469, 8
        %v1490 = vpop.permute.xlu0 %1489
        %1491 = vrot.lane.b32.xlu0 %v1470, 8
        %v1492 = vpop.permute.xlu0 %1491
        %1493 = vrot.lane.b32.xlu0 %v1471, 8
        %v1494 = vpop.permute.xlu0 %1493
        %1495 = vrot.lane.b32.xlu0 %v1472, 8
        %v1496 = vpop.permute.xlu0 %1495
        %1497 = vrot.lane.b32.xlu0 %v1473, 8
        %v1498 = vpop.permute.xlu0 %1497
        %1499 = vrot.lane.b32.xlu0 %v1474, 8
        %v1500 = vpop.permute.xlu0 %1499
        %1501 = vrot.lane.b32.xlu0 %v1475, 8
        %v1502 = vpop.permute.xlu0 %1501
        %v1503 = vsel %vm400, %v1486, %v1488
        %v1504 = vsel %vm400, %v1488, %v1490
        %v1505 = vsel %vm400, %v1490, %v1492
        %v1506 = vsel %vm400, %v1492, %v1494
        %v1507 = vsel %vm400, %v1494, %v1496
        %v1508 = vsel %vm400, %v1496, %v1498
        %v1509 = vsel %vm400, %v1498, %v1500
        %v1510 = vsel %vm400, %v1500, %v1502
        %1519 = vst [vmem:[#allocation3 + $0x4c0] sm:$0xff] %v1503
        %1520 = vst [vmem:[#allocation3 + $0x4c8] sm:$0xff] %v1504
        %1521 = vst [vmem:[#allocation3 + $0x4d0] sm:$0xff] %v1505
        %1522 = vst [vmem:[#allocation3 + $0x4d8] sm:$0xff] %v1506
        %1523 = vst [vmem:[#allocation3 + $0x4e0] sm:$0xff] %v1507
        %1524 = vst [vmem:[#allocation3 + $0x4e8] sm:$0xff] %v1508
        %1525 = vst [vmem:[#allocation3 + $0x4f0] sm:$0xff] %v1509
        %1526 = vst [vmem:[#allocation3 + $0x4f8] sm:$0xff] %v1510
        %v1527 = vlaneseq
        %v1528 = vshrl.u32 %v1527, 7
        %v1529 = vsub.s32 2, %v1528
        %v1530 = vrot.slane %v357, %v1529
        %v1531 = vlaneseq
        %v1532 = vshrl.u32 %v1531, 7
        %v1533 = vsub.s32 2, %v1532
        %v1534 = vrot.slane %v358, %v1533
        %v1535 = vlaneseq
        %v1536 = vshrl.u32 %v1535, 7
        %v1537 = vsub.s32 2, %v1536
        %v1538 = vrot.slane %v359, %v1537
        %v1539 = vlaneseq
        %v1540 = vshrl.u32 %v1539, 7
        %v1541 = vsub.s32 2, %v1540
        %v1542 = vrot.slane %v360, %v1541
        %v1543 = vlaneseq
        %v1544 = vshrl.u32 %v1543, 7
        %v1545 = vsub.s32 2, %v1544
        %v1546 = vrot.slane %v361, %v1545
        %v1547 = vlaneseq
        %v1548 = vshrl.u32 %v1547, 7
        %v1549 = vsub.s32 2, %v1548
        %v1550 = vrot.slane %v362, %v1549
        %v1551 = vlaneseq
        %v1552 = vshrl.u32 %v1551, 7
        %v1553 = vsub.s32 2, %v1552
        %v1554 = vrot.slane %v363, %v1553
        %v1555 = vlaneseq
        %v1556 = vshrl.u32 %v1555, 7
        %v1557 = vsub.s32 2, %v1556
        %v1558 = vrot.slane %v364, %v1557
        %1567 = vrot.lane.b32.xlu0 %v1530, 121
        %v1568 = vpop.permute.xlu0 %1567
        %1569 = vrot.lane.b32.xlu0 %v1534, 121
        %v1570 = vpop.permute.xlu0 %1569
        %1571 = vrot.lane.b32.xlu0 %v1538, 121
        %v1572 = vpop.permute.xlu0 %1571
        %1573 = vrot.lane.b32.xlu0 %v1542, 121
        %v1574 = vpop.permute.xlu0 %1573
        %1575 = vrot.lane.b32.xlu0 %v1546, 121
        %v1576 = vpop.permute.xlu0 %1575
        %1577 = vrot.lane.b32.xlu0 %v1550, 121
        %v1578 = vpop.permute.xlu0 %1577
        %1579 = vrot.lane.b32.xlu0 %v1554, 121
        %v1580 = vpop.permute.xlu0 %1579
        %1581 = vrot.lane.b32.xlu0 %v1558, 121
        %v1582 = vpop.permute.xlu0 %1581
        %vm1583 = vcmask 990208
        %v1584 = vsel %vm1583, %v1568, %v1570
        %v1585 = vsel %vm1583, %v1570, %v1572
        %v1586 = vsel %vm1583, %v1572, %v1574
        %v1587 = vsel %vm1583, %v1574, %v1576
        %v1588 = vsel %vm1583, %v1576, %v1578
        %v1589 = vsel %vm1583, %v1578, %v1580
        %v1590 = vsel %vm1583, %v1580, %v1582
        %v1600 = vmul.f32 %v720, %v1568
        %v1601 = vmul.f32 %v721, %v1584
        %v1602 = vmul.f32 %v722, %v1585
        %v1603 = vmul.f32 %v723, %v1586
        %v1604 = vmul.f32 %v724, %v1587
        %v1605 = vmul.f32 %v725, %v1588
        %v1606 = vmul.f32 %v726, %v1589
        %v1607 = vmul.f32 %v727, %v1590
        %v1608 = vmul.f32 %v728, %v1582
        %1618 = vrot.lane.b32.xlu0 %v1600, 7
        %v1619 = vpop.permute.xlu0 %1618
        %1620 = vrot.lane.b32.xlu0 %v1601, 7
        %v1621 = vpop.permute.xlu0 %1620
        %1622 = vrot.lane.b32.xlu0 %v1602, 7
        %v1623 = vpop.permute.xlu0 %1622
        %1624 = vrot.lane.b32.xlu0 %v1603, 7
        %v1625 = vpop.permute.xlu0 %1624
        %1626 = vrot.lane.b32.xlu0 %v1604, 7
        %v1627 = vpop.permute.xlu0 %1626
        %1628 = vrot.lane.b32.xlu0 %v1605, 7
        %v1629 = vpop.permute.xlu0 %1628
        %1630 = vrot.lane.b32.xlu0 %v1606, 7
        %v1631 = vpop.permute.xlu0 %1630
        %1632 = vrot.lane.b32.xlu0 %v1607, 7
        %v1633 = vpop.permute.xlu0 %1632
        %1634 = vrot.lane.b32.xlu0 %v1608, 7
        %v1635 = vpop.permute.xlu0 %1634
        %vm1636 = vcmask 56320
        %v1637 = vsel %vm1636, %v1619, %v1621
        %v1638 = vsel %vm1636, %v1621, %v1623
        %v1639 = vsel %vm1636, %v1623, %v1625
        %v1640 = vsel %vm1636, %v1625, %v1627
        %v1641 = vsel %vm1636, %v1627, %v1629
        %v1642 = vsel %vm1636, %v1629, %v1631
        %v1643 = vsel %vm1636, %v1631, %v1633
        %v1644 = vsel %vm1636, %v1633, %v1635
        %1653 = vst [vmem:[#allocation3 + $0x80] sm:$0xff] %v1637
        %1654 = vst [vmem:[#allocation3 + $0x88] sm:$0xff] %v1638
        %1655 = vst [vmem:[#allocation3 + $0x90] sm:$0xff] %v1639
        %1656 = vst [vmem:[#allocation3 + $0x98] sm:$0xff] %v1640
        %1657 = vst [vmem:[#allocation3 + $0xa0] sm:$0xff] %v1641
        %1658 = vst [vmem:[#allocation3 + $0xa8] sm:$0xff] %v1642
        %1659 = vst [vmem:[#allocation3 + $0xb0] sm:$0xff] %v1643
        %1660 = vst [vmem:[#allocation3 + $0xb8] sm:$0xff] %v1644
        %v1661 = vlaneseq
        %v1662 = vshrl.u32 %v1661, 7
        %v1663 = vsub.s32 3, %v1662
        %v1664 = vrot.slane %v365, %v1663
        %v1665 = vlaneseq
        %v1666 = vshrl.u32 %v1665, 7
        %v1667 = vsub.s32 3, %v1666
        %v1668 = vrot.slane %v366, %v1667
        %v1669 = vlaneseq
        %v1670 = vshrl.u32 %v1669, 7
        %v1671 = vsub.s32 3, %v1670
        %v1672 = vrot.slane %v367, %v1671
        %v1673 = vlaneseq
        %v1674 = vshrl.u32 %v1673, 7
        %v1675 = vsub.s32 3, %v1674
        %v1676 = vrot.slane %v368, %v1675
        %v1677 = vlaneseq
        %v1678 = vshrl.u32 %v1677, 7
        %v1679 = vsub.s32 3, %v1678
        %v1680 = vrot.slane %v369, %v1679
        %v1681 = vlaneseq
        %v1682 = vshrl.u32 %v1681, 7
        %v1683 = vsub.s32 3, %v1682
        %v1684 = vrot.slane %v370, %v1683
        %v1685 = vlaneseq
        %v1686 = vshrl.u32 %v1685, 7
        %v1687 = vsub.s32 3, %v1686
        %v1688 = vrot.slane %v371, %v1687
        %v1689 = vlaneseq
        %v1690 = vshrl.u32 %v1689, 7
        %v1691 = vsub.s32 3, %v1690
        %v1692 = vrot.slane %v372, %v1691
        %1701 = vrot.lane.b32.xlu0 %v1664, 121
        %v1702 = vpop.permute.xlu0 %1701
        %1703 = vrot.lane.b32.xlu0 %v1668, 121
        %v1704 = vpop.permute.xlu0 %1703
        %1705 = vrot.lane.b32.xlu0 %v1672, 121
        %v1706 = vpop.permute.xlu0 %1705
        %1707 = vrot.lane.b32.xlu0 %v1676, 121
        %v1708 = vpop.permute.xlu0 %1707
        %1709 = vrot.lane.b32.xlu0 %v1680, 121
        %v1710 = vpop.permute.xlu0 %1709
        %1711 = vrot.lane.b32.xlu0 %v1684, 121
        %v1712 = vpop.permute.xlu0 %1711
        %1713 = vrot.lane.b32.xlu0 %v1688, 121
        %v1714 = vpop.permute.xlu0 %1713
        %1715 = vrot.lane.b32.xlu0 %v1692, 121
        %v1716 = vpop.permute.xlu0 %1715
        %v1717 = vsel %vm1583, %v1702, %v1704
        %v1718 = vsel %vm1583, %v1704, %v1706
        %v1719 = vsel %vm1583, %v1706, %v1708
        %v1720 = vsel %vm1583, %v1708, %v1710
        %v1721 = vsel %vm1583, %v1710, %v1712
        %v1722 = vsel %vm1583, %v1712, %v1714
        %v1723 = vsel %vm1583, %v1714, %v1716
        %v1733 = vmul.f32 %v721, %v1702
        %v1734 = vmul.f32 %v722, %v1717
        %v1735 = vmul.f32 %v723, %v1718
        %v1736 = vmul.f32 %v724, %v1719
        %v1737 = vmul.f32 %v725, %v1720
        %v1738 = vmul.f32 %v726, %v1721
        %v1739 = vmul.f32 %v727, %v1722
        %v1740 = vmul.f32 %v728, %v1723
        %v1741 = vmul.f32 %v729, %v1716
        %1751 = vrot.lane.b32.xlu0 %v1733, 7
        %v1752 = vpop.permute.xlu0 %1751
        %1753 = vrot.lane.b32.xlu0 %v1734, 7
        %v1754 = vpop.permute.xlu0 %1753
        %1755 = vrot.lane.b32.xlu0 %v1735, 7
        %v1756 = vpop.permute.xlu0 %1755
        %1757 = vrot.lane.b32.xlu0 %v1736, 7
        %v1758 = vpop.permute.xlu0 %1757
        %1759 = vrot.lane.b32.xlu0 %v1737, 7
        %v1760 = vpop.permute.xlu0 %1759
        %1761 = vrot.lane.b32.xlu0 %v1738, 7
        %v1762 = vpop.permute.xlu0 %1761
        %1763 = vrot.lane.b32.xlu0 %v1739, 7
        %v1764 = vpop.permute.xlu0 %1763
        %1765 = vrot.lane.b32.xlu0 %v1740, 7
        %v1766 = vpop.permute.xlu0 %1765
        %1767 = vrot.lane.b32.xlu0 %v1741, 7
        %v1768 = vpop.permute.xlu0 %1767
        %v1769 = vsel %vm1636, %v1752, %v1754
        %v1770 = vsel %vm1636, %v1754, %v1756
        %v1771 = vsel %vm1636, %v1756, %v1758
        %v1772 = vsel %vm1636, %v1758, %v1760
        %v1773 = vsel %vm1636, %v1760, %v1762
        %v1774 = vsel %vm1636, %v1762, %v1764
        %v1775 = vsel %vm1636, %v1764, %v1766
        %v1776 = vsel %vm1636, %v1766, %v1768
        %1785 = vst [vmem:[#allocation3 + $0x2c0] sm:$0xff] %v1769
        %1786 = vst [vmem:[#allocation3 + $0x2c8] sm:$0xff] %v1770
        %1787 = vst [vmem:[#allocation3 + $0x2d0] sm:$0xff] %v1771
        %1788 = vst [vmem:[#allocation3 + $0x2d8] sm:$0xff] %v1772
        %1789 = vst [vmem:[#allocation3 + $0x2e0] sm:$0xff] %v1773
        %1790 = vst [vmem:[#allocation3 + $0x2e8] sm:$0xff] %v1774
        %1791 = vst [vmem:[#allocation3 + $0x2f0] sm:$0xff] %v1775
        %1792 = vst [vmem:[#allocation3 + $0x2f8] sm:$0xff] %v1776
        %v1793 = vlaneseq
        %v1794 = vshrl.u32 %v1793, 7
        %v1795 = vsub.s32 4, %v1794
        %v1796 = vrot.slane %v373, %v1795
        %v1797 = vlaneseq
        %v1798 = vshrl.u32 %v1797, 7
        %v1799 = vsub.s32 4, %v1798
        %v1800 = vrot.slane %v374, %v1799
        %v1801 = vlaneseq
        %v1802 = vshrl.u32 %v1801, 7
        %v1803 = vsub.s32 4, %v1802
        %v1804 = vrot.slane %v375, %v1803
        %v1805 = vlaneseq
        %v1806 = vshrl.u32 %v1805, 7
        %v1807 = vsub.s32 4, %v1806
        %v1808 = vrot.slane %v376, %v1807
        %v1809 = vlaneseq
        %v1810 = vshrl.u32 %v1809, 7
        %v1811 = vsub.s32 4, %v1810
        %v1812 = vrot.slane %v377, %v1811
        %v1813 = vlaneseq
        %v1814 = vshrl.u32 %v1813, 7
        %v1815 = vsub.s32 4, %v1814
        %v1816 = vrot.slane %v378, %v1815
        %v1817 = vlaneseq
        %v1818 = vshrl.u32 %v1817, 7
        %v1819 = vsub.s32 4, %v1818
        %v1820 = vrot.slane %v379, %v1819
        %v1821 = vlaneseq
        %v1822 = vshrl.u32 %v1821, 7
        %v1823 = vsub.s32 4, %v1822
        %v1824 = vrot.slane %v380, %v1823
        %1833 = vrot.lane.b32.xlu0 %v1796, 121
        %v1834 = vpop.permute.xlu0 %1833
        %1835 = vrot.lane.b32.xlu0 %v1800, 121
        %v1836 = vpop.permute.xlu0 %1835
        %1837 = vrot.lane.b32.xlu0 %v1804, 121
        %v1838 = vpop.permute.xlu0 %1837
        %1839 = vrot.lane.b32.xlu0 %v1808, 121
        %v1840 = vpop.permute.xlu0 %1839
        %1841 = vrot.lane.b32.xlu0 %v1812, 121
        %v1842 = vpop.permute.xlu0 %1841
        %1843 = vrot.lane.b32.xlu0 %v1816, 121
        %v1844 = vpop.permute.xlu0 %1843
        %1845 = vrot.lane.b32.xlu0 %v1820, 121
        %v1846 = vpop.permute.xlu0 %1845
        %1847 = vrot.lane.b32.xlu0 %v1824, 121
        %v1848 = vpop.permute.xlu0 %1847
        %v1849 = vsel %vm1583, %v1834, %v1836
        %v1850 = vsel %vm1583, %v1836, %v1838
        %v1851 = vsel %vm1583, %v1838, %v1840
        %v1852 = vsel %vm1583, %v1840, %v1842
        %v1853 = vsel %vm1583, %v1842, %v1844
        %v1854 = vsel %vm1583, %v1844, %v1846
        %v1855 = vsel %vm1583, %v1846, %v1848
        %v1865 = vmul.f32 %v722, %v1834
        %v1866 = vmul.f32 %v723, %v1849
        %v1867 = vmul.f32 %v724, %v1850
        %v1868 = vmul.f32 %v725, %v1851
        %v1869 = vmul.f32 %v726, %v1852
        %v1870 = vmul.f32 %v727, %v1853
        %v1871 = vmul.f32 %v728, %v1854
        %v1872 = vmul.f32 %v729, %v1855
        %v1873 = vmul.f32 %v730, %v1848
        %1883 = vrot.lane.b32.xlu0 %v1865, 7
        %v1884 = vpop.permute.xlu0 %1883
        %1885 = vrot.lane.b32.xlu0 %v1866, 7
        %v1886 = vpop.permute.xlu0 %1885
        %1887 = vrot.lane.b32.xlu0 %v1867, 7
        %v1888 = vpop.permute.xlu0 %1887
        %1889 = vrot.lane.b32.xlu0 %v1868, 7
        %v1890 = vpop.permute.xlu0 %1889
        %1891 = vrot.lane.b32.xlu0 %v1869, 7
        %v1892 = vpop.permute.xlu0 %1891
        %1893 = vrot.lane.b32.xlu0 %v1870, 7
        %v1894 = vpop.permute.xlu0 %1893
        %1895 = vrot.lane.b32.xlu0 %v1871, 7
        %v1896 = vpop.permute.xlu0 %1895
        %1897 = vrot.lane.b32.xlu0 %v1872, 7
        %v1898 = vpop.permute.xlu0 %1897
        %1899 = vrot.lane.b32.xlu0 %v1873, 7
        %v1900 = vpop.permute.xlu0 %1899
        %v1901 = vsel %vm1636, %v1884, %v1886
        %v1902 = vsel %vm1636, %v1886, %v1888
        %v1903 = vsel %vm1636, %v1888, %v1890
        %v1904 = vsel %vm1636, %v1890, %v1892
        %v1905 = vsel %vm1636, %v1892, %v1894
        %v1906 = vsel %vm1636, %v1894, %v1896
        %v1907 = vsel %vm1636, %v1896, %v1898
        %v1908 = vsel %vm1636, %v1898, %v1900
        %1917 = vst [vmem:[#allocation3 + $0x500] sm:$0xff] %v1901
        %1918 = vst [vmem:[#allocation3 + $0x508] sm:$0xff] %v1902
        %1919 = vst [vmem:[#allocation3 + $0x510] sm:$0xff] %v1903
        %1920 = vst [vmem:[#allocation3 + $0x518] sm:$0xff] %v1904
        %1921 = vst [vmem:[#allocation3 + $0x520] sm:$0xff] %v1905
        %1922 = vst [vmem:[#allocation3 + $0x528] sm:$0xff] %v1906
        %1923 = vst [vmem:[#allocation3 + $0x530] sm:$0xff] %v1907
        %1924 = vst [vmem:[#allocation3 + $0x538] sm:$0xff] %v1908
        %v1925 = vlaneseq
        %v1926 = vshrl.u32 %v1925, 7
        %v1927 = vsub.s32 3, %v1926
        %v1928 = vrot.slane %v357, %v1927
        %v1929 = vlaneseq
        %v1930 = vshrl.u32 %v1929, 7
        %v1931 = vsub.s32 3, %v1930
        %v1932 = vrot.slane %v358, %v1931
        %v1933 = vlaneseq
        %v1934 = vshrl.u32 %v1933, 7
        %v1935 = vsub.s32 3, %v1934
        %v1936 = vrot.slane %v359, %v1935
        %v1937 = vlaneseq
        %v1938 = vshrl.u32 %v1937, 7
        %v1939 = vsub.s32 3, %v1938
        %v1940 = vrot.slane %v360, %v1939
        %v1941 = vlaneseq
        %v1942 = vshrl.u32 %v1941, 7
        %v1943 = vsub.s32 3, %v1942
        %v1944 = vrot.slane %v361, %v1943
        %v1945 = vlaneseq
        %v1946 = vshrl.u32 %v1945, 7
        %v1947 = vsub.s32 3, %v1946
        %v1948 = vrot.slane %v362, %v1947
        %v1949 = vlaneseq
        %v1950 = vshrl.u32 %v1949, 7
        %v1951 = vsub.s32 3, %v1950
        %v1952 = vrot.slane %v363, %v1951
        %v1953 = vlaneseq
        %v1954 = vshrl.u32 %v1953, 7
        %v1955 = vsub.s32 3, %v1954
        %v1956 = vrot.slane %v364, %v1955
        %1965 = vrot.lane.b32.xlu0 %v1928, 127
        %v1966 = vpop.permute.xlu0 %1965
        %1967 = vrot.lane.b32.xlu0 %v1932, 127
        %v1968 = vpop.permute.xlu0 %1967
        %1969 = vrot.lane.b32.xlu0 %v1936, 127
        %v1970 = vpop.permute.xlu0 %1969
        %1971 = vrot.lane.b32.xlu0 %v1940, 127
        %v1972 = vpop.permute.xlu0 %1971
        %1973 = vrot.lane.b32.xlu0 %v1944, 127
        %v1974 = vpop.permute.xlu0 %1973
        %1975 = vrot.lane.b32.xlu0 %v1948, 127
        %v1976 = vpop.permute.xlu0 %1975
        %1977 = vrot.lane.b32.xlu0 %v1952, 127
        %v1978 = vpop.permute.xlu0 %1977
        %1979 = vrot.lane.b32.xlu0 %v1956, 127
        %v1980 = vpop.permute.xlu0 %1979
        %vm1981 = vcmask 1039360
        %v1982 = vsel %vm1981, %v1966, %v1968
        %v1983 = vsel %vm1981, %v1968, %v1970
        %v1984 = vsel %vm1981, %v1970, %v1972
        %v1985 = vsel %vm1981, %v1972, %v1974
        %v1986 = vsel %vm1981, %v1974, %v1976
        %v1987 = vsel %vm1981, %v1976, %v1978
        %v1988 = vsel %vm1981, %v1978, %v1980
        %v1998 = vmul.f32 %v720, %v1966
        %v1999 = vmul.f32 %v721, %v1982
        %v2000 = vmul.f32 %v722, %v1983
        %v2001 = vmul.f32 %v723, %v1984
        %v2002 = vmul.f32 %v724, %v1985
        %v2003 = vmul.f32 %v725, %v1986
        %v2004 = vmul.f32 %v726, %v1987
        %v2005 = vmul.f32 %v727, %v1988
        %v2006 = vmul.f32 %v728, %v1980
        %2016 = vrot.lane.b32.xlu0 %v1998, 1
        %v2017 = vpop.permute.xlu0 %2016
        %2018 = vrot.lane.b32.xlu0 %v1999, 1
        %v2019 = vpop.permute.xlu0 %2018
        %2020 = vrot.lane.b32.xlu0 %v2000, 1
        %v2021 = vpop.permute.xlu0 %2020
        %2022 = vrot.lane.b32.xlu0 %v2001, 1
        %v2023 = vpop.permute.xlu0 %2022
        %2024 = vrot.lane.b32.xlu0 %v2002, 1
        %v2025 = vpop.permute.xlu0 %2024
        %2026 = vrot.lane.b32.xlu0 %v2003, 1
        %v2027 = vpop.permute.xlu0 %2026
        %2028 = vrot.lane.b32.xlu0 %v2004, 1
        %v2029 = vpop.permute.xlu0 %2028
        %2030 = vrot.lane.b32.xlu0 %v2005, 1
        %v2031 = vpop.permute.xlu0 %2030
        %2032 = vrot.lane.b32.xlu0 %v2006, 1
        %v2033 = vpop.permute.xlu0 %2032
        %vm2034 = vcmask 7168
        %v2035 = vsel %vm2034, %v2017, %v2019
        %v2036 = vsel %vm2034, %v2019, %v2021
        %v2037 = vsel %vm2034, %v2021, %v2023
        %v2038 = vsel %vm2034, %v2023, %v2025
        %v2039 = vsel %vm2034, %v2025, %v2027
        %v2040 = vsel %vm2034, %v2027, %v2029
        %v2041 = vsel %vm2034, %v2029, %v2031
        %v2042 = vsel %vm2034, %v2031, %v2033
        %2051 = vst [vmem:[#allocation3 + $0xc0] sm:$0xff] %v2035
        %2052 = vst [vmem:[#allocation3 + $0xc8] sm:$0xff] %v2036
        %2053 = vst [vmem:[#allocation3 + $0xd0] sm:$0xff] %v2037
        %2054 = vst [vmem:[#allocation3 + $0xd8] sm:$0xff] %v2038
        %2055 = vst [vmem:[#allocation3 + $0xe0] sm:$0xff] %v2039
        %2056 = vst [vmem:[#allocation3 + $0xe8] sm:$0xff] %v2040
        %2057 = vst [vmem:[#allocation3 + $0xf0] sm:$0xff] %v2041
        %2058 = vst [vmem:[#allocation3 + $0xf8] sm:$0xff] %v2042
        %v2059 = vlaneseq
        %v2060 = vshrl.u32 %v2059, 7
        %v2061 = vsub.s32 4, %v2060
        %v2062 = vrot.slane %v365, %v2061
        %v2063 = vlaneseq
        %v2064 = vshrl.u32 %v2063, 7
        %v2065 = vsub.s32 4, %v2064
        %v2066 = vrot.slane %v366, %v2065
        %v2067 = vlaneseq
        %v2068 = vshrl.u32 %v2067, 7
        %v2069 = vsub.s32 4, %v2068
        %v2070 = vrot.slane %v367, %v2069
        %v2071 = vlaneseq
        %v2072 = vshrl.u32 %v2071, 7
        %v2073 = vsub.s32 4, %v2072
        %v2074 = vrot.slane %v368, %v2073
        %v2075 = vlaneseq
        %v2076 = vshrl.u32 %v2075, 7
        %v2077 = vsub.s32 4, %v2076
        %v2078 = vrot.slane %v369, %v2077
        %v2079 = vlaneseq
        %v2080 = vshrl.u32 %v2079, 7
        %v2081 = vsub.s32 4, %v2080
        %v2082 = vrot.slane %v370, %v2081
        %v2083 = vlaneseq
        %v2084 = vshrl.u32 %v2083, 7
        %v2085 = vsub.s32 4, %v2084
        %v2086 = vrot.slane %v371, %v2085
        %v2087 = vlaneseq
        %v2088 = vshrl.u32 %v2087, 7
        %v2089 = vsub.s32 4, %v2088
        %v2090 = vrot.slane %v372, %v2089
        %2099 = vrot.lane.b32.xlu0 %v2062, 127
        %v2100 = vpop.permute.xlu0 %2099
        %2101 = vrot.lane.b32.xlu0 %v2066, 127
        %v2102 = vpop.permute.xlu0 %2101
        %2103 = vrot.lane.b32.xlu0 %v2070, 127
        %v2104 = vpop.permute.xlu0 %2103
        %2105 = vrot.lane.b32.xlu0 %v2074, 127
        %v2106 = vpop.permute.xlu0 %2105
        %2107 = vrot.lane.b32.xlu0 %v2078, 127
        %v2108 = vpop.permute.xlu0 %2107
        %2109 = vrot.lane.b32.xlu0 %v2082, 127
        %v2110 = vpop.permute.xlu0 %2109
        %2111 = vrot.lane.b32.xlu0 %v2086, 127
        %v2112 = vpop.permute.xlu0 %2111
        %2113 = vrot.lane.b32.xlu0 %v2090, 127
        %v2114 = vpop.permute.xlu0 %2113
        %v2115 = vsel %vm1981, %v2100, %v2102
        %v2116 = vsel %vm1981, %v2102, %v2104
        %v2117 = vsel %vm1981, %v2104, %v2106
        %v2118 = vsel %vm1981, %v2106, %v2108
        %v2119 = vsel %vm1981, %v2108, %v2110
        %v2120 = vsel %vm1981, %v2110, %v2112
        %v2121 = vsel %vm1981, %v2112, %v2114
        %v2131 = vmul.f32 %v721, %v2100
        %v2132 = vmul.f32 %v722, %v2115
        %v2133 = vmul.f32 %v723, %v2116
        %v2134 = vmul.f32 %v724, %v2117
        %v2135 = vmul.f32 %v725, %v2118
        %v2136 = vmul.f32 %v726, %v2119
        %v2137 = vmul.f32 %v727, %v2120
        %v2138 = vmul.f32 %v728, %v2121
        %v2139 = vmul.f32 %v729, %v2114
        %2149 = vrot.lane.b32.xlu0 %v2131, 1
        %v2150 = vpop.permute.xlu0 %2149
        %2151 = vrot.lane.b32.xlu0 %v2132, 1
        %v2152 = vpop.permute.xlu0 %2151
        %2153 = vrot.lane.b32.xlu0 %v2133, 1
        %v2154 = vpop.permute.xlu0 %2153
        %2155 = vrot.lane.b32.xlu0 %v2134, 1
        %v2156 = vpop.permute.xlu0 %2155
        %2157 = vrot.lane.b32.xlu0 %v2135, 1
        %v2158 = vpop.permute.xlu0 %2157
        %2159 = vrot.lane.b32.xlu0 %v2136, 1
        %v2160 = vpop.permute.xlu0 %2159
        %2161 = vrot.lane.b32.xlu0 %v2137, 1
        %v2162 = vpop.permute.xlu0 %2161
        %2163 = vrot.lane.b32.xlu0 %v2138, 1
        %v2164 = vpop.permute.xlu0 %2163
        %2165 = vrot.lane.b32.xlu0 %v2139, 1
        %v2166 = vpop.permute.xlu0 %2165
        %v2167 = vsel %vm2034, %v2150, %v2152
        %v2168 = vsel %vm2034, %v2152, %v2154
        %v2169 = vsel %vm2034, %v2154, %v2156
        %v2170 = vsel %vm2034, %v2156, %v2158
        %v2171 = vsel %vm2034, %v2158, %v2160
        %v2172 = vsel %vm2034, %v2160, %v2162
        %v2173 = vsel %vm2034, %v2162, %v2164
        %v2174 = vsel %vm2034, %v2164, %v2166
        %2183 = vst [vmem:[#allocation3 + $0x300] sm:$0xff] %v2167
        %2184 = vst [vmem:[#allocation3 + $0x308] sm:$0xff] %v2168
        %2185 = vst [vmem:[#allocation3 + $0x310] sm:$0xff] %v2169
        %2186 = vst [vmem:[#allocation3 + $0x318] sm:$0xff] %v2170
        %2187 = vst [vmem:[#allocation3 + $0x320] sm:$0xff] %v2171
        %2188 = vst [vmem:[#allocation3 + $0x328] sm:$0xff] %v2172
        %2189 = vst [vmem:[#allocation3 + $0x330] sm:$0xff] %v2173
        %2190 = vst [vmem:[#allocation3 + $0x338] sm:$0xff] %v2174
        %v2191 = vlaneseq
        %v2192 = vshrl.u32 %v2191, 7
        %v2193 = vsub.s32 5, %v2192
        %v2194 = vrot.slane %v373, %v2193
        %v2195 = vlaneseq
        %v2196 = vshrl.u32 %v2195, 7
        %v2197 = vsub.s32 5, %v2196
        %v2198 = vrot.slane %v374, %v2197
        %v2199 = vlaneseq
        %v2200 = vshrl.u32 %v2199, 7
        %v2201 = vsub.s32 5, %v2200
        %v2202 = vrot.slane %v375, %v2201
        %v2203 = vlaneseq
        %v2204 = vshrl.u32 %v2203, 7
        %v2205 = vsub.s32 5, %v2204
        %v2206 = vrot.slane %v376, %v2205
        %v2207 = vlaneseq
        %v2208 = vshrl.u32 %v2207, 7
        %v2209 = vsub.s32 5, %v2208
        %v2210 = vrot.slane %v377, %v2209
        %v2211 = vlaneseq
        %v2212 = vshrl.u32 %v2211, 7
        %v2213 = vsub.s32 5, %v2212
        %v2214 = vrot.slane %v378, %v2213
        %v2215 = vlaneseq
        %v2216 = vshrl.u32 %v2215, 7
        %v2217 = vsub.s32 5, %v2216
        %v2218 = vrot.slane %v379, %v2217
        %v2219 = vlaneseq
        %v2220 = vshrl.u32 %v2219, 7
        %v2221 = vsub.s32 5, %v2220
        %v2222 = vrot.slane %v380, %v2221
        %2231 = vrot.lane.b32.xlu0 %v2194, 127
        %v2232 = vpop.permute.xlu0 %2231
        %2233 = vrot.lane.b32.xlu0 %v2198, 127
        %v2234 = vpop.permute.xlu0 %2233
        %2235 = vrot.lane.b32.xlu0 %v2202, 127
        %v2236 = vpop.permute.xlu0 %2235
        %2237 = vrot.lane.b32.xlu0 %v2206, 127
        %v2238 = vpop.permute.xlu0 %2237
        %2239 = vrot.lane.b32.xlu0 %v2210, 127
        %v2240 = vpop.permute.xlu0 %2239
        %2241 = vrot.lane.b32.xlu0 %v2214, 127
        %v2242 = vpop.permute.xlu0 %2241
        %2243 = vrot.lane.b32.xlu0 %v2218, 127
        %v2244 = vpop.permute.xlu0 %2243
        %2245 = vrot.lane.b32.xlu0 %v2222, 127
        %v2246 = vpop.permute.xlu0 %2245
        %v2247 = vsel %vm1981, %v2232, %v2234
        %v2248 = vsel %vm1981, %v2234, %v2236
        %v2249 = vsel %vm1981, %v2236, %v2238
        %v2250 = vsel %vm1981, %v2238, %v2240
        %v2251 = vsel %vm1981, %v2240, %v2242
        %v2252 = vsel %vm1981, %v2242, %v2244
        %v2253 = vsel %vm1981, %v2244, %v2246
        %v2263 = vmul.f32 %v722, %v2232
        %v2264 = vmul.f32 %v723, %v2247
        %v2265 = vmul.f32 %v724, %v2248
        %v2266 = vmul.f32 %v725, %v2249
        %v2267 = vmul.f32 %v726, %v2250
        %v2268 = vmul.f32 %v727, %v2251
        %v2269 = vmul.f32 %v728, %v2252
        %v2270 = vmul.f32 %v729, %v2253
        %v2271 = vmul.f32 %v730, %v2246
        %2281 = vrot.lane.b32.xlu0 %v2263, 1
        %v2282 = vpop.permute.xlu0 %2281
        %2283 = vrot.lane.b32.xlu0 %v2264, 1
        %v2284 = vpop.permute.xlu0 %2283
        %2285 = vrot.lane.b32.xlu0 %v2265, 1
        %v2286 = vpop.permute.xlu0 %2285
        %2287 = vrot.lane.b32.xlu0 %v2266, 1
        %v2288 = vpop.permute.xlu0 %2287
        %2289 = vrot.lane.b32.xlu0 %v2267, 1
        %v2290 = vpop.permute.xlu0 %2289
        %2291 = vrot.lane.b32.xlu0 %v2268, 1
        %v2292 = vpop.permute.xlu0 %2291
        %2293 = vrot.lane.b32.xlu0 %v2269, 1
        %v2294 = vpop.permute.xlu0 %2293
        %2295 = vrot.lane.b32.xlu0 %v2270, 1
        %v2296 = vpop.permute.xlu0 %2295
        %2297 = vrot.lane.b32.xlu0 %v2271, 1
        %v2298 = vpop.permute.xlu0 %2297
        %v2299 = vsel %vm2034, %v2282, %v2284
        %v2300 = vsel %vm2034, %v2284, %v2286
        %v2301 = vsel %vm2034, %v2286, %v2288
        %v2302 = vsel %vm2034, %v2288, %v2290
        %v2303 = vsel %vm2034, %v2290, %v2292
        %v2304 = vsel %vm2034, %v2292, %v2294
        %v2305 = vsel %vm2034, %v2294, %v2296
        %v2306 = vsel %vm2034, %v2296, %v2298
        %2315 = vst [vmem:[#allocation3 + $0x540] sm:$0xff] %v2299
        %2316 = vst [vmem:[#allocation3 + $0x548] sm:$0xff] %v2300
        %2317 = vst [vmem:[#allocation3 + $0x550] sm:$0xff] %v2301
        %2318 = vst [vmem:[#allocation3 + $0x558] sm:$0xff] %v2302
        %2319 = vst [vmem:[#allocation3 + $0x560] sm:$0xff] %v2303
        %2320 = vst [vmem:[#allocation3 + $0x568] sm:$0xff] %v2304
        %2321 = vst [vmem:[#allocation3 + $0x570] sm:$0xff] %v2305
        %2322 = vst [vmem:[#allocation3 + $0x578] sm:$0xff] %v2306
        %v2323 = vlaneseq
        %v2324 = vshrl.u32 %v2323, 7
        %v2325 = vsub.s32 4, %v2324
        %v2326 = vrot.slane %v357, %v2325
        %v2327 = vlaneseq
        %v2328 = vshrl.u32 %v2327, 7
        %v2329 = vsub.s32 4, %v2328
        %v2330 = vrot.slane %v358, %v2329
        %v2331 = vlaneseq
        %v2332 = vshrl.u32 %v2331, 7
        %v2333 = vsub.s32 4, %v2332
        %v2334 = vrot.slane %v359, %v2333
        %v2335 = vlaneseq
        %v2336 = vshrl.u32 %v2335, 7
        %v2337 = vsub.s32 4, %v2336
        %v2338 = vrot.slane %v360, %v2337
        %v2339 = vlaneseq
        %v2340 = vshrl.u32 %v2339, 7
        %v2341 = vsub.s32 4, %v2340
        %v2342 = vrot.slane %v361, %v2341
        %v2343 = vlaneseq
        %v2344 = vshrl.u32 %v2343, 7
        %v2345 = vsub.s32 4, %v2344
        %v2346 = vrot.slane %v362, %v2345
        %v2347 = vlaneseq
        %v2348 = vshrl.u32 %v2347, 7
        %v2349 = vsub.s32 4, %v2348
        %v2350 = vrot.slane %v363, %v2349
        %v2351 = vlaneseq
        %v2352 = vshrl.u32 %v2351, 7
        %v2353 = vsub.s32 4, %v2352
        %v2354 = vrot.slane %v364, %v2353
        %v2355 = vmul.f32 %v721, %v2326
        %v2356 = vmul.f32 %v722, %v2330
        %v2357 = vmul.f32 %v723, %v2334
        %v2358 = vmul.f32 %v724, %v2338
        %v2359 = vmul.f32 %v725, %v2342
        %v2360 = vmul.f32 %v726, %v2346
        %v2361 = vmul.f32 %v727, %v2350
        %v2362 = vmul.f32 %v728, %v2354
        %2363 = vst [vmem:[#allocation3 + $0x100] sm:$0xff] %v2355
        %2364 = vst [vmem:[#allocation3 + $0x108] sm:$0xff] %v2356
        %2365 = vst [vmem:[#allocation3 + $0x110] sm:$0xff] %v2357
        %2366 = vst [vmem:[#allocation3 + $0x118] sm:$0xff] %v2358
        %2367 = vst [vmem:[#allocation3 + $0x120] sm:$0xff] %v2359
        %2368 = vst [vmem:[#allocation3 + $0x128] sm:$0xff] %v2360
        %2369 = vst [vmem:[#allocation3 + $0x130] sm:$0xff] %v2361
        %2370 = vst [vmem:[#allocation3 + $0x138] sm:$0xff] %v2362
        %v2371 = vlaneseq
        %v2372 = vshrl.u32 %v2371, 7
        %v2373 = vsub.s32 5, %v2372
        %v2374 = vrot.slane %v365, %v2373
        %v2375 = vlaneseq
        %v2376 = vshrl.u32 %v2375, 7
        %v2377 = vsub.s32 5, %v2376
        %v2378 = vrot.slane %v366, %v2377
        %v2379 = vlaneseq
        %v2380 = vshrl.u32 %v2379, 7
        %v2381 = vsub.s32 5, %v2380
        %v2382 = vrot.slane %v367, %v2381
        %v2383 = vlaneseq
        %v2384 = vshrl.u32 %v2383, 7
        %v2385 = vsub.s32 5, %v2384
        %v2386 = vrot.slane %v368, %v2385
        %v2387 = vlaneseq
        %v2388 = vshrl.u32 %v2387, 7
        %v2389 = vsub.s32 5, %v2388
        %v2390 = vrot.slane %v369, %v2389
        %v2391 = vlaneseq
        %v2392 = vshrl.u32 %v2391, 7
        %v2393 = vsub.s32 5, %v2392
        %v2394 = vrot.slane %v370, %v2393
        %v2395 = vlaneseq
        %v2396 = vshrl.u32 %v2395, 7
        %v2397 = vsub.s32 5, %v2396
        %v2398 = vrot.slane %v371, %v2397
        %v2399 = vlaneseq
        %v2400 = vshrl.u32 %v2399, 7
        %v2401 = vsub.s32 5, %v2400
        %v2402 = vrot.slane %v372, %v2401
        %v2403 = vmul.f32 %v722, %v2374
        %v2404 = vmul.f32 %v723, %v2378
        %v2405 = vmul.f32 %v724, %v2382
        %v2406 = vmul.f32 %v725, %v2386
        %v2407 = vmul.f32 %v726, %v2390
        %v2408 = vmul.f32 %v727, %v2394
        %v2409 = vmul.f32 %v728, %v2398
        %v2410 = vmul.f32 %v729, %v2402
        %2411 = vst [vmem:[#allocation3 + $0x340] sm:$0xff] %v2403
        %2412 = vst [vmem:[#allocation3 + $0x348] sm:$0xff] %v2404
        %2413 = vst [vmem:[#allocation3 + $0x350] sm:$0xff] %v2405
        %2414 = vst [vmem:[#allocation3 + $0x358] sm:$0xff] %v2406
        %2415 = vst [vmem:[#allocation3 + $0x360] sm:$0xff] %v2407
        %2416 = vst [vmem:[#allocation3 + $0x368] sm:$0xff] %v2408
        %2417 = vst [vmem:[#allocation3 + $0x370] sm:$0xff] %v2409
        %2418 = vst [vmem:[#allocation3 + $0x378] sm:$0xff] %v2410
        %v2419 = vlaneseq
        %v2420 = vshrl.u32 %v2419, 7
        %v2421 = vsub.s32 6, %v2420
        %v2422 = vrot.slane %v373, %v2421
        %v2423 = vlaneseq
        %v2424 = vshrl.u32 %v2423, 7
        %v2425 = vsub.s32 6, %v2424
        %v2426 = vrot.slane %v374, %v2425
        %v2427 = vlaneseq
        %v2428 = vshrl.u32 %v2427, 7
        %v2429 = vsub.s32 6, %v2428
        %v2430 = vrot.slane %v375, %v2429
        %v2431 = vlaneseq
        %v2432 = vshrl.u32 %v2431, 7
        %v2433 = vsub.s32 6, %v2432
        %v2434 = vrot.slane %v376, %v2433
        %v2435 = vlaneseq
        %v2436 = vshrl.u32 %v2435, 7
        %v2437 = vsub.s32 6, %v2436
        %v2438 = vrot.slane %v377, %v2437
        %v2439 = vlaneseq
        %v2440 = vshrl.u32 %v2439, 7
        %v2441 = vsub.s32 6, %v2440
        %v2442 = vrot.slane %v378, %v2441
        %v2443 = vlaneseq
        %v2444 = vshrl.u32 %v2443, 7
        %v2445 = vsub.s32 6, %v2444
        %v2446 = vrot.slane %v379, %v2445
        %v2447 = vlaneseq
        %v2448 = vshrl.u32 %v2447, 7
        %v2449 = vsub.s32 6, %v2448
        %v2450 = vrot.slane %v380, %v2449
        %v2451 = vmul.f32 %v723, %v2422
        %v2452 = vmul.f32 %v724, %v2426
        %v2453 = vmul.f32 %v725, %v2430
        %v2454 = vmul.f32 %v726, %v2434
        %v2455 = vmul.f32 %v727, %v2438
        %v2456 = vmul.f32 %v728, %v2442
        %v2457 = vmul.f32 %v729, %v2446
        %v2458 = vmul.f32 %v730, %v2450
        %2459 = vst [vmem:[#allocation3 + $0x580] sm:$0xff] %v2451
        %2460 = vst [vmem:[#allocation3 + $0x588] sm:$0xff] %v2452
        %2461 = vst [vmem:[#allocation3 + $0x590] sm:$0xff] %v2453
        %2462 = vst [vmem:[#allocation3 + $0x598] sm:$0xff] %v2454
        %2463 = vst [vmem:[#allocation3 + $0x5a0] sm:$0xff] %v2455
        %2464 = vst [vmem:[#allocation3 + $0x5a8] sm:$0xff] %v2456
        %2465 = vst [vmem:[#allocation3 + $0x5b0] sm:$0xff] %v2457
        %2466 = vst [vmem:[#allocation3 + $0x5b8] sm:$0xff] %v2458
        %v2467 = vlaneseq
        %v2468 = vshrl.u32 %v2467, 7
        %v2469 = vsub.s32 5, %v2468
        %v2470 = vrot.slane %v357, %v2469
        %v2471 = vlaneseq
        %v2472 = vshrl.u32 %v2471, 7
        %v2473 = vsub.s32 5, %v2472
        %v2474 = vrot.slane %v358, %v2473
        %v2475 = vlaneseq
        %v2476 = vshrl.u32 %v2475, 7
        %v2477 = vsub.s32 5, %v2476
        %v2478 = vrot.slane %v359, %v2477
        %v2479 = vlaneseq
        %v2480 = vshrl.u32 %v2479, 7
        %v2481 = vsub.s32 5, %v2480
        %v2482 = vrot.slane %v360, %v2481
        %v2483 = vlaneseq
        %v2484 = vshrl.u32 %v2483, 7
        %v2485 = vsub.s32 5, %v2484
        %v2486 = vrot.slane %v361, %v2485
        %v2487 = vlaneseq
        %v2488 = vshrl.u32 %v2487, 7
        %v2489 = vsub.s32 5, %v2488
        %v2490 = vrot.slane %v362, %v2489
        %v2491 = vlaneseq
        %v2492 = vshrl.u32 %v2491, 7
        %v2493 = vsub.s32 5, %v2492
        %v2494 = vrot.slane %v363, %v2493
        %v2495 = vlaneseq
        %v2496 = vshrl.u32 %v2495, 7
        %v2497 = vsub.s32 5, %v2496
        %v2498 = vrot.slane %v364, %v2497
        %2507 = vrot.lane.b32.xlu0 %v2470, 1
        %v2508 = vpop.permute.xlu0 %2507
        %2509 = vrot.lane.b32.xlu0 %v2474, 1
        %v2510 = vpop.permute.xlu0 %2509
        %2511 = vrot.lane.b32.xlu0 %v2478, 1
        %v2512 = vpop.permute.xlu0 %2511
        %2513 = vrot.lane.b32.xlu0 %v2482, 1
        %v2514 = vpop.permute.xlu0 %2513
        %2515 = vrot.lane.b32.xlu0 %v2486, 1
        %v2516 = vpop.permute.xlu0 %2515
        %2517 = vrot.lane.b32.xlu0 %v2490, 1
        %v2518 = vpop.permute.xlu0 %2517
        %2519 = vrot.lane.b32.xlu0 %v2494, 1
        %v2520 = vpop.permute.xlu0 %2519
        %2521 = vrot.lane.b32.xlu0 %v2498, 1
        %v2522 = vpop.permute.xlu0 %2521
        %v2523 = vsel %vm2034, %v2508, %v2510
        %v2524 = vsel %vm2034, %v2510, %v2512
        %v2525 = vsel %vm2034, %v2512, %v2514
        %v2526 = vsel %vm2034, %v2514, %v2516
        %v2527 = vsel %vm2034, %v2516, %v2518
        %v2528 = vsel %vm2034, %v2518, %v2520
        %v2529 = vsel %vm2034, %v2520, %v2522
        %v2539 = vmul.f32 %v721, %v2508
        %v2540 = vmul.f32 %v722, %v2523
        %v2541 = vmul.f32 %v723, %v2524
        %v2542 = vmul.f32 %v724, %v2525
        %v2543 = vmul.f32 %v725, %v2526
        %v2544 = vmul.f32 %v726, %v2527
        %v2545 = vmul.f32 %v727, %v2528
        %v2546 = vmul.f32 %v728, %v2529
        %v2547 = vmul.f32 %v729, %v2522
        %2557 = vrot.lane.b32.xlu0 %v2539, 127
        %v2558 = vpop.permute.xlu0 %2557
        %2559 = vrot.lane.b32.xlu0 %v2540, 127
        %v2560 = vpop.permute.xlu0 %2559
        %2561 = vrot.lane.b32.xlu0 %v2541, 127
        %v2562 = vpop.permute.xlu0 %2561
        %2563 = vrot.lane.b32.xlu0 %v2542, 127
        %v2564 = vpop.permute.xlu0 %2563
        %2565 = vrot.lane.b32.xlu0 %v2543, 127
        %v2566 = vpop.permute.xlu0 %2565
        %2567 = vrot.lane.b32.xlu0 %v2544, 127
        %v2568 = vpop.permute.xlu0 %2567
        %2569 = vrot.lane.b32.xlu0 %v2545, 127
        %v2570 = vpop.permute.xlu0 %2569
        %2571 = vrot.lane.b32.xlu0 %v2546, 127
        %v2572 = vpop.permute.xlu0 %2571
        %2573 = vrot.lane.b32.xlu0 %v2547, 127
        %v2574 = vpop.permute.xlu0 %2573
        %v2575 = vsel %vm1981, %v2558, %v2560
        %v2576 = vsel %vm1981, %v2560, %v2562
        %v2577 = vsel %vm1981, %v2562, %v2564
        %v2578 = vsel %vm1981, %v2564, %v2566
        %v2579 = vsel %vm1981, %v2566, %v2568
        %v2580 = vsel %vm1981, %v2568, %v2570
        %v2581 = vsel %vm1981, %v2570, %v2572
        %v2582 = vsel %vm1981, %v2572, %v2574
        %2591 = vst [vmem:[#allocation3 + $0x140] sm:$0xff] %v2575
        %2592 = vst [vmem:[#allocation3 + $0x148] sm:$0xff] %v2576
        %2593 = vst [vmem:[#allocation3 + $0x150] sm:$0xff] %v2577
        %2594 = vst [vmem:[#allocation3 + $0x158] sm:$0xff] %v2578
        %2595 = vst [vmem:[#allocation3 + $0x160] sm:$0xff] %v2579
        %2596 = vst [vmem:[#allocation3 + $0x168] sm:$0xff] %v2580
        %2597 = vst [vmem:[#allocation3 + $0x170] sm:$0xff] %v2581
        %2598 = vst [vmem:[#allocation3 + $0x178] sm:$0xff] %v2582
        %v2599 = vlaneseq
        %v2600 = vshrl.u32 %v2599, 7
        %v2601 = vsub.s32 6, %v2600
        %v2602 = vrot.slane %v365, %v2601
        %v2603 = vlaneseq
        %v2604 = vshrl.u32 %v2603, 7
        %v2605 = vsub.s32 6, %v2604
        %v2606 = vrot.slane %v366, %v2605
        %v2607 = vlaneseq
        %v2608 = vshrl.u32 %v2607, 7
        %v2609 = vsub.s32 6, %v2608
        %v2610 = vrot.slane %v367, %v2609
        %v2611 = vlaneseq
        %v2612 = vshrl.u32 %v2611, 7
        %v2613 = vsub.s32 6, %v2612
        %v2614 = vrot.slane %v368, %v2613
        %v2615 = vlaneseq
        %v2616 = vshrl.u32 %v2615, 7
        %v2617 = vsub.s32 6, %v2616
        %v2618 = vrot.slane %v369, %v2617
        %v2619 = vlaneseq
        %v2620 = vshrl.u32 %v2619, 7
        %v2621 = vsub.s32 6, %v2620
        %v2622 = vrot.slane %v370, %v2621
        %v2623 = vlaneseq
        %v2624 = vshrl.u32 %v2623, 7
        %v2625 = vsub.s32 6, %v2624
        %v2626 = vrot.slane %v371, %v2625
        %v2627 = vlaneseq
        %v2628 = vshrl.u32 %v2627, 7
        %v2629 = vsub.s32 6, %v2628
        %v2630 = vrot.slane %v372, %v2629
        %2639 = vrot.lane.b32.xlu0 %v2602, 1
        %v2640 = vpop.permute.xlu0 %2639
        %2641 = vrot.lane.b32.xlu0 %v2606, 1
        %v2642 = vpop.permute.xlu0 %2641
        %2643 = vrot.lane.b32.xlu0 %v2610, 1
        %v2644 = vpop.permute.xlu0 %2643
        %2645 = vrot.lane.b32.xlu0 %v2614, 1
        %v2646 = vpop.permute.xlu0 %2645
        %2647 = vrot.lane.b32.xlu0 %v2618, 1
        %v2648 = vpop.permute.xlu0 %2647
        %2649 = vrot.lane.b32.xlu0 %v2622, 1
        %v2650 = vpop.permute.xlu0 %2649
        %2651 = vrot.lane.b32.xlu0 %v2626, 1
        %v2652 = vpop.permute.xlu0 %2651
        %2653 = vrot.lane.b32.xlu0 %v2630, 1
        %v2654 = vpop.permute.xlu0 %2653
        %v2655 = vsel %vm2034, %v2640, %v2642
        %v2656 = vsel %vm2034, %v2642, %v2644
        %v2657 = vsel %vm2034, %v2644, %v2646
        %v2658 = vsel %vm2034, %v2646, %v2648
        %v2659 = vsel %vm2034, %v2648, %v2650
        %v2660 = vsel %vm2034, %v2650, %v2652
        %v2661 = vsel %vm2034, %v2652, %v2654
        %v2671 = vmul.f32 %v722, %v2640
        %v2672 = vmul.f32 %v723, %v2655
        %v2673 = vmul.f32 %v724, %v2656
        %v2674 = vmul.f32 %v725, %v2657
        %v2675 = vmul.f32 %v726, %v2658
        %v2676 = vmul.f32 %v727, %v2659
        %v2677 = vmul.f32 %v728, %v2660
        %v2678 = vmul.f32 %v729, %v2661
        %v2679 = vmul.f32 %v730, %v2654
        %2689 = vrot.lane.b32.xlu0 %v2671, 127
        %v2690 = vpop.permute.xlu0 %2689
        %2691 = vrot.lane.b32.xlu0 %v2672, 127
        %v2692 = vpop.permute.xlu0 %2691
        %2693 = vrot.lane.b32.xlu0 %v2673, 127
        %v2694 = vpop.permute.xlu0 %2693
        %2695 = vrot.lane.b32.xlu0 %v2674, 127
        %v2696 = vpop.permute.xlu0 %2695
        %2697 = vrot.lane.b32.xlu0 %v2675, 127
        %v2698 = vpop.permute.xlu0 %2697
        %2699 = vrot.lane.b32.xlu0 %v2676, 127
        %v2700 = vpop.permute.xlu0 %2699
        %2701 = vrot.lane.b32.xlu0 %v2677, 127
        %v2702 = vpop.permute.xlu0 %2701
        %2703 = vrot.lane.b32.xlu0 %v2678, 127
        %v2704 = vpop.permute.xlu0 %2703
        %2705 = vrot.lane.b32.xlu0 %v2679, 127
        %v2706 = vpop.permute.xlu0 %2705
        %v2707 = vsel %vm1981, %v2690, %v2692
        %v2708 = vsel %vm1981, %v2692, %v2694
        %v2709 = vsel %vm1981, %v2694, %v2696
        %v2710 = vsel %vm1981, %v2696, %v2698
        %v2711 = vsel %vm1981, %v2698, %v2700
        %v2712 = vsel %vm1981, %v2700, %v2702
        %v2713 = vsel %vm1981, %v2702, %v2704
        %v2714 = vsel %vm1981, %v2704, %v2706
        %2723 = vst [vmem:[#allocation3 + $0x380] sm:$0xff] %v2707
        %2724 = vst [vmem:[#allocation3 + $0x388] sm:$0xff] %v2708
        %2725 = vst [vmem:[#allocation3 + $0x390] sm:$0xff] %v2709
        %2726 = vst [vmem:[#allocation3 + $0x398] sm:$0xff] %v2710
        %2727 = vst [vmem:[#allocation3 + $0x3a0] sm:$0xff] %v2711
        %2728 = vst [vmem:[#allocation3 + $0x3a8] sm:$0xff] %v2712
        %2729 = vst [vmem:[#allocation3 + $0x3b0] sm:$0xff] %v2713
        %2730 = vst [vmem:[#allocation3 + $0x3b8] sm:$0xff] %v2714
        %v2731 = vlaneseq
        %v2732 = vshrl.u32 %v2731, 7
        %v2733 = vsub.s32 7, %v2732
        %v2734 = vrot.slane %v373, %v2733
        %v2735 = vlaneseq
        %v2736 = vshrl.u32 %v2735, 7
        %v2737 = vsub.s32 7, %v2736
        %v2738 = vrot.slane %v374, %v2737
        %v2739 = vlaneseq
        %v2740 = vshrl.u32 %v2739, 7
        %v2741 = vsub.s32 7, %v2740
        %v2742 = vrot.slane %v375, %v2741
        %v2743 = vlaneseq
        %v2744 = vshrl.u32 %v2743, 7
        %v2745 = vsub.s32 7, %v2744
        %v2746 = vrot.slane %v376, %v2745
        %v2747 = vlaneseq
        %v2748 = vshrl.u32 %v2747, 7
        %v2749 = vsub.s32 7, %v2748
        %v2750 = vrot.slane %v377, %v2749
        %v2751 = vlaneseq
        %v2752 = vshrl.u32 %v2751, 7
        %v2753 = vsub.s32 7, %v2752
        %v2754 = vrot.slane %v378, %v2753
        %v2755 = vlaneseq
        %v2756 = vshrl.u32 %v2755, 7
        %v2757 = vsub.s32 7, %v2756
        %v2758 = vrot.slane %v379, %v2757
        %v2759 = vlaneseq
        %v2760 = vshrl.u32 %v2759, 7
        %v2761 = vsub.s32 7, %v2760
        %v2762 = vrot.slane %v380, %v2761
        %2771 = vrot.lane.b32.xlu0 %v2734, 1
        %v2772 = vpop.permute.xlu0 %2771
        %2773 = vrot.lane.b32.xlu0 %v2738, 1
        %v2774 = vpop.permute.xlu0 %2773
        %2775 = vrot.lane.b32.xlu0 %v2742, 1
        %v2776 = vpop.permute.xlu0 %2775
        %2777 = vrot.lane.b32.xlu0 %v2746, 1
        %v2778 = vpop.permute.xlu0 %2777
        %2779 = vrot.lane.b32.xlu0 %v2750, 1
        %v2780 = vpop.permute.xlu0 %2779
        %2781 = vrot.lane.b32.xlu0 %v2754, 1
        %v2782 = vpop.permute.xlu0 %2781
        %2783 = vrot.lane.b32.xlu0 %v2758, 1
        %v2784 = vpop.permute.xlu0 %2783
        %2785 = vrot.lane.b32.xlu0 %v2762, 1
        %v2786 = vpop.permute.xlu0 %2785
        %v2787 = vsel %vm2034, %v2772, %v2774
        %v2788 = vsel %vm2034, %v2774, %v2776
        %v2789 = vsel %vm2034, %v2776, %v2778
        %v2790 = vsel %vm2034, %v2778, %v2780
        %v2791 = vsel %vm2034, %v2780, %v2782
        %v2792 = vsel %vm2034, %v2782, %v2784
        %v2793 = vsel %vm2034, %v2784, %v2786
        %v2803 = vmul.f32 %v723, %v2772
        %v2804 = vmul.f32 %v724, %v2787
        %v2805 = vmul.f32 %v725, %v2788
        %v2806 = vmul.f32 %v726, %v2789
        %v2807 = vmul.f32 %v727, %v2790
        %v2808 = vmul.f32 %v728, %v2791
        %v2809 = vmul.f32 %v729, %v2792
        %v2810 = vmul.f32 %v730, %v2793
        %v2811 = vmul.f32 %v731, %v2786
        %2821 = vrot.lane.b32.xlu0 %v2803, 127
        %v2822 = vpop.permute.xlu0 %2821
        %2823 = vrot.lane.b32.xlu0 %v2804, 127
        %v2824 = vpop.permute.xlu0 %2823
        %2825 = vrot.lane.b32.xlu0 %v2805, 127
        %v2826 = vpop.permute.xlu0 %2825
        %2827 = vrot.lane.b32.xlu0 %v2806, 127
        %v2828 = vpop.permute.xlu0 %2827
        %2829 = vrot.lane.b32.xlu0 %v2807, 127
        %v2830 = vpop.permute.xlu0 %2829
        %2831 = vrot.lane.b32.xlu0 %v2808, 127
        %v2832 = vpop.permute.xlu0 %2831
        %2833 = vrot.lane.b32.xlu0 %v2809, 127
        %v2834 = vpop.permute.xlu0 %2833
        %2835 = vrot.lane.b32.xlu0 %v2810, 127
        %v2836 = vpop.permute.xlu0 %2835
        %2837 = vrot.lane.b32.xlu0 %v2811, 127
        %v2838 = vpop.permute.xlu0 %2837
        %v2839 = vsel %vm1981, %v2822, %v2824
        %v2840 = vsel %vm1981, %v2824, %v2826
        %v2841 = vsel %vm1981, %v2826, %v2828
        %v2842 = vsel %vm1981, %v2828, %v2830
        %v2843 = vsel %vm1981, %v2830, %v2832
        %v2844 = vsel %vm1981, %v2832, %v2834
        %v2845 = vsel %vm1981, %v2834, %v2836
        %v2846 = vsel %vm1981, %v2836, %v2838
        %2855 = vst [vmem:[#allocation3 + $0x5c0] sm:$0xff] %v2839
        %2856 = vst [vmem:[#allocation3 + $0x5c8] sm:$0xff] %v2840
        %2857 = vst [vmem:[#allocation3 + $0x5d0] sm:$0xff] %v2841
        %2858 = vst [vmem:[#allocation3 + $0x5d8] sm:$0xff] %v2842
        %2859 = vst [vmem:[#allocation3 + $0x5e0] sm:$0xff] %v2843
        %2860 = vst [vmem:[#allocation3 + $0x5e8] sm:$0xff] %v2844
        %2861 = vst [vmem:[#allocation3 + $0x5f0] sm:$0xff] %v2845
        %2862 = vst [vmem:[#allocation3 + $0x5f8] sm:$0xff] %v2846
        %v2863 = vlaneseq
        %v2864 = vshrl.u32 %v2863, 7
        %v2865 = vsub.s32 6, %v2864
        %v2866 = vrot.slane %v357, %v2865
        %v2867 = vlaneseq
        %v2868 = vshrl.u32 %v2867, 7
        %v2869 = vsub.s32 6, %v2868
        %v2870 = vrot.slane %v358, %v2869
        %v2871 = vlaneseq
        %v2872 = vshrl.u32 %v2871, 7
        %v2873 = vsub.s32 6, %v2872
        %v2874 = vrot.slane %v359, %v2873
        %v2875 = vlaneseq
        %v2876 = vshrl.u32 %v2875, 7
        %v2877 = vsub.s32 6, %v2876
        %v2878 = vrot.slane %v360, %v2877
        %v2879 = vlaneseq
        %v2880 = vshrl.u32 %v2879, 7
        %v2881 = vsub.s32 6, %v2880
        %v2882 = vrot.slane %v361, %v2881
        %v2883 = vlaneseq
        %v2884 = vshrl.u32 %v2883, 7
        %v2885 = vsub.s32 6, %v2884
        %v2886 = vrot.slane %v362, %v2885
        %v2887 = vlaneseq
        %v2888 = vshrl.u32 %v2887, 7
        %v2889 = vsub.s32 6, %v2888
        %v2890 = vrot.slane %v363, %v2889
        %v2891 = vlaneseq
        %v2892 = vshrl.u32 %v2891, 7
        %v2893 = vsub.s32 6, %v2892
        %v2894 = vrot.slane %v364, %v2893
        %2903 = vrot.lane.b32.xlu0 %v2866, 7
        %v2904 = vpop.permute.xlu0 %2903
        %2905 = vrot.lane.b32.xlu0 %v2870, 7
        %v2906 = vpop.permute.xlu0 %2905
        %2907 = vrot.lane.b32.xlu0 %v2874, 7
        %v2908 = vpop.permute.xlu0 %2907
        %2909 = vrot.lane.b32.xlu0 %v2878, 7
        %v2910 = vpop.permute.xlu0 %2909
        %2911 = vrot.lane.b32.xlu0 %v2882, 7
        %v2912 = vpop.permute.xlu0 %2911
        %2913 = vrot.lane.b32.xlu0 %v2886, 7
        %v2914 = vpop.permute.xlu0 %2913
        %2915 = vrot.lane.b32.xlu0 %v2890, 7
        %v2916 = vpop.permute.xlu0 %2915
        %2917 = vrot.lane.b32.xlu0 %v2894, 7
        %v2918 = vpop.permute.xlu0 %2917
        %v2919 = vsel %vm1636, %v2904, %v2906
        %v2920 = vsel %vm1636, %v2906, %v2908
        %v2921 = vsel %vm1636, %v2908, %v2910
        %v2922 = vsel %vm1636, %v2910, %v2912
        %v2923 = vsel %vm1636, %v2912, %v2914
        %v2924 = vsel %vm1636, %v2914, %v2916
        %v2925 = vsel %vm1636, %v2916, %v2918
        %v2935 = vmul.f32 %v721, %v2904
        %v2936 = vmul.f32 %v722, %v2919
        %v2937 = vmul.f32 %v723, %v2920
        %v2938 = vmul.f32 %v724, %v2921
        %v2939 = vmul.f32 %v725, %v2922
        %v2940 = vmul.f32 %v726, %v2923
        %v2941 = vmul.f32 %v727, %v2924
        %v2942 = vmul.f32 %v728, %v2925
        %v2943 = vmul.f32 %v729, %v2918
        %2953 = vrot.lane.b32.xlu0 %v2935, 121
        %v2954 = vpop.permute.xlu0 %2953
        %2955 = vrot.lane.b32.xlu0 %v2936, 121
        %v2956 = vpop.permute.xlu0 %2955
        %2957 = vrot.lane.b32.xlu0 %v2937, 121
        %v2958 = vpop.permute.xlu0 %2957
        %2959 = vrot.lane.b32.xlu0 %v2938, 121
        %v2960 = vpop.permute.xlu0 %2959
        %2961 = vrot.lane.b32.xlu0 %v2939, 121
        %v2962 = vpop.permute.xlu0 %2961
        %2963 = vrot.lane.b32.xlu0 %v2940, 121
        %v2964 = vpop.permute.xlu0 %2963
        %2965 = vrot.lane.b32.xlu0 %v2941, 121
        %v2966 = vpop.permute.xlu0 %2965
        %2967 = vrot.lane.b32.xlu0 %v2942, 121
        %v2968 = vpop.permute.xlu0 %2967
        %2969 = vrot.lane.b32.xlu0 %v2943, 121
        %v2970 = vpop.permute.xlu0 %2969
        %v2971 = vsel %vm1583, %v2954, %v2956
        %v2972 = vsel %vm1583, %v2956, %v2958
        %v2973 = vsel %vm1583, %v2958, %v2960
        %v2974 = vsel %vm1583, %v2960, %v2962
        %v2975 = vsel %vm1583, %v2962, %v2964
        %v2976 = vsel %vm1583, %v2964, %v2966
        %v2977 = vsel %vm1583, %v2966, %v2968
        %v2978 = vsel %vm1583, %v2968, %v2970
        %2987 = vst [vmem:[#allocation3 + $0x180] sm:$0xff] %v2971
        %2988 = vst [vmem:[#allocation3 + $0x188] sm:$0xff] %v2972
        %2989 = vst [vmem:[#allocation3 + $0x190] sm:$0xff] %v2973
        %2990 = vst [vmem:[#allocation3 + $0x198] sm:$0xff] %v2974
        %2991 = vst [vmem:[#allocation3 + $0x1a0] sm:$0xff] %v2975
        %2992 = vst [vmem:[#allocation3 + $0x1a8] sm:$0xff] %v2976
        %2993 = vst [vmem:[#allocation3 + $0x1b0] sm:$0xff] %v2977
        %2994 = vst [vmem:[#allocation3 + $0x1b8] sm:$0xff] %v2978
        %v2995 = vlaneseq
        %v2996 = vshrl.u32 %v2995, 7
        %v2997 = vsub.s32 7, %v2996
        %v2998 = vrot.slane %v365, %v2997
        %v2999 = vlaneseq
        %v3000 = vshrl.u32 %v2999, 7
        %v3001 = vsub.s32 7, %v3000
        %v3002 = vrot.slane %v366, %v3001
        %v3003 = vlaneseq
        %v3004 = vshrl.u32 %v3003, 7
        %v3005 = vsub.s32 7, %v3004
        %v3006 = vrot.slane %v367, %v3005
        %v3007 = vlaneseq
        %v3008 = vshrl.u32 %v3007, 7
        %v3009 = vsub.s32 7, %v3008
        %v3010 = vrot.slane %v368, %v3009
        %v3011 = vlaneseq
        %v3012 = vshrl.u32 %v3011, 7
        %v3013 = vsub.s32 7, %v3012
        %v3014 = vrot.slane %v369, %v3013
        %v3015 = vlaneseq
        %v3016 = vshrl.u32 %v3015, 7
        %v3017 = vsub.s32 7, %v3016
        %v3018 = vrot.slane %v370, %v3017
        %v3019 = vlaneseq
        %v3020 = vshrl.u32 %v3019, 7
        %v3021 = vsub.s32 7, %v3020
        %v3022 = vrot.slane %v371, %v3021
        %v3023 = vlaneseq
        %v3024 = vshrl.u32 %v3023, 7
        %v3025 = vsub.s32 7, %v3024
        %v3026 = vrot.slane %v372, %v3025
        %3035 = vrot.lane.b32.xlu0 %v2998, 7
        %v3036 = vpop.permute.xlu0 %3035
        %3037 = vrot.lane.b32.xlu0 %v3002, 7
        %v3038 = vpop.permute.xlu0 %3037
        %3039 = vrot.lane.b32.xlu0 %v3006, 7
        %v3040 = vpop.permute.xlu0 %3039
        %3041 = vrot.lane.b32.xlu0 %v3010, 7
        %v3042 = vpop.permute.xlu0 %3041
        %3043 = vrot.lane.b32.xlu0 %v3014, 7
        %v3044 = vpop.permute.xlu0 %3043
        %3045 = vrot.lane.b32.xlu0 %v3018, 7
        %v3046 = vpop.permute.xlu0 %3045
        %3047 = vrot.lane.b32.xlu0 %v3022, 7
        %v3048 = vpop.permute.xlu0 %3047
        %3049 = vrot.lane.b32.xlu0 %v3026, 7
        %v3050 = vpop.permute.xlu0 %3049
        %v3051 = vsel %vm1636, %v3036, %v3038
        %v3052 = vsel %vm1636, %v3038, %v3040
        %v3053 = vsel %vm1636, %v3040, %v3042
        %v3054 = vsel %vm1636, %v3042, %v3044
        %v3055 = vsel %vm1636, %v3044, %v3046
        %v3056 = vsel %vm1636, %v3046, %v3048
        %v3057 = vsel %vm1636, %v3048, %v3050
        %v3067 = vmul.f32 %v722, %v3036
        %v3068 = vmul.f32 %v723, %v3051
        %v3069 = vmul.f32 %v724, %v3052
        %v3070 = vmul.f32 %v725, %v3053
        %v3071 = vmul.f32 %v726, %v3054
        %v3072 = vmul.f32 %v727, %v3055
        %v3073 = vmul.f32 %v728, %v3056
        %v3074 = vmul.f32 %v729, %v3057
        %v3075 = vmul.f32 %v730, %v3050
        %3085 = vrot.lane.b32.xlu0 %v3067, 121
        %v3086 = vpop.permute.xlu0 %3085
        %3087 = vrot.lane.b32.xlu0 %v3068, 121
        %v3088 = vpop.permute.xlu0 %3087
        %3089 = vrot.lane.b32.xlu0 %v3069, 121
        %v3090 = vpop.permute.xlu0 %3089
        %3091 = vrot.lane.b32.xlu0 %v3070, 121
        %v3092 = vpop.permute.xlu0 %3091
        %3093 = vrot.lane.b32.xlu0 %v3071, 121
        %v3094 = vpop.permute.xlu0 %3093
        %3095 = vrot.lane.b32.xlu0 %v3072, 121
        %v3096 = vpop.permute.xlu0 %3095
        %3097 = vrot.lane.b32.xlu0 %v3073, 121
        %v3098 = vpop.permute.xlu0 %3097
        %3099 = vrot.lane.b32.xlu0 %v3074, 121
        %v3100 = vpop.permute.xlu0 %3099
        %3101 = vrot.lane.b32.xlu0 %v3075, 121
        %v3102 = vpop.permute.xlu0 %3101
        %v3103 = vsel %vm1583, %v3086, %v3088
        %v3104 = vsel %vm1583, %v3088, %v3090
        %v3105 = vsel %vm1583, %v3090, %v3092
        %v3106 = vsel %vm1583, %v3092, %v3094
        %v3107 = vsel %vm1583, %v3094, %v3096
        %v3108 = vsel %vm1583, %v3096, %v3098
        %v3109 = vsel %vm1583, %v3098, %v3100
        %v3110 = vsel %vm1583, %v3100, %v3102
        %3119 = vst [vmem:[#allocation3 + $0x3c0] sm:$0xff] %v3103
        %3120 = vst [vmem:[#allocation3 + $0x3c8] sm:$0xff] %v3104
        %3121 = vst [vmem:[#allocation3 + $0x3d0] sm:$0xff] %v3105
        %3122 = vst [vmem:[#allocation3 + $0x3d8] sm:$0xff] %v3106
        %3123 = vst [vmem:[#allocation3 + $0x3e0] sm:$0xff] %v3107
        %3124 = vst [vmem:[#allocation3 + $0x3e8] sm:$0xff] %v3108
        %3125 = vst [vmem:[#allocation3 + $0x3f0] sm:$0xff] %v3109
        %3126 = vst [vmem:[#allocation3 + $0x3f8] sm:$0xff] %v3110
        %v3127 = vlaneseq
        %v3128 = vshrl.u32 %v3127, 7
        %v3129 = vsub.s32 0, %v3128
        %v3130 = vrot.slane %v381, %v3129
        %v3131 = vlaneseq
        %v3132 = vshrl.u32 %v3131, 7
        %v3133 = vsub.s32 0, %v3132
        %v3134 = vrot.slane %v382, %v3133
        %v3135 = vlaneseq
        %v3136 = vshrl.u32 %v3135, 7
        %v3137 = vsub.s32 0, %v3136
        %v3138 = vrot.slane %v383, %v3137
        %v3139 = vlaneseq
        %v3140 = vshrl.u32 %v3139, 7
        %v3141 = vsub.s32 0, %v3140
        %v3142 = vrot.slane %v384, %v3141
        %v3143 = vlaneseq
        %v3144 = vshrl.u32 %v3143, 7
        %v3145 = vsub.s32 0, %v3144
        %v3146 = vrot.slane %v385, %v3145
        %v3147 = vlaneseq
        %v3148 = vshrl.u32 %v3147, 7
        %v3149 = vsub.s32 0, %v3148
        %v3150 = vrot.slane %v386, %v3149
        %v3151 = vlaneseq
        %v3152 = vshrl.u32 %v3151, 7
        %v3153 = vsub.s32 0, %v3152
        %v3154 = vrot.slane %v387, %v3153
        %v3155 = vlaneseq
        %v3156 = vshrl.u32 %v3155, 7
        %v3157 = vsub.s32 0, %v3156
        %v3158 = vrot.slane %v388, %v3157
        %3167 = vrot.lane.b32.xlu0 %v3130, 7
        %v3168 = vpop.permute.xlu0 %3167
        %3169 = vrot.lane.b32.xlu0 %v3134, 7
        %v3170 = vpop.permute.xlu0 %3169
        %3171 = vrot.lane.b32.xlu0 %v3138, 7
        %v3172 = vpop.permute.xlu0 %3171
        %3173 = vrot.lane.b32.xlu0 %v3142, 7
        %v3174 = vpop.permute.xlu0 %3173
        %3175 = vrot.lane.b32.xlu0 %v3146, 7
        %v3176 = vpop.permute.xlu0 %3175
        %3177 = vrot.lane.b32.xlu0 %v3150, 7
        %v3178 = vpop.permute.xlu0 %3177
        %3179 = vrot.lane.b32.xlu0 %v3154, 7
        %v3180 = vpop.permute.xlu0 %3179
        %3181 = vrot.lane.b32.xlu0 %v3158, 7
        %v3182 = vpop.permute.xlu0 %3181
        %v3183 = vsel %vm1636, %v3168, %v3170
        %v3184 = vsel %vm1636, %v3170, %v3172
        %v3185 = vsel %vm1636, %v3172, %v3174
        %v3186 = vsel %vm1636, %v3174, %v3176
        %v3187 = vsel %vm1636, %v3176, %v3178
        %v3188 = vsel %vm1636, %v3178, %v3180
        %v3189 = vsel %vm1636, %v3180, %v3182
        %v3199 = vmul.f32 %v723, %v3168
        %v3200 = vmul.f32 %v724, %v3183
        %v3201 = vmul.f32 %v725, %v3184
        %v3202 = vmul.f32 %v726, %v3185
        %v3203 = vmul.f32 %v727, %v3186
        %v3204 = vmul.f32 %v728, %v3187
        %v3205 = vmul.f32 %v729, %v3188
        %v3206 = vmul.f32 %v730, %v3189
        %v3207 = vmul.f32 %v731, %v3182
        %3217 = vrot.lane.b32.xlu0 %v3199, 121
        %v3218 = vpop.permute.xlu0 %3217
        %3219 = vrot.lane.b32.xlu0 %v3200, 121
        %v3220 = vpop.permute.xlu0 %3219
        %3221 = vrot.lane.b32.xlu0 %v3201, 121
        %v3222 = vpop.permute.xlu0 %3221
        %3223 = vrot.lane.b32.xlu0 %v3202, 121
        %v3224 = vpop.permute.xlu0 %3223
        %3225 = vrot.lane.b32.xlu0 %v3203, 121
        %v3226 = vpop.permute.xlu0 %3225
        %3227 = vrot.lane.b32.xlu0 %v3204, 121
        %v3228 = vpop.permute.xlu0 %3227
        %3229 = vrot.lane.b32.xlu0 %v3205, 121
        %v3230 = vpop.permute.xlu0 %3229
        %3231 = vrot.lane.b32.xlu0 %v3206, 121
        %v3232 = vpop.permute.xlu0 %3231
        %3233 = vrot.lane.b32.xlu0 %v3207, 121
        %v3234 = vpop.permute.xlu0 %3233
        %v3235 = vsel %vm1583, %v3218, %v3220
        %v3236 = vsel %vm1583, %v3220, %v3222
        %v3237 = vsel %vm1583, %v3222, %v3224
        %v3238 = vsel %vm1583, %v3224, %v3226
        %v3239 = vsel %vm1583, %v3226, %v3228
        %v3240 = vsel %vm1583, %v3228, %v3230
        %v3241 = vsel %vm1583, %v3230, %v3232
        %v3242 = vsel %vm1583, %v3232, %v3234
        %3251 = vst [vmem:[#allocation3 + $0x600] sm:$0xff] %v3235
        %3252 = vst [vmem:[#allocation3 + $0x608] sm:$0xff] %v3236
        %3253 = vst [vmem:[#allocation3 + $0x610] sm:$0xff] %v3237
        %3254 = vst [vmem:[#allocation3 + $0x618] sm:$0xff] %v3238
        %3255 = vst [vmem:[#allocation3 + $0x620] sm:$0xff] %v3239
        %3256 = vst [vmem:[#allocation3 + $0x628] sm:$0xff] %v3240
        %3257 = vst [vmem:[#allocation3 + $0x630] sm:$0xff] %v3241
        %3258 = vst [vmem:[#allocation3 + $0x638] sm:$0xff] %v3242
        %v3259 = vlaneseq
        %v3260 = vshrl.u32 %v3259, 7
        %v3261 = vsub.s32 7, %v3260
        %v3262 = vrot.slane %v357, %v3261
        %v3263 = vlaneseq
        %v3264 = vshrl.u32 %v3263, 7
        %v3265 = vsub.s32 7, %v3264
        %v3266 = vrot.slane %v358, %v3265
        %v3267 = vlaneseq
        %v3268 = vshrl.u32 %v3267, 7
        %v3269 = vsub.s32 7, %v3268
        %v3270 = vrot.slane %v359, %v3269
        %v3271 = vlaneseq
        %v3272 = vshrl.u32 %v3271, 7
        %v3273 = vsub.s32 7, %v3272
        %v3274 = vrot.slane %v360, %v3273
        %v3275 = vlaneseq
        %v3276 = vshrl.u32 %v3275, 7
        %v3277 = vsub.s32 7, %v3276
        %v3278 = vrot.slane %v361, %v3277
        %v3279 = vlaneseq
        %v3280 = vshrl.u32 %v3279, 7
        %v3281 = vsub.s32 7, %v3280
        %v3282 = vrot.slane %v362, %v3281
        %v3283 = vlaneseq
        %v3284 = vshrl.u32 %v3283, 7
        %v3285 = vsub.s32 7, %v3284
        %v3286 = vrot.slane %v363, %v3285
        %v3287 = vlaneseq
        %v3288 = vshrl.u32 %v3287, 7
        %v3289 = vsub.s32 7, %v3288
        %v3290 = vrot.slane %v364, %v3289
        %3299 = vrot.lane.b32.xlu0 %v3262, 8
        %v3300 = vpop.permute.xlu0 %3299
        %3301 = vrot.lane.b32.xlu0 %v3266, 8
        %v3302 = vpop.permute.xlu0 %3301
        %3303 = vrot.lane.b32.xlu0 %v3270, 8
        %v3304 = vpop.permute.xlu0 %3303
        %3305 = vrot.lane.b32.xlu0 %v3274, 8
        %v3306 = vpop.permute.xlu0 %3305
        %3307 = vrot.lane.b32.xlu0 %v3278, 8
        %v3308 = vpop.permute.xlu0 %3307
        %3309 = vrot.lane.b32.xlu0 %v3282, 8
        %v3310 = vpop.permute.xlu0 %3309
        %3311 = vrot.lane.b32.xlu0 %v3286, 8
        %v3312 = vpop.permute.xlu0 %3311
        %3313 = vrot.lane.b32.xlu0 %v3290, 8
        %v3314 = vpop.permute.xlu0 %3313
        %v3315 = vsel %vm400, %v3300, %v3302
        %v3316 = vsel %vm400, %v3302, %v3304
        %v3317 = vsel %vm400, %v3304, %v3306
        %v3318 = vsel %vm400, %v3306, %v3308
        %v3319 = vsel %vm400, %v3308, %v3310
        %v3320 = vsel %vm400, %v3310, %v3312
        %v3321 = vsel %vm400, %v3312, %v3314
        %v3331 = vmul.f32 %v721, %v3300
        %v3332 = vmul.f32 %v722, %v3315
        %v3333 = vmul.f32 %v723, %v3316
        %v3334 = vmul.f32 %v724, %v3317
        %v3335 = vmul.f32 %v725, %v3318
        %v3336 = vmul.f32 %v726, %v3319
        %v3337 = vmul.f32 %v727, %v3320
        %v3338 = vmul.f32 %v728, %v3321
        %v3339 = vmul.f32 %v729, %v3314
        %3349 = vrot.lane.b32.xlu0 %v3331, 120
        %v3350 = vpop.permute.xlu0 %3349
        %3351 = vrot.lane.b32.xlu0 %v3332, 120
        %v3352 = vpop.permute.xlu0 %3351
        %3353 = vrot.lane.b32.xlu0 %v3333, 120
        %v3354 = vpop.permute.xlu0 %3353
        %3355 = vrot.lane.b32.xlu0 %v3334, 120
        %v3356 = vpop.permute.xlu0 %3355
        %3357 = vrot.lane.b32.xlu0 %v3335, 120
        %v3358 = vpop.permute.xlu0 %3357
        %3359 = vrot.lane.b32.xlu0 %v3336, 120
        %v3360 = vpop.permute.xlu0 %3359
        %3361 = vrot.lane.b32.xlu0 %v3337, 120
        %v3362 = vpop.permute.xlu0 %3361
        %3363 = vrot.lane.b32.xlu0 %v3338, 120
        %v3364 = vpop.permute.xlu0 %3363
        %3365 = vrot.lane.b32.xlu0 %v3339, 120
        %v3366 = vpop.permute.xlu0 %3365
        %v3367 = vsel %vm1186, %v3350, %v3352
        %v3368 = vsel %vm1186, %v3352, %v3354
        %v3369 = vsel %vm1186, %v3354, %v3356
        %v3370 = vsel %vm1186, %v3356, %v3358
        %v3371 = vsel %vm1186, %v3358, %v3360
        %v3372 = vsel %vm1186, %v3360, %v3362
        %v3373 = vsel %vm1186, %v3362, %v3364
        %v3374 = vsel %vm1186, %v3364, %v3366
        %3383 = vst [vmem:[#allocation3 + $0x1c0] sm:$0xff] %v3367
        %3384 = vst [vmem:[#allocation3 + $0x1c8] sm:$0xff] %v3368
        %3385 = vst [vmem:[#allocation3 + $0x1d0] sm:$0xff] %v3369
        %3386 = vst [vmem:[#allocation3 + $0x1d8] sm:$0xff] %v3370
        %3387 = vst [vmem:[#allocation3 + $0x1e0] sm:$0xff] %v3371
        %3388 = vst [vmem:[#allocation3 + $0x1e8] sm:$0xff] %v3372
        %3389 = vst [vmem:[#allocation3 + $0x1f0] sm:$0xff] %v3373
        %3390 = vst [vmem:[#allocation3 + $0x1f8] sm:$0xff] %v3374
        %v3391 = vlaneseq
        %v3392 = vshrl.u32 %v3391, 7
        %v3393 = vsub.s32 0, %v3392
        %v3394 = vrot.slane %v373, %v3393
        %v3395 = vlaneseq
        %v3396 = vshrl.u32 %v3395, 7
        %v3397 = vsub.s32 0, %v3396
        %v3398 = vrot.slane %v374, %v3397
        %v3399 = vlaneseq
        %v3400 = vshrl.u32 %v3399, 7
        %v3401 = vsub.s32 0, %v3400
        %v3402 = vrot.slane %v375, %v3401
        %v3403 = vlaneseq
        %v3404 = vshrl.u32 %v3403, 7
        %v3405 = vsub.s32 0, %v3404
        %v3406 = vrot.slane %v376, %v3405
        %v3407 = vlaneseq
        %v3408 = vshrl.u32 %v3407, 7
        %v3409 = vsub.s32 0, %v3408
        %v3410 = vrot.slane %v377, %v3409
        %v3411 = vlaneseq
        %v3412 = vshrl.u32 %v3411, 7
        %v3413 = vsub.s32 0, %v3412
        %v3414 = vrot.slane %v378, %v3413
        %v3415 = vlaneseq
        %v3416 = vshrl.u32 %v3415, 7
        %v3417 = vsub.s32 0, %v3416
        %v3418 = vrot.slane %v379, %v3417
        %v3419 = vlaneseq
        %v3420 = vshrl.u32 %v3419, 7
        %v3421 = vsub.s32 0, %v3420
        %v3422 = vrot.slane %v380, %v3421
        %3431 = vrot.lane.b32.xlu0 %v3394, 8
        %v3432 = vpop.permute.xlu0 %3431
        %3433 = vrot.lane.b32.xlu0 %v3398, 8
        %v3434 = vpop.permute.xlu0 %3433
        %3435 = vrot.lane.b32.xlu0 %v3402, 8
        %v3436 = vpop.permute.xlu0 %3435
        %3437 = vrot.lane.b32.xlu0 %v3406, 8
        %v3438 = vpop.permute.xlu0 %3437
        %3439 = vrot.lane.b32.xlu0 %v3410, 8
        %v3440 = vpop.permute.xlu0 %3439
        %3441 = vrot.lane.b32.xlu0 %v3414, 8
        %v3442 = vpop.permute.xlu0 %3441
        %3443 = vrot.lane.b32.xlu0 %v3418, 8
        %v3444 = vpop.permute.xlu0 %3443
        %3445 = vrot.lane.b32.xlu0 %v3422, 8
        %v3446 = vpop.permute.xlu0 %3445
        %v3447 = vsel %vm400, %v3432, %v3434
        %v3448 = vsel %vm400, %v3434, %v3436
        %v3449 = vsel %vm400, %v3436, %v3438
        %v3450 = vsel %vm400, %v3438, %v3440
        %v3451 = vsel %vm400, %v3440, %v3442
        %v3452 = vsel %vm400, %v3442, %v3444
        %v3453 = vsel %vm400, %v3444, %v3446
        %v3463 = vmul.f32 %v722, %v3432
        %v3464 = vmul.f32 %v723, %v3447
        %v3465 = vmul.f32 %v724, %v3448
        %v3466 = vmul.f32 %v725, %v3449
        %v3467 = vmul.f32 %v726, %v3450
        %v3468 = vmul.f32 %v727, %v3451
        %v3469 = vmul.f32 %v728, %v3452
        %v3470 = vmul.f32 %v729, %v3453
        %v3471 = vmul.f32 %v730, %v3446
        %3481 = vrot.lane.b32.xlu0 %v3463, 120
        %v3482 = vpop.permute.xlu0 %3481
        %3483 = vrot.lane.b32.xlu0 %v3464, 120
        %v3484 = vpop.permute.xlu0 %3483
        %3485 = vrot.lane.b32.xlu0 %v3465, 120
        %v3486 = vpop.permute.xlu0 %3485
        %3487 = vrot.lane.b32.xlu0 %v3466, 120
        %v3488 = vpop.permute.xlu0 %3487
        %3489 = vrot.lane.b32.xlu0 %v3467, 120
        %v3490 = vpop.permute.xlu0 %3489
        %3491 = vrot.lane.b32.xlu0 %v3468, 120
        %v3492 = vpop.permute.xlu0 %3491
        %3493 = vrot.lane.b32.xlu0 %v3469, 120
        %v3494 = vpop.permute.xlu0 %3493
        %3495 = vrot.lane.b32.xlu0 %v3470, 120
        %v3496 = vpop.permute.xlu0 %3495
        %3497 = vrot.lane.b32.xlu0 %v3471, 120
        %v3498 = vpop.permute.xlu0 %3497
        %v3499 = vsel %vm1186, %v3482, %v3484
        %v3500 = vsel %vm1186, %v3484, %v3486
        %v3501 = vsel %vm1186, %v3486, %v3488
        %v3502 = vsel %vm1186, %v3488, %v3490
        %v3503 = vsel %vm1186, %v3490, %v3492
        %v3504 = vsel %vm1186, %v3492, %v3494
        %v3505 = vsel %vm1186, %v3494, %v3496
        %v3506 = vsel %vm1186, %v3496, %v3498
        %3515 = vst [vmem:[#allocation3 + $0x400] sm:$0xff] %v3499
        %3516 = vst [vmem:[#allocation3 + $0x408] sm:$0xff] %v3500
        %3517 = vst [vmem:[#allocation3 + $0x410] sm:$0xff] %v3501
        %3518 = vst [vmem:[#allocation3 + $0x418] sm:$0xff] %v3502
        %3519 = vst [vmem:[#allocation3 + $0x420] sm:$0xff] %v3503
        %3520 = vst [vmem:[#allocation3 + $0x428] sm:$0xff] %v3504
        %3521 = vst [vmem:[#allocation3 + $0x430] sm:$0xff] %v3505
        %3522 = vst [vmem:[#allocation3 + $0x438] sm:$0xff] %v3506
        %v3523 = vlaneseq
        %v3524 = vshrl.u32 %v3523, 7
        %v3525 = vsub.s32 1, %v3524
        %v3526 = vrot.slane %v381, %v3525
        %v3527 = vlaneseq
        %v3528 = vshrl.u32 %v3527, 7
        %v3529 = vsub.s32 1, %v3528
        %v3530 = vrot.slane %v382, %v3529
        %v3531 = vlaneseq
        %v3532 = vshrl.u32 %v3531, 7
        %v3533 = vsub.s32 1, %v3532
        %v3534 = vrot.slane %v383, %v3533
        %v3535 = vlaneseq
        %v3536 = vshrl.u32 %v3535, 7
        %v3537 = vsub.s32 1, %v3536
        %v3538 = vrot.slane %v384, %v3537
        %v3539 = vlaneseq
        %v3540 = vshrl.u32 %v3539, 7
        %v3541 = vsub.s32 1, %v3540
        %v3542 = vrot.slane %v385, %v3541
        %v3543 = vlaneseq
        %v3544 = vshrl.u32 %v3543, 7
        %v3545 = vsub.s32 1, %v3544
        %v3546 = vrot.slane %v386, %v3545
        %v3547 = vlaneseq
        %v3548 = vshrl.u32 %v3547, 7
        %v3549 = vsub.s32 1, %v3548
        %v3550 = vrot.slane %v387, %v3549
        %v3551 = vlaneseq
        %v3552 = vshrl.u32 %v3551, 7
        %v3553 = vsub.s32 1, %v3552
        %v3554 = vrot.slane %v388, %v3553
        %3563 = vrot.lane.b32.xlu0 %v3526, 8
        %v3564 = vpop.permute.xlu0 %3563
        %3565 = vrot.lane.b32.xlu0 %v3530, 8
        %v3566 = vpop.permute.xlu0 %3565
        %3567 = vrot.lane.b32.xlu0 %v3534, 8
        %v3568 = vpop.permute.xlu0 %3567
        %3569 = vrot.lane.b32.xlu0 %v3538, 8
        %v3570 = vpop.permute.xlu0 %3569
        %3571 = vrot.lane.b32.xlu0 %v3542, 8
        %v3572 = vpop.permute.xlu0 %3571
        %3573 = vrot.lane.b32.xlu0 %v3546, 8
        %v3574 = vpop.permute.xlu0 %3573
        %3575 = vrot.lane.b32.xlu0 %v3550, 8
        %v3576 = vpop.permute.xlu0 %3575
        %3577 = vrot.lane.b32.xlu0 %v3554, 8
        %v3578 = vpop.permute.xlu0 %3577
        %v3579 = vsel %vm400, %v3564, %v3566
        %v3580 = vsel %vm400, %v3566, %v3568
        %v3581 = vsel %vm400, %v3568, %v3570
        %v3582 = vsel %vm400, %v3570, %v3572
        %v3583 = vsel %vm400, %v3572, %v3574
        %v3584 = vsel %vm400, %v3574, %v3576
        %v3585 = vsel %vm400, %v3576, %v3578
        %v3595 = vmul.f32 %v723, %v3564
        %v3596 = vmul.f32 %v724, %v3579
        %v3597 = vmul.f32 %v725, %v3580
        %v3598 = vmul.f32 %v726, %v3581
        %v3599 = vmul.f32 %v727, %v3582
        %v3600 = vmul.f32 %v728, %v3583
        %v3601 = vmul.f32 %v729, %v3584
        %v3602 = vmul.f32 %v730, %v3585
        %v3603 = vmul.f32 %v731, %v3578
        %3613 = vrot.lane.b32.xlu0 %v3595, 120
        %v3614 = vpop.permute.xlu0 %3613
        %3615 = vrot.lane.b32.xlu0 %v3596, 120
        %v3616 = vpop.permute.xlu0 %3615
        %3617 = vrot.lane.b32.xlu0 %v3597, 120
        %v3618 = vpop.permute.xlu0 %3617
        %3619 = vrot.lane.b32.xlu0 %v3598, 120
        %v3620 = vpop.permute.xlu0 %3619
        %3621 = vrot.lane.b32.xlu0 %v3599, 120
        %v3622 = vpop.permute.xlu0 %3621
        %3623 = vrot.lane.b32.xlu0 %v3600, 120
        %v3624 = vpop.permute.xlu0 %3623
        %3625 = vrot.lane.b32.xlu0 %v3601, 120
        %v3626 = vpop.permute.xlu0 %3625
        %3627 = vrot.lane.b32.xlu0 %v3602, 120
        %v3628 = vpop.permute.xlu0 %3627
        %3629 = vrot.lane.b32.xlu0 %v3603, 120
        %v3630 = vpop.permute.xlu0 %3629
        %v3631 = vsel %vm1186, %v3614, %v3616
        %v3632 = vsel %vm1186, %v3616, %v3618
        %v3633 = vsel %vm1186, %v3618, %v3620
        %v3634 = vsel %vm1186, %v3620, %v3622
        %v3635 = vsel %vm1186, %v3622, %v3624
        %v3636 = vsel %vm1186, %v3624, %v3626
        %v3637 = vsel %vm1186, %v3626, %v3628
        %v3638 = vsel %vm1186, %v3628, %v3630
        %3647 = vst [vmem:[#allocation3 + $0x640] sm:$0xff] %v3631
        %3648 = vst [vmem:[#allocation3 + $0x648] sm:$0xff] %v3632
        %3649 = vst [vmem:[#allocation3 + $0x650] sm:$0xff] %v3633
        %3650 = vst [vmem:[#allocation3 + $0x658] sm:$0xff] %v3634
        %3651 = vst [vmem:[#allocation3 + $0x660] sm:$0xff] %v3635
        %3652 = vst [vmem:[#allocation3 + $0x668] sm:$0xff] %v3636
        %3653 = vst [vmem:[#allocation3 + $0x670] sm:$0xff] %v3637
        %3654 = vst [vmem:[#allocation3 + $0x678] sm:$0xff] %v3638
        %v3655 = vlaneseq
        %v3656 = vshrl.u32 %v3655, 7
        %v3657 = vsub.s32 0, %v3656
        %v3658 = vrot.slane %v365, %v3657
        %v3659 = vlaneseq
        %v3660 = vshrl.u32 %v3659, 7
        %v3661 = vsub.s32 0, %v3660
        %v3662 = vrot.slane %v366, %v3661
        %v3663 = vlaneseq
        %v3664 = vshrl.u32 %v3663, 7
        %v3665 = vsub.s32 0, %v3664
        %v3666 = vrot.slane %v367, %v3665
        %v3667 = vlaneseq
        %v3668 = vshrl.u32 %v3667, 7
        %v3669 = vsub.s32 0, %v3668
        %v3670 = vrot.slane %v368, %v3669
        %v3671 = vlaneseq
        %v3672 = vshrl.u32 %v3671, 7
        %v3673 = vsub.s32 0, %v3672
        %v3674 = vrot.slane %v369, %v3673
        %v3675 = vlaneseq
        %v3676 = vshrl.u32 %v3675, 7
        %v3677 = vsub.s32 0, %v3676
        %v3678 = vrot.slane %v370, %v3677
        %v3679 = vlaneseq
        %v3680 = vshrl.u32 %v3679, 7
        %v3681 = vsub.s32 0, %v3680
        %v3682 = vrot.slane %v371, %v3681
        %v3683 = vlaneseq
        %v3684 = vshrl.u32 %v3683, 7
        %v3685 = vsub.s32 0, %v3684
        %v3686 = vrot.slane %v372, %v3685
        %3695 = vrot.lane.b32.xlu0 %v3658, 9
        %v3696 = vpop.permute.xlu0 %3695
        %3697 = vrot.lane.b32.xlu0 %v3662, 9
        %v3698 = vpop.permute.xlu0 %3697
        %3699 = vrot.lane.b32.xlu0 %v3666, 9
        %v3700 = vpop.permute.xlu0 %3699
        %3701 = vrot.lane.b32.xlu0 %v3670, 9
        %v3702 = vpop.permute.xlu0 %3701
        %3703 = vrot.lane.b32.xlu0 %v3674, 9
        %v3704 = vpop.permute.xlu0 %3703
        %3705 = vrot.lane.b32.xlu0 %v3678, 9
        %v3706 = vpop.permute.xlu0 %3705
        %3707 = vrot.lane.b32.xlu0 %v3682, 9
        %v3708 = vpop.permute.xlu0 %3707
        %3709 = vrot.lane.b32.xlu0 %v3686, 9
        %v3710 = vpop.permute.xlu0 %3709
        %v3711 = vsel %vm841, %v3696, %v3698
        %v3712 = vsel %vm841, %v3698, %v3700
        %v3713 = vsel %vm841, %v3700, %v3702
        %v3714 = vsel %vm841, %v3702, %v3704
        %v3715 = vsel %vm841, %v3704, %v3706
        %v3716 = vsel %vm841, %v3706, %v3708
        %v3717 = vsel %vm841, %v3708, %v3710
        %v3727 = vmul.f32 %v721, %v3696
        %v3728 = vmul.f32 %v722, %v3711
        %v3729 = vmul.f32 %v723, %v3712
        %v3730 = vmul.f32 %v724, %v3713
        %v3731 = vmul.f32 %v725, %v3714
        %v3732 = vmul.f32 %v726, %v3715
        %v3733 = vmul.f32 %v727, %v3716
        %v3734 = vmul.f32 %v728, %v3717
        %v3735 = vmul.f32 %v729, %v3710
        %3745 = vrot.lane.b32.xlu0 %v3727, 119
        %v3746 = vpop.permute.xlu0 %3745
        %3747 = vrot.lane.b32.xlu0 %v3728, 119
        %v3748 = vpop.permute.xlu0 %3747
        %3749 = vrot.lane.b32.xlu0 %v3729, 119
        %v3750 = vpop.permute.xlu0 %3749
        %3751 = vrot.lane.b32.xlu0 %v3730, 119
        %v3752 = vpop.permute.xlu0 %3751
        %3753 = vrot.lane.b32.xlu0 %v3731, 119
        %v3754 = vpop.permute.xlu0 %3753
        %3755 = vrot.lane.b32.xlu0 %v3732, 119
        %v3756 = vpop.permute.xlu0 %3755
        %3757 = vrot.lane.b32.xlu0 %v3733, 119
        %v3758 = vpop.permute.xlu0 %3757
        %3759 = vrot.lane.b32.xlu0 %v3734, 119
        %v3760 = vpop.permute.xlu0 %3759
        %3761 = vrot.lane.b32.xlu0 %v3735, 119
        %v3762 = vpop.permute.xlu0 %3761
        %v3763 = vsel %vm788, %v3746, %v3748
        %v3764 = vsel %vm788, %v3748, %v3750
        %v3765 = vsel %vm788, %v3750, %v3752
        %v3766 = vsel %vm788, %v3752, %v3754
        %v3767 = vsel %vm788, %v3754, %v3756
        %v3768 = vsel %vm788, %v3756, %v3758
        %v3769 = vsel %vm788, %v3758, %v3760
        %v3770 = vsel %vm788, %v3760, %v3762
        %3779 = vst [vmem:[#allocation3 + $0x200] sm:$0xff] %v3763
        %3780 = vst [vmem:[#allocation3 + $0x208] sm:$0xff] %v3764
        %3781 = vst [vmem:[#allocation3 + $0x210] sm:$0xff] %v3765
        %3782 = vst [vmem:[#allocation3 + $0x218] sm:$0xff] %v3766
        %3783 = vst [vmem:[#allocation3 + $0x220] sm:$0xff] %v3767
        %3784 = vst [vmem:[#allocation3 + $0x228] sm:$0xff] %v3768
        %3785 = vst [vmem:[#allocation3 + $0x230] sm:$0xff] %v3769
        %3786 = vst [vmem:[#allocation3 + $0x238] sm:$0xff] %v3770
        %v3787 = vlaneseq
        %v3788 = vshrl.u32 %v3787, 7
        %v3789 = vsub.s32 1, %v3788
        %v3790 = vrot.slane %v373, %v3789
        %v3791 = vlaneseq
        %v3792 = vshrl.u32 %v3791, 7
        %v3793 = vsub.s32 1, %v3792
        %v3794 = vrot.slane %v374, %v3793
        %v3795 = vlaneseq
        %v3796 = vshrl.u32 %v3795, 7
        %v3797 = vsub.s32 1, %v3796
        %v3798 = vrot.slane %v375, %v3797
        %v3799 = vlaneseq
        %v3800 = vshrl.u32 %v3799, 7
        %v3801 = vsub.s32 1, %v3800
        %v3802 = vrot.slane %v376, %v3801
        %v3803 = vlaneseq
        %v3804 = vshrl.u32 %v3803, 7
        %v3805 = vsub.s32 1, %v3804
        %v3806 = vrot.slane %v377, %v3805
        %v3807 = vlaneseq
        %v3808 = vshrl.u32 %v3807, 7
        %v3809 = vsub.s32 1, %v3808
        %v3810 = vrot.slane %v378, %v3809
        %v3811 = vlaneseq
        %v3812 = vshrl.u32 %v3811, 7
        %v3813 = vsub.s32 1, %v3812
        %v3814 = vrot.slane %v379, %v3813
        %v3815 = vlaneseq
        %v3816 = vshrl.u32 %v3815, 7
        %v3817 = vsub.s32 1, %v3816
        %v3818 = vrot.slane %v380, %v3817
        %3827 = vrot.lane.b32.xlu0 %v3790, 9
        %v3828 = vpop.permute.xlu0 %3827
        %3829 = vrot.lane.b32.xlu0 %v3794, 9
        %v3830 = vpop.permute.xlu0 %3829
        %3831 = vrot.lane.b32.xlu0 %v3798, 9
        %v3832 = vpop.permute.xlu0 %3831
        %3833 = vrot.lane.b32.xlu0 %v3802, 9
        %v3834 = vpop.permute.xlu0 %3833
        %3835 = vrot.lane.b32.xlu0 %v3806, 9
        %v3836 = vpop.permute.xlu0 %3835
        %3837 = vrot.lane.b32.xlu0 %v3810, 9
        %v3838 = vpop.permute.xlu0 %3837
        %3839 = vrot.lane.b32.xlu0 %v3814, 9
        %v3840 = vpop.permute.xlu0 %3839
        %3841 = vrot.lane.b32.xlu0 %v3818, 9
        %v3842 = vpop.permute.xlu0 %3841
        %v3843 = vsel %vm841, %v3828, %v3830
        %v3844 = vsel %vm841, %v3830, %v3832
        %v3845 = vsel %vm841, %v3832, %v3834
        %v3846 = vsel %vm841, %v3834, %v3836
        %v3847 = vsel %vm841, %v3836, %v3838
        %v3848 = vsel %vm841, %v3838, %v3840
        %v3849 = vsel %vm841, %v3840, %v3842
        %v3859 = vmul.f32 %v722, %v3828
        %v3860 = vmul.f32 %v723, %v3843
        %v3861 = vmul.f32 %v724, %v3844
        %v3862 = vmul.f32 %v725, %v3845
        %v3863 = vmul.f32 %v726, %v3846
        %v3864 = vmul.f32 %v727, %v3847
        %v3865 = vmul.f32 %v728, %v3848
        %v3866 = vmul.f32 %v729, %v3849
        %v3867 = vmul.f32 %v730, %v3842
        %3877 = vrot.lane.b32.xlu0 %v3859, 119
        %v3878 = vpop.permute.xlu0 %3877
        %3879 = vrot.lane.b32.xlu0 %v3860, 119
        %v3880 = vpop.permute.xlu0 %3879
        %3881 = vrot.lane.b32.xlu0 %v3861, 119
        %v3882 = vpop.permute.xlu0 %3881
        %3883 = vrot.lane.b32.xlu0 %v3862, 119
        %v3884 = vpop.permute.xlu0 %3883
        %3885 = vrot.lane.b32.xlu0 %v3863, 119
        %v3886 = vpop.permute.xlu0 %3885
        %3887 = vrot.lane.b32.xlu0 %v3864, 119
        %v3888 = vpop.permute.xlu0 %3887
        %3889 = vrot.lane.b32.xlu0 %v3865, 119
        %v3890 = vpop.permute.xlu0 %3889
        %3891 = vrot.lane.b32.xlu0 %v3866, 119
        %v3892 = vpop.permute.xlu0 %3891
        %3893 = vrot.lane.b32.xlu0 %v3867, 119
        %v3894 = vpop.permute.xlu0 %3893
        %v3895 = vsel %vm788, %v3878, %v3880
        %v3896 = vsel %vm788, %v3880, %v3882
        %v3897 = vsel %vm788, %v3882, %v3884
        %v3898 = vsel %vm788, %v3884, %v3886
        %v3899 = vsel %vm788, %v3886, %v3888
        %v3900 = vsel %vm788, %v3888, %v3890
        %v3901 = vsel %vm788, %v3890, %v3892
        %v3902 = vsel %vm788, %v3892, %v3894
        %3911 = vst [vmem:[#allocation3 + $0x440] sm:$0xff] %v3895
        %3912 = vst [vmem:[#allocation3 + $0x448] sm:$0xff] %v3896
        %3913 = vst [vmem:[#allocation3 + $0x450] sm:$0xff] %v3897
        %3914 = vst [vmem:[#allocation3 + $0x458] sm:$0xff] %v3898
        %3915 = vst [vmem:[#allocation3 + $0x460] sm:$0xff] %v3899
        %3916 = vst [vmem:[#allocation3 + $0x468] sm:$0xff] %v3900
        %3917 = vst [vmem:[#allocation3 + $0x470] sm:$0xff] %v3901
        %3918 = vst [vmem:[#allocation3 + $0x478] sm:$0xff] %v3902
        %v3919 = vlaneseq
        %v3920 = vshrl.u32 %v3919, 7
        %v3921 = vsub.s32 2, %v3920
        %v3922 = vrot.slane %v381, %v3921
        %v3923 = vlaneseq
        %v3924 = vshrl.u32 %v3923, 7
        %v3925 = vsub.s32 2, %v3924
        %v3926 = vrot.slane %v382, %v3925
        %v3927 = vlaneseq
        %v3928 = vshrl.u32 %v3927, 7
        %v3929 = vsub.s32 2, %v3928
        %v3930 = vrot.slane %v383, %v3929
        %v3931 = vlaneseq
        %v3932 = vshrl.u32 %v3931, 7
        %v3933 = vsub.s32 2, %v3932
        %v3934 = vrot.slane %v384, %v3933
        %v3935 = vlaneseq
        %v3936 = vshrl.u32 %v3935, 7
        %v3937 = vsub.s32 2, %v3936
        %v3938 = vrot.slane %v385, %v3937
        %v3939 = vlaneseq
        %v3940 = vshrl.u32 %v3939, 7
        %v3941 = vsub.s32 2, %v3940
        %v3942 = vrot.slane %v386, %v3941
        %v3943 = vlaneseq
        %v3944 = vshrl.u32 %v3943, 7
        %v3945 = vsub.s32 2, %v3944
        %v3946 = vrot.slane %v387, %v3945
        %v3947 = vlaneseq
        %v3948 = vshrl.u32 %v3947, 7
        %v3949 = vsub.s32 2, %v3948
        %v3950 = vrot.slane %v388, %v3949
        %3959 = vrot.lane.b32.xlu0 %v3922, 9
        %v3960 = vpop.permute.xlu0 %3959
        %3961 = vrot.lane.b32.xlu0 %v3926, 9
        %v3962 = vpop.permute.xlu0 %3961
        %3963 = vrot.lane.b32.xlu0 %v3930, 9
        %v3964 = vpop.permute.xlu0 %3963
        %3965 = vrot.lane.b32.xlu0 %v3934, 9
        %v3966 = vpop.permute.xlu0 %3965
        %3967 = vrot.lane.b32.xlu0 %v3938, 9
        %v3968 = vpop.permute.xlu0 %3967
        %3969 = vrot.lane.b32.xlu0 %v3942, 9
        %v3970 = vpop.permute.xlu0 %3969
        %3971 = vrot.lane.b32.xlu0 %v3946, 9
        %v3972 = vpop.permute.xlu0 %3971
        %3973 = vrot.lane.b32.xlu0 %v3950, 9
        %v3974 = vpop.permute.xlu0 %3973
        %v3975 = vsel %vm841, %v3960, %v3962
        %v3976 = vsel %vm841, %v3962, %v3964
        %v3977 = vsel %vm841, %v3964, %v3966
        %v3978 = vsel %vm841, %v3966, %v3968
        %v3979 = vsel %vm841, %v3968, %v3970
        %v3980 = vsel %vm841, %v3970, %v3972
        %v3981 = vsel %vm841, %v3972, %v3974
        %v3991 = vmul.f32 %v723, %v3960
        %v3992 = vmul.f32 %v724, %v3975
        %v3993 = vmul.f32 %v725, %v3976
        %v3994 = vmul.f32 %v726, %v3977
        %v3995 = vmul.f32 %v727, %v3978
        %v3996 = vmul.f32 %v728, %v3979
        %v3997 = vmul.f32 %v729, %v3980
        %v3998 = vmul.f32 %v730, %v3981
        %v3999 = vmul.f32 %v731, %v3974
        %4009 = vrot.lane.b32.xlu0 %v3991, 119
        %v4010 = vpop.permute.xlu0 %4009
        %4011 = vrot.lane.b32.xlu0 %v3992, 119
        %v4012 = vpop.permute.xlu0 %4011
        %4013 = vrot.lane.b32.xlu0 %v3993, 119
        %v4014 = vpop.permute.xlu0 %4013
        %4015 = vrot.lane.b32.xlu0 %v3994, 119
        %v4016 = vpop.permute.xlu0 %4015
        %4017 = vrot.lane.b32.xlu0 %v3995, 119
        %v4018 = vpop.permute.xlu0 %4017
        %4019 = vrot.lane.b32.xlu0 %v3996, 119
        %v4020 = vpop.permute.xlu0 %4019
        %4021 = vrot.lane.b32.xlu0 %v3997, 119
        %v4022 = vpop.permute.xlu0 %4021
        %4023 = vrot.lane.b32.xlu0 %v3998, 119
        %v4024 = vpop.permute.xlu0 %4023
        %4025 = vrot.lane.b32.xlu0 %v3999, 119
        %v4026 = vpop.permute.xlu0 %4025
        %v4027 = vsel %vm788, %v4010, %v4012
        %v4028 = vsel %vm788, %v4012, %v4014
        %v4029 = vsel %vm788, %v4014, %v4016
        %v4030 = vsel %vm788, %v4016, %v4018
        %v4031 = vsel %vm788, %v4018, %v4020
        %v4032 = vsel %vm788, %v4020, %v4022
        %v4033 = vsel %vm788, %v4022, %v4024
        %v4034 = vsel %vm788, %v4024, %v4026
        %4043 = vst [vmem:[#allocation3 + $0x680] sm:$0xff] %v4027
        %4044 = vst [vmem:[#allocation3 + $0x688] sm:$0xff] %v4028
        %4045 = vst [vmem:[#allocation3 + $0x690] sm:$0xff] %v4029
        %4046 = vst [vmem:[#allocation3 + $0x698] sm:$0xff] %v4030
        %4047 = vst [vmem:[#allocation3 + $0x6a0] sm:$0xff] %v4031
        %4048 = vst [vmem:[#allocation3 + $0x6a8] sm:$0xff] %v4032
        %4049 = vst [vmem:[#allocation3 + $0x6b0] sm:$0xff] %v4033
        %4050 = vst [vmem:[#allocation3 + $0x6b8] sm:$0xff] %v4034
        %v4051 = vld [vmem:[%s2] sm:$0xff]
        %v4052 = vld [vmem:[%s2 + $0x8] sm:$0xff]
        %v4053 = vld [vmem:[#allocation3] sm:$0xff]
        %v4054 = vld [vmem:[#allocation3 + $0x8] sm:$0xff]
        %v4055 = vld [vmem:[#allocation3 + $0x10] sm:$0xff]
        %v4056 = vld [vmem:[#allocation3 + $0x18] sm:$0xff]
        %v4057 = vld [vmem:[#allocation3 + $0x20] sm:$0xff]
        %v4058 = vld [vmem:[#allocation3 + $0x28] sm:$0xff]
        %v4059 = vld [vmem:[#allocation3 + $0x30] sm:$0xff]
        %v4060 = vld [vmem:[#allocation3 + $0x38] sm:$0xff]
        %v4061 = vld [vmem:[#allocation3 + $0x40] sm:$0xff]
        %v4062 = vld [vmem:[#allocation3 + $0x48] sm:$0xff]
        %v4063 = vld [vmem:[#allocation3 + $0x50] sm:$0xff]
        %v4064 = vld [vmem:[#allocation3 + $0x58] sm:$0xff]
        %v4065 = vld [vmem:[#allocation3 + $0x60] sm:$0xff]
        %v4066 = vld [vmem:[#allocation3 + $0x68] sm:$0xff]
        %v4067 = vld [vmem:[#allocation3 + $0x70] sm:$0xff]
        %v4068 = vld [vmem:[#allocation3 + $0x78] sm:$0xff]
        %v4069 = vld [vmem:[#allocation3 + $0x80] sm:$0xff]
        %v4070 = vld [vmem:[#allocation3 + $0x88] sm:$0xff]
        %v4071 = vld [vmem:[#allocation3 + $0x90] sm:$0xff]
        %v4072 = vld [vmem:[#allocation3 + $0x98] sm:$0xff]
        %v4073 = vld [vmem:[#allocation3 + $0xa0] sm:$0xff]
        %v4074 = vld [vmem:[#allocation3 + $0xa8] sm:$0xff]
        %v4075 = vld [vmem:[#allocation3 + $0xb0] sm:$0xff]
        %v4076 = vld [vmem:[#allocation3 + $0xb8] sm:$0xff]
        %v4077 = vld [vmem:[#allocation3 + $0xc0] sm:$0xff]
        %v4078 = vld [vmem:[#allocation3 + $0xc8] sm:$0xff]
        %v4079 = vld [vmem:[#allocation3 + $0xd0] sm:$0xff]
        %v4080 = vld [vmem:[#allocation3 + $0xd8] sm:$0xff]
        %v4081 = vld [vmem:[#allocation3 + $0xe0] sm:$0xff]
        %v4082 = vld [vmem:[#allocation3 + $0xe8] sm:$0xff]
        %v4083 = vld [vmem:[#allocation3 + $0xf0] sm:$0xff]
        %v4084 = vld [vmem:[#allocation3 + $0xf8] sm:$0xff]
        %v4085 = vld [vmem:[#allocation3 + $0x100] sm:$0xff]
        %v4086 = vld [vmem:[#allocation3 + $0x108] sm:$0xff]
        %v4087 = vld [vmem:[#allocation3 + $0x110] sm:$0xff]
        %v4088 = vld [vmem:[#allocation3 + $0x118] sm:$0xff]
        %v4089 = vld [vmem:[#allocation3 + $0x120] sm:$0xff]
        %v4090 = vld [vmem:[#allocation3 + $0x128] sm:$0xff]
        %v4091 = vld [vmem:[#allocation3 + $0x130] sm:$0xff]
        %v4092 = vld [vmem:[#allocation3 + $0x138] sm:$0xff]
        %v4093 = vld [vmem:[#allocation3 + $0x140] sm:$0xff]
        %v4094 = vld [vmem:[#allocation3 + $0x148] sm:$0xff]
        %v4095 = vld [vmem:[#allocation3 + $0x150] sm:$0xff]
        %v4096 = vld [vmem:[#allocation3 + $0x158] sm:$0xff]
        %v4097 = vld [vmem:[#allocation3 + $0x160] sm:$0xff]
        %v4098 = vld [vmem:[#allocation3 + $0x168] sm:$0xff]
        %v4099 = vld [vmem:[#allocation3 + $0x170] sm:$0xff]
        %v4100 = vld [vmem:[#allocation3 + $0x178] sm:$0xff]
        %v4101 = vld [vmem:[#allocation3 + $0x180] sm:$0xff]
        %v4102 = vld [vmem:[#allocation3 + $0x188] sm:$0xff]
        %v4103 = vld [vmem:[#allocation3 + $0x190] sm:$0xff]
        %v4104 = vld [vmem:[#allocation3 + $0x198] sm:$0xff]
        %v4105 = vld [vmem:[#allocation3 + $0x1a0] sm:$0xff]
        %v4106 = vld [vmem:[#allocation3 + $0x1a8] sm:$0xff]
        %v4107 = vld [vmem:[#allocation3 + $0x1b0] sm:$0xff]
        %v4108 = vld [vmem:[#allocation3 + $0x1b8] sm:$0xff]
        %v4109 = vld [vmem:[#allocation3 + $0x1c0] sm:$0xff]
        %v4110 = vld [vmem:[#allocation3 + $0x1c8] sm:$0xff]
        %v4111 = vld [vmem:[#allocation3 + $0x1d0] sm:$0xff]
        %v4112 = vld [vmem:[#allocation3 + $0x1d8] sm:$0xff]
        %v4113 = vld [vmem:[#allocation3 + $0x1e0] sm:$0xff]
        %v4114 = vld [vmem:[#allocation3 + $0x1e8] sm:$0xff]
        %v4115 = vld [vmem:[#allocation3 + $0x1f0] sm:$0xff]
        %v4116 = vld [vmem:[#allocation3 + $0x1f8] sm:$0xff]
        %v4117 = vld [vmem:[#allocation3 + $0x200] sm:$0xff]
        %v4118 = vld [vmem:[#allocation3 + $0x208] sm:$0xff]
        %v4119 = vld [vmem:[#allocation3 + $0x210] sm:$0xff]
        %v4120 = vld [vmem:[#allocation3 + $0x218] sm:$0xff]
        %v4121 = vld [vmem:[#allocation3 + $0x220] sm:$0xff]
        %v4122 = vld [vmem:[#allocation3 + $0x228] sm:$0xff]
        %v4123 = vld [vmem:[#allocation3 + $0x230] sm:$0xff]
        %v4124 = vld [vmem:[#allocation3 + $0x238] sm:$0xff]
        %v4125 = vld [vmem:[#allocation3 + $0x240] sm:$0xff]
        %v4126 = vld [vmem:[#allocation3 + $0x248] sm:$0xff]
        %v4127 = vld [vmem:[#allocation3 + $0x250] sm:$0xff]
        %v4128 = vld [vmem:[#allocation3 + $0x258] sm:$0xff]
        %v4129 = vld [vmem:[#allocation3 + $0x260] sm:$0xff]
        %v4130 = vld [vmem:[#allocation3 + $0x268] sm:$0xff]
        %v4131 = vld [vmem:[#allocation3 + $0x270] sm:$0xff]
        %v4132 = vld [vmem:[#allocation3 + $0x278] sm:$0xff]
        %v4133 = vld [vmem:[#allocation3 + $0x280] sm:$0xff]
        %v4134 = vld [vmem:[#allocation3 + $0x288] sm:$0xff]
        %v4135 = vld [vmem:[#allocation3 + $0x290] sm:$0xff]
        %v4136 = vld [vmem:[#allocation3 + $0x298] sm:$0xff]
        %v4137 = vld [vmem:[#allocation3 + $0x2a0] sm:$0xff]
        %v4138 = vld [vmem:[#allocation3 + $0x2a8] sm:$0xff]
        %v4139 = vld [vmem:[#allocation3 + $0x2b0] sm:$0xff]
        %v4140 = vld [vmem:[#allocation3 + $0x2b8] sm:$0xff]
        %v4141 = vld [vmem:[#allocation3 + $0x2c0] sm:$0xff]
        %v4142 = vld [vmem:[#allocation3 + $0x2c8] sm:$0xff]
        %v4143 = vld [vmem:[#allocation3 + $0x2d0] sm:$0xff]
        %v4144 = vld [vmem:[#allocation3 + $0x2d8] sm:$0xff]
        %v4145 = vld [vmem:[#allocation3 + $0x2e0] sm:$0xff]
        %v4146 = vld [vmem:[#allocation3 + $0x2e8] sm:$0xff]
        %v4147 = vld [vmem:[#allocation3 + $0x2f0] sm:$0xff]
        %v4148 = vld [vmem:[#allocation3 + $0x2f8] sm:$0xff]
        %v4149 = vld [vmem:[#allocation3 + $0x300] sm:$0xff]
        %v4150 = vld [vmem:[#allocation3 + $0x308] sm:$0xff]
        %v4151 = vld [vmem:[#allocation3 + $0x310] sm:$0xff]
        %v4152 = vld [vmem:[#allocation3 + $0x318] sm:$0xff]
        %v4153 = vld [vmem:[#allocation3 + $0x320] sm:$0xff]
        %v4154 = vld [vmem:[#allocation3 + $0x328] sm:$0xff]
        %v4155 = vld [vmem:[#allocation3 + $0x330] sm:$0xff]
        %v4156 = vld [vmem:[#allocation3 + $0x338] sm:$0xff]
        %v4157 = vld [vmem:[#allocation3 + $0x340] sm:$0xff]
        %v4158 = vld [vmem:[#allocation3 + $0x348] sm:$0xff]
        %v4159 = vld [vmem:[#allocation3 + $0x350] sm:$0xff]
        %v4160 = vld [vmem:[#allocation3 + $0x358] sm:$0xff]
        %v4161 = vld [vmem:[#allocation3 + $0x360] sm:$0xff]
        %v4162 = vld [vmem:[#allocation3 + $0x368] sm:$0xff]
        %v4163 = vld [vmem:[#allocation3 + $0x370] sm:$0xff]
        %v4164 = vld [vmem:[#allocation3 + $0x378] sm:$0xff]
        %v4165 = vld [vmem:[#allocation3 + $0x380] sm:$0xff]
        %v4166 = vld [vmem:[#allocation3 + $0x388] sm:$0xff]
        %v4167 = vld [vmem:[#allocation3 + $0x390] sm:$0xff]
        %v4168 = vld [vmem:[#allocation3 + $0x398] sm:$0xff]
        %v4169 = vld [vmem:[#allocation3 + $0x3a0] sm:$0xff]
        %v4170 = vld [vmem:[#allocation3 + $0x3a8] sm:$0xff]
        %v4171 = vld [vmem:[#allocation3 + $0x3b0] sm:$0xff]
        %v4172 = vld [vmem:[#allocation3 + $0x3b8] sm:$0xff]
        %v4173 = vld [vmem:[#allocation3 + $0x3c0] sm:$0xff]
        %v4174 = vld [vmem:[#allocation3 + $0x3c8] sm:$0xff]
        %v4175 = vld [vmem:[#allocation3 + $0x3d0] sm:$0xff]
        %v4176 = vld [vmem:[#allocation3 + $0x3d8] sm:$0xff]
        %v4177 = vld [vmem:[#allocation3 + $0x3e0] sm:$0xff]
        %v4178 = vld [vmem:[#allocation3 + $0x3e8] sm:$0xff]
        %v4179 = vld [vmem:[#allocation3 + $0x3f0] sm:$0xff]
        %v4180 = vld [vmem:[#allocation3 + $0x3f8] sm:$0xff]
        %v4181 = vld [vmem:[#allocation3 + $0x400] sm:$0xff]
        %v4182 = vld [vmem:[#allocation3 + $0x408] sm:$0xff]
        %v4183 = vld [vmem:[#allocation3 + $0x410] sm:$0xff]
        %v4184 = vld [vmem:[#allocation3 + $0x418] sm:$0xff]
        %v4185 = vld [vmem:[#allocation3 + $0x420] sm:$0xff]
        %v4186 = vld [vmem:[#allocation3 + $0x428] sm:$0xff]
        %v4187 = vld [vmem:[#allocation3 + $0x430] sm:$0xff]
        %v4188 = vld [vmem:[#allocation3 + $0x438] sm:$0xff]
        %v4189 = vld [vmem:[#allocation3 + $0x440] sm:$0xff]
        %v4190 = vld [vmem:[#allocation3 + $0x448] sm:$0xff]
        %v4191 = vld [vmem:[#allocation3 + $0x450] sm:$0xff]
        %v4192 = vld [vmem:[#allocation3 + $0x458] sm:$0xff]
        %v4193 = vld [vmem:[#allocation3 + $0x460] sm:$0xff]
        %v4194 = vld [vmem:[#allocation3 + $0x468] sm:$0xff]
        %v4195 = vld [vmem:[#allocation3 + $0x470] sm:$0xff]
        %v4196 = vld [vmem:[#allocation3 + $0x478] sm:$0xff]
        %v4197 = vld [vmem:[#allocation3 + $0x480] sm:$0xff]
        %v4198 = vld [vmem:[#allocation3 + $0x488] sm:$0xff]
        %v4199 = vld [vmem:[#allocation3 + $0x490] sm:$0xff]
        %v4200 = vld [vmem:[#allocation3 + $0x498] sm:$0xff]
        %v4201 = vld [vmem:[#allocation3 + $0x4a0] sm:$0xff]
        %v4202 = vld [vmem:[#allocation3 + $0x4a8] sm:$0xff]
        %v4203 = vld [vmem:[#allocation3 + $0x4b0] sm:$0xff]
        %v4204 = vld [vmem:[#allocation3 + $0x4b8] sm:$0xff]
        %v4205 = vld [vmem:[#allocation3 + $0x4c0] sm:$0xff]
        %v4206 = vld [vmem:[#allocation3 + $0x4c8] sm:$0xff]
        %v4207 = vld [vmem:[#allocation3 + $0x4d0] sm:$0xff]
        %v4208 = vld [vmem:[#allocation3 + $0x4d8] sm:$0xff]
        %v4209 = vld [vmem:[#allocation3 + $0x4e0] sm:$0xff]
        %v4210 = vld [vmem:[#allocation3 + $0x4e8] sm:$0xff]
        %v4211 = vld [vmem:[#allocation3 + $0x4f0] sm:$0xff]
        %v4212 = vld [vmem:[#allocation3 + $0x4f8] sm:$0xff]
        %v4213 = vld [vmem:[#allocation3 + $0x500] sm:$0xff]
        %v4214 = vld [vmem:[#allocation3 + $0x508] sm:$0xff]
        %v4215 = vld [vmem:[#allocation3 + $0x510] sm:$0xff]
        %v4216 = vld [vmem:[#allocation3 + $0x518] sm:$0xff]
        %v4217 = vld [vmem:[#allocation3 + $0x520] sm:$0xff]
        %v4218 = vld [vmem:[#allocation3 + $0x528] sm:$0xff]
        %v4219 = vld [vmem:[#allocation3 + $0x530] sm:$0xff]
        %v4220 = vld [vmem:[#allocation3 + $0x538] sm:$0xff]
        %v4221 = vld [vmem:[#allocation3 + $0x540] sm:$0xff]
        %v4222 = vld [vmem:[#allocation3 + $0x548] sm:$0xff]
        %v4223 = vld [vmem:[#allocation3 + $0x550] sm:$0xff]
        %v4224 = vld [vmem:[#allocation3 + $0x558] sm:$0xff]
        %v4225 = vld [vmem:[#allocation3 + $0x560] sm:$0xff]
        %v4226 = vld [vmem:[#allocation3 + $0x568] sm:$0xff]
        %v4227 = vld [vmem:[#allocation3 + $0x570] sm:$0xff]
        %v4228 = vld [vmem:[#allocation3 + $0x578] sm:$0xff]
        %v4229 = vld [vmem:[#allocation3 + $0x580] sm:$0xff]
        %v4230 = vld [vmem:[#allocation3 + $0x588] sm:$0xff]
        %v4231 = vld [vmem:[#allocation3 + $0x590] sm:$0xff]
        %v4232 = vld [vmem:[#allocation3 + $0x598] sm:$0xff]
        %v4233 = vld [vmem:[#allocation3 + $0x5a0] sm:$0xff]
        %v4234 = vld [vmem:[#allocation3 + $0x5a8] sm:$0xff]
        %v4235 = vld [vmem:[#allocation3 + $0x5b0] sm:$0xff]
        %v4236 = vld [vmem:[#allocation3 + $0x5b8] sm:$0xff]
        %v4237 = vld [vmem:[#allocation3 + $0x5c0] sm:$0xff]
        %v4238 = vld [vmem:[#allocation3 + $0x5c8] sm:$0xff]
        %v4239 = vld [vmem:[#allocation3 + $0x5d0] sm:$0xff]
        %v4240 = vld [vmem:[#allocation3 + $0x5d8] sm:$0xff]
        %v4241 = vld [vmem:[#allocation3 + $0x5e0] sm:$0xff]
        %v4242 = vld [vmem:[#allocation3 + $0x5e8] sm:$0xff]
        %v4243 = vld [vmem:[#allocation3 + $0x5f0] sm:$0xff]
        %v4244 = vld [vmem:[#allocation3 + $0x5f8] sm:$0xff]
        %v4245 = vld [vmem:[#allocation3 + $0x600] sm:$0xff]
        %v4246 = vld [vmem:[#allocation3 + $0x608] sm:$0xff]
        %v4247 = vld [vmem:[#allocation3 + $0x610] sm:$0xff]
        %v4248 = vld [vmem:[#allocation3 + $0x618] sm:$0xff]
        %v4249 = vld [vmem:[#allocation3 + $0x620] sm:$0xff]
        %v4250 = vld [vmem:[#allocation3 + $0x628] sm:$0xff]
        %v4251 = vld [vmem:[#allocation3 + $0x630] sm:$0xff]
        %v4252 = vld [vmem:[#allocation3 + $0x638] sm:$0xff]
        %v4253 = vld [vmem:[#allocation3 + $0x640] sm:$0xff]
        %v4254 = vld [vmem:[#allocation3 + $0x648] sm:$0xff]
        %v4255 = vld [vmem:[#allocation3 + $0x650] sm:$0xff]
        %v4256 = vld [vmem:[#allocation3 + $0x658] sm:$0xff]
        %v4257 = vld [vmem:[#allocation3 + $0x660] sm:$0xff]
        %v4258 = vld [vmem:[#allocation3 + $0x668] sm:$0xff]
        %v4259 = vld [vmem:[#allocation3 + $0x670] sm:$0xff]
        %v4260 = vld [vmem:[#allocation3 + $0x678] sm:$0xff]
        %v4261 = vld [vmem:[#allocation3 + $0x680] sm:$0xff]
        %v4262 = vld [vmem:[#allocation3 + $0x688] sm:$0xff]
        %v4263 = vld [vmem:[#allocation3 + $0x690] sm:$0xff]
        %v4264 = vld [vmem:[#allocation3 + $0x698] sm:$0xff]
        %v4265 = vld [vmem:[#allocation3 + $0x6a0] sm:$0xff]
        %v4266 = vld [vmem:[#allocation3 + $0x6a8] sm:$0xff]
        %v4267 = vld [vmem:[#allocation3 + $0x6b0] sm:$0xff]
        %v4268 = vld [vmem:[#allocation3 + $0x6b8] sm:$0xff]
        %v4269 = vld [vmem:[%s5] sm:$0xff]
        %4271 = vset.pattern.permute.xlu0 0
        %4272 = vperm.xlu0 %4271, %v4269
        %v4273 = vpop.permute.xlu0 %4272
        %vm4275 = vcmask 719872
        %v4277 = vsel %vm4275, %v4052, 0
        %4279 = vmatprep.subr.mxu0 %v4174
        %4280 = vmatpush1.msra.mxu0 %v4173
        %4281 = vmatprep.subr.mxu0 %v4166
        %4282 = vmatpush1.msra.mxu0 %v4165
        %4283 = vmatprep.subr.mxu0 %v4158
        %4284 = vmatpush1.msra.mxu0 %v4157
        %4285 = vmatprep.subr.mxu0 %v4150
        %4286 = vmatpush1.msra.mxu0 %v4149
        %4287 = vmatprep.subr.mxu0 %v4142
        %4288 = vmatpush1.msra.mxu0 %v4141
        %4289 = vmatprep.subr.mxu0 %v4134
        %4290 = vmatpush1.msra.mxu0 %v4133
        %4291 = vmatprep.subr.mxu0 %v4126
        %4292 = vmatpush1.msra.mxu0 %v4125
        %4293 = vmatprep.subr.mxu0 %v4118
        %4294 = vmatpush1.msra.mxu0 %v4117
        %4295 = vmatprep.subr.mxu0 %v4110
        %4296 = vmatpush1.msra.mxu0 %v4109
        %4297 = vmatprep.subr.mxu0 %v4102
        %4298 = vmatpush1.msra.mxu0 %v4101
        %4299 = vmatprep.subr.mxu0 %v4094
        %4300 = vmatpush1.msra.mxu0 %v4093
        %4301 = vmatprep.subr.mxu0 %v4086
        %4302 = vmatpush1.msra.mxu0 %v4085
        %4303 = vmatprep.subr.mxu0 %v4078
        %4304 = vmatpush1.msra.mxu0 %v4077
        %4305 = vmatprep.subr.mxu0 %v4070
        %4306 = vmatpush1.msra.mxu0 %v4069
        %4307 = vmatprep.subr.mxu0 %v4062
        %4308 = vmatpush1.msra.mxu0 %v4061
        %4309 = vmatprep.subr.mxu0 %v4054
        %4310 = vmatpush1.msra.mxu0 %v4053
        %4311 = vmatprep.subr.mxu0 0.0
        %4312 = vmatpush2.msra.mxu0 0.0
        %4313 = vmatprep.subr.mxu0 0.0
        %4314 = vmatpush2.msra.mxu0 0.0
        %4315 = vmatprep.subr.mxu0 0.0
        %4316 = vmatpush2.msra.mxu0 0.0
        %4317 = vmatprep.subr.mxu0 0.0
        %4318 = vmatpush2.msra.mxu0 0.0
        %4319 = vmatprep.subr.mxu0 0.0
        %4320 = vmatpush2.msra.mxu0 0.0
        %4321 = vmatprep.subr.mxu0 %v4262
        %4322 = vmatpush2.msra.mxu0 %v4261
        %4323 = vmatprep.subr.mxu0 %v4254
        %4324 = vmatpush2.msra.mxu0 %v4253
        %4325 = vmatprep.subr.mxu0 %v4246
        %4326 = vmatpush2.msra.mxu0 %v4245
        %4327 = vmatprep.subr.mxu0 %v4238
        %4328 = vmatpush2.msra.mxu0 %v4237
        %4329 = vmatprep.subr.mxu0 %v4230
        %4330 = vmatpush2.msra.mxu0 %v4229
        %4331 = vmatprep.subr.mxu0 %v4222
        %4332 = vmatpush2.msra.mxu0 %v4221
        %4333 = vmatprep.subr.mxu0 %v4214
        %4334 = vmatpush2.msra.mxu0 %v4213
        %4335 = vmatprep.subr.mxu0 %v4206
        %4336 = vmatpush2.msra.mxu0 %v4205
        %4337 = vmatprep.subr.mxu0 %v4198
        %4338 = vmatpush2.msra.mxu0 %v4197
        %4339 = vmatprep.subr.mxu0 %v4190
        %4340 = vmatpush2.msra.mxu0 %v4189
        %4341 = vmatprep.subr.mxu0 %v4182
        %4342 = vmatpush2.msra.mxu0 %v4181
        %4343 = vmatprep.mubr.f32.mxu0 %v4277
        %4344 = vmatmul.mubr.f32.gmra.mxu0 %v4051
        %v4345 = vpop.f32.mrf.mxu0
        %v4346 = vadd.f32 %v4273, %v4345
        %v4347 = vpop.f32.mrf.mxu0
        %v4348 = vadd.f32 %v4273, %v4347
        %4349 = vdwg.mxu0
        %4350 = vmatprep.subr.mxu0 %v4176
        %4351 = vmatpush1.msra.mxu0 %v4175
        %4352 = vmatprep.subr.mxu0 %v4168
        %4353 = vmatpush1.msra.mxu0 %v4167
        %4354 = vmatprep.subr.mxu0 %v4160
        %4355 = vmatpush1.msra.mxu0 %v4159
        %4356 = vmatprep.subr.mxu0 %v4152
        %4357 = vmatpush1.msra.mxu0 %v4151
        %4358 = vmatprep.subr.mxu0 %v4144
        %4359 = vmatpush1.msra.mxu0 %v4143
        %4360 = vmatprep.subr.mxu0 %v4136
        %4361 = vmatpush1.msra.mxu0 %v4135
        %4362 = vmatprep.subr.mxu0 %v4128
        %4363 = vmatpush1.msra.mxu0 %v4127
        %4364 = vmatprep.subr.mxu0 %v4120
        %4365 = vmatpush1.msra.mxu0 %v4119
        %4366 = vmatprep.subr.mxu0 %v4112
        %4367 = vmatpush1.msra.mxu0 %v4111
        %4368 = vmatprep.subr.mxu0 %v4104
        %4369 = vmatpush1.msra.mxu0 %v4103
        %4370 = vmatprep.subr.mxu0 %v4096
        %4371 = vmatpush1.msra.mxu0 %v4095
        %4372 = vmatprep.subr.mxu0 %v4088
        %4373 = vmatpush1.msra.mxu0 %v4087
        %4374 = vmatprep.subr.mxu0 %v4080
        %4375 = vmatpush1.msra.mxu0 %v4079
        %4376 = vmatprep.subr.mxu0 %v4072
        %4377 = vmatpush1.msra.mxu0 %v4071
        %4378 = vmatprep.subr.mxu0 %v4064
        %4379 = vmatpush1.msra.mxu0 %v4063
        %4380 = vmatprep.subr.mxu0 %v4056
        %4381 = vmatpush1.msra.mxu0 %v4055
        %4382 = vmatprep.subr.mxu0 0.0
        %4383 = vmatpush2.msra.mxu0 0.0
        %4384 = vmatprep.subr.mxu0 0.0
        %4385 = vmatpush2.msra.mxu0 0.0
        %4386 = vmatprep.subr.mxu0 0.0
        %4387 = vmatpush2.msra.mxu0 0.0
        %4388 = vmatprep.subr.mxu0 0.0
        %4389 = vmatpush2.msra.mxu0 0.0
        %4390 = vmatprep.subr.mxu0 0.0
        %4391 = vmatpush2.msra.mxu0 0.0
        %4392 = vmatprep.subr.mxu0 %v4264
        %4393 = vmatpush2.msra.mxu0 %v4263
        %4394 = vmatprep.subr.mxu0 %v4256
        %4395 = vmatpush2.msra.mxu0 %v4255
        %4396 = vmatprep.subr.mxu0 %v4248
        %4397 = vmatpush2.msra.mxu0 %v4247
        %4398 = vmatprep.subr.mxu0 %v4240
        %4399 = vmatpush2.msra.mxu0 %v4239
        %4400 = vmatprep.subr.mxu0 %v4232
        %4401 = vmatpush2.msra.mxu0 %v4231
        %4402 = vmatprep.subr.mxu0 %v4224
        %4403 = vmatpush2.msra.mxu0 %v4223
        %4404 = vmatprep.subr.mxu0 %v4216
        %4405 = vmatpush2.msra.mxu0 %v4215
        %4406 = vmatprep.subr.mxu0 %v4208
        %4407 = vmatpush2.msra.mxu0 %v4207
        %4408 = vmatprep.subr.mxu0 %v4200
        %4409 = vmatpush2.msra.mxu0 %v4199
        %4410 = vmatprep.subr.mxu0 %v4192
        %4411 = vmatpush2.msra.mxu0 %v4191
        %4412 = vmatprep.subr.mxu0 %v4184
        %4413 = vmatpush2.msra.mxu0 %v4183
        %4414 = vmatprep.mubr.f32.mxu0 %v4277
        %4415 = vmatmul.mubr.f32.gmra.mxu0 %v4051
        %v4416 = vpop.f32.mrf.mxu0
        %v4417 = vadd.f32 %v4273, %v4416
        %v4418 = vpop.f32.mrf.mxu0
        %v4419 = vadd.f32 %v4273, %v4418
        %4420 = vdwg.mxu0
        %4421 = vmatprep.subr.mxu0 %v4178
        %4422 = vmatpush1.msra.mxu0 %v4177
        %4423 = vmatprep.subr.mxu0 %v4170
        %4424 = vmatpush1.msra.mxu0 %v4169
        %4425 = vmatprep.subr.mxu0 %v4162
        %4426 = vmatpush1.msra.mxu0 %v4161
        %4427 = vmatprep.subr.mxu0 %v4154
        %4428 = vmatpush1.msra.mxu0 %v4153
        %4429 = vmatprep.subr.mxu0 %v4146
        %4430 = vmatpush1.msra.mxu0 %v4145
        %4431 = vmatprep.subr.mxu0 %v4138
        %4432 = vmatpush1.msra.mxu0 %v4137
        %4433 = vmatprep.subr.mxu0 %v4130
        %4434 = vmatpush1.msra.mxu0 %v4129
        %4435 = vmatprep.subr.mxu0 %v4122
        %4436 = vmatpush1.msra.mxu0 %v4121
        %4437 = vmatprep.subr.mxu0 %v4114
        %4438 = vmatpush1.msra.mxu0 %v4113
        %4439 = vmatprep.subr.mxu0 %v4106
        %4440 = vmatpush1.msra.mxu0 %v4105
        %4441 = vmatprep.subr.mxu0 %v4098
        %4442 = vmatpush1.msra.mxu0 %v4097
        %4443 = vmatprep.subr.mxu0 %v4090
        %4444 = vmatpush1.msra.mxu0 %v4089
        %4445 = vmatprep.subr.mxu0 %v4082
        %4446 = vmatpush1.msra.mxu0 %v4081
        %4447 = vmatprep.subr.mxu0 %v4074
        %4448 = vmatpush1.msra.mxu0 %v4073
        %4449 = vmatprep.subr.mxu0 %v4066
        %4450 = vmatpush1.msra.mxu0 %v4065
        %4451 = vmatprep.subr.mxu0 %v4058
        %4452 = vmatpush1.msra.mxu0 %v4057
        %4453 = vmatprep.subr.mxu0 0.0
        %4454 = vmatpush2.msra.mxu0 0.0
        %4455 = vmatprep.subr.mxu0 0.0
        %4456 = vmatpush2.msra.mxu0 0.0
        %4457 = vmatprep.subr.mxu0 0.0
        %4458 = vmatpush2.msra.mxu0 0.0
        %4459 = vmatprep.subr.mxu0 0.0
        %4460 = vmatpush2.msra.mxu0 0.0
        %4461 = vmatprep.subr.mxu0 0.0
        %4462 = vmatpush2.msra.mxu0 0.0
        %4463 = vmatprep.subr.mxu0 %v4266
        %4464 = vmatpush2.msra.mxu0 %v4265
        %4465 = vmatprep.subr.mxu0 %v4258
        %4466 = vmatpush2.msra.mxu0 %v4257
        %4467 = vmatprep.subr.mxu0 %v4250
        %4468 = vmatpush2.msra.mxu0 %v4249
        %4469 = vmatprep.subr.mxu0 %v4242
        %4470 = vmatpush2.msra.mxu0 %v4241
        %4471 = vmatprep.subr.mxu0 %v4234
        %4472 = vmatpush2.msra.mxu0 %v4233
        %4473 = vmatprep.subr.mxu0 %v4226
        %4474 = vmatpush2.msra.mxu0 %v4225
        %4475 = vmatprep.subr.mxu0 %v4218
        %4476 = vmatpush2.msra.mxu0 %v4217
        %4477 = vmatprep.subr.mxu0 %v4210
        %4478 = vmatpush2.msra.mxu0 %v4209
        %4479 = vmatprep.subr.mxu0 %v4202
        %4480 = vmatpush2.msra.mxu0 %v4201
        %4481 = vmatprep.subr.mxu0 %v4194
        %4482 = vmatpush2.msra.mxu0 %v4193
        %4483 = vmatprep.subr.mxu0 %v4186
        %4484 = vmatpush2.msra.mxu0 %v4185
        %4485 = vmatprep.mubr.f32.mxu0 %v4277
        %4486 = vmatmul.mubr.f32.gmra.mxu0 %v4051
        %v4487 = vpop.f32.mrf.mxu0
        %v4488 = vadd.f32 %v4273, %v4487
        %v4489 = vpop.f32.mrf.mxu0
        %v4490 = vadd.f32 %v4273, %v4489
        %4491 = vdwg.mxu0
        %4492 = vmatprep.subr.mxu0 %v4180
        %4493 = vmatpush1.msra.mxu0 %v4179
        %4494 = vmatprep.subr.mxu0 %v4172
        %4495 = vmatpush1.msra.mxu0 %v4171
        %4496 = vmatprep.subr.mxu0 %v4164
        %4497 = vmatpush1.msra.mxu0 %v4163
        %4498 = vmatprep.subr.mxu0 %v4156
        %4499 = vmatpush1.msra.mxu0 %v4155
        %4500 = vmatprep.subr.mxu0 %v4148
        %4501 = vmatpush1.msra.mxu0 %v4147
        %4502 = vmatprep.subr.mxu0 %v4140
        %4503 = vmatpush1.msra.mxu0 %v4139
        %4504 = vmatprep.subr.mxu0 %v4132
        %4505 = vmatpush1.msra.mxu0 %v4131
        %4506 = vmatprep.subr.mxu0 %v4124
        %4507 = vmatpush1.msra.mxu0 %v4123
        %4508 = vmatprep.subr.mxu0 %v4116
        %4509 = vmatpush1.msra.mxu0 %v4115
        %4510 = vmatprep.subr.mxu0 %v4108
        %4511 = vmatpush1.msra.mxu0 %v4107
        %4512 = vmatprep.subr.mxu0 %v4100
        %4513 = vmatpush1.msra.mxu0 %v4099
        %4514 = vmatprep.subr.mxu0 %v4092
        %4515 = vmatpush1.msra.mxu0 %v4091
        %4516 = vmatprep.subr.mxu0 %v4084
        %4517 = vmatpush1.msra.mxu0 %v4083
        %4518 = vmatprep.subr.mxu0 %v4076
        %4519 = vmatpush1.msra.mxu0 %v4075
        %4520 = vmatprep.subr.mxu0 %v4068
        %4521 = vmatpush1.msra.mxu0 %v4067
        %4522 = vmatprep.subr.mxu0 %v4060
        %4523 = vmatpush1.msra.mxu0 %v4059
        %4524 = vmatprep.subr.mxu0 0.0
        %4525 = vmatpush2.msra.mxu0 0.0
        %4526 = vmatprep.subr.mxu0 0.0
        %4527 = vmatpush2.msra.mxu0 0.0
        %4528 = vmatprep.subr.mxu0 0.0
        %4529 = vmatpush2.msra.mxu0 0.0
        %4530 = vmatprep.subr.mxu0 0.0
        %4531 = vmatpush2.msra.mxu0 0.0
        %4532 = vmatprep.subr.mxu0 0.0
        %4533 = vmatpush2.msra.mxu0 0.0
        %4534 = vmatprep.subr.mxu0 %v4268
        %4535 = vmatpush2.msra.mxu0 %v4267
        %4536 = vmatprep.subr.mxu0 %v4260
        %4537 = vmatpush2.msra.mxu0 %v4259
        %4538 = vmatprep.subr.mxu0 %v4252
        %4539 = vmatpush2.msra.mxu0 %v4251
        %4540 = vmatprep.subr.mxu0 %v4244
        %4541 = vmatpush2.msra.mxu0 %v4243
        %4542 = vmatprep.subr.mxu0 %v4236
        %4543 = vmatpush2.msra.mxu0 %v4235
        %4544 = vmatprep.subr.mxu0 %v4228
        %4545 = vmatpush2.msra.mxu0 %v4227
        %4546 = vmatprep.subr.mxu0 %v4220
        %4547 = vmatpush2.msra.mxu0 %v4219
        %4548 = vmatprep.subr.mxu0 %v4212
        %4549 = vmatpush2.msra.mxu0 %v4211
        %4550 = vmatprep.subr.mxu0 %v4204
        %4551 = vmatpush2.msra.mxu0 %v4203
        %4552 = vmatprep.subr.mxu0 %v4196
        %4553 = vmatpush2.msra.mxu0 %v4195
        %4554 = vmatprep.subr.mxu0 %v4188
        %4555 = vmatpush2.msra.mxu0 %v4187
        %4556 = vmatprep.mubr.f32.mxu0 %v4277
        %4557 = vmatmul.mubr.f32.gmra.mxu0 %v4051
        %v4558 = vpop.f32.mrf.mxu0
        %v4559 = vadd.f32 %v4273, %v4558
        %v4560 = vpop.f32.mrf.mxu0
        %v4561 = vadd.f32 %v4273, %v4560
        %4562 = vdwg.mxu0
        %vm4563 = vcmp.gt.f32.partialorder %v4346, 0.0
        %vm4564 = vcmp.gt.f32.partialorder %v4348, 0.0
        %vm4565 = vcmp.gt.f32.partialorder %v4417, 0.0
        %vm4566 = vcmp.gt.f32.partialorder %v4419, 0.0
        %vm4567 = vcmp.gt.f32.partialorder %v4488, 0.0
        %vm4568 = vcmp.gt.f32.partialorder %v4490, 0.0
        %vm4569 = vcmp.gt.f32.partialorder %v4559, 0.0
        %vm4570 = vcmp.gt.f32.partialorder %v4561, 0.0
        %v4571 = vmul.f32 %v4346, 0.3
        %v4572 = vmul.f32 %v4348, 0.3
        %v4573 = vmul.f32 %v4417, 0.3
        %v4574 = vmul.f32 %v4419, 0.3
        %v4575 = vmul.f32 %v4488, 0.3
        %v4576 = vmul.f32 %v4490, 0.3
        %v4577 = vmul.f32 %v4559, 0.3
        %v4578 = vmul.f32 %v4561, 0.3
        %v4579 = vsel %vm4563, %v4346, %v4571
        %v4580 = vsel %vm4564, %v4348, %v4572
        %v4581 = vsel %vm4565, %v4417, %v4573
        %v4582 = vsel %vm4566, %v4419, %v4574
        %v4583 = vsel %vm4567, %v4488, %v4575
        %v4584 = vsel %vm4568, %v4490, %v4576
        %v4585 = vsel %vm4569, %v4559, %v4577
        %v4586 = vsel %vm4570, %v4561, %v4578
        %4587 = vst [vmem:[#allocation2 + $0x10] sm:$0xff] %v4579
        %4588 = vst [vmem:[#allocation2 + $0x18] sm:$0xff] %v4580
        %4589 = vst [vmem:[#allocation2 + $0x20] sm:$0xff] %v4581
        %4590 = vst [vmem:[#allocation2 + $0x28] sm:$0xff] %v4582
        %4591 = vst [vmem:[#allocation2 + $0x30] sm:$0xff] %v4583
        %4592 = vst [vmem:[#allocation2 + $0x38] sm:$0xff] %v4584
        %4593 = vst [vmem:[#allocation2 + $0x40] sm:$0xff] %v4585
        %4594 = vst [vmem:[#allocation2 + $0x48] sm:$0xff] %v4586
        %v4595 = vld [vmem:[#allocation2] sm:$0xff]
        %v4596 = vld [vmem:[#allocation2 + $0x8] sm:$0xff]
        %v4597 = vld [vmem:[#allocation2 + $0x10] sm:$0xff]
        %v4598 = vld [vmem:[#allocation2 + $0x18] sm:$0xff]
        %v4599 = vld [vmem:[#allocation2 + $0x20] sm:$0xff]
        %v4600 = vld [vmem:[#allocation2 + $0x28] sm:$0xff]
        %v4601 = vld [vmem:[#allocation2 + $0x30] sm:$0xff]
        %v4602 = vld [vmem:[#allocation2 + $0x38] sm:$0xff]
        %v4603 = vld [vmem:[#allocation2 + $0x40] sm:$0xff]
        %v4604 = vld [vmem:[#allocation2 + $0x48] sm:$0xff]
        %v4605 = vld [vmem:[#allocation2 + $0x50] sm:$0xff]
        %v4606 = vld [vmem:[#allocation2 + $0x58] sm:$0xff]
        %v4607 = vmul.f32 %v4595, %v773
        %v4608 = vmul.f32 %v4596, %v789
        %v4609 = vmul.f32 %v4597, %v790
        %v4610 = vmul.f32 %v4598, %v791
        %v4611 = vmul.f32 %v4599, %v792
        %v4612 = vmul.f32 %v4600, %v793
        %v4613 = vmul.f32 %v4601, %v794
        %v4614 = vmul.f32 %v4602, %v795
        %v4615 = vmul.f32 %v4603, %v787
        %4625 = vrot.lane.b32.xlu0 %v4607, 9
        %v4626 = vpop.permute.xlu0 %4625
        %4627 = vrot.lane.b32.xlu0 %v4608, 9
        %v4628 = vpop.permute.xlu0 %4627
        %4629 = vrot.lane.b32.xlu0 %v4609, 9
        %v4630 = vpop.permute.xlu0 %4629
        %4631 = vrot.lane.b32.xlu0 %v4610, 9
        %v4632 = vpop.permute.xlu0 %4631
        %4633 = vrot.lane.b32.xlu0 %v4611, 9
        %v4634 = vpop.permute.xlu0 %4633
        %4635 = vrot.lane.b32.xlu0 %v4612, 9
        %v4636 = vpop.permute.xlu0 %4635
        %4637 = vrot.lane.b32.xlu0 %v4613, 9
        %v4638 = vpop.permute.xlu0 %4637
        %4639 = vrot.lane.b32.xlu0 %v4614, 9
        %v4640 = vpop.permute.xlu0 %4639
        %4641 = vrot.lane.b32.xlu0 %v4615, 9
        %v4642 = vpop.permute.xlu0 %4641
        %v4643 = vsel %vm841, %v4626, %v4628
        %v4644 = vsel %vm841, %v4628, %v4630
        %v4645 = vsel %vm841, %v4630, %v4632
        %v4646 = vsel %vm841, %v4632, %v4634
        %v4647 = vsel %vm841, %v4634, %v4636
        %v4648 = vsel %vm841, %v4636, %v4638
        %v4649 = vsel %vm841, %v4638, %v4640
        %v4650 = vsel %vm841, %v4640, %v4642
        %4659 = vst [vmem:[#allocation3] sm:$0xff] %v4643
        %4660 = vst [vmem:[#allocation3 + $0x8] sm:$0xff] %v4644
        %4661 = vst [vmem:[#allocation3 + $0x10] sm:$0xff] %v4645
        %4662 = vst [vmem:[#allocation3 + $0x18] sm:$0xff] %v4646
        %4663 = vst [vmem:[#allocation3 + $0x20] sm:$0xff] %v4647
        %4664 = vst [vmem:[#allocation3 + $0x28] sm:$0xff] %v4648
        %4665 = vst [vmem:[#allocation3 + $0x30] sm:$0xff] %v4649
        %4666 = vst [vmem:[#allocation3 + $0x38] sm:$0xff] %v4650
        %v4667 = vmul.f32 %v4596, %v907
        %v4668 = vmul.f32 %v4597, %v922
        %v4669 = vmul.f32 %v4598, %v923
        %v4670 = vmul.f32 %v4599, %v924
        %v4671 = vmul.f32 %v4600, %v925
        %v4672 = vmul.f32 %v4601, %v926
        %v4673 = vmul.f32 %v4602, %v927
        %v4674 = vmul.f32 %v4603, %v928
        %v4675 = vmul.f32 %v4604, %v921
        %4685 = vrot.lane.b32.xlu0 %v4667, 9
        %v4686 = vpop.permute.xlu0 %4685
        %4687 = vrot.lane.b32.xlu0 %v4668, 9
        %v4688 = vpop.permute.xlu0 %4687
        %4689 = vrot.lane.b32.xlu0 %v4669, 9
        %v4690 = vpop.permute.xlu0 %4689
        %4691 = vrot.lane.b32.xlu0 %v4670, 9
        %v4692 = vpop.permute.xlu0 %4691
        %4693 = vrot.lane.b32.xlu0 %v4671, 9
        %v4694 = vpop.permute.xlu0 %4693
        %4695 = vrot.lane.b32.xlu0 %v4672, 9
        %v4696 = vpop.permute.xlu0 %4695
        %4697 = vrot.lane.b32.xlu0 %v4673, 9
        %v4698 = vpop.permute.xlu0 %4697
        %4699 = vrot.lane.b32.xlu0 %v4674, 9
        %v4700 = vpop.permute.xlu0 %4699
        %4701 = vrot.lane.b32.xlu0 %v4675, 9
        %v4702 = vpop.permute.xlu0 %4701
        %v4703 = vsel %vm841, %v4686, %v4688
        %v4704 = vsel %vm841, %v4688, %v4690
        %v4705 = vsel %vm841, %v4690, %v4692
        %v4706 = vsel %vm841, %v4692, %v4694
        %v4707 = vsel %vm841, %v4694, %v4696
        %v4708 = vsel %vm841, %v4696, %v4698
        %v4709 = vsel %vm841, %v4698, %v4700
        %v4710 = vsel %vm841, %v4700, %v4702
        %4719 = vst [vmem:[#allocation3 + $0x240] sm:$0xff] %v4703
        %4720 = vst [vmem:[#allocation3 + $0x248] sm:$0xff] %v4704
        %4721 = vst [vmem:[#allocation3 + $0x250] sm:$0xff] %v4705
        %4722 = vst [vmem:[#allocation3 + $0x258] sm:$0xff] %v4706
        %4723 = vst [vmem:[#allocation3 + $0x260] sm:$0xff] %v4707
        %4724 = vst [vmem:[#allocation3 + $0x268] sm:$0xff] %v4708
        %4725 = vst [vmem:[#allocation3 + $0x270] sm:$0xff] %v4709
        %4726 = vst [vmem:[#allocation3 + $0x278] sm:$0xff] %v4710
        %v4727 = vmul.f32 %v4597, %v1039
        %v4728 = vmul.f32 %v4598, %v1054
        %v4729 = vmul.f32 %v4599, %v1055
        %v4730 = vmul.f32 %v4600, %v1056
        %v4731 = vmul.f32 %v4601, %v1057
        %v4732 = vmul.f32 %v4602, %v1058
        %v4733 = vmul.f32 %v4603, %v1059
        %v4734 = vmul.f32 %v4604, %v1060
        %v4735 = vmul.f32 %v4605, %v1053
        %4745 = vrot.lane.b32.xlu0 %v4727, 9
        %v4746 = vpop.permute.xlu0 %4745
        %4747 = vrot.lane.b32.xlu0 %v4728, 9
        %v4748 = vpop.permute.xlu0 %4747
        %4749 = vrot.lane.b32.xlu0 %v4729, 9
        %v4750 = vpop.permute.xlu0 %4749
        %4751 = vrot.lane.b32.xlu0 %v4730, 9
        %v4752 = vpop.permute.xlu0 %4751
        %4753 = vrot.lane.b32.xlu0 %v4731, 9
        %v4754 = vpop.permute.xlu0 %4753
        %4755 = vrot.lane.b32.xlu0 %v4732, 9
        %v4756 = vpop.permute.xlu0 %4755
        %4757 = vrot.lane.b32.xlu0 %v4733, 9
        %v4758 = vpop.permute.xlu0 %4757
        %4759 = vrot.lane.b32.xlu0 %v4734, 9
        %v4760 = vpop.permute.xlu0 %4759
        %4761 = vrot.lane.b32.xlu0 %v4735, 9
        %v4762 = vpop.permute.xlu0 %4761
        %v4763 = vsel %vm841, %v4746, %v4748
        %v4764 = vsel %vm841, %v4748, %v4750
        %v4765 = vsel %vm841, %v4750, %v4752
        %v4766 = vsel %vm841, %v4752, %v4754
        %v4767 = vsel %vm841, %v4754, %v4756
        %v4768 = vsel %vm841, %v4756, %v4758
        %v4769 = vsel %vm841, %v4758, %v4760
        %v4770 = vsel %vm841, %v4760, %v4762
        %4779 = vst [vmem:[#allocation3 + $0x480] sm:$0xff] %v4763
        %4780 = vst [vmem:[#allocation3 + $0x488] sm:$0xff] %v4764
        %4781 = vst [vmem:[#allocation3 + $0x490] sm:$0xff] %v4765
        %4782 = vst [vmem:[#allocation3 + $0x498] sm:$0xff] %v4766
        %4783 = vst [vmem:[#allocation3 + $0x4a0] sm:$0xff] %v4767
        %4784 = vst [vmem:[#allocation3 + $0x4a8] sm:$0xff] %v4768
        %4785 = vst [vmem:[#allocation3 + $0x4b0] sm:$0xff] %v4769
        %4786 = vst [vmem:[#allocation3 + $0x4b8] sm:$0xff] %v4770
        %v4787 = vmul.f32 %v4595, %v1171
        %v4788 = vmul.f32 %v4596, %v1187
        %v4789 = vmul.f32 %v4597, %v1188
        %v4790 = vmul.f32 %v4598, %v1189
        %v4791 = vmul.f32 %v4599, %v1190
        %v4792 = vmul.f32 %v4600, %v1191
        %v4793 = vmul.f32 %v4601, %v1192
        %v4794 = vmul.f32 %v4602, %v1193
        %v4795 = vmul.f32 %v4603, %v1185
        %4805 = vrot.lane.b32.xlu0 %v4787, 8
        %v4806 = vpop.permute.xlu0 %4805
        %4807 = vrot.lane.b32.xlu0 %v4788, 8
        %v4808 = vpop.permute.xlu0 %4807
        %4809 = vrot.lane.b32.xlu0 %v4789, 8
        %v4810 = vpop.permute.xlu0 %4809
        %4811 = vrot.lane.b32.xlu0 %v4790, 8
        %v4812 = vpop.permute.xlu0 %4811
        %4813 = vrot.lane.b32.xlu0 %v4791, 8
        %v4814 = vpop.permute.xlu0 %4813
        %4815 = vrot.lane.b32.xlu0 %v4792, 8
        %v4816 = vpop.permute.xlu0 %4815
        %4817 = vrot.lane.b32.xlu0 %v4793, 8
        %v4818 = vpop.permute.xlu0 %4817
        %4819 = vrot.lane.b32.xlu0 %v4794, 8
        %v4820 = vpop.permute.xlu0 %4819
        %4821 = vrot.lane.b32.xlu0 %v4795, 8
        %v4822 = vpop.permute.xlu0 %4821
        %v4823 = vsel %vm400, %v4806, %v4808
        %v4824 = vsel %vm400, %v4808, %v4810
        %v4825 = vsel %vm400, %v4810, %v4812
        %v4826 = vsel %vm400, %v4812, %v4814
        %v4827 = vsel %vm400, %v4814, %v4816
        %v4828 = vsel %vm400, %v4816, %v4818
        %v4829 = vsel %vm400, %v4818, %v4820
        %v4830 = vsel %vm400, %v4820, %v4822
        %4839 = vst [vmem:[#allocation3 + $0x40] sm:$0xff] %v4823
        %4840 = vst [vmem:[#allocation3 + $0x48] sm:$0xff] %v4824
        %4841 = vst [vmem:[#allocation3 + $0x50] sm:$0xff] %v4825
        %4842 = vst [vmem:[#allocation3 + $0x58] sm:$0xff] %v4826
        %4843 = vst [vmem:[#allocation3 + $0x60] sm:$0xff] %v4827
        %4844 = vst [vmem:[#allocation3 + $0x68] sm:$0xff] %v4828
        %4845 = vst [vmem:[#allocation3 + $0x70] sm:$0xff] %v4829
        %4846 = vst [vmem:[#allocation3 + $0x78] sm:$0xff] %v4830
        %v4847 = vmul.f32 %v4596, %v1304
        %v4848 = vmul.f32 %v4597, %v1319
        %v4849 = vmul.f32 %v4598, %v1320
        %v4850 = vmul.f32 %v4599, %v1321
        %v4851 = vmul.f32 %v4600, %v1322
        %v4852 = vmul.f32 %v4601, %v1323
        %v4853 = vmul.f32 %v4602, %v1324
        %v4854 = vmul.f32 %v4603, %v1325
        %v4855 = vmul.f32 %v4604, %v1318
        %4865 = vrot.lane.b32.xlu0 %v4847, 8
        %v4866 = vpop.permute.xlu0 %4865
        %4867 = vrot.lane.b32.xlu0 %v4848, 8
        %v4868 = vpop.permute.xlu0 %4867
        %4869 = vrot.lane.b32.xlu0 %v4849, 8
        %v4870 = vpop.permute.xlu0 %4869
        %4871 = vrot.lane.b32.xlu0 %v4850, 8
        %v4872 = vpop.permute.xlu0 %4871
        %4873 = vrot.lane.b32.xlu0 %v4851, 8
        %v4874 = vpop.permute.xlu0 %4873
        %4875 = vrot.lane.b32.xlu0 %v4852, 8
        %v4876 = vpop.permute.xlu0 %4875
        %4877 = vrot.lane.b32.xlu0 %v4853, 8
        %v4878 = vpop.permute.xlu0 %4877
        %4879 = vrot.lane.b32.xlu0 %v4854, 8
        %v4880 = vpop.permute.xlu0 %4879
        %4881 = vrot.lane.b32.xlu0 %v4855, 8
        %v4882 = vpop.permute.xlu0 %4881
        %v4883 = vsel %vm400, %v4866, %v4868
        %v4884 = vsel %vm400, %v4868, %v4870
        %v4885 = vsel %vm400, %v4870, %v4872
        %v4886 = vsel %vm400, %v4872, %v4874
        %v4887 = vsel %vm400, %v4874, %v4876
        %v4888 = vsel %vm400, %v4876, %v4878
        %v4889 = vsel %vm400, %v4878, %v4880
        %v4890 = vsel %vm400, %v4880, %v4882
        %4899 = vst [vmem:[#allocation3 + $0x280] sm:$0xff] %v4883
        %4900 = vst [vmem:[#allocation3 + $0x288] sm:$0xff] %v4884
        %4901 = vst [vmem:[#allocation3 + $0x290] sm:$0xff] %v4885
        %4902 = vst [vmem:[#allocation3 + $0x298] sm:$0xff] %v4886
        %4903 = vst [vmem:[#allocation3 + $0x2a0] sm:$0xff] %v4887
        %4904 = vst [vmem:[#allocation3 + $0x2a8] sm:$0xff] %v4888
        %4905 = vst [vmem:[#allocation3 + $0x2b0] sm:$0xff] %v4889
        %4906 = vst [vmem:[#allocation3 + $0x2b8] sm:$0xff] %v4890
        %v4907 = vmul.f32 %v4597, %v1436
        %v4908 = vmul.f32 %v4598, %v1451
        %v4909 = vmul.f32 %v4599, %v1452
        %v4910 = vmul.f32 %v4600, %v1453
        %v4911 = vmul.f32 %v4601, %v1454
        %v4912 = vmul.f32 %v4602, %v1455
        %v4913 = vmul.f32 %v4603, %v1456
        %v4914 = vmul.f32 %v4604, %v1457
        %v4915 = vmul.f32 %v4605, %v1450
        %4925 = vrot.lane.b32.xlu0 %v4907, 8
        %v4926 = vpop.permute.xlu0 %4925
        %4927 = vrot.lane.b32.xlu0 %v4908, 8
        %v4928 = vpop.permute.xlu0 %4927
        %4929 = vrot.lane.b32.xlu0 %v4909, 8
        %v4930 = vpop.permute.xlu0 %4929
        %4931 = vrot.lane.b32.xlu0 %v4910, 8
        %v4932 = vpop.permute.xlu0 %4931
        %4933 = vrot.lane.b32.xlu0 %v4911, 8
        %v4934 = vpop.permute.xlu0 %4933
        %4935 = vrot.lane.b32.xlu0 %v4912, 8
        %v4936 = vpop.permute.xlu0 %4935
        %4937 = vrot.lane.b32.xlu0 %v4913, 8
        %v4938 = vpop.permute.xlu0 %4937
        %4939 = vrot.lane.b32.xlu0 %v4914, 8
        %v4940 = vpop.permute.xlu0 %4939
        %4941 = vrot.lane.b32.xlu0 %v4915, 8
        %v4942 = vpop.permute.xlu0 %4941
        %v4943 = vsel %vm400, %v4926, %v4928
        %v4944 = vsel %vm400, %v4928, %v4930
        %v4945 = vsel %vm400, %v4930, %v4932
        %v4946 = vsel %vm400, %v4932, %v4934
        %v4947 = vsel %vm400, %v4934, %v4936
        %v4948 = vsel %vm400, %v4936, %v4938
        %v4949 = vsel %vm400, %v4938, %v4940
        %v4950 = vsel %vm400, %v4940, %v4942
        %4959 = vst [vmem:[#allocation3 + $0x4c0] sm:$0xff] %v4943
        %4960 = vst [vmem:[#allocation3 + $0x4c8] sm:$0xff] %v4944
        %4961 = vst [vmem:[#allocation3 + $0x4d0] sm:$0xff] %v4945
        %4962 = vst [vmem:[#allocation3 + $0x4d8] sm:$0xff] %v4946
        %4963 = vst [vmem:[#allocation3 + $0x4e0] sm:$0xff] %v4947
        %4964 = vst [vmem:[#allocation3 + $0x4e8] sm:$0xff] %v4948
        %4965 = vst [vmem:[#allocation3 + $0x4f0] sm:$0xff] %v4949
        %4966 = vst [vmem:[#allocation3 + $0x4f8] sm:$0xff] %v4950
        %v4967 = vmul.f32 %v4595, %v1568
        %v4968 = vmul.f32 %v4596, %v1584
        %v4969 = vmul.f32 %v4597, %v1585
        %v4970 = vmul.f32 %v4598, %v1586
        %v4971 = vmul.f32 %v4599, %v1587
        %v4972 = vmul.f32 %v4600, %v1588
        %v4973 = vmul.f32 %v4601, %v1589
        %v4974 = vmul.f32 %v4602, %v1590
        %v4975 = vmul.f32 %v4603, %v1582
        %4985 = vrot.lane.b32.xlu0 %v4967, 7
        %v4986 = vpop.permute.xlu0 %4985
        %4987 = vrot.lane.b32.xlu0 %v4968, 7
        %v4988 = vpop.permute.xlu0 %4987
        %4989 = vrot.lane.b32.xlu0 %v4969, 7
        %v4990 = vpop.permute.xlu0 %4989
        %4991 = vrot.lane.b32.xlu0 %v4970, 7
        %v4992 = vpop.permute.xlu0 %4991
        %4993 = vrot.lane.b32.xlu0 %v4971, 7
        %v4994 = vpop.permute.xlu0 %4993
        %4995 = vrot.lane.b32.xlu0 %v4972, 7
        %v4996 = vpop.permute.xlu0 %4995
        %4997 = vrot.lane.b32.xlu0 %v4973, 7
        %v4998 = vpop.permute.xlu0 %4997
        %4999 = vrot.lane.b32.xlu0 %v4974, 7
        %v5000 = vpop.permute.xlu0 %4999
        %5001 = vrot.lane.b32.xlu0 %v4975, 7
        %v5002 = vpop.permute.xlu0 %5001
        %v5003 = vsel %vm1636, %v4986, %v4988
        %v5004 = vsel %vm1636, %v4988, %v4990
        %v5005 = vsel %vm1636, %v4990, %v4992
        %v5006 = vsel %vm1636, %v4992, %v4994
        %v5007 = vsel %vm1636, %v4994, %v4996
        %v5008 = vsel %vm1636, %v4996, %v4998
        %v5009 = vsel %vm1636, %v4998, %v5000
        %v5010 = vsel %vm1636, %v5000, %v5002
        %5019 = vst [vmem:[#allocation3 + $0x80] sm:$0xff] %v5003
        %5020 = vst [vmem:[#allocation3 + $0x88] sm:$0xff] %v5004
        %5021 = vst [vmem:[#allocation3 + $0x90] sm:$0xff] %v5005
        %5022 = vst [vmem:[#allocation3 + $0x98] sm:$0xff] %v5006
        %5023 = vst [vmem:[#allocation3 + $0xa0] sm:$0xff] %v5007
        %5024 = vst [vmem:[#allocation3 + $0xa8] sm:$0xff] %v5008
        %5025 = vst [vmem:[#allocation3 + $0xb0] sm:$0xff] %v5009
        %5026 = vst [vmem:[#allocation3 + $0xb8] sm:$0xff] %v5010
        %v5027 = vmul.f32 %v4596, %v1702
        %v5028 = vmul.f32 %v4597, %v1717
        %v5029 = vmul.f32 %v4598, %v1718
        %v5030 = vmul.f32 %v4599, %v1719
        %v5031 = vmul.f32 %v4600, %v1720
        %v5032 = vmul.f32 %v4601, %v1721
        %v5033 = vmul.f32 %v4602, %v1722
        %v5034 = vmul.f32 %v4603, %v1723
        %v5035 = vmul.f32 %v4604, %v1716
        %5045 = vrot.lane.b32.xlu0 %v5027, 7
        %v5046 = vpop.permute.xlu0 %5045
        %5047 = vrot.lane.b32.xlu0 %v5028, 7
        %v5048 = vpop.permute.xlu0 %5047
        %5049 = vrot.lane.b32.xlu0 %v5029, 7
        %v5050 = vpop.permute.xlu0 %5049
        %5051 = vrot.lane.b32.xlu0 %v5030, 7
        %v5052 = vpop.permute.xlu0 %5051
        %5053 = vrot.lane.b32.xlu0 %v5031, 7
        %v5054 = vpop.permute.xlu0 %5053
        %5055 = vrot.lane.b32.xlu0 %v5032, 7
        %v5056 = vpop.permute.xlu0 %5055
        %5057 = vrot.lane.b32.xlu0 %v5033, 7
        %v5058 = vpop.permute.xlu0 %5057
        %5059 = vrot.lane.b32.xlu0 %v5034, 7
        %v5060 = vpop.permute.xlu0 %5059
        %5061 = vrot.lane.b32.xlu0 %v5035, 7
        %v5062 = vpop.permute.xlu0 %5061
        %v5063 = vsel %vm1636, %v5046, %v5048
        %v5064 = vsel %vm1636, %v5048, %v5050
        %v5065 = vsel %vm1636, %v5050, %v5052
        %v5066 = vsel %vm1636, %v5052, %v5054
        %v5067 = vsel %vm1636, %v5054, %v5056
        %v5068 = vsel %vm1636, %v5056, %v5058
        %v5069 = vsel %vm1636, %v5058, %v5060
        %v5070 = vsel %vm1636, %v5060, %v5062
        %5079 = vst [vmem:[#allocation3 + $0x2c0] sm:$0xff] %v5063
        %5080 = vst [vmem:[#allocation3 + $0x2c8] sm:$0xff] %v5064
        %5081 = vst [vmem:[#allocation3 + $0x2d0] sm:$0xff] %v5065
        %5082 = vst [vmem:[#allocation3 + $0x2d8] sm:$0xff] %v5066
        %5083 = vst [vmem:[#allocation3 + $0x2e0] sm:$0xff] %v5067
        %5084 = vst [vmem:[#allocation3 + $0x2e8] sm:$0xff] %v5068
        %5085 = vst [vmem:[#allocation3 + $0x2f0] sm:$0xff] %v5069
        %5086 = vst [vmem:[#allocation3 + $0x2f8] sm:$0xff] %v5070
        %v5087 = vmul.f32 %v4597, %v1834
        %v5088 = vmul.f32 %v4598, %v1849
        %v5089 = vmul.f32 %v4599, %v1850
        %v5090 = vmul.f32 %v4600, %v1851
        %v5091 = vmul.f32 %v4601, %v1852
        %v5092 = vmul.f32 %v4602, %v1853
        %v5093 = vmul.f32 %v4603, %v1854
        %v5094 = vmul.f32 %v4604, %v1855
        %v5095 = vmul.f32 %v4605, %v1848
        %5105 = vrot.lane.b32.xlu0 %v5087, 7
        %v5106 = vpop.permute.xlu0 %5105
        %5107 = vrot.lane.b32.xlu0 %v5088, 7
        %v5108 = vpop.permute.xlu0 %5107
        %5109 = vrot.lane.b32.xlu0 %v5089, 7
        %v5110 = vpop.permute.xlu0 %5109
        %5111 = vrot.lane.b32.xlu0 %v5090, 7
        %v5112 = vpop.permute.xlu0 %5111
        %5113 = vrot.lane.b32.xlu0 %v5091, 7
        %v5114 = vpop.permute.xlu0 %5113
        %5115 = vrot.lane.b32.xlu0 %v5092, 7
        %v5116 = vpop.permute.xlu0 %5115
        %5117 = vrot.lane.b32.xlu0 %v5093, 7
        %v5118 = vpop.permute.xlu0 %5117
        %5119 = vrot.lane.b32.xlu0 %v5094, 7
        %v5120 = vpop.permute.xlu0 %5119
        %5121 = vrot.lane.b32.xlu0 %v5095, 7
        %v5122 = vpop.permute.xlu0 %5121
        %v5123 = vsel %vm1636, %v5106, %v5108
        %v5124 = vsel %vm1636, %v5108, %v5110
        %v5125 = vsel %vm1636, %v5110, %v5112
        %v5126 = vsel %vm1636, %v5112, %v5114
        %v5127 = vsel %vm1636, %v5114, %v5116
        %v5128 = vsel %vm1636, %v5116, %v5118
        %v5129 = vsel %vm1636, %v5118, %v5120
        %v5130 = vsel %vm1636, %v5120, %v5122
        %5139 = vst [vmem:[#allocation3 + $0x500] sm:$0xff] %v5123
        %5140 = vst [vmem:[#allocation3 + $0x508] sm:$0xff] %v5124
        %5141 = vst [vmem:[#allocation3 + $0x510] sm:$0xff] %v5125
        %5142 = vst [vmem:[#allocation3 + $0x518] sm:$0xff] %v5126
        %5143 = vst [vmem:[#allocation3 + $0x520] sm:$0xff] %v5127
        %5144 = vst [vmem:[#allocation3 + $0x528] sm:$0xff] %v5128
        %5145 = vst [vmem:[#allocation3 + $0x530] sm:$0xff] %v5129
        %5146 = vst [vmem:[#allocation3 + $0x538] sm:$0xff] %v5130
        %v5147 = vmul.f32 %v4595, %v1966
        %v5148 = vmul.f32 %v4596, %v1982
        %v5149 = vmul.f32 %v4597, %v1983
        %v5150 = vmul.f32 %v4598, %v1984
        %v5151 = vmul.f32 %v4599, %v1985
        %v5152 = vmul.f32 %v4600, %v1986
        %v5153 = vmul.f32 %v4601, %v1987
        %v5154 = vmul.f32 %v4602, %v1988
        %v5155 = vmul.f32 %v4603, %v1980
        %5165 = vrot.lane.b32.xlu0 %v5147, 1
        %v5166 = vpop.permute.xlu0 %5165
        %5167 = vrot.lane.b32.xlu0 %v5148, 1
        %v5168 = vpop.permute.xlu0 %5167
        %5169 = vrot.lane.b32.xlu0 %v5149, 1
        %v5170 = vpop.permute.xlu0 %5169
        %5171 = vrot.lane.b32.xlu0 %v5150, 1
        %v5172 = vpop.permute.xlu0 %5171
        %5173 = vrot.lane.b32.xlu0 %v5151, 1
        %v5174 = vpop.permute.xlu0 %5173
        %5175 = vrot.lane.b32.xlu0 %v5152, 1
        %v5176 = vpop.permute.xlu0 %5175
        %5177 = vrot.lane.b32.xlu0 %v5153, 1
        %v5178 = vpop.permute.xlu0 %5177
        %5179 = vrot.lane.b32.xlu0 %v5154, 1
        %v5180 = vpop.permute.xlu0 %5179
        %5181 = vrot.lane.b32.xlu0 %v5155, 1
        %v5182 = vpop.permute.xlu0 %5181
        %v5183 = vsel %vm2034, %v5166, %v5168
        %v5184 = vsel %vm2034, %v5168, %v5170
        %v5185 = vsel %vm2034, %v5170, %v5172
        %v5186 = vsel %vm2034, %v5172, %v5174
        %v5187 = vsel %vm2034, %v5174, %v5176
        %v5188 = vsel %vm2034, %v5176, %v5178
        %v5189 = vsel %vm2034, %v5178, %v5180
        %v5190 = vsel %vm2034, %v5180, %v5182
        %5199 = vst [vmem:[#allocation3 + $0xc0] sm:$0xff] %v5183
        %5200 = vst [vmem:[#allocation3 + $0xc8] sm:$0xff] %v5184
        %5201 = vst [vmem:[#allocation3 + $0xd0] sm:$0xff] %v5185
        %5202 = vst [vmem:[#allocation3 + $0xd8] sm:$0xff] %v5186
        %5203 = vst [vmem:[#allocation3 + $0xe0] sm:$0xff] %v5187
        %5204 = vst [vmem:[#allocation3 + $0xe8] sm:$0xff] %v5188
        %5205 = vst [vmem:[#allocation3 + $0xf0] sm:$0xff] %v5189
        %5206 = vst [vmem:[#allocation3 + $0xf8] sm:$0xff] %v5190
        %v5207 = vmul.f32 %v4596, %v2100
        %v5208 = vmul.f32 %v4597, %v2115
        %v5209 = vmul.f32 %v4598, %v2116
        %v5210 = vmul.f32 %v4599, %v2117
        %v5211 = vmul.f32 %v4600, %v2118
        %v5212 = vmul.f32 %v4601, %v2119
        %v5213 = vmul.f32 %v4602, %v2120
        %v5214 = vmul.f32 %v4603, %v2121
        %v5215 = vmul.f32 %v4604, %v2114
        %5225 = vrot.lane.b32.xlu0 %v5207, 1
        %v5226 = vpop.permute.xlu0 %5225
        %5227 = vrot.lane.b32.xlu0 %v5208, 1
        %v5228 = vpop.permute.xlu0 %5227
        %5229 = vrot.lane.b32.xlu0 %v5209, 1
        %v5230 = vpop.permute.xlu0 %5229
        %5231 = vrot.lane.b32.xlu0 %v5210, 1
        %v5232 = vpop.permute.xlu0 %5231
        %5233 = vrot.lane.b32.xlu0 %v5211, 1
        %v5234 = vpop.permute.xlu0 %5233
        %5235 = vrot.lane.b32.xlu0 %v5212, 1
        %v5236 = vpop.permute.xlu0 %5235
        %5237 = vrot.lane.b32.xlu0 %v5213, 1
        %v5238 = vpop.permute.xlu0 %5237
        %5239 = vrot.lane.b32.xlu0 %v5214, 1
        %v5240 = vpop.permute.xlu0 %5239
        %5241 = vrot.lane.b32.xlu0 %v5215, 1
        %v5242 = vpop.permute.xlu0 %5241
        %v5243 = vsel %vm2034, %v5226, %v5228
        %v5244 = vsel %vm2034, %v5228, %v5230
        %v5245 = vsel %vm2034, %v5230, %v5232
        %v5246 = vsel %vm2034, %v5232, %v5234
        %v5247 = vsel %vm2034, %v5234, %v5236
        %v5248 = vsel %vm2034, %v5236, %v5238
        %v5249 = vsel %vm2034, %v5238, %v5240
        %v5250 = vsel %vm2034, %v5240, %v5242
        %5259 = vst [vmem:[#allocation3 + $0x300] sm:$0xff] %v5243
        %5260 = vst [vmem:[#allocation3 + $0x308] sm:$0xff] %v5244
        %5261 = vst [vmem:[#allocation3 + $0x310] sm:$0xff] %v5245
        %5262 = vst [vmem:[#allocation3 + $0x318] sm:$0xff] %v5246
        %5263 = vst [vmem:[#allocation3 + $0x320] sm:$0xff] %v5247
        %5264 = vst [vmem:[#allocation3 + $0x328] sm:$0xff] %v5248
        %5265 = vst [vmem:[#allocation3 + $0x330] sm:$0xff] %v5249
        %5266 = vst [vmem:[#allocation3 + $0x338] sm:$0xff] %v5250
        %v5267 = vmul.f32 %v4597, %v2232
        %v5268 = vmul.f32 %v4598, %v2247
        %v5269 = vmul.f32 %v4599, %v2248
        %v5270 = vmul.f32 %v4600, %v2249
        %v5271 = vmul.f32 %v4601, %v2250
        %v5272 = vmul.f32 %v4602, %v2251
        %v5273 = vmul.f32 %v4603, %v2252
        %v5274 = vmul.f32 %v4604, %v2253
        %v5275 = vmul.f32 %v4605, %v2246
        %5285 = vrot.lane.b32.xlu0 %v5267, 1
        %v5286 = vpop.permute.xlu0 %5285
        %5287 = vrot.lane.b32.xlu0 %v5268, 1
        %v5288 = vpop.permute.xlu0 %5287
        %5289 = vrot.lane.b32.xlu0 %v5269, 1
        %v5290 = vpop.permute.xlu0 %5289
        %5291 = vrot.lane.b32.xlu0 %v5270, 1
        %v5292 = vpop.permute.xlu0 %5291
        %5293 = vrot.lane.b32.xlu0 %v5271, 1
        %v5294 = vpop.permute.xlu0 %5293
        %5295 = vrot.lane.b32.xlu0 %v5272, 1
        %v5296 = vpop.permute.xlu0 %5295
        %5297 = vrot.lane.b32.xlu0 %v5273, 1
        %v5298 = vpop.permute.xlu0 %5297
        %5299 = vrot.lane.b32.xlu0 %v5274, 1
        %v5300 = vpop.permute.xlu0 %5299
        %5301 = vrot.lane.b32.xlu0 %v5275, 1
        %v5302 = vpop.permute.xlu0 %5301
        %v5303 = vsel %vm2034, %v5286, %v5288
        %v5304 = vsel %vm2034, %v5288, %v5290
        %v5305 = vsel %vm2034, %v5290, %v5292
        %v5306 = vsel %vm2034, %v5292, %v5294
        %v5307 = vsel %vm2034, %v5294, %v5296
        %v5308 = vsel %vm2034, %v5296, %v5298
        %v5309 = vsel %vm2034, %v5298, %v5300
        %v5310 = vsel %vm2034, %v5300, %v5302
        %5319 = vst [vmem:[#allocation3 + $0x540] sm:$0xff] %v5303
        %5320 = vst [vmem:[#allocation3 + $0x548] sm:$0xff] %v5304
        %5321 = vst [vmem:[#allocation3 + $0x550] sm:$0xff] %v5305
        %5322 = vst [vmem:[#allocation3 + $0x558] sm:$0xff] %v5306
        %5323 = vst [vmem:[#allocation3 + $0x560] sm:$0xff] %v5307
        %5324 = vst [vmem:[#allocation3 + $0x568] sm:$0xff] %v5308
        %5325 = vst [vmem:[#allocation3 + $0x570] sm:$0xff] %v5309
        %5326 = vst [vmem:[#allocation3 + $0x578] sm:$0xff] %v5310
        %v5327 = vmul.f32 %v4596, %v2326
        %v5328 = vmul.f32 %v4597, %v2330
        %v5329 = vmul.f32 %v4598, %v2334
        %v5330 = vmul.f32 %v4599, %v2338
        %v5331 = vmul.f32 %v4600, %v2342
        %v5332 = vmul.f32 %v4601, %v2346
        %v5333 = vmul.f32 %v4602, %v2350
        %v5334 = vmul.f32 %v4603, %v2354
        %5335 = vst [vmem:[#allocation3 + $0x100] sm:$0xff] %v5327
        %5336 = vst [vmem:[#allocation3 + $0x108] sm:$0xff] %v5328
        %5337 = vst [vmem:[#allocation3 + $0x110] sm:$0xff] %v5329
        %5338 = vst [vmem:[#allocation3 + $0x118] sm:$0xff] %v5330
        %5339 = vst [vmem:[#allocation3 + $0x120] sm:$0xff] %v5331
        %5340 = vst [vmem:[#allocation3 + $0x128] sm:$0xff] %v5332
        %5341 = vst [vmem:[#allocation3 + $0x130] sm:$0xff] %v5333
        %5342 = vst [vmem:[#allocation3 + $0x138] sm:$0xff] %v5334
        %v5343 = vmul.f32 %v4597, %v2374
        %v5344 = vmul.f32 %v4598, %v2378
        %v5345 = vmul.f32 %v4599, %v2382
        %v5346 = vmul.f32 %v4600, %v2386
        %v5347 = vmul.f32 %v4601, %v2390
        %v5348 = vmul.f32 %v4602, %v2394
        %v5349 = vmul.f32 %v4603, %v2398
        %v5350 = vmul.f32 %v4604, %v2402
        %5351 = vst [vmem:[#allocation3 + $0x340] sm:$0xff] %v5343
        %5352 = vst [vmem:[#allocation3 + $0x348] sm:$0xff] %v5344
        %5353 = vst [vmem:[#allocation3 + $0x350] sm:$0xff] %v5345
        %5354 = vst [vmem:[#allocation3 + $0x358] sm:$0xff] %v5346
        %5355 = vst [vmem:[#allocation3 + $0x360] sm:$0xff] %v5347
        %5356 = vst [vmem:[#allocation3 + $0x368] sm:$0xff] %v5348
        %5357 = vst [vmem:[#allocation3 + $0x370] sm:$0xff] %v5349
        %5358 = vst [vmem:[#allocation3 + $0x378] sm:$0xff] %v5350
        %v5359 = vmul.f32 %v4598, %v2422
        %v5360 = vmul.f32 %v4599, %v2426
        %v5361 = vmul.f32 %v4600, %v2430
        %v5362 = vmul.f32 %v4601, %v2434
        %v5363 = vmul.f32 %v4602, %v2438
        %v5364 = vmul.f32 %v4603, %v2442
        %v5365 = vmul.f32 %v4604, %v2446
        %v5366 = vmul.f32 %v4605, %v2450
        %5367 = vst [vmem:[#allocation3 + $0x580] sm:$0xff] %v5359
        %5368 = vst [vmem:[#allocation3 + $0x588] sm:$0xff] %v5360
        %5369 = vst [vmem:[#allocation3 + $0x590] sm:$0xff] %v5361
        %5370 = vst [vmem:[#allocation3 + $0x598] sm:$0xff] %v5362
        %5371 = vst [vmem:[#allocation3 + $0x5a0] sm:$0xff] %v5363
        %5372 = vst [vmem:[#allocation3 + $0x5a8] sm:$0xff] %v5364
        %5373 = vst [vmem:[#allocation3 + $0x5b0] sm:$0xff] %v5365
        %5374 = vst [vmem:[#allocation3 + $0x5b8] sm:$0xff] %v5366
        %v5375 = vmul.f32 %v4596, %v2508
        %v5376 = vmul.f32 %v4597, %v2523
        %v5377 = vmul.f32 %v4598, %v2524
        %v5378 = vmul.f32 %v4599, %v2525
        %v5379 = vmul.f32 %v4600, %v2526
        %v5380 = vmul.f32 %v4601, %v2527
        %v5381 = vmul.f32 %v4602, %v2528
        %v5382 = vmul.f32 %v4603, %v2529
        %v5383 = vmul.f32 %v4604, %v2522
        %5393 = vrot.lane.b32.xlu0 %v5375, 127
        %v5394 = vpop.permute.xlu0 %5393
        %5395 = vrot.lane.b32.xlu0 %v5376, 127
        %v5396 = vpop.permute.xlu0 %5395
        %5397 = vrot.lane.b32.xlu0 %v5377, 127
        %v5398 = vpop.permute.xlu0 %5397
        %5399 = vrot.lane.b32.xlu0 %v5378, 127
        %v5400 = vpop.permute.xlu0 %5399
        %5401 = vrot.lane.b32.xlu0 %v5379, 127
        %v5402 = vpop.permute.xlu0 %5401
        %5403 = vrot.lane.b32.xlu0 %v5380, 127
        %v5404 = vpop.permute.xlu0 %5403
        %5405 = vrot.lane.b32.xlu0 %v5381, 127
        %v5406 = vpop.permute.xlu0 %5405
        %5407 = vrot.lane.b32.xlu0 %v5382, 127
        %v5408 = vpop.permute.xlu0 %5407
        %5409 = vrot.lane.b32.xlu0 %v5383, 127
        %v5410 = vpop.permute.xlu0 %5409
        %v5411 = vsel %vm1981, %v5394, %v5396
        %v5412 = vsel %vm1981, %v5396, %v5398
        %v5413 = vsel %vm1981, %v5398, %v5400
        %v5414 = vsel %vm1981, %v5400, %v5402
        %v5415 = vsel %vm1981, %v5402, %v5404
        %v5416 = vsel %vm1981, %v5404, %v5406
        %v5417 = vsel %vm1981, %v5406, %v5408
        %v5418 = vsel %vm1981, %v5408, %v5410
        %5427 = vst [vmem:[#allocation3 + $0x140] sm:$0xff] %v5411
        %5428 = vst [vmem:[#allocation3 + $0x148] sm:$0xff] %v5412
        %5429 = vst [vmem:[#allocation3 + $0x150] sm:$0xff] %v5413
        %5430 = vst [vmem:[#allocation3 + $0x158] sm:$0xff] %v5414
        %5431 = vst [vmem:[#allocation3 + $0x160] sm:$0xff] %v5415
        %5432 = vst [vmem:[#allocation3 + $0x168] sm:$0xff] %v5416
        %5433 = vst [vmem:[#allocation3 + $0x170] sm:$0xff] %v5417
        %5434 = vst [vmem:[#allocation3 + $0x178] sm:$0xff] %v5418
        %v5435 = vmul.f32 %v4597, %v2640
        %v5436 = vmul.f32 %v4598, %v2655
        %v5437 = vmul.f32 %v4599, %v2656
        %v5438 = vmul.f32 %v4600, %v2657
        %v5439 = vmul.f32 %v4601, %v2658
        %v5440 = vmul.f32 %v4602, %v2659
        %v5441 = vmul.f32 %v4603, %v2660
        %v5442 = vmul.f32 %v4604, %v2661
        %v5443 = vmul.f32 %v4605, %v2654
        %5453 = vrot.lane.b32.xlu0 %v5435, 127
        %v5454 = vpop.permute.xlu0 %5453
        %5455 = vrot.lane.b32.xlu0 %v5436, 127
        %v5456 = vpop.permute.xlu0 %5455
        %5457 = vrot.lane.b32.xlu0 %v5437, 127
        %v5458 = vpop.permute.xlu0 %5457
        %5459 = vrot.lane.b32.xlu0 %v5438, 127
        %v5460 = vpop.permute.xlu0 %5459
        %5461 = vrot.lane.b32.xlu0 %v5439, 127
        %v5462 = vpop.permute.xlu0 %5461
        %5463 = vrot.lane.b32.xlu0 %v5440, 127
        %v5464 = vpop.permute.xlu0 %5463
        %5465 = vrot.lane.b32.xlu0 %v5441, 127
        %v5466 = vpop.permute.xlu0 %5465
        %5467 = vrot.lane.b32.xlu0 %v5442, 127
        %v5468 = vpop.permute.xlu0 %5467
        %5469 = vrot.lane.b32.xlu0 %v5443, 127
        %v5470 = vpop.permute.xlu0 %5469
        %v5471 = vsel %vm1981, %v5454, %v5456
        %v5472 = vsel %vm1981, %v5456, %v5458
        %v5473 = vsel %vm1981, %v5458, %v5460
        %v5474 = vsel %vm1981, %v5460, %v5462
        %v5475 = vsel %vm1981, %v5462, %v5464
        %v5476 = vsel %vm1981, %v5464, %v5466
        %v5477 = vsel %vm1981, %v5466, %v5468
        %v5478 = vsel %vm1981, %v5468, %v5470
        %5487 = vst [vmem:[#allocation3 + $0x380] sm:$0xff] %v5471
        %5488 = vst [vmem:[#allocation3 + $0x388] sm:$0xff] %v5472
        %5489 = vst [vmem:[#allocation3 + $0x390] sm:$0xff] %v5473
        %5490 = vst [vmem:[#allocation3 + $0x398] sm:$0xff] %v5474
        %5491 = vst [vmem:[#allocation3 + $0x3a0] sm:$0xff] %v5475
        %5492 = vst [vmem:[#allocation3 + $0x3a8] sm:$0xff] %v5476
        %5493 = vst [vmem:[#allocation3 + $0x3b0] sm:$0xff] %v5477
        %5494 = vst [vmem:[#allocation3 + $0x3b8] sm:$0xff] %v5478
        %v5495 = vmul.f32 %v4598, %v2772
        %v5496 = vmul.f32 %v4599, %v2787
        %v5497 = vmul.f32 %v4600, %v2788
        %v5498 = vmul.f32 %v4601, %v2789
        %v5499 = vmul.f32 %v4602, %v2790
        %v5500 = vmul.f32 %v4603, %v2791
        %v5501 = vmul.f32 %v4604, %v2792
        %v5502 = vmul.f32 %v4605, %v2793
        %v5503 = vmul.f32 %v4606, %v2786
        %5513 = vrot.lane.b32.xlu0 %v5495, 127
        %v5514 = vpop.permute.xlu0 %5513
        %5515 = vrot.lane.b32.xlu0 %v5496, 127
        %v5516 = vpop.permute.xlu0 %5515
        %5517 = vrot.lane.b32.xlu0 %v5497, 127
        %v5518 = vpop.permute.xlu0 %5517
        %5519 = vrot.lane.b32.xlu0 %v5498, 127
        %v5520 = vpop.permute.xlu0 %5519
        %5521 = vrot.lane.b32.xlu0 %v5499, 127
        %v5522 = vpop.permute.xlu0 %5521
        %5523 = vrot.lane.b32.xlu0 %v5500, 127
        %v5524 = vpop.permute.xlu0 %5523
        %5525 = vrot.lane.b32.xlu0 %v5501, 127
        %v5526 = vpop.permute.xlu0 %5525
        %5527 = vrot.lane.b32.xlu0 %v5502, 127
        %v5528 = vpop.permute.xlu0 %5527
        %5529 = vrot.lane.b32.xlu0 %v5503, 127
        %v5530 = vpop.permute.xlu0 %5529
        %v5531 = vsel %vm1981, %v5514, %v5516
        %v5532 = vsel %vm1981, %v5516, %v5518
        %v5533 = vsel %vm1981, %v5518, %v5520
        %v5534 = vsel %vm1981, %v5520, %v5522
        %v5535 = vsel %vm1981, %v5522, %v5524
        %v5536 = vsel %vm1981, %v5524, %v5526
        %v5537 = vsel %vm1981, %v5526, %v5528
        %v5538 = vsel %vm1981, %v5528, %v5530
        %5547 = vst [vmem:[#allocation3 + $0x5c0] sm:$0xff] %v5531
        %5548 = vst [vmem:[#allocation3 + $0x5c8] sm:$0xff] %v5532
        %5549 = vst [vmem:[#allocation3 + $0x5d0] sm:$0xff] %v5533
        %5550 = vst [vmem:[#allocation3 + $0x5d8] sm:$0xff] %v5534
        %5551 = vst [vmem:[#allocation3 + $0x5e0] sm:$0xff] %v5535
        %5552 = vst [vmem:[#allocation3 + $0x5e8] sm:$0xff] %v5536
        %5553 = vst [vmem:[#allocation3 + $0x5f0] sm:$0xff] %v5537
        %5554 = vst [vmem:[#allocation3 + $0x5f8] sm:$0xff] %v5538
        %v5555 = vmul.f32 %v4596, %v2904
        %v5556 = vmul.f32 %v4597, %v2919
        %v5557 = vmul.f32 %v4598, %v2920
        %v5558 = vmul.f32 %v4599, %v2921
        %v5559 = vmul.f32 %v4600, %v2922
        %v5560 = vmul.f32 %v4601, %v2923
        %v5561 = vmul.f32 %v4602, %v2924
        %v5562 = vmul.f32 %v4603, %v2925
        %v5563 = vmul.f32 %v4604, %v2918
        %5573 = vrot.lane.b32.xlu0 %v5555, 121
        %v5574 = vpop.permute.xlu0 %5573
        %5575 = vrot.lane.b32.xlu0 %v5556, 121
        %v5576 = vpop.permute.xlu0 %5575
        %5577 = vrot.lane.b32.xlu0 %v5557, 121
        %v5578 = vpop.permute.xlu0 %5577
        %5579 = vrot.lane.b32.xlu0 %v5558, 121
        %v5580 = vpop.permute.xlu0 %5579
        %5581 = vrot.lane.b32.xlu0 %v5559, 121
        %v5582 = vpop.permute.xlu0 %5581
        %5583 = vrot.lane.b32.xlu0 %v5560, 121
        %v5584 = vpop.permute.xlu0 %5583
        %5585 = vrot.lane.b32.xlu0 %v5561, 121
        %v5586 = vpop.permute.xlu0 %5585
        %5587 = vrot.lane.b32.xlu0 %v5562, 121
        %v5588 = vpop.permute.xlu0 %5587
        %5589 = vrot.lane.b32.xlu0 %v5563, 121
        %v5590 = vpop.permute.xlu0 %5589
        %v5591 = vsel %vm1583, %v5574, %v5576
        %v5592 = vsel %vm1583, %v5576, %v5578
        %v5593 = vsel %vm1583, %v5578, %v5580
        %v5594 = vsel %vm1583, %v5580, %v5582
        %v5595 = vsel %vm1583, %v5582, %v5584
        %v5596 = vsel %vm1583, %v5584, %v5586
        %v5597 = vsel %vm1583, %v5586, %v5588
        %v5598 = vsel %vm1583, %v5588, %v5590
        %5607 = vst [vmem:[#allocation3 + $0x180] sm:$0xff] %v5591
        %5608 = vst [vmem:[#allocation3 + $0x188] sm:$0xff] %v5592
        %5609 = vst [vmem:[#allocation3 + $0x190] sm:$0xff] %v5593
        %5610 = vst [vmem:[#allocation3 + $0x198] sm:$0xff] %v5594
        %5611 = vst [vmem:[#allocation3 + $0x1a0] sm:$0xff] %v5595
        %5612 = vst [vmem:[#allocation3 + $0x1a8] sm:$0xff] %v5596
        %5613 = vst [vmem:[#allocation3 + $0x1b0] sm:$0xff] %v5597
        %5614 = vst [vmem:[#allocation3 + $0x1b8] sm:$0xff] %v5598
        %v5615 = vmul.f32 %v4597, %v3036
        %v5616 = vmul.f32 %v4598, %v3051
        %v5617 = vmul.f32 %v4599, %v3052
        %v5618 = vmul.f32 %v4600, %v3053
        %v5619 = vmul.f32 %v4601, %v3054
        %v5620 = vmul.f32 %v4602, %v3055
        %v5621 = vmul.f32 %v4603, %v3056
        %v5622 = vmul.f32 %v4604, %v3057
        %v5623 = vmul.f32 %v4605, %v3050
        %5633 = vrot.lane.b32.xlu0 %v5615, 121
        %v5634 = vpop.permute.xlu0 %5633
        %5635 = vrot.lane.b32.xlu0 %v5616, 121
        %v5636 = vpop.permute.xlu0 %5635
        %5637 = vrot.lane.b32.xlu0 %v5617, 121
        %v5638 = vpop.permute.xlu0 %5637
        %5639 = vrot.lane.b32.xlu0 %v5618, 121
        %v5640 = vpop.permute.xlu0 %5639
        %5641 = vrot.lane.b32.xlu0 %v5619, 121
        %v5642 = vpop.permute.xlu0 %5641
        %5643 = vrot.lane.b32.xlu0 %v5620, 121
        %v5644 = vpop.permute.xlu0 %5643
        %5645 = vrot.lane.b32.xlu0 %v5621, 121
        %v5646 = vpop.permute.xlu0 %5645
        %5647 = vrot.lane.b32.xlu0 %v5622, 121
        %v5648 = vpop.permute.xlu0 %5647
        %5649 = vrot.lane.b32.xlu0 %v5623, 121
        %v5650 = vpop.permute.xlu0 %5649
        %v5651 = vsel %vm1583, %v5634, %v5636
        %v5652 = vsel %vm1583, %v5636, %v5638
        %v5653 = vsel %vm1583, %v5638, %v5640
        %v5654 = vsel %vm1583, %v5640, %v5642
        %v5655 = vsel %vm1583, %v5642, %v5644
        %v5656 = vsel %vm1583, %v5644, %v5646
        %v5657 = vsel %vm1583, %v5646, %v5648
        %v5658 = vsel %vm1583, %v5648, %v5650
        %5667 = vst [vmem:[#allocation3 + $0x3c0] sm:$0xff] %v5651
        %5668 = vst [vmem:[#allocation3 + $0x3c8] sm:$0xff] %v5652
        %5669 = vst [vmem:[#allocation3 + $0x3d0] sm:$0xff] %v5653
        %5670 = vst [vmem:[#allocation3 + $0x3d8] sm:$0xff] %v5654
        %5671 = vst [vmem:[#allocation3 + $0x3e0] sm:$0xff] %v5655
        %5672 = vst [vmem:[#allocation3 + $0x3e8] sm:$0xff] %v5656
        %5673 = vst [vmem:[#allocation3 + $0x3f0] sm:$0xff] %v5657
        %5674 = vst [vmem:[#allocation3 + $0x3f8] sm:$0xff] %v5658
        %v5675 = vmul.f32 %v4598, %v3168
        %v5676 = vmul.f32 %v4599, %v3183
        %v5677 = vmul.f32 %v4600, %v3184
        %v5678 = vmul.f32 %v4601, %v3185
        %v5679 = vmul.f32 %v4602, %v3186
        %v5680 = vmul.f32 %v4603, %v3187
        %v5681 = vmul.f32 %v4604, %v3188
        %v5682 = vmul.f32 %v4605, %v3189
        %v5683 = vmul.f32 %v4606, %v3182
        %5693 = vrot.lane.b32.xlu0 %v5675, 121
        %v5694 = vpop.permute.xlu0 %5693
        %5695 = vrot.lane.b32.xlu0 %v5676, 121
        %v5696 = vpop.permute.xlu0 %5695
        %5697 = vrot.lane.b32.xlu0 %v5677, 121
        %v5698 = vpop.permute.xlu0 %5697
        %5699 = vrot.lane.b32.xlu0 %v5678, 121
        %v5700 = vpop.permute.xlu0 %5699
        %5701 = vrot.lane.b32.xlu0 %v5679, 121
        %v5702 = vpop.permute.xlu0 %5701
        %5703 = vrot.lane.b32.xlu0 %v5680, 121
        %v5704 = vpop.permute.xlu0 %5703
        %5705 = vrot.lane.b32.xlu0 %v5681, 121
        %v5706 = vpop.permute.xlu0 %5705
        %5707 = vrot.lane.b32.xlu0 %v5682, 121
        %v5708 = vpop.permute.xlu0 %5707
        %5709 = vrot.lane.b32.xlu0 %v5683, 121
        %v5710 = vpop.permute.xlu0 %5709
        %v5711 = vsel %vm1583, %v5694, %v5696
        %v5712 = vsel %vm1583, %v5696, %v5698
        %v5713 = vsel %vm1583, %v5698, %v5700
        %v5714 = vsel %vm1583, %v5700, %v5702
        %v5715 = vsel %vm1583, %v5702, %v5704
        %v5716 = vsel %vm1583, %v5704, %v5706
        %v5717 = vsel %vm1583, %v5706, %v5708
        %v5718 = vsel %vm1583, %v5708, %v5710
        %5727 = vst [vmem:[#allocation3 + $0x600] sm:$0xff] %v5711
        %5728 = vst [vmem:[#allocation3 + $0x608] sm:$0xff] %v5712
        %5729 = vst [vmem:[#allocation3 + $0x610] sm:$0xff] %v5713
        %5730 = vst [vmem:[#allocation3 + $0x618] sm:$0xff] %v5714
        %5731 = vst [vmem:[#allocation3 + $0x620] sm:$0xff] %v5715
        %5732 = vst [vmem:[#allocation3 + $0x628] sm:$0xff] %v5716
        %5733 = vst [vmem:[#allocation3 + $0x630] sm:$0xff] %v5717
        %5734 = vst [vmem:[#allocation3 + $0x638] sm:$0xff] %v5718
        %v5735 = vmul.f32 %v4596, %v3300
        %v5736 = vmul.f32 %v4597, %v3315
        %v5737 = vmul.f32 %v4598, %v3316
        %v5738 = vmul.f32 %v4599, %v3317
        %v5739 = vmul.f32 %v4600, %v3318
        %v5740 = vmul.f32 %v4601, %v3319
        %v5741 = vmul.f32 %v4602, %v3320
        %v5742 = vmul.f32 %v4603, %v3321
        %v5743 = vmul.f32 %v4604, %v3314
        %5753 = vrot.lane.b32.xlu0 %v5735, 120
        %v5754 = vpop.permute.xlu0 %5753
        %5755 = vrot.lane.b32.xlu0 %v5736, 120
        %v5756 = vpop.permute.xlu0 %5755
        %5757 = vrot.lane.b32.xlu0 %v5737, 120
        %v5758 = vpop.permute.xlu0 %5757
        %5759 = vrot.lane.b32.xlu0 %v5738, 120
        %v5760 = vpop.permute.xlu0 %5759
        %5761 = vrot.lane.b32.xlu0 %v5739, 120
        %v5762 = vpop.permute.xlu0 %5761
        %5763 = vrot.lane.b32.xlu0 %v5740, 120
        %v5764 = vpop.permute.xlu0 %5763
        %5765 = vrot.lane.b32.xlu0 %v5741, 120
        %v5766 = vpop.permute.xlu0 %5765
        %5767 = vrot.lane.b32.xlu0 %v5742, 120
        %v5768 = vpop.permute.xlu0 %5767
        %5769 = vrot.lane.b32.xlu0 %v5743, 120
        %v5770 = vpop.permute.xlu0 %5769
        %v5771 = vsel %vm1186, %v5754, %v5756
        %v5772 = vsel %vm1186, %v5756, %v5758
        %v5773 = vsel %vm1186, %v5758, %v5760
        %v5774 = vsel %vm1186, %v5760, %v5762
        %v5775 = vsel %vm1186, %v5762, %v5764
        %v5776 = vsel %vm1186, %v5764, %v5766
        %v5777 = vsel %vm1186, %v5766, %v5768
        %v5778 = vsel %vm1186, %v5768, %v5770
        %5787 = vst [vmem:[#allocation3 + $0x1c0] sm:$0xff] %v5771
        %5788 = vst [vmem:[#allocation3 + $0x1c8] sm:$0xff] %v5772
        %5789 = vst [vmem:[#allocation3 + $0x1d0] sm:$0xff] %v5773
        %5790 = vst [vmem:[#allocation3 + $0x1d8] sm:$0xff] %v5774
        %5791 = vst [vmem:[#allocation3 + $0x1e0] sm:$0xff] %v5775
        %5792 = vst [vmem:[#allocation3 + $0x1e8] sm:$0xff] %v5776
        %5793 = vst [vmem:[#allocation3 + $0x1f0] sm:$0xff] %v5777
        %5794 = vst [vmem:[#allocation3 + $0x1f8] sm:$0xff] %v5778
        %v5795 = vmul.f32 %v4597, %v3432
        %v5796 = vmul.f32 %v4598, %v3447
        %v5797 = vmul.f32 %v4599, %v3448
        %v5798 = vmul.f32 %v4600, %v3449
        %v5799 = vmul.f32 %v4601, %v3450
        %v5800 = vmul.f32 %v4602, %v3451
        %v5801 = vmul.f32 %v4603, %v3452
        %v5802 = vmul.f32 %v4604, %v3453
        %v5803 = vmul.f32 %v4605, %v3446
        %5813 = vrot.lane.b32.xlu0 %v5795, 120
        %v5814 = vpop.permute.xlu0 %5813
        %5815 = vrot.lane.b32.xlu0 %v5796, 120
        %v5816 = vpop.permute.xlu0 %5815
        %5817 = vrot.lane.b32.xlu0 %v5797, 120
        %v5818 = vpop.permute.xlu0 %5817
        %5819 = vrot.lane.b32.xlu0 %v5798, 120
        %v5820 = vpop.permute.xlu0 %5819
        %5821 = vrot.lane.b32.xlu0 %v5799, 120
        %v5822 = vpop.permute.xlu0 %5821
        %5823 = vrot.lane.b32.xlu0 %v5800, 120
        %v5824 = vpop.permute.xlu0 %5823
        %5825 = vrot.lane.b32.xlu0 %v5801, 120
        %v5826 = vpop.permute.xlu0 %5825
        %5827 = vrot.lane.b32.xlu0 %v5802, 120
        %v5828 = vpop.permute.xlu0 %5827
        %5829 = vrot.lane.b32.xlu0 %v5803, 120
        %v5830 = vpop.permute.xlu0 %5829
        %v5831 = vsel %vm1186, %v5814, %v5816
        %v5832 = vsel %vm1186, %v5816, %v5818
        %v5833 = vsel %vm1186, %v5818, %v5820
        %v5834 = vsel %vm1186, %v5820, %v5822
        %v5835 = vsel %vm1186, %v5822, %v5824
        %v5836 = vsel %vm1186, %v5824, %v5826
        %v5837 = vsel %vm1186, %v5826, %v5828
        %v5838 = vsel %vm1186, %v5828, %v5830
        %5847 = vst [vmem:[#allocation3 + $0x400] sm:$0xff] %v5831
        %5848 = vst [vmem:[#allocation3 + $0x408] sm:$0xff] %v5832
        %5849 = vst [vmem:[#allocation3 + $0x410] sm:$0xff] %v5833
        %5850 = vst [vmem:[#allocation3 + $0x418] sm:$0xff] %v5834
        %5851 = vst [vmem:[#allocation3 + $0x420] sm:$0xff] %v5835
        %5852 = vst [vmem:[#allocation3 + $0x428] sm:$0xff] %v5836
        %5853 = vst [vmem:[#allocation3 + $0x430] sm:$0xff] %v5837
        %5854 = vst [vmem:[#allocation3 + $0x438] sm:$0xff] %v5838
        %v5855 = vmul.f32 %v4598, %v3564
        %v5856 = vmul.f32 %v4599, %v3579
        %v5857 = vmul.f32 %v4600, %v3580
        %v5858 = vmul.f32 %v4601, %v3581
        %v5859 = vmul.f32 %v4602, %v3582
        %v5860 = vmul.f32 %v4603, %v3583
        %v5861 = vmul.f32 %v4604, %v3584
        %v5862 = vmul.f32 %v4605, %v3585
        %v5863 = vmul.f32 %v4606, %v3578
        %5873 = vrot.lane.b32.xlu0 %v5855, 120
        %v5874 = vpop.permute.xlu0 %5873
        %5875 = vrot.lane.b32.xlu0 %v5856, 120
        %v5876 = vpop.permute.xlu0 %5875
        %5877 = vrot.lane.b32.xlu0 %v5857, 120
        %v5878 = vpop.permute.xlu0 %5877
        %5879 = vrot.lane.b32.xlu0 %v5858, 120
        %v5880 = vpop.permute.xlu0 %5879
        %5881 = vrot.lane.b32.xlu0 %v5859, 120
        %v5882 = vpop.permute.xlu0 %5881
        %5883 = vrot.lane.b32.xlu0 %v5860, 120
        %v5884 = vpop.permute.xlu0 %5883
        %5885 = vrot.lane.b32.xlu0 %v5861, 120
        %v5886 = vpop.permute.xlu0 %5885
        %5887 = vrot.lane.b32.xlu0 %v5862, 120
        %v5888 = vpop.permute.xlu0 %5887
        %5889 = vrot.lane.b32.xlu0 %v5863, 120
        %v5890 = vpop.permute.xlu0 %5889
        %v5891 = vsel %vm1186, %v5874, %v5876
        %v5892 = vsel %vm1186, %v5876, %v5878
        %v5893 = vsel %vm1186, %v5878, %v5880
        %v5894 = vsel %vm1186, %v5880, %v5882
        %v5895 = vsel %vm1186, %v5882, %v5884
        %v5896 = vsel %vm1186, %v5884, %v5886
        %v5897 = vsel %vm1186, %v5886, %v5888
        %v5898 = vsel %vm1186, %v5888, %v5890
        %5907 = vst [vmem:[#allocation3 + $0x640] sm:$0xff] %v5891
        %5908 = vst [vmem:[#allocation3 + $0x648] sm:$0xff] %v5892
        %5909 = vst [vmem:[#allocation3 + $0x650] sm:$0xff] %v5893
        %5910 = vst [vmem:[#allocation3 + $0x658] sm:$0xff] %v5894
        %5911 = vst [vmem:[#allocation3 + $0x660] sm:$0xff] %v5895
        %5912 = vst [vmem:[#allocation3 + $0x668] sm:$0xff] %v5896
        %5913 = vst [vmem:[#allocation3 + $0x670] sm:$0xff] %v5897
        %5914 = vst [vmem:[#allocation3 + $0x678] sm:$0xff] %v5898
        %v5915 = vmul.f32 %v4596, %v3696
        %v5916 = vmul.f32 %v4597, %v3711
        %v5917 = vmul.f32 %v4598, %v3712
        %v5918 = vmul.f32 %v4599, %v3713
        %v5919 = vmul.f32 %v4600, %v3714
        %v5920 = vmul.f32 %v4601, %v3715
        %v5921 = vmul.f32 %v4602, %v3716
        %v5922 = vmul.f32 %v4603, %v3717
        %v5923 = vmul.f32 %v4604, %v3710
        %5933 = vrot.lane.b32.xlu0 %v5915, 119
        %v5934 = vpop.permute.xlu0 %5933
        %5935 = vrot.lane.b32.xlu0 %v5916, 119
        %v5936 = vpop.permute.xlu0 %5935
        %5937 = vrot.lane.b32.xlu0 %v5917, 119
        %v5938 = vpop.permute.xlu0 %5937
        %5939 = vrot.lane.b32.xlu0 %v5918, 119
        %v5940 = vpop.permute.xlu0 %5939
        %5941 = vrot.lane.b32.xlu0 %v5919, 119
        %v5942 = vpop.permute.xlu0 %5941
        %5943 = vrot.lane.b32.xlu0 %v5920, 119
        %v5944 = vpop.permute.xlu0 %5943
        %5945 = vrot.lane.b32.xlu0 %v5921, 119
        %v5946 = vpop.permute.xlu0 %5945
        %5947 = vrot.lane.b32.xlu0 %v5922, 119
        %v5948 = vpop.permute.xlu0 %5947
        %5949 = vrot.lane.b32.xlu0 %v5923, 119
        %v5950 = vpop.permute.xlu0 %5949
        %v5951 = vsel %vm788, %v5934, %v5936
        %v5952 = vsel %vm788, %v5936, %v5938
        %v5953 = vsel %vm788, %v5938, %v5940
        %v5954 = vsel %vm788, %v5940, %v5942
        %v5955 = vsel %vm788, %v5942, %v5944
        %v5956 = vsel %vm788, %v5944, %v5946
        %v5957 = vsel %vm788, %v5946, %v5948
        %v5958 = vsel %vm788, %v5948, %v5950
        %5967 = vst [vmem:[#allocation3 + $0x200] sm:$0xff] %v5951
        %5968 = vst [vmem:[#allocation3 + $0x208] sm:$0xff] %v5952
        %5969 = vst [vmem:[#allocation3 + $0x210] sm:$0xff] %v5953
        %5970 = vst [vmem:[#allocation3 + $0x218] sm:$0xff] %v5954
        %5971 = vst [vmem:[#allocation3 + $0x220] sm:$0xff] %v5955
        %5972 = vst [vmem:[#allocation3 + $0x228] sm:$0xff] %v5956
        %5973 = vst [vmem:[#allocation3 + $0x230] sm:$0xff] %v5957
        %5974 = vst [vmem:[#allocation3 + $0x238] sm:$0xff] %v5958
        %v5975 = vmul.f32 %v4597, %v3828
        %v5976 = vmul.f32 %v4598, %v3843
        %v5977 = vmul.f32 %v4599, %v3844
        %v5978 = vmul.f32 %v4600, %v3845
        %v5979 = vmul.f32 %v4601, %v3846
        %v5980 = vmul.f32 %v4602, %v3847
        %v5981 = vmul.f32 %v4603, %v3848
        %v5982 = vmul.f32 %v4604, %v3849
        %v5983 = vmul.f32 %v4605, %v3842
        %5993 = vrot.lane.b32.xlu0 %v5975, 119
        %v5994 = vpop.permute.xlu0 %5993
        %5995 = vrot.lane.b32.xlu0 %v5976, 119
        %v5996 = vpop.permute.xlu0 %5995
        %5997 = vrot.lane.b32.xlu0 %v5977, 119
        %v5998 = vpop.permute.xlu0 %5997
        %5999 = vrot.lane.b32.xlu0 %v5978, 119
        %v6000 = vpop.permute.xlu0 %5999
        %6001 = vrot.lane.b32.xlu0 %v5979, 119
        %v6002 = vpop.permute.xlu0 %6001
        %6003 = vrot.lane.b32.xlu0 %v5980, 119
        %v6004 = vpop.permute.xlu0 %6003
        %6005 = vrot.lane.b32.xlu0 %v5981, 119
        %v6006 = vpop.permute.xlu0 %6005
        %6007 = vrot.lane.b32.xlu0 %v5982, 119
        %v6008 = vpop.permute.xlu0 %6007
        %6009 = vrot.lane.b32.xlu0 %v5983, 119
        %v6010 = vpop.permute.xlu0 %6009
        %v6011 = vsel %vm788, %v5994, %v5996
        %v6012 = vsel %vm788, %v5996, %v5998
        %v6013 = vsel %vm788, %v5998, %v6000
        %v6014 = vsel %vm788, %v6000, %v6002
        %v6015 = vsel %vm788, %v6002, %v6004
        %v6016 = vsel %vm788, %v6004, %v6006
        %v6017 = vsel %vm788, %v6006, %v6008
        %v6018 = vsel %vm788, %v6008, %v6010
        %6027 = vst [vmem:[#allocation3 + $0x440] sm:$0xff] %v6011
        %6028 = vst [vmem:[#allocation3 + $0x448] sm:$0xff] %v6012
        %6029 = vst [vmem:[#allocation3 + $0x450] sm:$0xff] %v6013
        %6030 = vst [vmem:[#allocation3 + $0x458] sm:$0xff] %v6014
        %6031 = vst [vmem:[#allocation3 + $0x460] sm:$0xff] %v6015
        %6032 = vst [vmem:[#allocation3 + $0x468] sm:$0xff] %v6016
        %6033 = vst [vmem:[#allocation3 + $0x470] sm:$0xff] %v6017
        %6034 = vst [vmem:[#allocation3 + $0x478] sm:$0xff] %v6018
        %v6035 = vmul.f32 %v4598, %v3960
        %v6036 = vmul.f32 %v4599, %v3975
        %v6037 = vmul.f32 %v4600, %v3976
        %v6038 = vmul.f32 %v4601, %v3977
        %v6039 = vmul.f32 %v4602, %v3978
        %v6040 = vmul.f32 %v4603, %v3979
        %v6041 = vmul.f32 %v4604, %v3980
        %v6042 = vmul.f32 %v4605, %v3981
        %v6043 = vmul.f32 %v4606, %v3974
        %6053 = vrot.lane.b32.xlu0 %v6035, 119
        %v6054 = vpop.permute.xlu0 %6053
        %6055 = vrot.lane.b32.xlu0 %v6036, 119
        %v6056 = vpop.permute.xlu0 %6055
        %6057 = vrot.lane.b32.xlu0 %v6037, 119
        %v6058 = vpop.permute.xlu0 %6057
        %6059 = vrot.lane.b32.xlu0 %v6038, 119
        %v6060 = vpop.permute.xlu0 %6059
        %6061 = vrot.lane.b32.xlu0 %v6039, 119
        %v6062 = vpop.permute.xlu0 %6061
        %6063 = vrot.lane.b32.xlu0 %v6040, 119
        %v6064 = vpop.permute.xlu0 %6063
        %6065 = vrot.lane.b32.xlu0 %v6041, 119
        %v6066 = vpop.permute.xlu0 %6065
        %6067 = vrot.lane.b32.xlu0 %v6042, 119
        %v6068 = vpop.permute.xlu0 %6067
        %6069 = vrot.lane.b32.xlu0 %v6043, 119
        %v6070 = vpop.permute.xlu0 %6069
        %v6071 = vsel %vm788, %v6054, %v6056
        %v6072 = vsel %vm788, %v6056, %v6058
        %v6073 = vsel %vm788, %v6058, %v6060
        %v6074 = vsel %vm788, %v6060, %v6062
        %v6075 = vsel %vm788, %v6062, %v6064
        %v6076 = vsel %vm788, %v6064, %v6066
        %v6077 = vsel %vm788, %v6066, %v6068
        %v6078 = vsel %vm788, %v6068, %v6070
        %6087 = vst [vmem:[#allocation3 + $0x680] sm:$0xff] %v6071
        %6088 = vst [vmem:[#allocation3 + $0x688] sm:$0xff] %v6072
        %6089 = vst [vmem:[#allocation3 + $0x690] sm:$0xff] %v6073
        %6090 = vst [vmem:[#allocation3 + $0x698] sm:$0xff] %v6074
        %6091 = vst [vmem:[#allocation3 + $0x6a0] sm:$0xff] %v6075
        %6092 = vst [vmem:[#allocation3 + $0x6a8] sm:$0xff] %v6076
        %6093 = vst [vmem:[#allocation3 + $0x6b0] sm:$0xff] %v6077
        %6094 = vst [vmem:[#allocation3 + $0x6b8] sm:$0xff] %v6078
        %v6095 = vld [vmem:[%s3] sm:$0xff]
        %v6096 = vld [vmem:[%s3 + $0x8] sm:$0xff]
        %v6097 = vld [vmem:[#allocation3] sm:$0xff]
        %v6098 = vld [vmem:[#allocation3 + $0x8] sm:$0xff]
        %v6099 = vld [vmem:[#allocation3 + $0x10] sm:$0xff]
        %v6100 = vld [vmem:[#allocation3 + $0x18] sm:$0xff]
        %v6101 = vld [vmem:[#allocation3 + $0x20] sm:$0xff]
        %v6102 = vld [vmem:[#allocation3 + $0x28] sm:$0xff]
        %v6103 = vld [vmem:[#allocation3 + $0x30] sm:$0xff]
        %v6104 = vld [vmem:[#allocation3 + $0x38] sm:$0xff]
        %v6105 = vld [vmem:[#allocation3 + $0x40] sm:$0xff]
        %v6106 = vld [vmem:[#allocation3 + $0x48] sm:$0xff]
        %v6107 = vld [vmem:[#allocation3 + $0x50] sm:$0xff]
        %v6108 = vld [vmem:[#allocation3 + $0x58] sm:$0xff]
        %v6109 = vld [vmem:[#allocation3 + $0x60] sm:$0xff]
        %v6110 = vld [vmem:[#allocation3 + $0x68] sm:$0xff]
        %v6111 = vld [vmem:[#allocation3 + $0x70] sm:$0xff]
        %v6112 = vld [vmem:[#allocation3 + $0x78] sm:$0xff]
        %v6113 = vld [vmem:[#allocation3 + $0x80] sm:$0xff]
        %v6114 = vld [vmem:[#allocation3 + $0x88] sm:$0xff]
        %v6115 = vld [vmem:[#allocation3 + $0x90] sm:$0xff]
        %v6116 = vld [vmem:[#allocation3 + $0x98] sm:$0xff]
        %v6117 = vld [vmem:[#allocation3 + $0xa0] sm:$0xff]
        %v6118 = vld [vmem:[#allocation3 + $0xa8] sm:$0xff]
        %v6119 = vld [vmem:[#allocation3 + $0xb0] sm:$0xff]
        %v6120 = vld [vmem:[#allocation3 + $0xb8] sm:$0xff]
        %v6121 = vld [vmem:[#allocation3 + $0xc0] sm:$0xff]
        %v6122 = vld [vmem:[#allocation3 + $0xc8] sm:$0xff]
        %v6123 = vld [vmem:[#allocation3 + $0xd0] sm:$0xff]
        %v6124 = vld [vmem:[#allocation3 + $0xd8] sm:$0xff]
        %v6125 = vld [vmem:[#allocation3 + $0xe0] sm:$0xff]
        %v6126 = vld [vmem:[#allocation3 + $0xe8] sm:$0xff]
        %v6127 = vld [vmem:[#allocation3 + $0xf0] sm:$0xff]
        %v6128 = vld [vmem:[#allocation3 + $0xf8] sm:$0xff]
        %v6129 = vld [vmem:[#allocation3 + $0x100] sm:$0xff]
        %v6130 = vld [vmem:[#allocation3 + $0x108] sm:$0xff]
        %v6131 = vld [vmem:[#allocation3 + $0x110] sm:$0xff]
        %v6132 = vld [vmem:[#allocation3 + $0x118] sm:$0xff]
        %v6133 = vld [vmem:[#allocation3 + $0x120] sm:$0xff]
        %v6134 = vld [vmem:[#allocation3 + $0x128] sm:$0xff]
        %v6135 = vld [vmem:[#allocation3 + $0x130] sm:$0xff]
        %v6136 = vld [vmem:[#allocation3 + $0x138] sm:$0xff]
        %v6137 = vld [vmem:[#allocation3 + $0x140] sm:$0xff]
        %v6138 = vld [vmem:[#allocation3 + $0x148] sm:$0xff]
        %v6139 = vld [vmem:[#allocation3 + $0x150] sm:$0xff]
        %v6140 = vld [vmem:[#allocation3 + $0x158] sm:$0xff]
        %v6141 = vld [vmem:[#allocation3 + $0x160] sm:$0xff]
        %v6142 = vld [vmem:[#allocation3 + $0x168] sm:$0xff]
        %v6143 = vld [vmem:[#allocation3 + $0x170] sm:$0xff]
        %v6144 = vld [vmem:[#allocation3 + $0x178] sm:$0xff]
        %v6145 = vld [vmem:[#allocation3 + $0x180] sm:$0xff]
        %v6146 = vld [vmem:[#allocation3 + $0x188] sm:$0xff]
        %v6147 = vld [vmem:[#allocation3 + $0x190] sm:$0xff]
        %v6148 = vld [vmem:[#allocation3 + $0x198] sm:$0xff]
        %v6149 = vld [vmem:[#allocation3 + $0x1a0] sm:$0xff]
        %v6150 = vld [vmem:[#allocation3 + $0x1a8] sm:$0xff]
        %v6151 = vld [vmem:[#allocation3 + $0x1b0] sm:$0xff]
        %v6152 = vld [vmem:[#allocation3 + $0x1b8] sm:$0xff]
        %v6153 = vld [vmem:[#allocation3 + $0x1c0] sm:$0xff]
        %v6154 = vld [vmem:[#allocation3 + $0x1c8] sm:$0xff]
        %v6155 = vld [vmem:[#allocation3 + $0x1d0] sm:$0xff]
        %v6156 = vld [vmem:[#allocation3 + $0x1d8] sm:$0xff]
        %v6157 = vld [vmem:[#allocation3 + $0x1e0] sm:$0xff]
        %v6158 = vld [vmem:[#allocation3 + $0x1e8] sm:$0xff]
        %v6159 = vld [vmem:[#allocation3 + $0x1f0] sm:$0xff]
        %v6160 = vld [vmem:[#allocation3 + $0x1f8] sm:$0xff]
        %v6161 = vld [vmem:[#allocation3 + $0x200] sm:$0xff]
        %v6162 = vld [vmem:[#allocation3 + $0x208] sm:$0xff]
        %v6163 = vld [vmem:[#allocation3 + $0x210] sm:$0xff]
        %v6164 = vld [vmem:[#allocation3 + $0x218] sm:$0xff]
        %v6165 = vld [vmem:[#allocation3 + $0x220] sm:$0xff]
        %v6166 = vld [vmem:[#allocation3 + $0x228] sm:$0xff]
        %v6167 = vld [vmem:[#allocation3 + $0x230] sm:$0xff]
        %v6168 = vld [vmem:[#allocation3 + $0x238] sm:$0xff]
        %v6169 = vld [vmem:[#allocation3 + $0x240] sm:$0xff]
        %v6170 = vld [vmem:[#allocation3 + $0x248] sm:$0xff]
        %v6171 = vld [vmem:[#allocation3 + $0x250] sm:$0xff]
        %v6172 = vld [vmem:[#allocation3 + $0x258] sm:$0xff]
        %v6173 = vld [vmem:[#allocation3 + $0x260] sm:$0xff]
        %v6174 = vld [vmem:[#allocation3 + $0x268] sm:$0xff]
        %v6175 = vld [vmem:[#allocation3 + $0x270] sm:$0xff]
        %v6176 = vld [vmem:[#allocation3 + $0x278] sm:$0xff]
        %v6177 = vld [vmem:[#allocation3 + $0x280] sm:$0xff]
        %v6178 = vld [vmem:[#allocation3 + $0x288] sm:$0xff]
        %v6179 = vld [vmem:[#allocation3 + $0x290] sm:$0xff]
        %v6180 = vld [vmem:[#allocation3 + $0x298] sm:$0xff]
        %v6181 = vld [vmem:[#allocation3 + $0x2a0] sm:$0xff]
        %v6182 = vld [vmem:[#allocation3 + $0x2a8] sm:$0xff]
        %v6183 = vld [vmem:[#allocation3 + $0x2b0] sm:$0xff]
        %v6184 = vld [vmem:[#allocation3 + $0x2b8] sm:$0xff]
        %v6185 = vld [vmem:[#allocation3 + $0x2c0] sm:$0xff]
        %v6186 = vld [vmem:[#allocation3 + $0x2c8] sm:$0xff]
        %v6187 = vld [vmem:[#allocation3 + $0x2d0] sm:$0xff]
        %v6188 = vld [vmem:[#allocation3 + $0x2d8] sm:$0xff]
        %v6189 = vld [vmem:[#allocation3 + $0x2e0] sm:$0xff]
        %v6190 = vld [vmem:[#allocation3 + $0x2e8] sm:$0xff]
        %v6191 = vld [vmem:[#allocation3 + $0x2f0] sm:$0xff]
        %v6192 = vld [vmem:[#allocation3 + $0x2f8] sm:$0xff]
        %v6193 = vld [vmem:[#allocation3 + $0x300] sm:$0xff]
        %v6194 = vld [vmem:[#allocation3 + $0x308] sm:$0xff]
        %v6195 = vld [vmem:[#allocation3 + $0x310] sm:$0xff]
        %v6196 = vld [vmem:[#allocation3 + $0x318] sm:$0xff]
        %v6197 = vld [vmem:[#allocation3 + $0x320] sm:$0xff]
        %v6198 = vld [vmem:[#allocation3 + $0x328] sm:$0xff]
        %v6199 = vld [vmem:[#allocation3 + $0x330] sm:$0xff]
        %v6200 = vld [vmem:[#allocation3 + $0x338] sm:$0xff]
        %v6201 = vld [vmem:[#allocation3 + $0x340] sm:$0xff]
        %v6202 = vld [vmem:[#allocation3 + $0x348] sm:$0xff]
        %v6203 = vld [vmem:[#allocation3 + $0x350] sm:$0xff]
        %v6204 = vld [vmem:[#allocation3 + $0x358] sm:$0xff]
        %v6205 = vld [vmem:[#allocation3 + $0x360] sm:$0xff]
        %v6206 = vld [vmem:[#allocation3 + $0x368] sm:$0xff]
        %v6207 = vld [vmem:[#allocation3 + $0x370] sm:$0xff]
        %v6208 = vld [vmem:[#allocation3 + $0x378] sm:$0xff]
        %v6209 = vld [vmem:[#allocation3 + $0x380] sm:$0xff]
        %v6210 = vld [vmem:[#allocation3 + $0x388] sm:$0xff]
        %v6211 = vld [vmem:[#allocation3 + $0x390] sm:$0xff]
        %v6212 = vld [vmem:[#allocation3 + $0x398] sm:$0xff]
        %v6213 = vld [vmem:[#allocation3 + $0x3a0] sm:$0xff]
        %v6214 = vld [vmem:[#allocation3 + $0x3a8] sm:$0xff]
        %v6215 = vld [vmem:[#allocation3 + $0x3b0] sm:$0xff]
        %v6216 = vld [vmem:[#allocation3 + $0x3b8] sm:$0xff]
        %v6217 = vld [vmem:[#allocation3 + $0x3c0] sm:$0xff]
        %v6218 = vld [vmem:[#allocation3 + $0x3c8] sm:$0xff]
        %v6219 = vld [vmem:[#allocation3 + $0x3d0] sm:$0xff]
        %v6220 = vld [vmem:[#allocation3 + $0x3d8] sm:$0xff]
        %v6221 = vld [vmem:[#allocation3 + $0x3e0] sm:$0xff]
        %v6222 = vld [vmem:[#allocation3 + $0x3e8] sm:$0xff]
        %v6223 = vld [vmem:[#allocation3 + $0x3f0] sm:$0xff]
        %v6224 = vld [vmem:[#allocation3 + $0x3f8] sm:$0xff]
        %v6225 = vld [vmem:[#allocation3 + $0x400] sm:$0xff]
        %v6226 = vld [vmem:[#allocation3 + $0x408] sm:$0xff]
        %v6227 = vld [vmem:[#allocation3 + $0x410] sm:$0xff]
        %v6228 = vld [vmem:[#allocation3 + $0x418] sm:$0xff]
        %v6229 = vld [vmem:[#allocation3 + $0x420] sm:$0xff]
        %v6230 = vld [vmem:[#allocation3 + $0x428] sm:$0xff]
        %v6231 = vld [vmem:[#allocation3 + $0x430] sm:$0xff]
        %v6232 = vld [vmem:[#allocation3 + $0x438] sm:$0xff]
        %v6233 = vld [vmem:[#allocation3 + $0x440] sm:$0xff]
        %v6234 = vld [vmem:[#allocation3 + $0x448] sm:$0xff]
        %v6235 = vld [vmem:[#allocation3 + $0x450] sm:$0xff]
        %v6236 = vld [vmem:[#allocation3 + $0x458] sm:$0xff]
        %v6237 = vld [vmem:[#allocation3 + $0x460] sm:$0xff]
        %v6238 = vld [vmem:[#allocation3 + $0x468] sm:$0xff]
        %v6239 = vld [vmem:[#allocation3 + $0x470] sm:$0xff]
        %v6240 = vld [vmem:[#allocation3 + $0x478] sm:$0xff]
        %v6241 = vld [vmem:[#allocation3 + $0x480] sm:$0xff]
        %v6242 = vld [vmem:[#allocation3 + $0x488] sm:$0xff]
        %v6243 = vld [vmem:[#allocation3 + $0x490] sm:$0xff]
        %v6244 = vld [vmem:[#allocation3 + $0x498] sm:$0xff]
        %v6245 = vld [vmem:[#allocation3 + $0x4a0] sm:$0xff]
        %v6246 = vld [vmem:[#allocation3 + $0x4a8] sm:$0xff]
        %v6247 = vld [vmem:[#allocation3 + $0x4b0] sm:$0xff]
        %v6248 = vld [vmem:[#allocation3 + $0x4b8] sm:$0xff]
        %v6249 = vld [vmem:[#allocation3 + $0x4c0] sm:$0xff]
        %v6250 = vld [vmem:[#allocation3 + $0x4c8] sm:$0xff]
        %v6251 = vld [vmem:[#allocation3 + $0x4d0] sm:$0xff]
        %v6252 = vld [vmem:[#allocation3 + $0x4d8] sm:$0xff]
        %v6253 = vld [vmem:[#allocation3 + $0x4e0] sm:$0xff]
        %v6254 = vld [vmem:[#allocation3 + $0x4e8] sm:$0xff]
        %v6255 = vld [vmem:[#allocation3 + $0x4f0] sm:$0xff]
        %v6256 = vld [vmem:[#allocation3 + $0x4f8] sm:$0xff]
        %v6257 = vld [vmem:[#allocation3 + $0x500] sm:$0xff]
        %v6258 = vld [vmem:[#allocation3 + $0x508] sm:$0xff]
        %v6259 = vld [vmem:[#allocation3 + $0x510] sm:$0xff]
        %v6260 = vld [vmem:[#allocation3 + $0x518] sm:$0xff]
        %v6261 = vld [vmem:[#allocation3 + $0x520] sm:$0xff]
        %v6262 = vld [vmem:[#allocation3 + $0x528] sm:$0xff]
        %v6263 = vld [vmem:[#allocation3 + $0x530] sm:$0xff]
        %v6264 = vld [vmem:[#allocation3 + $0x538] sm:$0xff]
        %v6265 = vld [vmem:[#allocation3 + $0x540] sm:$0xff]
        %v6266 = vld [vmem:[#allocation3 + $0x548] sm:$0xff]
        %v6267 = vld [vmem:[#allocation3 + $0x550] sm:$0xff]
        %v6268 = vld [vmem:[#allocation3 + $0x558] sm:$0xff]
        %v6269 = vld [vmem:[#allocation3 + $0x560] sm:$0xff]
        %v6270 = vld [vmem:[#allocation3 + $0x568] sm:$0xff]
        %v6271 = vld [vmem:[#allocation3 + $0x570] sm:$0xff]
        %v6272 = vld [vmem:[#allocation3 + $0x578] sm:$0xff]
        %v6273 = vld [vmem:[#allocation3 + $0x580] sm:$0xff]
        %v6274 = vld [vmem:[#allocation3 + $0x588] sm:$0xff]
        %v6275 = vld [vmem:[#allocation3 + $0x590] sm:$0xff]
        %v6276 = vld [vmem:[#allocation3 + $0x598] sm:$0xff]
        %v6277 = vld [vmem:[#allocation3 + $0x5a0] sm:$0xff]
        %v6278 = vld [vmem:[#allocation3 + $0x5a8] sm:$0xff]
        %v6279 = vld [vmem:[#allocation3 + $0x5b0] sm:$0xff]
        %v6280 = vld [vmem:[#allocation3 + $0x5b8] sm:$0xff]
        %v6281 = vld [vmem:[#allocation3 + $0x5c0] sm:$0xff]
        %v6282 = vld [vmem:[#allocation3 + $0x5c8] sm:$0xff]
        %v6283 = vld [vmem:[#allocation3 + $0x5d0] sm:$0xff]
        %v6284 = vld [vmem:[#allocation3 + $0x5d8] sm:$0xff]
        %v6285 = vld [vmem:[#allocation3 + $0x5e0] sm:$0xff]
        %v6286 = vld [vmem:[#allocation3 + $0x5e8] sm:$0xff]
        %v6287 = vld [vmem:[#allocation3 + $0x5f0] sm:$0xff]
        %v6288 = vld [vmem:[#allocation3 + $0x5f8] sm:$0xff]
        %v6289 = vld [vmem:[#allocation3 + $0x600] sm:$0xff]
        %v6290 = vld [vmem:[#allocation3 + $0x608] sm:$0xff]
        %v6291 = vld [vmem:[#allocation3 + $0x610] sm:$0xff]
        %v6292 = vld [vmem:[#allocation3 + $0x618] sm:$0xff]
        %v6293 = vld [vmem:[#allocation3 + $0x620] sm:$0xff]
        %v6294 = vld [vmem:[#allocation3 + $0x628] sm:$0xff]
        %v6295 = vld [vmem:[#allocation3 + $0x630] sm:$0xff]
        %v6296 = vld [vmem:[#allocation3 + $0x638] sm:$0xff]
        %v6297 = vld [vmem:[#allocation3 + $0x640] sm:$0xff]
        %v6298 = vld [vmem:[#allocation3 + $0x648] sm:$0xff]
        %v6299 = vld [vmem:[#allocation3 + $0x650] sm:$0xff]
        %v6300 = vld [vmem:[#allocation3 + $0x658] sm:$0xff]
        %v6301 = vld [vmem:[#allocation3 + $0x660] sm:$0xff]
        %v6302 = vld [vmem:[#allocation3 + $0x668] sm:$0xff]
        %v6303 = vld [vmem:[#allocation3 + $0x670] sm:$0xff]
        %v6304 = vld [vmem:[#allocation3 + $0x678] sm:$0xff]
        %v6305 = vld [vmem:[#allocation3 + $0x680] sm:$0xff]
        %v6306 = vld [vmem:[#allocation3 + $0x688] sm:$0xff]
        %v6307 = vld [vmem:[#allocation3 + $0x690] sm:$0xff]
        %v6308 = vld [vmem:[#allocation3 + $0x698] sm:$0xff]
        %v6309 = vld [vmem:[#allocation3 + $0x6a0] sm:$0xff]
        %v6310 = vld [vmem:[#allocation3 + $0x6a8] sm:$0xff]
        %v6311 = vld [vmem:[#allocation3 + $0x6b0] sm:$0xff]
        %v6312 = vld [vmem:[#allocation3 + $0x6b8] sm:$0xff]
        %v6313 = vld [vmem:[%s6] sm:$0xff]
        %6315 = vset.pattern.permute.xlu0 0
        %6316 = vperm.xlu0 %6315, %v6313
        %v6317 = vpop.permute.xlu0 %6316
        %v6320 = vsel %vm4275, %v6096, 0
        %6322 = vmatprep.subr.mxu0 %v6218
        %6323 = vmatpush1.msra.mxu0 %v6217
        %6324 = vmatprep.subr.mxu0 %v6210
        %6325 = vmatpush1.msra.mxu0 %v6209
        %6326 = vmatprep.subr.mxu0 %v6202
        %6327 = vmatpush1.msra.mxu0 %v6201
        %6328 = vmatprep.subr.mxu0 %v6194
        %6329 = vmatpush1.msra.mxu0 %v6193
        %6330 = vmatprep.subr.mxu0 %v6186
        %6331 = vmatpush1.msra.mxu0 %v6185
        %6332 = vmatprep.subr.mxu0 %v6178
        %6333 = vmatpush1.msra.mxu0 %v6177
        %6334 = vmatprep.subr.mxu0 %v6170
        %6335 = vmatpush1.msra.mxu0 %v6169
        %6336 = vmatprep.subr.mxu0 %v6162
        %6337 = vmatpush1.msra.mxu0 %v6161
        %6338 = vmatprep.subr.mxu0 %v6154
        %6339 = vmatpush1.msra.mxu0 %v6153
        %6340 = vmatprep.subr.mxu0 %v6146
        %6341 = vmatpush1.msra.mxu0 %v6145
        %6342 = vmatprep.subr.mxu0 %v6138
        %6343 = vmatpush1.msra.mxu0 %v6137
        %6344 = vmatprep.subr.mxu0 %v6130
        %6345 = vmatpush1.msra.mxu0 %v6129
        %6346 = vmatprep.subr.mxu0 %v6122
        %6347 = vmatpush1.msra.mxu0 %v6121
        %6348 = vmatprep.subr.mxu0 %v6114
        %6349 = vmatpush1.msra.mxu0 %v6113
        %6350 = vmatprep.subr.mxu0 %v6106
        %6351 = vmatpush1.msra.mxu0 %v6105
        %6352 = vmatprep.subr.mxu0 %v6098
        %6353 = vmatpush1.msra.mxu0 %v6097
        %6354 = vmatprep.subr.mxu0 0.0
        %6355 = vmatpush2.msra.mxu0 0.0
        %6356 = vmatprep.subr.mxu0 0.0
        %6357 = vmatpush2.msra.mxu0 0.0
        %6358 = vmatprep.subr.mxu0 0.0
        %6359 = vmatpush2.msra.mxu0 0.0
        %6360 = vmatprep.subr.mxu0 0.0
        %6361 = vmatpush2.msra.mxu0 0.0
        %6362 = vmatprep.subr.mxu0 0.0
        %6363 = vmatpush2.msra.mxu0 0.0
        %6364 = vmatprep.subr.mxu0 %v6306
        %6365 = vmatpush2.msra.mxu0 %v6305
        %6366 = vmatprep.subr.mxu0 %v6298
        %6367 = vmatpush2.msra.mxu0 %v6297
        %6368 = vmatprep.subr.mxu0 %v6290
        %6369 = vmatpush2.msra.mxu0 %v6289
        %6370 = vmatprep.subr.mxu0 %v6282
        %6371 = vmatpush2.msra.mxu0 %v6281
        %6372 = vmatprep.subr.mxu0 %v6274
        %6373 = vmatpush2.msra.mxu0 %v6273
        %6374 = vmatprep.subr.mxu0 %v6266
        %6375 = vmatpush2.msra.mxu0 %v6265
        %6376 = vmatprep.subr.mxu0 %v6258
        %6377 = vmatpush2.msra.mxu0 %v6257
        %6378 = vmatprep.subr.mxu0 %v6250
        %6379 = vmatpush2.msra.mxu0 %v6249
        %6380 = vmatprep.subr.mxu0 %v6242
        %6381 = vmatpush2.msra.mxu0 %v6241
        %6382 = vmatprep.subr.mxu0 %v6234
        %6383 = vmatpush2.msra.mxu0 %v6233
        %6384 = vmatprep.subr.mxu0 %v6226
        %6385 = vmatpush2.msra.mxu0 %v6225
        %6386 = vmatprep.mubr.f32.mxu0 %v6320
        %6387 = vmatmul.mubr.f32.gmra.mxu0 %v6095
        %v6388 = vpop.f32.mrf.mxu0
        %v6389 = vadd.f32 %v6317, %v6388
        %v6390 = vpop.f32.mrf.mxu0
        %v6391 = vadd.f32 %v6317, %v6390
        %6392 = vdwg.mxu0
        %6393 = vmatprep.subr.mxu0 %v6220
        %6394 = vmatpush1.msra.mxu0 %v6219
        %6395 = vmatprep.subr.mxu0 %v6212
        %6396 = vmatpush1.msra.mxu0 %v6211
        %6397 = vmatprep.subr.mxu0 %v6204
        %6398 = vmatpush1.msra.mxu0 %v6203
        %6399 = vmatprep.subr.mxu0 %v6196
        %6400 = vmatpush1.msra.mxu0 %v6195
        %6401 = vmatprep.subr.mxu0 %v6188
        %6402 = vmatpush1.msra.mxu0 %v6187
        %6403 = vmatprep.subr.mxu0 %v6180
        %6404 = vmatpush1.msra.mxu0 %v6179
        %6405 = vmatprep.subr.mxu0 %v6172
        %6406 = vmatpush1.msra.mxu0 %v6171
        %6407 = vmatprep.subr.mxu0 %v6164
        %6408 = vmatpush1.msra.mxu0 %v6163
        %6409 = vmatprep.subr.mxu0 %v6156
        %6410 = vmatpush1.msra.mxu0 %v6155
        %6411 = vmatprep.subr.mxu0 %v6148
        %6412 = vmatpush1.msra.mxu0 %v6147
        %6413 = vmatprep.subr.mxu0 %v6140
        %6414 = vmatpush1.msra.mxu0 %v6139
        %6415 = vmatprep.subr.mxu0 %v6132
        %6416 = vmatpush1.msra.mxu0 %v6131
        %6417 = vmatprep.subr.mxu0 %v6124
        %6418 = vmatpush1.msra.mxu0 %v6123
        %6419 = vmatprep.subr.mxu0 %v6116
        %6420 = vmatpush1.msra.mxu0 %v6115
        %6421 = vmatprep.subr.mxu0 %v6108
        %6422 = vmatpush1.msra.mxu0 %v6107
        %6423 = vmatprep.subr.mxu0 %v6100
        %6424 = vmatpush1.msra.mxu0 %v6099
        %6425 = vmatprep.subr.mxu0 0.0
        %6426 = vmatpush2.msra.mxu0 0.0
        %6427 = vmatprep.subr.mxu0 0.0
        %6428 = vmatpush2.msra.mxu0 0.0
        %6429 = vmatprep.subr.mxu0 0.0
        %6430 = vmatpush2.msra.mxu0 0.0
        %6431 = vmatprep.subr.mxu0 0.0
        %6432 = vmatpush2.msra.mxu0 0.0
        %6433 = vmatprep.subr.mxu0 0.0
        %6434 = vmatpush2.msra.mxu0 0.0
        %6435 = vmatprep.subr.mxu0 %v6308
        %6436 = vmatpush2.msra.mxu0 %v6307
        %6437 = vmatprep.subr.mxu0 %v6300
        %6438 = vmatpush2.msra.mxu0 %v6299
        %6439 = vmatprep.subr.mxu0 %v6292
        %6440 = vmatpush2.msra.mxu0 %v6291
        %6441 = vmatprep.subr.mxu0 %v6284
        %6442 = vmatpush2.msra.mxu0 %v6283
        %6443 = vmatprep.subr.mxu0 %v6276
        %6444 = vmatpush2.msra.mxu0 %v6275
        %6445 = vmatprep.subr.mxu0 %v6268
        %6446 = vmatpush2.msra.mxu0 %v6267
        %6447 = vmatprep.subr.mxu0 %v6260
        %6448 = vmatpush2.msra.mxu0 %v6259
        %6449 = vmatprep.subr.mxu0 %v6252
        %6450 = vmatpush2.msra.mxu0 %v6251
        %6451 = vmatprep.subr.mxu0 %v6244
        %6452 = vmatpush2.msra.mxu0 %v6243
        %6453 = vmatprep.subr.mxu0 %v6236
        %6454 = vmatpush2.msra.mxu0 %v6235
        %6455 = vmatprep.subr.mxu0 %v6228
        %6456 = vmatpush2.msra.mxu0 %v6227
        %6457 = vmatprep.mubr.f32.mxu0 %v6320
        %6458 = vmatmul.mubr.f32.gmra.mxu0 %v6095
        %v6459 = vpop.f32.mrf.mxu0
        %v6460 = vadd.f32 %v6317, %v6459
        %v6461 = vpop.f32.mrf.mxu0
        %v6462 = vadd.f32 %v6317, %v6461
        %6463 = vdwg.mxu0
        %6464 = vmatprep.subr.mxu0 %v6222
        %6465 = vmatpush1.msra.mxu0 %v6221
        %6466 = vmatprep.subr.mxu0 %v6214
        %6467 = vmatpush1.msra.mxu0 %v6213
        %6468 = vmatprep.subr.mxu0 %v6206
        %6469 = vmatpush1.msra.mxu0 %v6205
        %6470 = vmatprep.subr.mxu0 %v6198
        %6471 = vmatpush1.msra.mxu0 %v6197
        %6472 = vmatprep.subr.mxu0 %v6190
        %6473 = vmatpush1.msra.mxu0 %v6189
        %6474 = vmatprep.subr.mxu0 %v6182
        %6475 = vmatpush1.msra.mxu0 %v6181
        %6476 = vmatprep.subr.mxu0 %v6174
        %6477 = vmatpush1.msra.mxu0 %v6173
        %6478 = vmatprep.subr.mxu0 %v6166
        %6479 = vmatpush1.msra.mxu0 %v6165
        %6480 = vmatprep.subr.mxu0 %v6158
        %6481 = vmatpush1.msra.mxu0 %v6157
        %6482 = vmatprep.subr.mxu0 %v6150
        %6483 = vmatpush1.msra.mxu0 %v6149
        %6484 = vmatprep.subr.mxu0 %v6142
        %6485 = vmatpush1.msra.mxu0 %v6141
        %6486 = vmatprep.subr.mxu0 %v6134
        %6487 = vmatpush1.msra.mxu0 %v6133
        %6488 = vmatprep.subr.mxu0 %v6126
        %6489 = vmatpush1.msra.mxu0 %v6125
        %6490 = vmatprep.subr.mxu0 %v6118
        %6491 = vmatpush1.msra.mxu0 %v6117
        %6492 = vmatprep.subr.mxu0 %v6110
        %6493 = vmatpush1.msra.mxu0 %v6109
        %6494 = vmatprep.subr.mxu0 %v6102
        %6495 = vmatpush1.msra.mxu0 %v6101
        %6496 = vmatprep.subr.mxu0 0.0
        %6497 = vmatpush2.msra.mxu0 0.0
        %6498 = vmatprep.subr.mxu0 0.0
        %6499 = vmatpush2.msra.mxu0 0.0
        %6500 = vmatprep.subr.mxu0 0.0
        %6501 = vmatpush2.msra.mxu0 0.0
        %6502 = vmatprep.subr.mxu0 0.0
        %6503 = vmatpush2.msra.mxu0 0.0
        %6504 = vmatprep.subr.mxu0 0.0
        %6505 = vmatpush2.msra.mxu0 0.0
        %6506 = vmatprep.subr.mxu0 %v6310
        %6507 = vmatpush2.msra.mxu0 %v6309
        %6508 = vmatprep.subr.mxu0 %v6302
        %6509 = vmatpush2.msra.mxu0 %v6301
        %6510 = vmatprep.subr.mxu0 %v6294
        %6511 = vmatpush2.msra.mxu0 %v6293
        %6512 = vmatprep.subr.mxu0 %v6286
        %6513 = vmatpush2.msra.mxu0 %v6285
        %6514 = vmatprep.subr.mxu0 %v6278
        %6515 = vmatpush2.msra.mxu0 %v6277
        %6516 = vmatprep.subr.mxu0 %v6270
        %6517 = vmatpush2.msra.mxu0 %v6269
        %6518 = vmatprep.subr.mxu0 %v6262
        %6519 = vmatpush2.msra.mxu0 %v6261
        %6520 = vmatprep.subr.mxu0 %v6254
        %6521 = vmatpush2.msra.mxu0 %v6253
        %6522 = vmatprep.subr.mxu0 %v6246
        %6523 = vmatpush2.msra.mxu0 %v6245
        %6524 = vmatprep.subr.mxu0 %v6238
        %6525 = vmatpush2.msra.mxu0 %v6237
        %6526 = vmatprep.subr.mxu0 %v6230
        %6527 = vmatpush2.msra.mxu0 %v6229
        %6528 = vmatprep.mubr.f32.mxu0 %v6320
        %6529 = vmatmul.mubr.f32.gmra.mxu0 %v6095
        %v6530 = vpop.f32.mrf.mxu0
        %v6531 = vadd.f32 %v6317, %v6530
        %v6532 = vpop.f32.mrf.mxu0
        %v6533 = vadd.f32 %v6317, %v6532
        %6534 = vdwg.mxu0
        %6535 = vmatprep.subr.mxu0 %v6224
        %6536 = vmatpush1.msra.mxu0 %v6223
        %6537 = vmatprep.subr.mxu0 %v6216
        %6538 = vmatpush1.msra.mxu0 %v6215
        %6539 = vmatprep.subr.mxu0 %v6208
        %6540 = vmatpush1.msra.mxu0 %v6207
        %6541 = vmatprep.subr.mxu0 %v6200
        %6542 = vmatpush1.msra.mxu0 %v6199
        %6543 = vmatprep.subr.mxu0 %v6192
        %6544 = vmatpush1.msra.mxu0 %v6191
        %6545 = vmatprep.subr.mxu0 %v6184
        %6546 = vmatpush1.msra.mxu0 %v6183
        %6547 = vmatprep.subr.mxu0 %v6176
        %6548 = vmatpush1.msra.mxu0 %v6175
        %6549 = vmatprep.subr.mxu0 %v6168
        %6550 = vmatpush1.msra.mxu0 %v6167
        %6551 = vmatprep.subr.mxu0 %v6160
        %6552 = vmatpush1.msra.mxu0 %v6159
        %6553 = vmatprep.subr.mxu0 %v6152
        %6554 = vmatpush1.msra.mxu0 %v6151
        %6555 = vmatprep.subr.mxu0 %v6144
        %6556 = vmatpush1.msra.mxu0 %v6143
        %6557 = vmatprep.subr.mxu0 %v6136
        %6558 = vmatpush1.msra.mxu0 %v6135
        %6559 = vmatprep.subr.mxu0 %v6128
        %6560 = vmatpush1.msra.mxu0 %v6127
        %6561 = vmatprep.subr.mxu0 %v6120
        %6562 = vmatpush1.msra.mxu0 %v6119
        %6563 = vmatprep.subr.mxu0 %v6112
        %6564 = vmatpush1.msra.mxu0 %v6111
        %6565 = vmatprep.subr.mxu0 %v6104
        %6566 = vmatpush1.msra.mxu0 %v6103
        %6567 = vmatprep.subr.mxu0 0.0
        %6568 = vmatpush2.msra.mxu0 0.0
        %6569 = vmatprep.subr.mxu0 0.0
        %6570 = vmatpush2.msra.mxu0 0.0
        %6571 = vmatprep.subr.mxu0 0.0
        %6572 = vmatpush2.msra.mxu0 0.0
        %6573 = vmatprep.subr.mxu0 0.0
        %6574 = vmatpush2.msra.mxu0 0.0
        %6575 = vmatprep.subr.mxu0 0.0
        %6576 = vmatpush2.msra.mxu0 0.0
        %6577 = vmatprep.subr.mxu0 %v6312
        %6578 = vmatpush2.msra.mxu0 %v6311
        %6579 = vmatprep.subr.mxu0 %v6304
        %6580 = vmatpush2.msra.mxu0 %v6303
        %6581 = vmatprep.subr.mxu0 %v6296
        %6582 = vmatpush2.msra.mxu0 %v6295
        %6583 = vmatprep.subr.mxu0 %v6288
        %6584 = vmatpush2.msra.mxu0 %v6287
        %6585 = vmatprep.subr.mxu0 %v6280
        %6586 = vmatpush2.msra.mxu0 %v6279
        %6587 = vmatprep.subr.mxu0 %v6272
        %6588 = vmatpush2.msra.mxu0 %v6271
        %6589 = vmatprep.subr.mxu0 %v6264
        %6590 = vmatpush2.msra.mxu0 %v6263
        %6591 = vmatprep.subr.mxu0 %v6256
        %6592 = vmatpush2.msra.mxu0 %v6255
        %6593 = vmatprep.subr.mxu0 %v6248
        %6594 = vmatpush2.msra.mxu0 %v6247
        %6595 = vmatprep.subr.mxu0 %v6240
        %6596 = vmatpush2.msra.mxu0 %v6239
        %6597 = vmatprep.subr.mxu0 %v6232
        %6598 = vmatpush2.msra.mxu0 %v6231
        %6599 = vmatprep.mubr.f32.mxu0 %v6320
        %6600 = vmatmul.mubr.f32.gmra.mxu0 %v6095
        %v6601 = vpop.f32.mrf.mxu0
        %v6602 = vadd.f32 %v6317, %v6601
        %v6603 = vpop.f32.mrf.mxu0
        %v6604 = vadd.f32 %v6317, %v6603
        %6605 = vdwg.mxu0
        %v6606 = vadd.f32 %v6389, %v349
        %v6607 = vadd.f32 %v6391, %v350
        %v6608 = vadd.f32 %v6460, %v351
        %v6609 = vadd.f32 %v6462, %v352
        %v6610 = vadd.f32 %v6531, %v353
        %v6611 = vadd.f32 %v6533, %v354
        %v6612 = vadd.f32 %v6602, %v355
        %v6613 = vadd.f32 %v6604, %v356
        %vm6614 = vcmp.gt.f32.partialorder %v6606, 0.0
        %vm6615 = vcmp.gt.f32.partialorder %v6607, 0.0
        %vm6616 = vcmp.gt.f32.partialorder %v6608, 0.0
        %vm6617 = vcmp.gt.f32.partialorder %v6609, 0.0
        %vm6618 = vcmp.gt.f32.partialorder %v6610, 0.0
        %vm6619 = vcmp.gt.f32.partialorder %v6611, 0.0
        %vm6620 = vcmp.gt.f32.partialorder %v6612, 0.0
        %vm6621 = vcmp.gt.f32.partialorder %v6613, 0.0
        %v6622 = vmul.f32 %v6606, 0.3
        %v6623 = vmul.f32 %v6607, 0.3
        %v6624 = vmul.f32 %v6608, 0.3
        %v6625 = vmul.f32 %v6609, 0.3
        %v6626 = vmul.f32 %v6610, 0.3
        %v6627 = vmul.f32 %v6611, 0.3
        %v6628 = vmul.f32 %v6612, 0.3
        %v6629 = vmul.f32 %v6613, 0.3
        %v6630 = vsel %vm6614, %v6606, %v6622
        %v6631 = vsel %vm6615, %v6607, %v6623
        %v6632 = vsel %vm6616, %v6608, %v6624
        %v6633 = vsel %vm6617, %v6609, %v6625
        %v6634 = vsel %vm6618, %v6610, %v6626
        %v6635 = vsel %vm6619, %v6611, %v6627
        %v6636 = vsel %vm6620, %v6612, %v6628
        %v6637 = vsel %vm6621, %v6613, %v6629
        %6638 = vst [vmem:[%s348] sm:$0xff] %v6630
        %6639 = vst [vmem:[%s348 + $0x8] sm:$0xff] %v6631
        %6640 = vst [vmem:[%s348 + $0x10] sm:$0xff] %v6632
        %6641 = vst [vmem:[%s348 + $0x18] sm:$0xff] %v6633
        %6642 = vst [vmem:[%s348 + $0x20] sm:$0xff] %v6634
        %6643 = vst [vmem:[%s348 + $0x28] sm:$0xff] %v6635
        %6644 = vst [vmem:[%s348 + $0x30] sm:$0xff] %v6636
        %6645 = vst [vmem:[%s348 + $0x38] sm:$0xff] %v6637
        %s6646 = sand.u32 %s207, 1
        %s6647 = scalar_lea.sflag [#allocation6], %s6646
        %s6648 = sand.u32 %s207, 1
        %s6649 = smul.addr %s6648, 64
        %s6650 = scalar_lea.vmem [#allocation10], %s6649
        // Predicated region
        $region65: #{tpu_custom_call.1} parent=51 // pred_check
          %p6651 = pneg %p217
        $region66: #{tpu_custom_call.1} parent=51 // pred_check_branch
          %6653 = sbr.rel (%p6651) target = $region68
        $region67: #{tpu_custom_call.1} parent=51 // pred_region
          %s6655 = ssub.s32 1024, 1024
          %6656 = vsyncadd %s6647, %s6655
          %s6657 = smul.addr %s26, 8
          %s6658 = smul.addr %s6657, 128
          %s6659 = scalar_lea.hbm %s8, %s6658
          %s6661 = sshll.u32 %s6650, 4
          %s6662 = int_to_ptr.vmem [resolvable:$true] %s6661
          %6664 = dma.vmem_to_hbm [thread:$0]  %s6662, 1024, %s6659, %s6647
        $region68: #{tpu_custom_call.1} parent=51 // pred_fallthru
          _
      $region52: #{tpu_custom_call.1} parent=5 // pred_fallthru
        _
      %p6665 = scmp.le.s32.totalorder 2, %s21
      // Predicated region
      $region69: #{tpu_custom_call.1} parent=5 // pred_check
        %p6666 = pneg %p6665
      $region70: #{tpu_custom_call.1} parent=5 // pred_check_branch
        %6668 = sbr.rel (%p6666) target = $region72
      $region71: #{tpu_custom_call.1} parent=5 // pred_region
        %s6669 = ssub.s32 %s21, 2
        // Predicated region
        $region73: #{tpu_custom_call.1} parent=71 // pred_check
          %p6670 = pneg %p223
        $region74: #{tpu_custom_call.1} parent=71 // pred_check_branch
          %6672 = sbr.rel (%p6670) target = $region76
        $region75: #{tpu_custom_call.1} parent=71 // pred_region
          %s6673 = sand.u32 %s208, 1
          %s6674 = scalar_lea.sflag [#allocation6], %s6673
          %s6675 = sand.u32 %s208, 1
          %s6676 = smul.addr %s6675, 64
          %s6677 = scalar_lea.vmem [#allocation10], %s6676
          %6678 = dma.done %s6674, 1024
        $region76: #{tpu_custom_call.1} parent=71 // pred_fallthru
          _
      $region72: #{tpu_custom_call.1} parent=5 // pred_fallthru
        _
    $region6: #{tpu_custom_call.1} parent=1 // loop_footer
      %s25 = sadd.s32 1, %s21
    $region7: #{tpu_custom_call.1} parent=1 // loop_footer_branch
      %20 = sbr.rel target = $region3
    $region8: #{tpu_custom_call.1} parent=1 // loop_exit
      _
    %6679 = vsyncpa [#allocation5], 1
    %s6680 = scalar_lea.sflag [#allocation5], 1
    %6681 = vsyncpa %s6680, 1
    %6682 = vsyncpa [#allocation8], 1
    %6683 = vsyncpa [#allocation6], 1
    %s6684 = scalar_lea.sflag [#allocation6], 1
    %6685 = vsyncpa %s6684, 1

</llo_original>
